<compile_context>
chip_gen: v5e
topology: v5e:2x2
jax: 0.10.0
libtpu: 0.0.40
codegen_flags: <defaults>
</compile_context>

<pallas_src>
import functools

import jax
import jax.numpy as jnp
from jax.experimental import pallas as pl
from jax.experimental.pallas import tpu as pltpu

_LANE = 128                  # lanes: polygon pairs per vreg row
_SUB = 8                     # sublanes: rows of pairs per vreg
_CHUNK = _SUB * _LANE        # 1024 polygon pairs per (8,128) working tile
_BLOCK_CHUNKS = 4            # chunks per grid step (4096 pairs / step)


def _gift_wrap(xs, ys, n_out, start=None):
    """Branch-free Jarvis march, vectorized over an (8,128) tile of pairs.

    xs/ys: lists of (8, 128) f32 arrays (one per candidate point).  Returns
    n_out hull vertices in CCW order; once the hull closes the start vertex is
    repeated (zero-length edges are harmless for shoelace / clipping below).
    `start` optionally supplies the precomputed start vertex (lowest y, then
    lowest x) so the scan over candidates can be skipped.
    """
    k_pts = len(xs)
    if start is None:
        sx, sy = xs[0], ys[0]
        for k in range(1, k_pts):
            better = (ys[k] < sy) | ((ys[k] == sy) & (xs[k] < sx))
            sx = jnp.where(better, xs[k], sx)
            sy = jnp.where(better, ys[k], sy)
    else:
        sx, sy = start
    cx, cy = sx, sy
    done = jnp.zeros(sx.shape, dtype=jnp.bool_)
    hx, hy = [], []
    for _ in range(n_out):
        hx.append(cx)
        hy.append(cy)
        # Candidate q starts at point 0; carry (q - c) and |q - c|^2 so the
        # inner loop never re-derives them.  r == 0 equals the initial q and is
        # provably a no-op, so the inner loop starts at 1.
        qx, qy = xs[0], ys[0]
        dqx = qx - cx
        dqy = qy - cy
        dq = dqx * dqx + dqy * dqy
        for r in range(1, k_pts):
            drx = xs[r] - cx
            dry = ys[r] - cy
            dr = drx * drx + dry * dry
            cross = dqx * dry - dqy * drx
            upd = ((dq == 0.0) | (cross < 0.0) |
                   ((cross == 0.0) & (dr > dq))) & (dr > 0.0)
            qx = jnp.where(upd, xs[r], qx)
            qy = jnp.where(upd, ys[r], qy)
            dqx = jnp.where(upd, drx, dqx)
            dqy = jnp.where(upd, dry, dqy)
            dq = jnp.where(upd, dr, dq)
        done = done | ((qx == sx) & (qy == sy))
        cx = jnp.where(done, sx, qx)
        cy = jnp.where(done, sy, qy)
    return hx, hy


def _shoelace_area(hx, hy):
    k = len(hx)
    s = jnp.zeros_like(hx[0])
    for i in range(k):
        j = (i + 1) % k
        s = s + hx[i] * hy[j] - hx[j] * hy[i]
    return 0.5 * jnp.abs(s)


def _edge_data(cxs, cys):
    """Inward normals and offsets of each edge of a CCW convex polygon.

    Hoisted out of _clip_contrib so the 8 clip calls per tile don't recompute
    the per-clip-edge constants.
    """
    m = len(cxs)
    nxs, nys, offs = [], [], []
    for i in range(m):
        j = (i + 1) % m
        ex = cxs[j] - cxs[i]
        ey = cys[j] - cys[i]
        nx = -ey                     # inward normal of a CCW clip polygon
        ny = ex
        nxs.append(nx)
        nys.append(ny)
        offs.append(nx * cxs[i] + ny * cys[i])
    return nxs, nys, offs


def _clip_contrib(px, py, qx, qy, edges, *, drop_coincident):
    """Shoelace line-integral contribution of directed segment p->q clipped to a
    convex CCW polygon (given by precomputed edge normals/offsets) via a
    branch-free Cyrus-Beck clip.

    drop_coincident: on the "target-edge clipped against pred-hull" pass, a
    piece lying exactly on a clip-polygon boundary line with the SAME
    orientation is dropped (already counted once by the other pass); an
    opposite-oriented coincident piece is kept so zero-area touching overlaps
    cancel out.
    """
    nxs, nys, offs = edges
    dx = qx - px
    dy = qy - py
    valid = (dx * dx + dy * dy) > 0.0
    t0 = jnp.zeros_like(px)
    t1 = jnp.ones_like(px)
    for nx, ny, off in zip(nxs, nys, offs):
        denom = nx * dx + ny * dy
        num = off - (nx * px + ny * py)          # constraint: t*denom >= num
        safe = jnp.where(denom == 0.0, jnp.ones_like(denom), denom)
        t_hit = num / safe
        t0 = jnp.where(denom > 0.0, jnp.maximum(t0, t_hit), t0)
        t1 = jnp.where(denom < 0.0, jnp.minimum(t1, t_hit), t1)
        outside_parallel = (denom == 0.0) & (num > 0.0)
        if drop_coincident:
            same_side = (ny * dx - nx * dy) > 0.0
            outside_parallel = outside_parallel | (
                (denom == 0.0) & (num == 0.0) & same_side)
        valid = valid & (~outside_parallel)
    valid = valid & (t0 <= t1)
    ax = px + t0 * dx
    ay = py + t0 * dy
    bx = px + t1 * dx
    by = py + t1 * dy
    contrib = 0.5 * (ax * by - ay * bx)
    return jnp.where(valid, contrib, jnp.zeros_like(contrib))


def _poly_iou_kernel(p_ref, t_ref, o_ref, *, loss_type, n_sub):
    # p_ref / t_ref: (8, n_sub, 8, 128) blocks; leading index 2k / 2k+1 holds
    # x_k / y_k of polygon point k.  o_ref: (n_sub, 8, 128).
    # Process one (8, 128) vreg of 1024 polygon pairs per loop step so every
    # operand is exactly one sublane+lane-dense vreg (no widening, no spills).
    @pl.loop(0, n_sub)
    def _(c):
        px = [p_ref[2 * k, c, :, :] for k in range(4)]
        py = [p_ref[2 * k + 1, c, :, :] for k in range(4)]
        tx = [t_ref[2 * k, c, :, :] for k in range(4)]
        ty = [t_ref[2 * k + 1, c, :, :] for k in range(4)]

        ax, ay = _gift_wrap(px, py, 4)            # convex hull of pred    (CCW)
        bx, by = _gift_wrap(tx, ty, 4)            # convex hull of target  (CCW)

        # Convex hull of pred ∪ target: reuse the two hull start vertices
        # (lowest y, then lowest x) instead of rescanning all 8 points.
        b_first = (by[0] < ay[0]) | ((by[0] == ay[0]) & (bx[0] < ax[0]))
        usx = jnp.where(b_first, bx[0], ax[0])
        usy = jnp.where(b_first, by[0], ay[0])
        ux, uy = _gift_wrap(px + tx, py + ty, 8, start=(usx, usy))
        union_area = _shoelace_area(ux, uy)       # reference's union_poly.area

        # Area(hull(pred) ∩ hull(target)) = sum of shoelace line integrals of
        # (pred-hull edges clipped to target hull) + (target-hull edges clipped
        # to pred hull), with coincident boundary pieces counted exactly once.
        a_edges = _edge_data(ax, ay)
        b_edges = _edge_data(bx, by)
        inter = jnp.zeros_like(union_area)
        for i in range(4):
            j = (i + 1) % 4
            inter = inter + _clip_contrib(ax[i], ay[i], ax[j], ay[j], b_edges,
                                          drop_coincident=False)
            inter = inter + _clip_contrib(bx[i], by[i], bx[j], by[j], a_edges,
                                          drop_coincident=True)
        inter = jnp.maximum(inter, 0.0)

        has_union = union_area > 0.0
        safe_u = jnp.where(has_union, union_area, 1.0)
        # EUP reciprocal + one Newton step: keeps the divide off the saturated
        # VALU slot while staying accurate to ~1 ulp for this loss.
        r = pl.reciprocal(safe_u, approx=True)
        r = r * (2.0 - safe_u * r)
        iou = jnp.where(has_union, inter * r, 0.0)
        if loss_type == "iou":
            loss = 1.0 - iou
        else:
            # giou = iou - (C - I)/C = 2*iou - 1 (equals -1 when disjoint or
            # merely touching, where iou == 0) -> loss = 2 - 2*iou, exactly as
            # in the reference module.
            loss = 1.0 - (2.0 * iou - 1.0)
        o_ref[c, :, :] = loss.astype(o_ref.dtype)


def poly_iou_loss(preds, targets, reduction="none", loss_type="iou"):
    assert loss_type in ("iou", "giou")
    assert preds.shape == targets.shape and preds.shape[-1] == 8
    n = preds.shape[0]

    n_chunks = max(1, pl.cdiv(n, _CHUNK))
    block_chunks = min(_BLOCK_CHUNKS, n_chunks)
    n_chunks_tot = pl.cdiv(n_chunks, block_chunks) * block_chunks
    n_pad = n_chunks_tot * _CHUNK

    # Single-pass layout prep: pad the pair axis, transpose coordinates to the
    # front, then split pairs into (chunk, sublane, lane).
    def prep(x):
        x = jnp.pad(x.astype(jnp.float32), ((0, n_pad - n), (0, 0)))
        return x.T.reshape(8, n_chunks_tot, _SUB, _LANE)

    p = prep(preds)
    t = prep(targets)

    out = pl.pallas_call(
        functools.partial(_poly_iou_kernel, loss_type=loss_type,
                          n_sub=block_chunks),
        out_shape=jax.ShapeDtypeStruct((n_chunks_tot, _SUB, _LANE), jnp.float32),
        grid=(n_chunks_tot // block_chunks,),
        in_specs=[
            pl.BlockSpec((8, block_chunks, _SUB, _LANE), lambda i: (0, i, 0, 0)),
            pl.BlockSpec((8, block_chunks, _SUB, _LANE), lambda i: (0, i, 0, 0)),
        ],
        out_specs=pl.BlockSpec((block_chunks, _SUB, _LANE), lambda i: (i, 0, 0)),
        compiler_params=pltpu.CompilerParams(dimension_semantics=("parallel",)),
    )(p, t)

    loss = out.reshape(-1)[:n]
    if reduction == "mean":
        loss = loss.mean()
    elif reduction == "sum":
        loss = loss.sum()
    return loss


if __name__ == "__main__":
    key = jax.random.PRNGKey(0)
    k1, k2 = jax.random.split(key)

    # Deterministic small inputs: 6 polygon pairs of 8 coords each.
    unit_sq = jnp.array([0., 0., 1., 0., 1., 1., 0., 1.], jnp.float32)
    shift_x2 = jnp.array([2., 0.] * 4, jnp.float32)
    preds_fixed = jnp.stack([unit_sq, unit_sq])                 # identical / disjoint
    targets_fixed = jnp.stack([unit_sq, unit_sq + shift_x2])
    preds_rand = jax.random.uniform(k1, (4, 8), jnp.float32, 0.0, 4.0)
    targets_rand = jax.random.uniform(k2, (4, 8), jnp.float32, 0.0, 4.0)
    preds = jnp.concatenate([preds_fixed, preds_rand], axis=0)      # (6, 8)
    targets = jnp.concatenate([targets_fixed, targets_rand], axis=0)

    loss_iou = poly_iou_loss(preds, targets, reduction="none", loss_type="iou")
    jax.block_until_ready(loss_iou)
    loss_giou_mean = poly_iou_loss(preds, targets, reduction="mean", loss_type="giou")
    jax.block_until_ready(loss_giou_mean)

    assert loss_iou.shape == (6,)
    assert abs(float(loss_iou[0]) - 0.0) < 1e-4   # identical squares -> IoU 1 -> loss 0
    assert abs(float(loss_iou[1]) - 1.0) < 1e-4   # disjoint squares  -> IoU 0 -> loss 1
    assert loss_giou_mean.shape == ()

    print("KERNEL_OK")
</pallas_src>

<mosaic_0001>
module attributes {stable_mosaic.version = 11 : i64} {
  func.func @_poly_iou_kernel(%arg0: i32, %arg1: memref<8x1x8x128xf32, #tpu.memory_space<vmem>>, %arg2: memref<8x1x8x128xf32, #tpu.memory_space<vmem>>, %arg3: memref<1x8x128xf32, #tpu.memory_space<vmem>>) attributes {dimension_semantics = [#tpu.dimension_semantics<parallel>], iteration_bounds = array<i64: 1>, scalar_prefetch = 0 : i64, scratch_operands = 0 : i64, tpu.core_type = #tpu.core_type<tc>, window_params = [{transform_indices = @transform_0, window_bounds = array<i64: 8, 1, 8, 128>}, {transform_indices = @transform_1, window_bounds = array<i64: 8, 1, 8, 128>}, {transform_indices = @transform_2, window_bounds = array<i64: 1, 8, 128>}]} {
    %c0_i32 = arith.constant 0 : i32
    %c1_i32 = arith.constant 1 : i32
    %0 = arith.muli %c0_i32, %c1_i32 : i32
    %c0_i32_0 = arith.constant 0 : i32
    %1 = arith.addi %c0_i32_0, %0 : i32
    %c0 = arith.constant 0 : index
    %2 = arith.index_cast %1 : i32 to index
    %c0_1 = arith.constant 0 : index
    %c0_2 = arith.constant 0 : index
    %3 = vector.load %arg1[%c0, %2, %c0_1, %c0_2] : memref<8x1x8x128xf32, #tpu.memory_space<vmem>>, vector<1x1x8x128xf32>
    %4 = vector.shape_cast %3 : vector<1x1x8x128xf32> to vector<8x128xf32>
    %c2 = arith.constant 2 : index
    %5 = arith.index_cast %1 : i32 to index
    %c0_3 = arith.constant 0 : index
    %c0_4 = arith.constant 0 : index
    %6 = vector.load %arg1[%c2, %5, %c0_3, %c0_4] : memref<8x1x8x128xf32, #tpu.memory_space<vmem>>, vector<1x1x8x128xf32>
    %7 = vector.shape_cast %6 : vector<1x1x8x128xf32> to vector<8x128xf32>
    %c4 = arith.constant 4 : index
    %8 = arith.index_cast %1 : i32 to index
    %c0_5 = arith.constant 0 : index
    %c0_6 = arith.constant 0 : index
    %9 = vector.load %arg1[%c4, %8, %c0_5, %c0_6] : memref<8x1x8x128xf32, #tpu.memory_space<vmem>>, vector<1x1x8x128xf32>
    %10 = vector.shape_cast %9 : vector<1x1x8x128xf32> to vector<8x128xf32>
    %c6 = arith.constant 6 : index
    %11 = arith.index_cast %1 : i32 to index
    %c0_7 = arith.constant 0 : index
    %c0_8 = arith.constant 0 : index
    %12 = vector.load %arg1[%c6, %11, %c0_7, %c0_8] : memref<8x1x8x128xf32, #tpu.memory_space<vmem>>, vector<1x1x8x128xf32>
    %13 = vector.shape_cast %12 : vector<1x1x8x128xf32> to vector<8x128xf32>
    %c1 = arith.constant 1 : index
    %14 = arith.index_cast %1 : i32 to index
    %c0_9 = arith.constant 0 : index
    %c0_10 = arith.constant 0 : index
    %15 = vector.load %arg1[%c1, %14, %c0_9, %c0_10] : memref<8x1x8x128xf32, #tpu.memory_space<vmem>>, vector<1x1x8x128xf32>
    %16 = vector.shape_cast %15 : vector<1x1x8x128xf32> to vector<8x128xf32>
    %c3 = arith.constant 3 : index
    %17 = arith.index_cast %1 : i32 to index
    %c0_11 = arith.constant 0 : index
    %c0_12 = arith.constant 0 : index
    %18 = vector.load %arg1[%c3, %17, %c0_11, %c0_12] : memref<8x1x8x128xf32, #tpu.memory_space<vmem>>, vector<1x1x8x128xf32>
    %19 = vector.shape_cast %18 : vector<1x1x8x128xf32> to vector<8x128xf32>
    %c5 = arith.constant 5 : index
    %20 = arith.index_cast %1 : i32 to index
    %c0_13 = arith.constant 0 : index
    %c0_14 = arith.constant 0 : index
    %21 = vector.load %arg1[%c5, %20, %c0_13, %c0_14] : memref<8x1x8x128xf32, #tpu.memory_space<vmem>>, vector<1x1x8x128xf32>
    %22 = vector.shape_cast %21 : vector<1x1x8x128xf32> to vector<8x128xf32>
    %c7 = arith.constant 7 : index
    %23 = arith.index_cast %1 : i32 to index
    %c0_15 = arith.constant 0 : index
    %c0_16 = arith.constant 0 : index
    %24 = vector.load %arg1[%c7, %23, %c0_15, %c0_16] : memref<8x1x8x128xf32, #tpu.memory_space<vmem>>, vector<1x1x8x128xf32>
    %25 = vector.shape_cast %24 : vector<1x1x8x128xf32> to vector<8x128xf32>
    %c0_17 = arith.constant 0 : index
    %26 = arith.index_cast %1 : i32 to index
    %c0_18 = arith.constant 0 : index
    %c0_19 = arith.constant 0 : index
    %27 = vector.load %arg2[%c0_17, %26, %c0_18, %c0_19] : memref<8x1x8x128xf32, #tpu.memory_space<vmem>>, vector<1x1x8x128xf32>
    %28 = vector.shape_cast %27 : vector<1x1x8x128xf32> to vector<8x128xf32>
    %c2_20 = arith.constant 2 : index
    %29 = arith.index_cast %1 : i32 to index
    %c0_21 = arith.constant 0 : index
    %c0_22 = arith.constant 0 : index
    %30 = vector.load %arg2[%c2_20, %29, %c0_21, %c0_22] : memref<8x1x8x128xf32, #tpu.memory_space<vmem>>, vector<1x1x8x128xf32>
    %31 = vector.shape_cast %30 : vector<1x1x8x128xf32> to vector<8x128xf32>
    %c4_23 = arith.constant 4 : index
    %32 = arith.index_cast %1 : i32 to index
    %c0_24 = arith.constant 0 : index
    %c0_25 = arith.constant 0 : index
    %33 = vector.load %arg2[%c4_23, %32, %c0_24, %c0_25] : memref<8x1x8x128xf32, #tpu.memory_space<vmem>>, vector<1x1x8x128xf32>
    %34 = vector.shape_cast %33 : vector<1x1x8x128xf32> to vector<8x128xf32>
    %c6_26 = arith.constant 6 : index
    %35 = arith.index_cast %1 : i32 to index
    %c0_27 = arith.constant 0 : index
    %c0_28 = arith.constant 0 : index
    %36 = vector.load %arg2[%c6_26, %35, %c0_27, %c0_28] : memref<8x1x8x128xf32, #tpu.memory_space<vmem>>, vector<1x1x8x128xf32>
    %37 = vector.shape_cast %36 : vector<1x1x8x128xf32> to vector<8x128xf32>
    %c1_29 = arith.constant 1 : index
    %38 = arith.index_cast %1 : i32 to index
    %c0_30 = arith.constant 0 : index
    %c0_31 = arith.constant 0 : index
    %39 = vector.load %arg2[%c1_29, %38, %c0_30, %c0_31] : memref<8x1x8x128xf32, #tpu.memory_space<vmem>>, vector<1x1x8x128xf32>
    %40 = vector.shape_cast %39 : vector<1x1x8x128xf32> to vector<8x128xf32>
    %c3_32 = arith.constant 3 : index
    %41 = arith.index_cast %1 : i32 to index
    %c0_33 = arith.constant 0 : index
    %c0_34 = arith.constant 0 : index
    %42 = vector.load %arg2[%c3_32, %41, %c0_33, %c0_34] : memref<8x1x8x128xf32, #tpu.memory_space<vmem>>, vector<1x1x8x128xf32>
    %43 = vector.shape_cast %42 : vector<1x1x8x128xf32> to vector<8x128xf32>
    %c5_35 = arith.constant 5 : index
    %44 = arith.index_cast %1 : i32 to index
    %c0_36 = arith.constant 0 : index
    %c0_37 = arith.constant 0 : index
    %45 = vector.load %arg2[%c5_35, %44, %c0_36, %c0_37] : memref<8x1x8x128xf32, #tpu.memory_space<vmem>>, vector<1x1x8x128xf32>
    %46 = vector.shape_cast %45 : vector<1x1x8x128xf32> to vector<8x128xf32>
    %c7_38 = arith.constant 7 : index
    %47 = arith.index_cast %1 : i32 to index
    %c0_39 = arith.constant 0 : index
    %c0_40 = arith.constant 0 : index
    %48 = vector.load %arg2[%c7_38, %47, %c0_39, %c0_40] : memref<8x1x8x128xf32, #tpu.memory_space<vmem>>, vector<1x1x8x128xf32>
    %49 = vector.shape_cast %48 : vector<1x1x8x128xf32> to vector<8x128xf32>
    %50 = arith.cmpf olt, %19, %16 : vector<8x128xf32>
    %51 = arith.cmpf oeq, %19, %16 : vector<8x128xf32>
    %52 = arith.cmpf olt, %7, %4 : vector<8x128xf32>
    %53 = arith.andi %51, %52 : vector<8x128xi1>
    %54 = arith.ori %50, %53 : vector<8x128xi1>
    %55 = arith.select %54, %7, %4 : vector<8x128xi1>, vector<8x128xf32>
    %56 = arith.select %54, %19, %16 : vector<8x128xi1>, vector<8x128xf32>
    %57 = arith.cmpf olt, %22, %56 : vector<8x128xf32>
    %58 = arith.cmpf oeq, %22, %56 : vector<8x128xf32>
    %59 = arith.cmpf olt, %10, %55 : vector<8x128xf32>
    %60 = arith.andi %58, %59 : vector<8x128xi1>
    %61 = arith.ori %57, %60 : vector<8x128xi1>
    %62 = arith.select %61, %10, %55 : vector<8x128xi1>, vector<8x128xf32>
    %63 = arith.select %61, %22, %56 : vector<8x128xi1>, vector<8x128xf32>
    %64 = arith.cmpf olt, %25, %63 : vector<8x128xf32>
    %65 = arith.cmpf oeq, %25, %63 : vector<8x128xf32>
    %66 = arith.cmpf olt, %13, %62 : vector<8x128xf32>
    %67 = arith.andi %65, %66 : vector<8x128xi1>
    %68 = arith.ori %64, %67 : vector<8x128xi1>
    %69 = arith.select %68, %13, %62 : vector<8x128xi1>, vector<8x128xf32>
    %70 = arith.select %68, %25, %63 : vector<8x128xi1>, vector<8x128xf32>
    %false = arith.constant false
    %71 = vector.broadcast %false : i1 to vector<8x128xi1>
    %72 = arith.subf %4, %69 : vector<8x128xf32>
    %73 = arith.subf %16, %70 : vector<8x128xf32>
    %74 = arith.mulf %72, %72 : vector<8x128xf32>
    %75 = arith.mulf %73, %73 : vector<8x128xf32>
    %76 = arith.addf %74, %75 : vector<8x128xf32>
    %77 = arith.subf %7, %69 : vector<8x128xf32>
    %78 = arith.subf %19, %70 : vector<8x128xf32>
    %79 = arith.mulf %77, %77 : vector<8x128xf32>
    %80 = arith.mulf %78, %78 : vector<8x128xf32>
    %81 = arith.addf %79, %80 : vector<8x128xf32>
    %82 = arith.mulf %72, %78 : vector<8x128xf32>
    %83 = arith.mulf %73, %77 : vector<8x128xf32>
    %84 = arith.subf %82, %83 : vector<8x128xf32>
    %cst = arith.constant 0.000000e+00 : f32
    %85 = vector.broadcast %cst : f32 to vector<8x128xf32>
    %86 = arith.cmpf oeq, %76, %85 : vector<8x128xf32>
    %cst_41 = arith.constant 0.000000e+00 : f32
    %87 = vector.broadcast %cst_41 : f32 to vector<8x128xf32>
    %88 = arith.cmpf olt, %84, %87 : vector<8x128xf32>
    %89 = arith.ori %86, %88 : vector<8x128xi1>
    %cst_42 = arith.constant 0.000000e+00 : f32
    %90 = vector.broadcast %cst_42 : f32 to vector<8x128xf32>
    %91 = arith.cmpf oeq, %84, %90 : vector<8x128xf32>
    %92 = arith.cmpf ogt, %81, %76 : vector<8x128xf32>
    %93 = arith.andi %91, %92 : vector<8x128xi1>
    %94 = arith.ori %89, %93 : vector<8x128xi1>
    %cst_43 = arith.constant 0.000000e+00 : f32
    %95 = vector.broadcast %cst_43 : f32 to vector<8x128xf32>
    %96 = arith.cmpf ogt, %81, %95 : vector<8x128xf32>
    %97 = arith.andi %94, %96 : vector<8x128xi1>
    %98 = arith.select %97, %7, %4 : vector<8x128xi1>, vector<8x128xf32>
    %99 = arith.select %97, %19, %16 : vector<8x128xi1>, vector<8x128xf32>
    %100 = arith.select %97, %77, %72 : vector<8x128xi1>, vector<8x128xf32>
    %101 = arith.select %97, %78, %73 : vector<8x128xi1>, vector<8x128xf32>
    %102 = arith.select %97, %81, %76 : vector<8x128xi1>, vector<8x128xf32>
    %103 = arith.subf %10, %69 : vector<8x128xf32>
    %104 = arith.subf %22, %70 : vector<8x128xf32>
    %105 = arith.mulf %103, %103 : vector<8x128xf32>
    %106 = arith.mulf %104, %104 : vector<8x128xf32>
    %107 = arith.addf %105, %106 : vector<8x128xf32>
    %108 = arith.mulf %100, %104 : vector<8x128xf32>
    %109 = arith.mulf %101, %103 : vector<8x128xf32>
    %110 = arith.subf %108, %109 : vector<8x128xf32>
    %cst_44 = arith.constant 0.000000e+00 : f32
    %111 = vector.broadcast %cst_44 : f32 to vector<8x128xf32>
    %112 = arith.cmpf oeq, %102, %111 : vector<8x128xf32>
    %cst_45 = arith.constant 0.000000e+00 : f32
    %113 = vector.broadcast %cst_45 : f32 to vector<8x128xf32>
    %114 = arith.cmpf olt, %110, %113 : vector<8x128xf32>
    %115 = arith.ori %112, %114 : vector<8x128xi1>
    %cst_46 = arith.constant 0.000000e+00 : f32
    %116 = vector.broadcast %cst_46 : f32 to vector<8x128xf32>
    %117 = arith.cmpf oeq, %110, %116 : vector<8x128xf32>
    %118 = arith.cmpf ogt, %107, %102 : vector<8x128xf32>
    %119 = arith.andi %117, %118 : vector<8x128xi1>
    %120 = arith.ori %115, %119 : vector<8x128xi1>
    %cst_47 = arith.constant 0.000000e+00 : f32
    %121 = vector.broadcast %cst_47 : f32 to vector<8x128xf32>
    %122 = arith.cmpf ogt, %107, %121 : vector<8x128xf32>
    %123 = arith.andi %120, %122 : vector<8x128xi1>
    %124 = arith.select %123, %10, %98 : vector<8x128xi1>, vector<8x128xf32>
    %125 = arith.select %123, %22, %99 : vector<8x128xi1>, vector<8x128xf32>
    %126 = arith.select %123, %103, %100 : vector<8x128xi1>, vector<8x128xf32>
    %127 = arith.select %123, %104, %101 : vector<8x128xi1>, vector<8x128xf32>
    %128 = arith.select %123, %107, %102 : vector<8x128xi1>, vector<8x128xf32>
    %129 = arith.subf %13, %69 : vector<8x128xf32>
    %130 = arith.subf %25, %70 : vector<8x128xf32>
    %131 = arith.mulf %129, %129 : vector<8x128xf32>
    %132 = arith.mulf %130, %130 : vector<8x128xf32>
    %133 = arith.addf %131, %132 : vector<8x128xf32>
    %134 = arith.mulf %126, %130 : vector<8x128xf32>
    %135 = arith.mulf %127, %129 : vector<8x128xf32>
    %136 = arith.subf %134, %135 : vector<8x128xf32>
    %cst_48 = arith.constant 0.000000e+00 : f32
    %137 = vector.broadcast %cst_48 : f32 to vector<8x128xf32>
    %138 = arith.cmpf oeq, %128, %137 : vector<8x128xf32>
    %cst_49 = arith.constant 0.000000e+00 : f32
    %139 = vector.broadcast %cst_49 : f32 to vector<8x128xf32>
    %140 = arith.cmpf olt, %136, %139 : vector<8x128xf32>
    %141 = arith.ori %138, %140 : vector<8x128xi1>
    %cst_50 = arith.constant 0.000000e+00 : f32
    %142 = vector.broadcast %cst_50 : f32 to vector<8x128xf32>
    %143 = arith.cmpf oeq, %136, %142 : vector<8x128xf32>
    %144 = arith.cmpf ogt, %133, %128 : vector<8x128xf32>
    %145 = arith.andi %143, %144 : vector<8x128xi1>
    %146 = arith.ori %141, %145 : vector<8x128xi1>
    %cst_51 = arith.constant 0.000000e+00 : f32
    %147 = vector.broadcast %cst_51 : f32 to vector<8x128xf32>
    %148 = arith.cmpf ogt, %133, %147 : vector<8x128xf32>
    %149 = arith.andi %146, %148 : vector<8x128xi1>
    %150 = arith.select %149, %13, %124 : vector<8x128xi1>, vector<8x128xf32>
    %151 = arith.select %149, %25, %125 : vector<8x128xi1>, vector<8x128xf32>
    %152 = arith.cmpf oeq, %150, %69 : vector<8x128xf32>
    %153 = arith.cmpf oeq, %151, %70 : vector<8x128xf32>
    %154 = arith.andi %152, %153 : vector<8x128xi1>
    %155 = arith.ori %71, %154 : vector<8x128xi1>
    %156 = arith.select %155, %69, %150 : vector<8x128xi1>, vector<8x128xf32>
    %157 = arith.select %155, %70, %151 : vector<8x128xi1>, vector<8x128xf32>
    %158 = arith.subf %4, %156 : vector<8x128xf32>
    %159 = arith.subf %16, %157 : vector<8x128xf32>
    %160 = arith.mulf %158, %158 : vector<8x128xf32>
    %161 = arith.mulf %159, %159 : vector<8x128xf32>
    %162 = arith.addf %160, %161 : vector<8x128xf32>
    %163 = arith.subf %7, %156 : vector<8x128xf32>
    %164 = arith.subf %19, %157 : vector<8x128xf32>
    %165 = arith.mulf %163, %163 : vector<8x128xf32>
    %166 = arith.mulf %164, %164 : vector<8x128xf32>
    %167 = arith.addf %165, %166 : vector<8x128xf32>
    %168 = arith.mulf %158, %164 : vector<8x128xf32>
    %169 = arith.mulf %159, %163 : vector<8x128xf32>
    %170 = arith.subf %168, %169 : vector<8x128xf32>
    %cst_52 = arith.constant 0.000000e+00 : f32
    %171 = vector.broadcast %cst_52 : f32 to vector<8x128xf32>
    %172 = arith.cmpf oeq, %162, %171 : vector<8x128xf32>
    %cst_53 = arith.constant 0.000000e+00 : f32
    %173 = vector.broadcast %cst_53 : f32 to vector<8x128xf32>
    %174 = arith.cmpf olt, %170, %173 : vector<8x128xf32>
    %175 = arith.ori %172, %174 : vector<8x128xi1>
    %cst_54 = arith.constant 0.000000e+00 : f32
    %176 = vector.broadcast %cst_54 : f32 to vector<8x128xf32>
    %177 = arith.cmpf oeq, %170, %176 : vector<8x128xf32>
    %178 = arith.cmpf ogt, %167, %162 : vector<8x128xf32>
    %179 = arith.andi %177, %178 : vector<8x128xi1>
    %180 = arith.ori %175, %179 : vector<8x128xi1>
    %cst_55 = arith.constant 0.000000e+00 : f32
    %181 = vector.broadcast %cst_55 : f32 to vector<8x128xf32>
    %182 = arith.cmpf ogt, %167, %181 : vector<8x128xf32>
    %183 = arith.andi %180, %182 : vector<8x128xi1>
    %184 = arith.select %183, %7, %4 : vector<8x128xi1>, vector<8x128xf32>
    %185 = arith.select %183, %19, %16 : vector<8x128xi1>, vector<8x128xf32>
    %186 = arith.select %183, %163, %158 : vector<8x128xi1>, vector<8x128xf32>
    %187 = arith.select %183, %164, %159 : vector<8x128xi1>, vector<8x128xf32>
    %188 = arith.select %183, %167, %162 : vector<8x128xi1>, vector<8x128xf32>
    %189 = arith.subf %10, %156 : vector<8x128xf32>
    %190 = arith.subf %22, %157 : vector<8x128xf32>
    %191 = arith.mulf %189, %189 : vector<8x128xf32>
    %192 = arith.mulf %190, %190 : vector<8x128xf32>
    %193 = arith.addf %191, %192 : vector<8x128xf32>
    %194 = arith.mulf %186, %190 : vector<8x128xf32>
    %195 = arith.mulf %187, %189 : vector<8x128xf32>
    %196 = arith.subf %194, %195 : vector<8x128xf32>
    %cst_56 = arith.constant 0.000000e+00 : f32
    %197 = vector.broadcast %cst_56 : f32 to vector<8x128xf32>
    %198 = arith.cmpf oeq, %188, %197 : vector<8x128xf32>
    %cst_57 = arith.constant 0.000000e+00 : f32
    %199 = vector.broadcast %cst_57 : f32 to vector<8x128xf32>
    %200 = arith.cmpf olt, %196, %199 : vector<8x128xf32>
    %201 = arith.ori %198, %200 : vector<8x128xi1>
    %cst_58 = arith.constant 0.000000e+00 : f32
    %202 = vector.broadcast %cst_58 : f32 to vector<8x128xf32>
    %203 = arith.cmpf oeq, %196, %202 : vector<8x128xf32>
    %204 = arith.cmpf ogt, %193, %188 : vector<8x128xf32>
    %205 = arith.andi %203, %204 : vector<8x128xi1>
    %206 = arith.ori %201, %205 : vector<8x128xi1>
    %cst_59 = arith.constant 0.000000e+00 : f32
    %207 = vector.broadcast %cst_59 : f32 to vector<8x128xf32>
    %208 = arith.cmpf ogt, %193, %207 : vector<8x128xf32>
    %209 = arith.andi %206, %208 : vector<8x128xi1>
    %210 = arith.select %209, %10, %184 : vector<8x128xi1>, vector<8x128xf32>
    %211 = arith.select %209, %22, %185 : vector<8x128xi1>, vector<8x128xf32>
    %212 = arith.select %209, %189, %186 : vector<8x128xi1>, vector<8x128xf32>
    %213 = arith.select %209, %190, %187 : vector<8x128xi1>, vector<8x128xf32>
    %214 = arith.select %209, %193, %188 : vector<8x128xi1>, vector<8x128xf32>
    %215 = arith.subf %13, %156 : vector<8x128xf32>
    %216 = arith.subf %25, %157 : vector<8x128xf32>
    %217 = arith.mulf %215, %215 : vector<8x128xf32>
    %218 = arith.mulf %216, %216 : vector<8x128xf32>
    %219 = arith.addf %217, %218 : vector<8x128xf32>
    %220 = arith.mulf %212, %216 : vector<8x128xf32>
    %221 = arith.mulf %213, %215 : vector<8x128xf32>
    %222 = arith.subf %220, %221 : vector<8x128xf32>
    %cst_60 = arith.constant 0.000000e+00 : f32
    %223 = vector.broadcast %cst_60 : f32 to vector<8x128xf32>
    %224 = arith.cmpf oeq, %214, %223 : vector<8x128xf32>
    %cst_61 = arith.constant 0.000000e+00 : f32
    %225 = vector.broadcast %cst_61 : f32 to vector<8x128xf32>
    %226 = arith.cmpf olt, %222, %225 : vector<8x128xf32>
    %227 = arith.ori %224, %226 : vector<8x128xi1>
    %cst_62 = arith.constant 0.000000e+00 : f32
    %228 = vector.broadcast %cst_62 : f32 to vector<8x128xf32>
    %229 = arith.cmpf oeq, %222, %228 : vector<8x128xf32>
    %230 = arith.cmpf ogt, %219, %214 : vector<8x128xf32>
    %231 = arith.andi %229, %230 : vector<8x128xi1>
    %232 = arith.ori %227, %231 : vector<8x128xi1>
    %cst_63 = arith.constant 0.000000e+00 : f32
    %233 = vector.broadcast %cst_63 : f32 to vector<8x128xf32>
    %234 = arith.cmpf ogt, %219, %233 : vector<8x128xf32>
    %235 = arith.andi %232, %234 : vector<8x128xi1>
    %236 = arith.select %235, %13, %210 : vector<8x128xi1>, vector<8x128xf32>
    %237 = arith.select %235, %25, %211 : vector<8x128xi1>, vector<8x128xf32>
    %238 = arith.cmpf oeq, %236, %69 : vector<8x128xf32>
    %239 = arith.cmpf oeq, %237, %70 : vector<8x128xf32>
    %240 = arith.andi %238, %239 : vector<8x128xi1>
    %241 = arith.ori %155, %240 : vector<8x128xi1>
    %242 = arith.select %241, %69, %236 : vector<8x128xi1>, vector<8x128xf32>
    %243 = arith.select %241, %70, %237 : vector<8x128xi1>, vector<8x128xf32>
    %244 = arith.subf %4, %242 : vector<8x128xf32>
    %245 = arith.subf %16, %243 : vector<8x128xf32>
    %246 = arith.mulf %244, %244 : vector<8x128xf32>
    %247 = arith.mulf %245, %245 : vector<8x128xf32>
    %248 = arith.addf %246, %247 : vector<8x128xf32>
    %249 = arith.subf %7, %242 : vector<8x128xf32>
    %250 = arith.subf %19, %243 : vector<8x128xf32>
    %251 = arith.mulf %249, %249 : vector<8x128xf32>
    %252 = arith.mulf %250, %250 : vector<8x128xf32>
    %253 = arith.addf %251, %252 : vector<8x128xf32>
    %254 = arith.mulf %244, %250 : vector<8x128xf32>
    %255 = arith.mulf %245, %249 : vector<8x128xf32>
    %256 = arith.subf %254, %255 : vector<8x128xf32>
    %cst_64 = arith.constant 0.000000e+00 : f32
    %257 = vector.broadcast %cst_64 : f32 to vector<8x128xf32>
    %258 = arith.cmpf oeq, %248, %257 : vector<8x128xf32>
    %cst_65 = arith.constant 0.000000e+00 : f32
    %259 = vector.broadcast %cst_65 : f32 to vector<8x128xf32>
    %260 = arith.cmpf olt, %256, %259 : vector<8x128xf32>
    %261 = arith.ori %258, %260 : vector<8x128xi1>
    %cst_66 = arith.constant 0.000000e+00 : f32
    %262 = vector.broadcast %cst_66 : f32 to vector<8x128xf32>
    %263 = arith.cmpf oeq, %256, %262 : vector<8x128xf32>
    %264 = arith.cmpf ogt, %253, %248 : vector<8x128xf32>
    %265 = arith.andi %263, %264 : vector<8x128xi1>
    %266 = arith.ori %261, %265 : vector<8x128xi1>
    %cst_67 = arith.constant 0.000000e+00 : f32
    %267 = vector.broadcast %cst_67 : f32 to vector<8x128xf32>
    %268 = arith.cmpf ogt, %253, %267 : vector<8x128xf32>
    %269 = arith.andi %266, %268 : vector<8x128xi1>
    %270 = arith.select %269, %7, %4 : vector<8x128xi1>, vector<8x128xf32>
    %271 = arith.select %269, %19, %16 : vector<8x128xi1>, vector<8x128xf32>
    %272 = arith.select %269, %249, %244 : vector<8x128xi1>, vector<8x128xf32>
    %273 = arith.select %269, %250, %245 : vector<8x128xi1>, vector<8x128xf32>
    %274 = arith.select %269, %253, %248 : vector<8x128xi1>, vector<8x128xf32>
    %275 = arith.subf %10, %242 : vector<8x128xf32>
    %276 = arith.subf %22, %243 : vector<8x128xf32>
    %277 = arith.mulf %275, %275 : vector<8x128xf32>
    %278 = arith.mulf %276, %276 : vector<8x128xf32>
    %279 = arith.addf %277, %278 : vector<8x128xf32>
    %280 = arith.mulf %272, %276 : vector<8x128xf32>
    %281 = arith.mulf %273, %275 : vector<8x128xf32>
    %282 = arith.subf %280, %281 : vector<8x128xf32>
    %cst_68 = arith.constant 0.000000e+00 : f32
    %283 = vector.broadcast %cst_68 : f32 to vector<8x128xf32>
    %284 = arith.cmpf oeq, %274, %283 : vector<8x128xf32>
    %cst_69 = arith.constant 0.000000e+00 : f32
    %285 = vector.broadcast %cst_69 : f32 to vector<8x128xf32>
    %286 = arith.cmpf olt, %282, %285 : vector<8x128xf32>
    %287 = arith.ori %284, %286 : vector<8x128xi1>
    %cst_70 = arith.constant 0.000000e+00 : f32
    %288 = vector.broadcast %cst_70 : f32 to vector<8x128xf32>
    %289 = arith.cmpf oeq, %282, %288 : vector<8x128xf32>
    %290 = arith.cmpf ogt, %279, %274 : vector<8x128xf32>
    %291 = arith.andi %289, %290 : vector<8x128xi1>
    %292 = arith.ori %287, %291 : vector<8x128xi1>
    %cst_71 = arith.constant 0.000000e+00 : f32
    %293 = vector.broadcast %cst_71 : f32 to vector<8x128xf32>
    %294 = arith.cmpf ogt, %279, %293 : vector<8x128xf32>
    %295 = arith.andi %292, %294 : vector<8x128xi1>
    %296 = arith.select %295, %10, %270 : vector<8x128xi1>, vector<8x128xf32>
    %297 = arith.select %295, %22, %271 : vector<8x128xi1>, vector<8x128xf32>
    %298 = arith.select %295, %275, %272 : vector<8x128xi1>, vector<8x128xf32>
    %299 = arith.select %295, %276, %273 : vector<8x128xi1>, vector<8x128xf32>
    %300 = arith.select %295, %279, %274 : vector<8x128xi1>, vector<8x128xf32>
    %301 = arith.subf %13, %242 : vector<8x128xf32>
    %302 = arith.subf %25, %243 : vector<8x128xf32>
    %303 = arith.mulf %301, %301 : vector<8x128xf32>
    %304 = arith.mulf %302, %302 : vector<8x128xf32>
    %305 = arith.addf %303, %304 : vector<8x128xf32>
    %306 = arith.mulf %298, %302 : vector<8x128xf32>
    %307 = arith.mulf %299, %301 : vector<8x128xf32>
    %308 = arith.subf %306, %307 : vector<8x128xf32>
    %cst_72 = arith.constant 0.000000e+00 : f32
    %309 = vector.broadcast %cst_72 : f32 to vector<8x128xf32>
    %310 = arith.cmpf oeq, %300, %309 : vector<8x128xf32>
    %cst_73 = arith.constant 0.000000e+00 : f32
    %311 = vector.broadcast %cst_73 : f32 to vector<8x128xf32>
    %312 = arith.cmpf olt, %308, %311 : vector<8x128xf32>
    %313 = arith.ori %310, %312 : vector<8x128xi1>
    %cst_74 = arith.constant 0.000000e+00 : f32
    %314 = vector.broadcast %cst_74 : f32 to vector<8x128xf32>
    %315 = arith.cmpf oeq, %308, %314 : vector<8x128xf32>
    %316 = arith.cmpf ogt, %305, %300 : vector<8x128xf32>
    %317 = arith.andi %315, %316 : vector<8x128xi1>
    %318 = arith.ori %313, %317 : vector<8x128xi1>
    %cst_75 = arith.constant 0.000000e+00 : f32
    %319 = vector.broadcast %cst_75 : f32 to vector<8x128xf32>
    %320 = arith.cmpf ogt, %305, %319 : vector<8x128xf32>
    %321 = arith.andi %318, %320 : vector<8x128xi1>
    %322 = arith.select %321, %13, %296 : vector<8x128xi1>, vector<8x128xf32>
    %323 = arith.select %321, %25, %297 : vector<8x128xi1>, vector<8x128xf32>
    %324 = arith.cmpf oeq, %322, %69 : vector<8x128xf32>
    %325 = arith.cmpf oeq, %323, %70 : vector<8x128xf32>
    %326 = arith.andi %324, %325 : vector<8x128xi1>
    %327 = arith.ori %241, %326 : vector<8x128xi1>
    %328 = arith.select %327, %69, %322 : vector<8x128xi1>, vector<8x128xf32>
    %329 = arith.select %327, %70, %323 : vector<8x128xi1>, vector<8x128xf32>
    %330 = arith.cmpf olt, %43, %40 : vector<8x128xf32>
    %331 = arith.cmpf oeq, %43, %40 : vector<8x128xf32>
    %332 = arith.cmpf olt, %31, %28 : vector<8x128xf32>
    %333 = arith.andi %331, %332 : vector<8x128xi1>
    %334 = arith.ori %330, %333 : vector<8x128xi1>
    %335 = arith.select %334, %31, %28 : vector<8x128xi1>, vector<8x128xf32>
    %336 = arith.select %334, %43, %40 : vector<8x128xi1>, vector<8x128xf32>
    %337 = arith.cmpf olt, %46, %336 : vector<8x128xf32>
    %338 = arith.cmpf oeq, %46, %336 : vector<8x128xf32>
    %339 = arith.cmpf olt, %34, %335 : vector<8x128xf32>
    %340 = arith.andi %338, %339 : vector<8x128xi1>
    %341 = arith.ori %337, %340 : vector<8x128xi1>
    %342 = arith.select %341, %34, %335 : vector<8x128xi1>, vector<8x128xf32>
    %343 = arith.select %341, %46, %336 : vector<8x128xi1>, vector<8x128xf32>
    %344 = arith.cmpf olt, %49, %343 : vector<8x128xf32>
    %345 = arith.cmpf oeq, %49, %343 : vector<8x128xf32>
    %346 = arith.cmpf olt, %37, %342 : vector<8x128xf32>
    %347 = arith.andi %345, %346 : vector<8x128xi1>
    %348 = arith.ori %344, %347 : vector<8x128xi1>
    %349 = arith.select %348, %37, %342 : vector<8x128xi1>, vector<8x128xf32>
    %350 = arith.select %348, %49, %343 : vector<8x128xi1>, vector<8x128xf32>
    %false_76 = arith.constant false
    %351 = vector.broadcast %false_76 : i1 to vector<8x128xi1>
    %352 = arith.subf %28, %349 : vector<8x128xf32>
    %353 = arith.subf %40, %350 : vector<8x128xf32>
    %354 = arith.mulf %352, %352 : vector<8x128xf32>
    %355 = arith.mulf %353, %353 : vector<8x128xf32>
    %356 = arith.addf %354, %355 : vector<8x128xf32>
    %357 = arith.subf %31, %349 : vector<8x128xf32>
    %358 = arith.subf %43, %350 : vector<8x128xf32>
    %359 = arith.mulf %357, %357 : vector<8x128xf32>
    %360 = arith.mulf %358, %358 : vector<8x128xf32>
    %361 = arith.addf %359, %360 : vector<8x128xf32>
    %362 = arith.mulf %352, %358 : vector<8x128xf32>
    %363 = arith.mulf %353, %357 : vector<8x128xf32>
    %364 = arith.subf %362, %363 : vector<8x128xf32>
    %cst_77 = arith.constant 0.000000e+00 : f32
    %365 = vector.broadcast %cst_77 : f32 to vector<8x128xf32>
    %366 = arith.cmpf oeq, %356, %365 : vector<8x128xf32>
    %cst_78 = arith.constant 0.000000e+00 : f32
    %367 = vector.broadcast %cst_78 : f32 to vector<8x128xf32>
    %368 = arith.cmpf olt, %364, %367 : vector<8x128xf32>
    %369 = arith.ori %366, %368 : vector<8x128xi1>
    %cst_79 = arith.constant 0.000000e+00 : f32
    %370 = vector.broadcast %cst_79 : f32 to vector<8x128xf32>
    %371 = arith.cmpf oeq, %364, %370 : vector<8x128xf32>
    %372 = arith.cmpf ogt, %361, %356 : vector<8x128xf32>
    %373 = arith.andi %371, %372 : vector<8x128xi1>
    %374 = arith.ori %369, %373 : vector<8x128xi1>
    %cst_80 = arith.constant 0.000000e+00 : f32
    %375 = vector.broadcast %cst_80 : f32 to vector<8x128xf32>
    %376 = arith.cmpf ogt, %361, %375 : vector<8x128xf32>
    %377 = arith.andi %374, %376 : vector<8x128xi1>
    %378 = arith.select %377, %31, %28 : vector<8x128xi1>, vector<8x128xf32>
    %379 = arith.select %377, %43, %40 : vector<8x128xi1>, vector<8x128xf32>
    %380 = arith.select %377, %357, %352 : vector<8x128xi1>, vector<8x128xf32>
    %381 = arith.select %377, %358, %353 : vector<8x128xi1>, vector<8x128xf32>
    %382 = arith.select %377, %361, %356 : vector<8x128xi1>, vector<8x128xf32>
    %383 = arith.subf %34, %349 : vector<8x128xf32>
    %384 = arith.subf %46, %350 : vector<8x128xf32>
    %385 = arith.mulf %383, %383 : vector<8x128xf32>
    %386 = arith.mulf %384, %384 : vector<8x128xf32>
    %387 = arith.addf %385, %386 : vector<8x128xf32>
    %388 = arith.mulf %380, %384 : vector<8x128xf32>
    %389 = arith.mulf %381, %383 : vector<8x128xf32>
    %390 = arith.subf %388, %389 : vector<8x128xf32>
    %cst_81 = arith.constant 0.000000e+00 : f32
    %391 = vector.broadcast %cst_81 : f32 to vector<8x128xf32>
    %392 = arith.cmpf oeq, %382, %391 : vector<8x128xf32>
    %cst_82 = arith.constant 0.000000e+00 : f32
    %393 = vector.broadcast %cst_82 : f32 to vector<8x128xf32>
    %394 = arith.cmpf olt, %390, %393 : vector<8x128xf32>
    %395 = arith.ori %392, %394 : vector<8x128xi1>
    %cst_83 = arith.constant 0.000000e+00 : f32
    %396 = vector.broadcast %cst_83 : f32 to vector<8x128xf32>
    %397 = arith.cmpf oeq, %390, %396 : vector<8x128xf32>
    %398 = arith.cmpf ogt, %387, %382 : vector<8x128xf32>
    %399 = arith.andi %397, %398 : vector<8x128xi1>
    %400 = arith.ori %395, %399 : vector<8x128xi1>
    %cst_84 = arith.constant 0.000000e+00 : f32
    %401 = vector.broadcast %cst_84 : f32 to vector<8x128xf32>
    %402 = arith.cmpf ogt, %387, %401 : vector<8x128xf32>
    %403 = arith.andi %400, %402 : vector<8x128xi1>
    %404 = arith.select %403, %34, %378 : vector<8x128xi1>, vector<8x128xf32>
    %405 = arith.select %403, %46, %379 : vector<8x128xi1>, vector<8x128xf32>
    %406 = arith.select %403, %383, %380 : vector<8x128xi1>, vector<8x128xf32>
    %407 = arith.select %403, %384, %381 : vector<8x128xi1>, vector<8x128xf32>
    %408 = arith.select %403, %387, %382 : vector<8x128xi1>, vector<8x128xf32>
    %409 = arith.subf %37, %349 : vector<8x128xf32>
    %410 = arith.subf %49, %350 : vector<8x128xf32>
    %411 = arith.mulf %409, %409 : vector<8x128xf32>
    %412 = arith.mulf %410, %410 : vector<8x128xf32>
    %413 = arith.addf %411, %412 : vector<8x128xf32>
    %414 = arith.mulf %406, %410 : vector<8x128xf32>
    %415 = arith.mulf %407, %409 : vector<8x128xf32>
    %416 = arith.subf %414, %415 : vector<8x128xf32>
    %cst_85 = arith.constant 0.000000e+00 : f32
    %417 = vector.broadcast %cst_85 : f32 to vector<8x128xf32>
    %418 = arith.cmpf oeq, %408, %417 : vector<8x128xf32>
    %cst_86 = arith.constant 0.000000e+00 : f32
    %419 = vector.broadcast %cst_86 : f32 to vector<8x128xf32>
    %420 = arith.cmpf olt, %416, %419 : vector<8x128xf32>
    %421 = arith.ori %418, %420 : vector<8x128xi1>
    %cst_87 = arith.constant 0.000000e+00 : f32
    %422 = vector.broadcast %cst_87 : f32 to vector<8x128xf32>
    %423 = arith.cmpf oeq, %416, %422 : vector<8x128xf32>
    %424 = arith.cmpf ogt, %413, %408 : vector<8x128xf32>
    %425 = arith.andi %423, %424 : vector<8x128xi1>
    %426 = arith.ori %421, %425 : vector<8x128xi1>
    %cst_88 = arith.constant 0.000000e+00 : f32
    %427 = vector.broadcast %cst_88 : f32 to vector<8x128xf32>
    %428 = arith.cmpf ogt, %413, %427 : vector<8x128xf32>
    %429 = arith.andi %426, %428 : vector<8x128xi1>
    %430 = arith.select %429, %37, %404 : vector<8x128xi1>, vector<8x128xf32>
    %431 = arith.select %429, %49, %405 : vector<8x128xi1>, vector<8x128xf32>
    %432 = arith.cmpf oeq, %430, %349 : vector<8x128xf32>
    %433 = arith.cmpf oeq, %431, %350 : vector<8x128xf32>
    %434 = arith.andi %432, %433 : vector<8x128xi1>
    %435 = arith.ori %351, %434 : vector<8x128xi1>
    %436 = arith.select %435, %349, %430 : vector<8x128xi1>, vector<8x128xf32>
    %437 = arith.select %435, %350, %431 : vector<8x128xi1>, vector<8x128xf32>
    %438 = arith.subf %28, %436 : vector<8x128xf32>
    %439 = arith.subf %40, %437 : vector<8x128xf32>
    %440 = arith.mulf %438, %438 : vector<8x128xf32>
    %441 = arith.mulf %439, %439 : vector<8x128xf32>
    %442 = arith.addf %440, %441 : vector<8x128xf32>
    %443 = arith.subf %31, %436 : vector<8x128xf32>
    %444 = arith.subf %43, %437 : vector<8x128xf32>
    %445 = arith.mulf %443, %443 : vector<8x128xf32>
    %446 = arith.mulf %444, %444 : vector<8x128xf32>
    %447 = arith.addf %445, %446 : vector<8x128xf32>
    %448 = arith.mulf %438, %444 : vector<8x128xf32>
    %449 = arith.mulf %439, %443 : vector<8x128xf32>
    %450 = arith.subf %448, %449 : vector<8x128xf32>
    %cst_89 = arith.constant 0.000000e+00 : f32
    %451 = vector.broadcast %cst_89 : f32 to vector<8x128xf32>
    %452 = arith.cmpf oeq, %442, %451 : vector<8x128xf32>
    %cst_90 = arith.constant 0.000000e+00 : f32
    %453 = vector.broadcast %cst_90 : f32 to vector<8x128xf32>
    %454 = arith.cmpf olt, %450, %453 : vector<8x128xf32>
    %455 = arith.ori %452, %454 : vector<8x128xi1>
    %cst_91 = arith.constant 0.000000e+00 : f32
    %456 = vector.broadcast %cst_91 : f32 to vector<8x128xf32>
    %457 = arith.cmpf oeq, %450, %456 : vector<8x128xf32>
    %458 = arith.cmpf ogt, %447, %442 : vector<8x128xf32>
    %459 = arith.andi %457, %458 : vector<8x128xi1>
    %460 = arith.ori %455, %459 : vector<8x128xi1>
    %cst_92 = arith.constant 0.000000e+00 : f32
    %461 = vector.broadcast %cst_92 : f32 to vector<8x128xf32>
    %462 = arith.cmpf ogt, %447, %461 : vector<8x128xf32>
    %463 = arith.andi %460, %462 : vector<8x128xi1>
    %464 = arith.select %463, %31, %28 : vector<8x128xi1>, vector<8x128xf32>
    %465 = arith.select %463, %43, %40 : vector<8x128xi1>, vector<8x128xf32>
    %466 = arith.select %463, %443, %438 : vector<8x128xi1>, vector<8x128xf32>
    %467 = arith.select %463, %444, %439 : vector<8x128xi1>, vector<8x128xf32>
    %468 = arith.select %463, %447, %442 : vector<8x128xi1>, vector<8x128xf32>
    %469 = arith.subf %34, %436 : vector<8x128xf32>
    %470 = arith.subf %46, %437 : vector<8x128xf32>
    %471 = arith.mulf %469, %469 : vector<8x128xf32>
    %472 = arith.mulf %470, %470 : vector<8x128xf32>
    %473 = arith.addf %471, %472 : vector<8x128xf32>
    %474 = arith.mulf %466, %470 : vector<8x128xf32>
    %475 = arith.mulf %467, %469 : vector<8x128xf32>
    %476 = arith.subf %474, %475 : vector<8x128xf32>
    %cst_93 = arith.constant 0.000000e+00 : f32
    %477 = vector.broadcast %cst_93 : f32 to vector<8x128xf32>
    %478 = arith.cmpf oeq, %468, %477 : vector<8x128xf32>
    %cst_94 = arith.constant 0.000000e+00 : f32
    %479 = vector.broadcast %cst_94 : f32 to vector<8x128xf32>
    %480 = arith.cmpf olt, %476, %479 : vector<8x128xf32>
    %481 = arith.ori %478, %480 : vector<8x128xi1>
    %cst_95 = arith.constant 0.000000e+00 : f32
    %482 = vector.broadcast %cst_95 : f32 to vector<8x128xf32>
    %483 = arith.cmpf oeq, %476, %482 : vector<8x128xf32>
    %484 = arith.cmpf ogt, %473, %468 : vector<8x128xf32>
    %485 = arith.andi %483, %484 : vector<8x128xi1>
    %486 = arith.ori %481, %485 : vector<8x128xi1>
    %cst_96 = arith.constant 0.000000e+00 : f32
    %487 = vector.broadcast %cst_96 : f32 to vector<8x128xf32>
    %488 = arith.cmpf ogt, %473, %487 : vector<8x128xf32>
    %489 = arith.andi %486, %488 : vector<8x128xi1>
    %490 = arith.select %489, %34, %464 : vector<8x128xi1>, vector<8x128xf32>
    %491 = arith.select %489, %46, %465 : vector<8x128xi1>, vector<8x128xf32>
    %492 = arith.select %489, %469, %466 : vector<8x128xi1>, vector<8x128xf32>
    %493 = arith.select %489, %470, %467 : vector<8x128xi1>, vector<8x128xf32>
    %494 = arith.select %489, %473, %468 : vector<8x128xi1>, vector<8x128xf32>
    %495 = arith.subf %37, %436 : vector<8x128xf32>
    %496 = arith.subf %49, %437 : vector<8x128xf32>
    %497 = arith.mulf %495, %495 : vector<8x128xf32>
    %498 = arith.mulf %496, %496 : vector<8x128xf32>
    %499 = arith.addf %497, %498 : vector<8x128xf32>
    %500 = arith.mulf %492, %496 : vector<8x128xf32>
    %501 = arith.mulf %493, %495 : vector<8x128xf32>
    %502 = arith.subf %500, %501 : vector<8x128xf32>
    %cst_97 = arith.constant 0.000000e+00 : f32
    %503 = vector.broadcast %cst_97 : f32 to vector<8x128xf32>
    %504 = arith.cmpf oeq, %494, %503 : vector<8x128xf32>
    %cst_98 = arith.constant 0.000000e+00 : f32
    %505 = vector.broadcast %cst_98 : f32 to vector<8x128xf32>
    %506 = arith.cmpf olt, %502, %505 : vector<8x128xf32>
    %507 = arith.ori %504, %506 : vector<8x128xi1>
    %cst_99 = arith.constant 0.000000e+00 : f32
    %508 = vector.broadcast %cst_99 : f32 to vector<8x128xf32>
    %509 = arith.cmpf oeq, %502, %508 : vector<8x128xf32>
    %510 = arith.cmpf ogt, %499, %494 : vector<8x128xf32>
    %511 = arith.andi %509, %510 : vector<8x128xi1>
    %512 = arith.ori %507, %511 : vector<8x128xi1>
    %cst_100 = arith.constant 0.000000e+00 : f32
    %513 = vector.broadcast %cst_100 : f32 to vector<8x128xf32>
    %514 = arith.cmpf ogt, %499, %513 : vector<8x128xf32>
    %515 = arith.andi %512, %514 : vector<8x128xi1>
    %516 = arith.select %515, %37, %490 : vector<8x128xi1>, vector<8x128xf32>
    %517 = arith.select %515, %49, %491 : vector<8x128xi1>, vector<8x128xf32>
    %518 = arith.cmpf oeq, %516, %349 : vector<8x128xf32>
    %519 = arith.cmpf oeq, %517, %350 : vector<8x128xf32>
    %520 = arith.andi %518, %519 : vector<8x128xi1>
    %521 = arith.ori %435, %520 : vector<8x128xi1>
    %522 = arith.select %521, %349, %516 : vector<8x128xi1>, vector<8x128xf32>
    %523 = arith.select %521, %350, %517 : vector<8x128xi1>, vector<8x128xf32>
    %524 = arith.subf %28, %522 : vector<8x128xf32>
    %525 = arith.subf %40, %523 : vector<8x128xf32>
    %526 = arith.mulf %524, %524 : vector<8x128xf32>
    %527 = arith.mulf %525, %525 : vector<8x128xf32>
    %528 = arith.addf %526, %527 : vector<8x128xf32>
    %529 = arith.subf %31, %522 : vector<8x128xf32>
    %530 = arith.subf %43, %523 : vector<8x128xf32>
    %531 = arith.mulf %529, %529 : vector<8x128xf32>
    %532 = arith.mulf %530, %530 : vector<8x128xf32>
    %533 = arith.addf %531, %532 : vector<8x128xf32>
    %534 = arith.mulf %524, %530 : vector<8x128xf32>
    %535 = arith.mulf %525, %529 : vector<8x128xf32>
    %536 = arith.subf %534, %535 : vector<8x128xf32>
    %cst_101 = arith.constant 0.000000e+00 : f32
    %537 = vector.broadcast %cst_101 : f32 to vector<8x128xf32>
    %538 = arith.cmpf oeq, %528, %537 : vector<8x128xf32>
    %cst_102 = arith.constant 0.000000e+00 : f32
    %539 = vector.broadcast %cst_102 : f32 to vector<8x128xf32>
    %540 = arith.cmpf olt, %536, %539 : vector<8x128xf32>
    %541 = arith.ori %538, %540 : vector<8x128xi1>
    %cst_103 = arith.constant 0.000000e+00 : f32
    %542 = vector.broadcast %cst_103 : f32 to vector<8x128xf32>
    %543 = arith.cmpf oeq, %536, %542 : vector<8x128xf32>
    %544 = arith.cmpf ogt, %533, %528 : vector<8x128xf32>
    %545 = arith.andi %543, %544 : vector<8x128xi1>
    %546 = arith.ori %541, %545 : vector<8x128xi1>
    %cst_104 = arith.constant 0.000000e+00 : f32
    %547 = vector.broadcast %cst_104 : f32 to vector<8x128xf32>
    %548 = arith.cmpf ogt, %533, %547 : vector<8x128xf32>
    %549 = arith.andi %546, %548 : vector<8x128xi1>
    %550 = arith.select %549, %31, %28 : vector<8x128xi1>, vector<8x128xf32>
    %551 = arith.select %549, %43, %40 : vector<8x128xi1>, vector<8x128xf32>
    %552 = arith.select %549, %529, %524 : vector<8x128xi1>, vector<8x128xf32>
    %553 = arith.select %549, %530, %525 : vector<8x128xi1>, vector<8x128xf32>
    %554 = arith.select %549, %533, %528 : vector<8x128xi1>, vector<8x128xf32>
    %555 = arith.subf %34, %522 : vector<8x128xf32>
    %556 = arith.subf %46, %523 : vector<8x128xf32>
    %557 = arith.mulf %555, %555 : vector<8x128xf32>
    %558 = arith.mulf %556, %556 : vector<8x128xf32>
    %559 = arith.addf %557, %558 : vector<8x128xf32>
    %560 = arith.mulf %552, %556 : vector<8x128xf32>
    %561 = arith.mulf %553, %555 : vector<8x128xf32>
    %562 = arith.subf %560, %561 : vector<8x128xf32>
    %cst_105 = arith.constant 0.000000e+00 : f32
    %563 = vector.broadcast %cst_105 : f32 to vector<8x128xf32>
    %564 = arith.cmpf oeq, %554, %563 : vector<8x128xf32>
    %cst_106 = arith.constant 0.000000e+00 : f32
    %565 = vector.broadcast %cst_106 : f32 to vector<8x128xf32>
    %566 = arith.cmpf olt, %562, %565 : vector<8x128xf32>
    %567 = arith.ori %564, %566 : vector<8x128xi1>
    %cst_107 = arith.constant 0.000000e+00 : f32
    %568 = vector.broadcast %cst_107 : f32 to vector<8x128xf32>
    %569 = arith.cmpf oeq, %562, %568 : vector<8x128xf32>
    %570 = arith.cmpf ogt, %559, %554 : vector<8x128xf32>
    %571 = arith.andi %569, %570 : vector<8x128xi1>
    %572 = arith.ori %567, %571 : vector<8x128xi1>
    %cst_108 = arith.constant 0.000000e+00 : f32
    %573 = vector.broadcast %cst_108 : f32 to vector<8x128xf32>
    %574 = arith.cmpf ogt, %559, %573 : vector<8x128xf32>
    %575 = arith.andi %572, %574 : vector<8x128xi1>
    %576 = arith.select %575, %34, %550 : vector<8x128xi1>, vector<8x128xf32>
    %577 = arith.select %575, %46, %551 : vector<8x128xi1>, vector<8x128xf32>
    %578 = arith.select %575, %555, %552 : vector<8x128xi1>, vector<8x128xf32>
    %579 = arith.select %575, %556, %553 : vector<8x128xi1>, vector<8x128xf32>
    %580 = arith.select %575, %559, %554 : vector<8x128xi1>, vector<8x128xf32>
    %581 = arith.subf %37, %522 : vector<8x128xf32>
    %582 = arith.subf %49, %523 : vector<8x128xf32>
    %583 = arith.mulf %581, %581 : vector<8x128xf32>
    %584 = arith.mulf %582, %582 : vector<8x128xf32>
    %585 = arith.addf %583, %584 : vector<8x128xf32>
    %586 = arith.mulf %578, %582 : vector<8x128xf32>
    %587 = arith.mulf %579, %581 : vector<8x128xf32>
    %588 = arith.subf %586, %587 : vector<8x128xf32>
    %cst_109 = arith.constant 0.000000e+00 : f32
    %589 = vector.broadcast %cst_109 : f32 to vector<8x128xf32>
    %590 = arith.cmpf oeq, %580, %589 : vector<8x128xf32>
    %cst_110 = arith.constant 0.000000e+00 : f32
    %591 = vector.broadcast %cst_110 : f32 to vector<8x128xf32>
    %592 = arith.cmpf olt, %588, %591 : vector<8x128xf32>
    %593 = arith.ori %590, %592 : vector<8x128xi1>
    %cst_111 = arith.constant 0.000000e+00 : f32
    %594 = vector.broadcast %cst_111 : f32 to vector<8x128xf32>
    %595 = arith.cmpf oeq, %588, %594 : vector<8x128xf32>
    %596 = arith.cmpf ogt, %585, %580 : vector<8x128xf32>
    %597 = arith.andi %595, %596 : vector<8x128xi1>
    %598 = arith.ori %593, %597 : vector<8x128xi1>
    %cst_112 = arith.constant 0.000000e+00 : f32
    %599 = vector.broadcast %cst_112 : f32 to vector<8x128xf32>
    %600 = arith.cmpf ogt, %585, %599 : vector<8x128xf32>
    %601 = arith.andi %598, %600 : vector<8x128xi1>
    %602 = arith.select %601, %37, %576 : vector<8x128xi1>, vector<8x128xf32>
    %603 = arith.select %601, %49, %577 : vector<8x128xi1>, vector<8x128xf32>
    %604 = arith.cmpf oeq, %602, %349 : vector<8x128xf32>
    %605 = arith.cmpf oeq, %603, %350 : vector<8x128xf32>
    %606 = arith.andi %604, %605 : vector<8x128xi1>
    %607 = arith.ori %521, %606 : vector<8x128xi1>
    %608 = arith.select %607, %349, %602 : vector<8x128xi1>, vector<8x128xf32>
    %609 = arith.select %607, %350, %603 : vector<8x128xi1>, vector<8x128xf32>
    %610 = arith.cmpf olt, %350, %70 : vector<8x128xf32>
    %611 = arith.cmpf oeq, %350, %70 : vector<8x128xf32>
    %612 = arith.cmpf olt, %349, %69 : vector<8x128xf32>
    %613 = arith.andi %611, %612 : vector<8x128xi1>
    %614 = arith.ori %610, %613 : vector<8x128xi1>
    %615 = arith.select %614, %349, %69 : vector<8x128xi1>, vector<8x128xf32>
    %616 = arith.select %614, %350, %70 : vector<8x128xi1>, vector<8x128xf32>
    %false_113 = arith.constant false
    %617 = vector.broadcast %false_113 : i1 to vector<8x128xi1>
    %618 = arith.subf %4, %615 : vector<8x128xf32>
    %619 = arith.subf %16, %616 : vector<8x128xf32>
    %620 = arith.mulf %618, %618 : vector<8x128xf32>
    %621 = arith.mulf %619, %619 : vector<8x128xf32>
    %622 = arith.addf %620, %621 : vector<8x128xf32>
    %623 = arith.subf %7, %615 : vector<8x128xf32>
    %624 = arith.subf %19, %616 : vector<8x128xf32>
    %625 = arith.mulf %623, %623 : vector<8x128xf32>
    %626 = arith.mulf %624, %624 : vector<8x128xf32>
    %627 = arith.addf %625, %626 : vector<8x128xf32>
    %628 = arith.mulf %618, %624 : vector<8x128xf32>
    %629 = arith.mulf %619, %623 : vector<8x128xf32>
    %630 = arith.subf %628, %629 : vector<8x128xf32>
    %cst_114 = arith.constant 0.000000e+00 : f32
    %631 = vector.broadcast %cst_114 : f32 to vector<8x128xf32>
    %632 = arith.cmpf oeq, %622, %631 : vector<8x128xf32>
    %cst_115 = arith.constant 0.000000e+00 : f32
    %633 = vector.broadcast %cst_115 : f32 to vector<8x128xf32>
    %634 = arith.cmpf olt, %630, %633 : vector<8x128xf32>
    %635 = arith.ori %632, %634 : vector<8x128xi1>
    %cst_116 = arith.constant 0.000000e+00 : f32
    %636 = vector.broadcast %cst_116 : f32 to vector<8x128xf32>
    %637 = arith.cmpf oeq, %630, %636 : vector<8x128xf32>
    %638 = arith.cmpf ogt, %627, %622 : vector<8x128xf32>
    %639 = arith.andi %637, %638 : vector<8x128xi1>
    %640 = arith.ori %635, %639 : vector<8x128xi1>
    %cst_117 = arith.constant 0.000000e+00 : f32
    %641 = vector.broadcast %cst_117 : f32 to vector<8x128xf32>
    %642 = arith.cmpf ogt, %627, %641 : vector<8x128xf32>
    %643 = arith.andi %640, %642 : vector<8x128xi1>
    %644 = arith.select %643, %7, %4 : vector<8x128xi1>, vector<8x128xf32>
    %645 = arith.select %643, %19, %16 : vector<8x128xi1>, vector<8x128xf32>
    %646 = arith.select %643, %623, %618 : vector<8x128xi1>, vector<8x128xf32>
    %647 = arith.select %643, %624, %619 : vector<8x128xi1>, vector<8x128xf32>
    %648 = arith.select %643, %627, %622 : vector<8x128xi1>, vector<8x128xf32>
    %649 = arith.subf %10, %615 : vector<8x128xf32>
    %650 = arith.subf %22, %616 : vector<8x128xf32>
    %651 = arith.mulf %649, %649 : vector<8x128xf32>
    %652 = arith.mulf %650, %650 : vector<8x128xf32>
    %653 = arith.addf %651, %652 : vector<8x128xf32>
    %654 = arith.mulf %646, %650 : vector<8x128xf32>
    %655 = arith.mulf %647, %649 : vector<8x128xf32>
    %656 = arith.subf %654, %655 : vector<8x128xf32>
    %cst_118 = arith.constant 0.000000e+00 : f32
    %657 = vector.broadcast %cst_118 : f32 to vector<8x128xf32>
    %658 = arith.cmpf oeq, %648, %657 : vector<8x128xf32>
    %cst_119 = arith.constant 0.000000e+00 : f32
    %659 = vector.broadcast %cst_119 : f32 to vector<8x128xf32>
    %660 = arith.cmpf olt, %656, %659 : vector<8x128xf32>
    %661 = arith.ori %658, %660 : vector<8x128xi1>
    %cst_120 = arith.constant 0.000000e+00 : f32
    %662 = vector.broadcast %cst_120 : f32 to vector<8x128xf32>
    %663 = arith.cmpf oeq, %656, %662 : vector<8x128xf32>
    %664 = arith.cmpf ogt, %653, %648 : vector<8x128xf32>
    %665 = arith.andi %663, %664 : vector<8x128xi1>
    %666 = arith.ori %661, %665 : vector<8x128xi1>
    %cst_121 = arith.constant 0.000000e+00 : f32
    %667 = vector.broadcast %cst_121 : f32 to vector<8x128xf32>
    %668 = arith.cmpf ogt, %653, %667 : vector<8x128xf32>
    %669 = arith.andi %666, %668 : vector<8x128xi1>
    %670 = arith.select %669, %10, %644 : vector<8x128xi1>, vector<8x128xf32>
    %671 = arith.select %669, %22, %645 : vector<8x128xi1>, vector<8x128xf32>
    %672 = arith.select %669, %649, %646 : vector<8x128xi1>, vector<8x128xf32>
    %673 = arith.select %669, %650, %647 : vector<8x128xi1>, vector<8x128xf32>
    %674 = arith.select %669, %653, %648 : vector<8x128xi1>, vector<8x128xf32>
    %675 = arith.subf %13, %615 : vector<8x128xf32>
    %676 = arith.subf %25, %616 : vector<8x128xf32>
    %677 = arith.mulf %675, %675 : vector<8x128xf32>
    %678 = arith.mulf %676, %676 : vector<8x128xf32>
    %679 = arith.addf %677, %678 : vector<8x128xf32>
    %680 = arith.mulf %672, %676 : vector<8x128xf32>
    %681 = arith.mulf %673, %675 : vector<8x128xf32>
    %682 = arith.subf %680, %681 : vector<8x128xf32>
    %cst_122 = arith.constant 0.000000e+00 : f32
    %683 = vector.broadcast %cst_122 : f32 to vector<8x128xf32>
    %684 = arith.cmpf oeq, %674, %683 : vector<8x128xf32>
    %cst_123 = arith.constant 0.000000e+00 : f32
    %685 = vector.broadcast %cst_123 : f32 to vector<8x128xf32>
    %686 = arith.cmpf olt, %682, %685 : vector<8x128xf32>
    %687 = arith.ori %684, %686 : vector<8x128xi1>
    %cst_124 = arith.constant 0.000000e+00 : f32
    %688 = vector.broadcast %cst_124 : f32 to vector<8x128xf32>
    %689 = arith.cmpf oeq, %682, %688 : vector<8x128xf32>
    %690 = arith.cmpf ogt, %679, %674 : vector<8x128xf32>
    %691 = arith.andi %689, %690 : vector<8x128xi1>
    %692 = arith.ori %687, %691 : vector<8x128xi1>
    %cst_125 = arith.constant 0.000000e+00 : f32
    %693 = vector.broadcast %cst_125 : f32 to vector<8x128xf32>
    %694 = arith.cmpf ogt, %679, %693 : vector<8x128xf32>
    %695 = arith.andi %692, %694 : vector<8x128xi1>
    %696 = arith.select %695, %13, %670 : vector<8x128xi1>, vector<8x128xf32>
    %697 = arith.select %695, %25, %671 : vector<8x128xi1>, vector<8x128xf32>
    %698 = arith.select %695, %675, %672 : vector<8x128xi1>, vector<8x128xf32>
    %699 = arith.select %695, %676, %673 : vector<8x128xi1>, vector<8x128xf32>
    %700 = arith.select %695, %679, %674 : vector<8x128xi1>, vector<8x128xf32>
    %701 = arith.subf %28, %615 : vector<8x128xf32>
    %702 = arith.subf %40, %616 : vector<8x128xf32>
    %703 = arith.mulf %701, %701 : vector<8x128xf32>
    %704 = arith.mulf %702, %702 : vector<8x128xf32>
    %705 = arith.addf %703, %704 : vector<8x128xf32>
    %706 = arith.mulf %698, %702 : vector<8x128xf32>
    %707 = arith.mulf %699, %701 : vector<8x128xf32>
    %708 = arith.subf %706, %707 : vector<8x128xf32>
    %cst_126 = arith.constant 0.000000e+00 : f32
    %709 = vector.broadcast %cst_126 : f32 to vector<8x128xf32>
    %710 = arith.cmpf oeq, %700, %709 : vector<8x128xf32>
    %cst_127 = arith.constant 0.000000e+00 : f32
    %711 = vector.broadcast %cst_127 : f32 to vector<8x128xf32>
    %712 = arith.cmpf olt, %708, %711 : vector<8x128xf32>
    %713 = arith.ori %710, %712 : vector<8x128xi1>
    %cst_128 = arith.constant 0.000000e+00 : f32
    %714 = vector.broadcast %cst_128 : f32 to vector<8x128xf32>
    %715 = arith.cmpf oeq, %708, %714 : vector<8x128xf32>
    %716 = arith.cmpf ogt, %705, %700 : vector<8x128xf32>
    %717 = arith.andi %715, %716 : vector<8x128xi1>
    %718 = arith.ori %713, %717 : vector<8x128xi1>
    %cst_129 = arith.constant 0.000000e+00 : f32
    %719 = vector.broadcast %cst_129 : f32 to vector<8x128xf32>
    %720 = arith.cmpf ogt, %705, %719 : vector<8x128xf32>
    %721 = arith.andi %718, %720 : vector<8x128xi1>
    %722 = arith.select %721, %28, %696 : vector<8x128xi1>, vector<8x128xf32>
    %723 = arith.select %721, %40, %697 : vector<8x128xi1>, vector<8x128xf32>
    %724 = arith.select %721, %701, %698 : vector<8x128xi1>, vector<8x128xf32>
    %725 = arith.select %721, %702, %699 : vector<8x128xi1>, vector<8x128xf32>
    %726 = arith.select %721, %705, %700 : vector<8x128xi1>, vector<8x128xf32>
    %727 = arith.subf %31, %615 : vector<8x128xf32>
    %728 = arith.subf %43, %616 : vector<8x128xf32>
    %729 = arith.mulf %727, %727 : vector<8x128xf32>
    %730 = arith.mulf %728, %728 : vector<8x128xf32>
    %731 = arith.addf %729, %730 : vector<8x128xf32>
    %732 = arith.mulf %724, %728 : vector<8x128xf32>
    %733 = arith.mulf %725, %727 : vector<8x128xf32>
    %734 = arith.subf %732, %733 : vector<8x128xf32>
    %cst_130 = arith.constant 0.000000e+00 : f32
    %735 = vector.broadcast %cst_130 : f32 to vector<8x128xf32>
    %736 = arith.cmpf oeq, %726, %735 : vector<8x128xf32>
    %cst_131 = arith.constant 0.000000e+00 : f32
    %737 = vector.broadcast %cst_131 : f32 to vector<8x128xf32>
    %738 = arith.cmpf olt, %734, %737 : vector<8x128xf32>
    %739 = arith.ori %736, %738 : vector<8x128xi1>
    %cst_132 = arith.constant 0.000000e+00 : f32
    %740 = vector.broadcast %cst_132 : f32 to vector<8x128xf32>
    %741 = arith.cmpf oeq, %734, %740 : vector<8x128xf32>
    %742 = arith.cmpf ogt, %731, %726 : vector<8x128xf32>
    %743 = arith.andi %741, %742 : vector<8x128xi1>
    %744 = arith.ori %739, %743 : vector<8x128xi1>
    %cst_133 = arith.constant 0.000000e+00 : f32
    %745 = vector.broadcast %cst_133 : f32 to vector<8x128xf32>
    %746 = arith.cmpf ogt, %731, %745 : vector<8x128xf32>
    %747 = arith.andi %744, %746 : vector<8x128xi1>
    %748 = arith.select %747, %31, %722 : vector<8x128xi1>, vector<8x128xf32>
    %749 = arith.select %747, %43, %723 : vector<8x128xi1>, vector<8x128xf32>
    %750 = arith.select %747, %727, %724 : vector<8x128xi1>, vector<8x128xf32>
    %751 = arith.select %747, %728, %725 : vector<8x128xi1>, vector<8x128xf32>
    %752 = arith.select %747, %731, %726 : vector<8x128xi1>, vector<8x128xf32>
    %753 = arith.subf %34, %615 : vector<8x128xf32>
    %754 = arith.subf %46, %616 : vector<8x128xf32>
    %755 = arith.mulf %753, %753 : vector<8x128xf32>
    %756 = arith.mulf %754, %754 : vector<8x128xf32>
    %757 = arith.addf %755, %756 : vector<8x128xf32>
    %758 = arith.mulf %750, %754 : vector<8x128xf32>
    %759 = arith.mulf %751, %753 : vector<8x128xf32>
    %760 = arith.subf %758, %759 : vector<8x128xf32>
    %cst_134 = arith.constant 0.000000e+00 : f32
    %761 = vector.broadcast %cst_134 : f32 to vector<8x128xf32>
    %762 = arith.cmpf oeq, %752, %761 : vector<8x128xf32>
    %cst_135 = arith.constant 0.000000e+00 : f32
    %763 = vector.broadcast %cst_135 : f32 to vector<8x128xf32>
    %764 = arith.cmpf olt, %760, %763 : vector<8x128xf32>
    %765 = arith.ori %762, %764 : vector<8x128xi1>
    %cst_136 = arith.constant 0.000000e+00 : f32
    %766 = vector.broadcast %cst_136 : f32 to vector<8x128xf32>
    %767 = arith.cmpf oeq, %760, %766 : vector<8x128xf32>
    %768 = arith.cmpf ogt, %757, %752 : vector<8x128xf32>
    %769 = arith.andi %767, %768 : vector<8x128xi1>
    %770 = arith.ori %765, %769 : vector<8x128xi1>
    %cst_137 = arith.constant 0.000000e+00 : f32
    %771 = vector.broadcast %cst_137 : f32 to vector<8x128xf32>
    %772 = arith.cmpf ogt, %757, %771 : vector<8x128xf32>
    %773 = arith.andi %770, %772 : vector<8x128xi1>
    %774 = arith.select %773, %34, %748 : vector<8x128xi1>, vector<8x128xf32>
    %775 = arith.select %773, %46, %749 : vector<8x128xi1>, vector<8x128xf32>
    %776 = arith.select %773, %753, %750 : vector<8x128xi1>, vector<8x128xf32>
    %777 = arith.select %773, %754, %751 : vector<8x128xi1>, vector<8x128xf32>
    %778 = arith.select %773, %757, %752 : vector<8x128xi1>, vector<8x128xf32>
    %779 = arith.subf %37, %615 : vector<8x128xf32>
    %780 = arith.subf %49, %616 : vector<8x128xf32>
    %781 = arith.mulf %779, %779 : vector<8x128xf32>
    %782 = arith.mulf %780, %780 : vector<8x128xf32>
    %783 = arith.addf %781, %782 : vector<8x128xf32>
    %784 = arith.mulf %776, %780 : vector<8x128xf32>
    %785 = arith.mulf %777, %779 : vector<8x128xf32>
    %786 = arith.subf %784, %785 : vector<8x128xf32>
    %cst_138 = arith.constant 0.000000e+00 : f32
    %787 = vector.broadcast %cst_138 : f32 to vector<8x128xf32>
    %788 = arith.cmpf oeq, %778, %787 : vector<8x128xf32>
    %cst_139 = arith.constant 0.000000e+00 : f32
    %789 = vector.broadcast %cst_139 : f32 to vector<8x128xf32>
    %790 = arith.cmpf olt, %786, %789 : vector<8x128xf32>
    %791 = arith.ori %788, %790 : vector<8x128xi1>
    %cst_140 = arith.constant 0.000000e+00 : f32
    %792 = vector.broadcast %cst_140 : f32 to vector<8x128xf32>
    %793 = arith.cmpf oeq, %786, %792 : vector<8x128xf32>
    %794 = arith.cmpf ogt, %783, %778 : vector<8x128xf32>
    %795 = arith.andi %793, %794 : vector<8x128xi1>
    %796 = arith.ori %791, %795 : vector<8x128xi1>
    %cst_141 = arith.constant 0.000000e+00 : f32
    %797 = vector.broadcast %cst_141 : f32 to vector<8x128xf32>
    %798 = arith.cmpf ogt, %783, %797 : vector<8x128xf32>
    %799 = arith.andi %796, %798 : vector<8x128xi1>
    %800 = arith.select %799, %37, %774 : vector<8x128xi1>, vector<8x128xf32>
    %801 = arith.select %799, %49, %775 : vector<8x128xi1>, vector<8x128xf32>
    %802 = arith.cmpf oeq, %800, %615 : vector<8x128xf32>
    %803 = arith.cmpf oeq, %801, %616 : vector<8x128xf32>
    %804 = arith.andi %802, %803 : vector<8x128xi1>
    %805 = arith.ori %617, %804 : vector<8x128xi1>
    %806 = arith.select %805, %615, %800 : vector<8x128xi1>, vector<8x128xf32>
    %807 = arith.select %805, %616, %801 : vector<8x128xi1>, vector<8x128xf32>
    %808 = arith.subf %4, %806 : vector<8x128xf32>
    %809 = arith.subf %16, %807 : vector<8x128xf32>
    %810 = arith.mulf %808, %808 : vector<8x128xf32>
    %811 = arith.mulf %809, %809 : vector<8x128xf32>
    %812 = arith.addf %810, %811 : vector<8x128xf32>
    %813 = arith.subf %7, %806 : vector<8x128xf32>
    %814 = arith.subf %19, %807 : vector<8x128xf32>
    %815 = arith.mulf %813, %813 : vector<8x128xf32>
    %816 = arith.mulf %814, %814 : vector<8x128xf32>
    %817 = arith.addf %815, %816 : vector<8x128xf32>
    %818 = arith.mulf %808, %814 : vector<8x128xf32>
    %819 = arith.mulf %809, %813 : vector<8x128xf32>
    %820 = arith.subf %818, %819 : vector<8x128xf32>
    %cst_142 = arith.constant 0.000000e+00 : f32
    %821 = vector.broadcast %cst_142 : f32 to vector<8x128xf32>
    %822 = arith.cmpf oeq, %812, %821 : vector<8x128xf32>
    %cst_143 = arith.constant 0.000000e+00 : f32
    %823 = vector.broadcast %cst_143 : f32 to vector<8x128xf32>
    %824 = arith.cmpf olt, %820, %823 : vector<8x128xf32>
    %825 = arith.ori %822, %824 : vector<8x128xi1>
    %cst_144 = arith.constant 0.000000e+00 : f32
    %826 = vector.broadcast %cst_144 : f32 to vector<8x128xf32>
    %827 = arith.cmpf oeq, %820, %826 : vector<8x128xf32>
    %828 = arith.cmpf ogt, %817, %812 : vector<8x128xf32>
    %829 = arith.andi %827, %828 : vector<8x128xi1>
    %830 = arith.ori %825, %829 : vector<8x128xi1>
    %cst_145 = arith.constant 0.000000e+00 : f32
    %831 = vector.broadcast %cst_145 : f32 to vector<8x128xf32>
    %832 = arith.cmpf ogt, %817, %831 : vector<8x128xf32>
    %833 = arith.andi %830, %832 : vector<8x128xi1>
    %834 = arith.select %833, %7, %4 : vector<8x128xi1>, vector<8x128xf32>
    %835 = arith.select %833, %19, %16 : vector<8x128xi1>, vector<8x128xf32>
    %836 = arith.select %833, %813, %808 : vector<8x128xi1>, vector<8x128xf32>
    %837 = arith.select %833, %814, %809 : vector<8x128xi1>, vector<8x128xf32>
    %838 = arith.select %833, %817, %812 : vector<8x128xi1>, vector<8x128xf32>
    %839 = arith.subf %10, %806 : vector<8x128xf32>
    %840 = arith.subf %22, %807 : vector<8x128xf32>
    %841 = arith.mulf %839, %839 : vector<8x128xf32>
    %842 = arith.mulf %840, %840 : vector<8x128xf32>
    %843 = arith.addf %841, %842 : vector<8x128xf32>
    %844 = arith.mulf %836, %840 : vector<8x128xf32>
    %845 = arith.mulf %837, %839 : vector<8x128xf32>
    %846 = arith.subf %844, %845 : vector<8x128xf32>
    %cst_146 = arith.constant 0.000000e+00 : f32
    %847 = vector.broadcast %cst_146 : f32 to vector<8x128xf32>
    %848 = arith.cmpf oeq, %838, %847 : vector<8x128xf32>
    %cst_147 = arith.constant 0.000000e+00 : f32
    %849 = vector.broadcast %cst_147 : f32 to vector<8x128xf32>
    %850 = arith.cmpf olt, %846, %849 : vector<8x128xf32>
    %851 = arith.ori %848, %850 : vector<8x128xi1>
    %cst_148 = arith.constant 0.000000e+00 : f32
    %852 = vector.broadcast %cst_148 : f32 to vector<8x128xf32>
    %853 = arith.cmpf oeq, %846, %852 : vector<8x128xf32>
    %854 = arith.cmpf ogt, %843, %838 : vector<8x128xf32>
    %855 = arith.andi %853, %854 : vector<8x128xi1>
    %856 = arith.ori %851, %855 : vector<8x128xi1>
    %cst_149 = arith.constant 0.000000e+00 : f32
    %857 = vector.broadcast %cst_149 : f32 to vector<8x128xf32>
    %858 = arith.cmpf ogt, %843, %857 : vector<8x128xf32>
    %859 = arith.andi %856, %858 : vector<8x128xi1>
    %860 = arith.select %859, %10, %834 : vector<8x128xi1>, vector<8x128xf32>
    %861 = arith.select %859, %22, %835 : vector<8x128xi1>, vector<8x128xf32>
    %862 = arith.select %859, %839, %836 : vector<8x128xi1>, vector<8x128xf32>
    %863 = arith.select %859, %840, %837 : vector<8x128xi1>, vector<8x128xf32>
    %864 = arith.select %859, %843, %838 : vector<8x128xi1>, vector<8x128xf32>
    %865 = arith.subf %13, %806 : vector<8x128xf32>
    %866 = arith.subf %25, %807 : vector<8x128xf32>
    %867 = arith.mulf %865, %865 : vector<8x128xf32>
    %868 = arith.mulf %866, %866 : vector<8x128xf32>
    %869 = arith.addf %867, %868 : vector<8x128xf32>
    %870 = arith.mulf %862, %866 : vector<8x128xf32>
    %871 = arith.mulf %863, %865 : vector<8x128xf32>
    %872 = arith.subf %870, %871 : vector<8x128xf32>
    %cst_150 = arith.constant 0.000000e+00 : f32
    %873 = vector.broadcast %cst_150 : f32 to vector<8x128xf32>
    %874 = arith.cmpf oeq, %864, %873 : vector<8x128xf32>
    %cst_151 = arith.constant 0.000000e+00 : f32
    %875 = vector.broadcast %cst_151 : f32 to vector<8x128xf32>
    %876 = arith.cmpf olt, %872, %875 : vector<8x128xf32>
    %877 = arith.ori %874, %876 : vector<8x128xi1>
    %cst_152 = arith.constant 0.000000e+00 : f32
    %878 = vector.broadcast %cst_152 : f32 to vector<8x128xf32>
    %879 = arith.cmpf oeq, %872, %878 : vector<8x128xf32>
    %880 = arith.cmpf ogt, %869, %864 : vector<8x128xf32>
    %881 = arith.andi %879, %880 : vector<8x128xi1>
    %882 = arith.ori %877, %881 : vector<8x128xi1>
    %cst_153 = arith.constant 0.000000e+00 : f32
    %883 = vector.broadcast %cst_153 : f32 to vector<8x128xf32>
    %884 = arith.cmpf ogt, %869, %883 : vector<8x128xf32>
    %885 = arith.andi %882, %884 : vector<8x128xi1>
    %886 = arith.select %885, %13, %860 : vector<8x128xi1>, vector<8x128xf32>
    %887 = arith.select %885, %25, %861 : vector<8x128xi1>, vector<8x128xf32>
    %888 = arith.select %885, %865, %862 : vector<8x128xi1>, vector<8x128xf32>
    %889 = arith.select %885, %866, %863 : vector<8x128xi1>, vector<8x128xf32>
    %890 = arith.select %885, %869, %864 : vector<8x128xi1>, vector<8x128xf32>
    %891 = arith.subf %28, %806 : vector<8x128xf32>
    %892 = arith.subf %40, %807 : vector<8x128xf32>
    %893 = arith.mulf %891, %891 : vector<8x128xf32>
    %894 = arith.mulf %892, %892 : vector<8x128xf32>
    %895 = arith.addf %893, %894 : vector<8x128xf32>
    %896 = arith.mulf %888, %892 : vector<8x128xf32>
    %897 = arith.mulf %889, %891 : vector<8x128xf32>
    %898 = arith.subf %896, %897 : vector<8x128xf32>
    %cst_154 = arith.constant 0.000000e+00 : f32
    %899 = vector.broadcast %cst_154 : f32 to vector<8x128xf32>
    %900 = arith.cmpf oeq, %890, %899 : vector<8x128xf32>
    %cst_155 = arith.constant 0.000000e+00 : f32
    %901 = vector.broadcast %cst_155 : f32 to vector<8x128xf32>
    %902 = arith.cmpf olt, %898, %901 : vector<8x128xf32>
    %903 = arith.ori %900, %902 : vector<8x128xi1>
    %cst_156 = arith.constant 0.000000e+00 : f32
    %904 = vector.broadcast %cst_156 : f32 to vector<8x128xf32>
    %905 = arith.cmpf oeq, %898, %904 : vector<8x128xf32>
    %906 = arith.cmpf ogt, %895, %890 : vector<8x128xf32>
    %907 = arith.andi %905, %906 : vector<8x128xi1>
    %908 = arith.ori %903, %907 : vector<8x128xi1>
    %cst_157 = arith.constant 0.000000e+00 : f32
    %909 = vector.broadcast %cst_157 : f32 to vector<8x128xf32>
    %910 = arith.cmpf ogt, %895, %909 : vector<8x128xf32>
    %911 = arith.andi %908, %910 : vector<8x128xi1>
    %912 = arith.select %911, %28, %886 : vector<8x128xi1>, vector<8x128xf32>
    %913 = arith.select %911, %40, %887 : vector<8x128xi1>, vector<8x128xf32>
    %914 = arith.select %911, %891, %888 : vector<8x128xi1>, vector<8x128xf32>
    %915 = arith.select %911, %892, %889 : vector<8x128xi1>, vector<8x128xf32>
    %916 = arith.select %911, %895, %890 : vector<8x128xi1>, vector<8x128xf32>
    %917 = arith.subf %31, %806 : vector<8x128xf32>
    %918 = arith.subf %43, %807 : vector<8x128xf32>
    %919 = arith.mulf %917, %917 : vector<8x128xf32>
    %920 = arith.mulf %918, %918 : vector<8x128xf32>
    %921 = arith.addf %919, %920 : vector<8x128xf32>
    %922 = arith.mulf %914, %918 : vector<8x128xf32>
    %923 = arith.mulf %915, %917 : vector<8x128xf32>
    %924 = arith.subf %922, %923 : vector<8x128xf32>
    %cst_158 = arith.constant 0.000000e+00 : f32
    %925 = vector.broadcast %cst_158 : f32 to vector<8x128xf32>
    %926 = arith.cmpf oeq, %916, %925 : vector<8x128xf32>
    %cst_159 = arith.constant 0.000000e+00 : f32
    %927 = vector.broadcast %cst_159 : f32 to vector<8x128xf32>
    %928 = arith.cmpf olt, %924, %927 : vector<8x128xf32>
    %929 = arith.ori %926, %928 : vector<8x128xi1>
    %cst_160 = arith.constant 0.000000e+00 : f32
    %930 = vector.broadcast %cst_160 : f32 to vector<8x128xf32>
    %931 = arith.cmpf oeq, %924, %930 : vector<8x128xf32>
    %932 = arith.cmpf ogt, %921, %916 : vector<8x128xf32>
    %933 = arith.andi %931, %932 : vector<8x128xi1>
    %934 = arith.ori %929, %933 : vector<8x128xi1>
    %cst_161 = arith.constant 0.000000e+00 : f32
    %935 = vector.broadcast %cst_161 : f32 to vector<8x128xf32>
    %936 = arith.cmpf ogt, %921, %935 : vector<8x128xf32>
    %937 = arith.andi %934, %936 : vector<8x128xi1>
    %938 = arith.select %937, %31, %912 : vector<8x128xi1>, vector<8x128xf32>
    %939 = arith.select %937, %43, %913 : vector<8x128xi1>, vector<8x128xf32>
    %940 = arith.select %937, %917, %914 : vector<8x128xi1>, vector<8x128xf32>
    %941 = arith.select %937, %918, %915 : vector<8x128xi1>, vector<8x128xf32>
    %942 = arith.select %937, %921, %916 : vector<8x128xi1>, vector<8x128xf32>
    %943 = arith.subf %34, %806 : vector<8x128xf32>
    %944 = arith.subf %46, %807 : vector<8x128xf32>
    %945 = arith.mulf %943, %943 : vector<8x128xf32>
    %946 = arith.mulf %944, %944 : vector<8x128xf32>
    %947 = arith.addf %945, %946 : vector<8x128xf32>
    %948 = arith.mulf %940, %944 : vector<8x128xf32>
    %949 = arith.mulf %941, %943 : vector<8x128xf32>
    %950 = arith.subf %948, %949 : vector<8x128xf32>
    %cst_162 = arith.constant 0.000000e+00 : f32
    %951 = vector.broadcast %cst_162 : f32 to vector<8x128xf32>
    %952 = arith.cmpf oeq, %942, %951 : vector<8x128xf32>
    %cst_163 = arith.constant 0.000000e+00 : f32
    %953 = vector.broadcast %cst_163 : f32 to vector<8x128xf32>
    %954 = arith.cmpf olt, %950, %953 : vector<8x128xf32>
    %955 = arith.ori %952, %954 : vector<8x128xi1>
    %cst_164 = arith.constant 0.000000e+00 : f32
    %956 = vector.broadcast %cst_164 : f32 to vector<8x128xf32>
    %957 = arith.cmpf oeq, %950, %956 : vector<8x128xf32>
    %958 = arith.cmpf ogt, %947, %942 : vector<8x128xf32>
    %959 = arith.andi %957, %958 : vector<8x128xi1>
    %960 = arith.ori %955, %959 : vector<8x128xi1>
    %cst_165 = arith.constant 0.000000e+00 : f32
    %961 = vector.broadcast %cst_165 : f32 to vector<8x128xf32>
    %962 = arith.cmpf ogt, %947, %961 : vector<8x128xf32>
    %963 = arith.andi %960, %962 : vector<8x128xi1>
    %964 = arith.select %963, %34, %938 : vector<8x128xi1>, vector<8x128xf32>
    %965 = arith.select %963, %46, %939 : vector<8x128xi1>, vector<8x128xf32>
    %966 = arith.select %963, %943, %940 : vector<8x128xi1>, vector<8x128xf32>
    %967 = arith.select %963, %944, %941 : vector<8x128xi1>, vector<8x128xf32>
    %968 = arith.select %963, %947, %942 : vector<8x128xi1>, vector<8x128xf32>
    %969 = arith.subf %37, %806 : vector<8x128xf32>
    %970 = arith.subf %49, %807 : vector<8x128xf32>
    %971 = arith.mulf %969, %969 : vector<8x128xf32>
    %972 = arith.mulf %970, %970 : vector<8x128xf32>
    %973 = arith.addf %971, %972 : vector<8x128xf32>
    %974 = arith.mulf %966, %970 : vector<8x128xf32>
    %975 = arith.mulf %967, %969 : vector<8x128xf32>
    %976 = arith.subf %974, %975 : vector<8x128xf32>
    %cst_166 = arith.constant 0.000000e+00 : f32
    %977 = vector.broadcast %cst_166 : f32 to vector<8x128xf32>
    %978 = arith.cmpf oeq, %968, %977 : vector<8x128xf32>
    %cst_167 = arith.constant 0.000000e+00 : f32
    %979 = vector.broadcast %cst_167 : f32 to vector<8x128xf32>
    %980 = arith.cmpf olt, %976, %979 : vector<8x128xf32>
    %981 = arith.ori %978, %980 : vector<8x128xi1>
    %cst_168 = arith.constant 0.000000e+00 : f32
    %982 = vector.broadcast %cst_168 : f32 to vector<8x128xf32>
    %983 = arith.cmpf oeq, %976, %982 : vector<8x128xf32>
    %984 = arith.cmpf ogt, %973, %968 : vector<8x128xf32>
    %985 = arith.andi %983, %984 : vector<8x128xi1>
    %986 = arith.ori %981, %985 : vector<8x128xi1>
    %cst_169 = arith.constant 0.000000e+00 : f32
    %987 = vector.broadcast %cst_169 : f32 to vector<8x128xf32>
    %988 = arith.cmpf ogt, %973, %987 : vector<8x128xf32>
    %989 = arith.andi %986, %988 : vector<8x128xi1>
    %990 = arith.select %989, %37, %964 : vector<8x128xi1>, vector<8x128xf32>
    %991 = arith.select %989, %49, %965 : vector<8x128xi1>, vector<8x128xf32>
    %992 = arith.cmpf oeq, %990, %615 : vector<8x128xf32>
    %993 = arith.cmpf oeq, %991, %616 : vector<8x128xf32>
    %994 = arith.andi %992, %993 : vector<8x128xi1>
    %995 = arith.ori %805, %994 : vector<8x128xi1>
    %996 = arith.select %995, %615, %990 : vector<8x128xi1>, vector<8x128xf32>
    %997 = arith.select %995, %616, %991 : vector<8x128xi1>, vector<8x128xf32>
    %998 = arith.subf %4, %996 : vector<8x128xf32>
    %999 = arith.subf %16, %997 : vector<8x128xf32>
    %1000 = arith.mulf %998, %998 : vector<8x128xf32>
    %1001 = arith.mulf %999, %999 : vector<8x128xf32>
    %1002 = arith.addf %1000, %1001 : vector<8x128xf32>
    %1003 = arith.subf %7, %996 : vector<8x128xf32>
    %1004 = arith.subf %19, %997 : vector<8x128xf32>
    %1005 = arith.mulf %1003, %1003 : vector<8x128xf32>
    %1006 = arith.mulf %1004, %1004 : vector<8x128xf32>
    %1007 = arith.addf %1005, %1006 : vector<8x128xf32>
    %1008 = arith.mulf %998, %1004 : vector<8x128xf32>
    %1009 = arith.mulf %999, %1003 : vector<8x128xf32>
    %1010 = arith.subf %1008, %1009 : vector<8x128xf32>
    %cst_170 = arith.constant 0.000000e+00 : f32
    %1011 = vector.broadcast %cst_170 : f32 to vector<8x128xf32>
    %1012 = arith.cmpf oeq, %1002, %1011 : vector<8x128xf32>
    %cst_171 = arith.constant 0.000000e+00 : f32
    %1013 = vector.broadcast %cst_171 : f32 to vector<8x128xf32>
    %1014 = arith.cmpf olt, %1010, %1013 : vector<8x128xf32>
    %1015 = arith.ori %1012, %1014 : vector<8x128xi1>
    %cst_172 = arith.constant 0.000000e+00 : f32
    %1016 = vector.broadcast %cst_172 : f32 to vector<8x128xf32>
    %1017 = arith.cmpf oeq, %1010, %1016 : vector<8x128xf32>
    %1018 = arith.cmpf ogt, %1007, %1002 : vector<8x128xf32>
    %1019 = arith.andi %1017, %1018 : vector<8x128xi1>
    %1020 = arith.ori %1015, %1019 : vector<8x128xi1>
    %cst_173 = arith.constant 0.000000e+00 : f32
    %1021 = vector.broadcast %cst_173 : f32 to vector<8x128xf32>
    %1022 = arith.cmpf ogt, %1007, %1021 : vector<8x128xf32>
    %1023 = arith.andi %1020, %1022 : vector<8x128xi1>
    %1024 = arith.select %1023, %7, %4 : vector<8x128xi1>, vector<8x128xf32>
    %1025 = arith.select %1023, %19, %16 : vector<8x128xi1>, vector<8x128xf32>
    %1026 = arith.select %1023, %1003, %998 : vector<8x128xi1>, vector<8x128xf32>
    %1027 = arith.select %1023, %1004, %999 : vector<8x128xi1>, vector<8x128xf32>
    %1028 = arith.select %1023, %1007, %1002 : vector<8x128xi1>, vector<8x128xf32>
    %1029 = arith.subf %10, %996 : vector<8x128xf32>
    %1030 = arith.subf %22, %997 : vector<8x128xf32>
    %1031 = arith.mulf %1029, %1029 : vector<8x128xf32>
    %1032 = arith.mulf %1030, %1030 : vector<8x128xf32>
    %1033 = arith.addf %1031, %1032 : vector<8x128xf32>
    %1034 = arith.mulf %1026, %1030 : vector<8x128xf32>
    %1035 = arith.mulf %1027, %1029 : vector<8x128xf32>
    %1036 = arith.subf %1034, %1035 : vector<8x128xf32>
    %cst_174 = arith.constant 0.000000e+00 : f32
    %1037 = vector.broadcast %cst_174 : f32 to vector<8x128xf32>
    %1038 = arith.cmpf oeq, %1028, %1037 : vector<8x128xf32>
    %cst_175 = arith.constant 0.000000e+00 : f32
    %1039 = vector.broadcast %cst_175 : f32 to vector<8x128xf32>
    %1040 = arith.cmpf olt, %1036, %1039 : vector<8x128xf32>
    %1041 = arith.ori %1038, %1040 : vector<8x128xi1>
    %cst_176 = arith.constant 0.000000e+00 : f32
    %1042 = vector.broadcast %cst_176 : f32 to vector<8x128xf32>
    %1043 = arith.cmpf oeq, %1036, %1042 : vector<8x128xf32>
    %1044 = arith.cmpf ogt, %1033, %1028 : vector<8x128xf32>
    %1045 = arith.andi %1043, %1044 : vector<8x128xi1>
    %1046 = arith.ori %1041, %1045 : vector<8x128xi1>
    %cst_177 = arith.constant 0.000000e+00 : f32
    %1047 = vector.broadcast %cst_177 : f32 to vector<8x128xf32>
    %1048 = arith.cmpf ogt, %1033, %1047 : vector<8x128xf32>
    %1049 = arith.andi %1046, %1048 : vector<8x128xi1>
    %1050 = arith.select %1049, %10, %1024 : vector<8x128xi1>, vector<8x128xf32>
    %1051 = arith.select %1049, %22, %1025 : vector<8x128xi1>, vector<8x128xf32>
    %1052 = arith.select %1049, %1029, %1026 : vector<8x128xi1>, vector<8x128xf32>
    %1053 = arith.select %1049, %1030, %1027 : vector<8x128xi1>, vector<8x128xf32>
    %1054 = arith.select %1049, %1033, %1028 : vector<8x128xi1>, vector<8x128xf32>
    %1055 = arith.subf %13, %996 : vector<8x128xf32>
    %1056 = arith.subf %25, %997 : vector<8x128xf32>
    %1057 = arith.mulf %1055, %1055 : vector<8x128xf32>
    %1058 = arith.mulf %1056, %1056 : vector<8x128xf32>
    %1059 = arith.addf %1057, %1058 : vector<8x128xf32>
    %1060 = arith.mulf %1052, %1056 : vector<8x128xf32>
    %1061 = arith.mulf %1053, %1055 : vector<8x128xf32>
    %1062 = arith.subf %1060, %1061 : vector<8x128xf32>
    %cst_178 = arith.constant 0.000000e+00 : f32
    %1063 = vector.broadcast %cst_178 : f32 to vector<8x128xf32>
    %1064 = arith.cmpf oeq, %1054, %1063 : vector<8x128xf32>
    %cst_179 = arith.constant 0.000000e+00 : f32
    %1065 = vector.broadcast %cst_179 : f32 to vector<8x128xf32>
    %1066 = arith.cmpf olt, %1062, %1065 : vector<8x128xf32>
    %1067 = arith.ori %1064, %1066 : vector<8x128xi1>
    %cst_180 = arith.constant 0.000000e+00 : f32
    %1068 = vector.broadcast %cst_180 : f32 to vector<8x128xf32>
    %1069 = arith.cmpf oeq, %1062, %1068 : vector<8x128xf32>
    %1070 = arith.cmpf ogt, %1059, %1054 : vector<8x128xf32>
    %1071 = arith.andi %1069, %1070 : vector<8x128xi1>
    %1072 = arith.ori %1067, %1071 : vector<8x128xi1>
    %cst_181 = arith.constant 0.000000e+00 : f32
    %1073 = vector.broadcast %cst_181 : f32 to vector<8x128xf32>
    %1074 = arith.cmpf ogt, %1059, %1073 : vector<8x128xf32>
    %1075 = arith.andi %1072, %1074 : vector<8x128xi1>
    %1076 = arith.select %1075, %13, %1050 : vector<8x128xi1>, vector<8x128xf32>
    %1077 = arith.select %1075, %25, %1051 : vector<8x128xi1>, vector<8x128xf32>
    %1078 = arith.select %1075, %1055, %1052 : vector<8x128xi1>, vector<8x128xf32>
    %1079 = arith.select %1075, %1056, %1053 : vector<8x128xi1>, vector<8x128xf32>
    %1080 = arith.select %1075, %1059, %1054 : vector<8x128xi1>, vector<8x128xf32>
    %1081 = arith.subf %28, %996 : vector<8x128xf32>
    %1082 = arith.subf %40, %997 : vector<8x128xf32>
    %1083 = arith.mulf %1081, %1081 : vector<8x128xf32>
    %1084 = arith.mulf %1082, %1082 : vector<8x128xf32>
    %1085 = arith.addf %1083, %1084 : vector<8x128xf32>
    %1086 = arith.mulf %1078, %1082 : vector<8x128xf32>
    %1087 = arith.mulf %1079, %1081 : vector<8x128xf32>
    %1088 = arith.subf %1086, %1087 : vector<8x128xf32>
    %cst_182 = arith.constant 0.000000e+00 : f32
    %1089 = vector.broadcast %cst_182 : f32 to vector<8x128xf32>
    %1090 = arith.cmpf oeq, %1080, %1089 : vector<8x128xf32>
    %cst_183 = arith.constant 0.000000e+00 : f32
    %1091 = vector.broadcast %cst_183 : f32 to vector<8x128xf32>
    %1092 = arith.cmpf olt, %1088, %1091 : vector<8x128xf32>
    %1093 = arith.ori %1090, %1092 : vector<8x128xi1>
    %cst_184 = arith.constant 0.000000e+00 : f32
    %1094 = vector.broadcast %cst_184 : f32 to vector<8x128xf32>
    %1095 = arith.cmpf oeq, %1088, %1094 : vector<8x128xf32>
    %1096 = arith.cmpf ogt, %1085, %1080 : vector<8x128xf32>
    %1097 = arith.andi %1095, %1096 : vector<8x128xi1>
    %1098 = arith.ori %1093, %1097 : vector<8x128xi1>
    %cst_185 = arith.constant 0.000000e+00 : f32
    %1099 = vector.broadcast %cst_185 : f32 to vector<8x128xf32>
    %1100 = arith.cmpf ogt, %1085, %1099 : vector<8x128xf32>
    %1101 = arith.andi %1098, %1100 : vector<8x128xi1>
    %1102 = arith.select %1101, %28, %1076 : vector<8x128xi1>, vector<8x128xf32>
    %1103 = arith.select %1101, %40, %1077 : vector<8x128xi1>, vector<8x128xf32>
    %1104 = arith.select %1101, %1081, %1078 : vector<8x128xi1>, vector<8x128xf32>
    %1105 = arith.select %1101, %1082, %1079 : vector<8x128xi1>, vector<8x128xf32>
    %1106 = arith.select %1101, %1085, %1080 : vector<8x128xi1>, vector<8x128xf32>
    %1107 = arith.subf %31, %996 : vector<8x128xf32>
    %1108 = arith.subf %43, %997 : vector<8x128xf32>
    %1109 = arith.mulf %1107, %1107 : vector<8x128xf32>
    %1110 = arith.mulf %1108, %1108 : vector<8x128xf32>
    %1111 = arith.addf %1109, %1110 : vector<8x128xf32>
    %1112 = arith.mulf %1104, %1108 : vector<8x128xf32>
    %1113 = arith.mulf %1105, %1107 : vector<8x128xf32>
    %1114 = arith.subf %1112, %1113 : vector<8x128xf32>
    %cst_186 = arith.constant 0.000000e+00 : f32
    %1115 = vector.broadcast %cst_186 : f32 to vector<8x128xf32>
    %1116 = arith.cmpf oeq, %1106, %1115 : vector<8x128xf32>
    %cst_187 = arith.constant 0.000000e+00 : f32
    %1117 = vector.broadcast %cst_187 : f32 to vector<8x128xf32>
    %1118 = arith.cmpf olt, %1114, %1117 : vector<8x128xf32>
    %1119 = arith.ori %1116, %1118 : vector<8x128xi1>
    %cst_188 = arith.constant 0.000000e+00 : f32
    %1120 = vector.broadcast %cst_188 : f32 to vector<8x128xf32>
    %1121 = arith.cmpf oeq, %1114, %1120 : vector<8x128xf32>
    %1122 = arith.cmpf ogt, %1111, %1106 : vector<8x128xf32>
    %1123 = arith.andi %1121, %1122 : vector<8x128xi1>
    %1124 = arith.ori %1119, %1123 : vector<8x128xi1>
    %cst_189 = arith.constant 0.000000e+00 : f32
    %1125 = vector.broadcast %cst_189 : f32 to vector<8x128xf32>
    %1126 = arith.cmpf ogt, %1111, %1125 : vector<8x128xf32>
    %1127 = arith.andi %1124, %1126 : vector<8x128xi1>
    %1128 = arith.select %1127, %31, %1102 : vector<8x128xi1>, vector<8x128xf32>
    %1129 = arith.select %1127, %43, %1103 : vector<8x128xi1>, vector<8x128xf32>
    %1130 = arith.select %1127, %1107, %1104 : vector<8x128xi1>, vector<8x128xf32>
    %1131 = arith.select %1127, %1108, %1105 : vector<8x128xi1>, vector<8x128xf32>
    %1132 = arith.select %1127, %1111, %1106 : vector<8x128xi1>, vector<8x128xf32>
    %1133 = arith.subf %34, %996 : vector<8x128xf32>
    %1134 = arith.subf %46, %997 : vector<8x128xf32>
    %1135 = arith.mulf %1133, %1133 : vector<8x128xf32>
    %1136 = arith.mulf %1134, %1134 : vector<8x128xf32>
    %1137 = arith.addf %1135, %1136 : vector<8x128xf32>
    %1138 = arith.mulf %1130, %1134 : vector<8x128xf32>
    %1139 = arith.mulf %1131, %1133 : vector<8x128xf32>
    %1140 = arith.subf %1138, %1139 : vector<8x128xf32>
    %cst_190 = arith.constant 0.000000e+00 : f32
    %1141 = vector.broadcast %cst_190 : f32 to vector<8x128xf32>
    %1142 = arith.cmpf oeq, %1132, %1141 : vector<8x128xf32>
    %cst_191 = arith.constant 0.000000e+00 : f32
    %1143 = vector.broadcast %cst_191 : f32 to vector<8x128xf32>
    %1144 = arith.cmpf olt, %1140, %1143 : vector<8x128xf32>
    %1145 = arith.ori %1142, %1144 : vector<8x128xi1>
    %cst_192 = arith.constant 0.000000e+00 : f32
    %1146 = vector.broadcast %cst_192 : f32 to vector<8x128xf32>
    %1147 = arith.cmpf oeq, %1140, %1146 : vector<8x128xf32>
    %1148 = arith.cmpf ogt, %1137, %1132 : vector<8x128xf32>
    %1149 = arith.andi %1147, %1148 : vector<8x128xi1>
    %1150 = arith.ori %1145, %1149 : vector<8x128xi1>
    %cst_193 = arith.constant 0.000000e+00 : f32
    %1151 = vector.broadcast %cst_193 : f32 to vector<8x128xf32>
    %1152 = arith.cmpf ogt, %1137, %1151 : vector<8x128xf32>
    %1153 = arith.andi %1150, %1152 : vector<8x128xi1>
    %1154 = arith.select %1153, %34, %1128 : vector<8x128xi1>, vector<8x128xf32>
    %1155 = arith.select %1153, %46, %1129 : vector<8x128xi1>, vector<8x128xf32>
    %1156 = arith.select %1153, %1133, %1130 : vector<8x128xi1>, vector<8x128xf32>
    %1157 = arith.select %1153, %1134, %1131 : vector<8x128xi1>, vector<8x128xf32>
    %1158 = arith.select %1153, %1137, %1132 : vector<8x128xi1>, vector<8x128xf32>
    %1159 = arith.subf %37, %996 : vector<8x128xf32>
    %1160 = arith.subf %49, %997 : vector<8x128xf32>
    %1161 = arith.mulf %1159, %1159 : vector<8x128xf32>
    %1162 = arith.mulf %1160, %1160 : vector<8x128xf32>
    %1163 = arith.addf %1161, %1162 : vector<8x128xf32>
    %1164 = arith.mulf %1156, %1160 : vector<8x128xf32>
    %1165 = arith.mulf %1157, %1159 : vector<8x128xf32>
    %1166 = arith.subf %1164, %1165 : vector<8x128xf32>
    %cst_194 = arith.constant 0.000000e+00 : f32
    %1167 = vector.broadcast %cst_194 : f32 to vector<8x128xf32>
    %1168 = arith.cmpf oeq, %1158, %1167 : vector<8x128xf32>
    %cst_195 = arith.constant 0.000000e+00 : f32
    %1169 = vector.broadcast %cst_195 : f32 to vector<8x128xf32>
    %1170 = arith.cmpf olt, %1166, %1169 : vector<8x128xf32>
    %1171 = arith.ori %1168, %1170 : vector<8x128xi1>
    %cst_196 = arith.constant 0.000000e+00 : f32
    %1172 = vector.broadcast %cst_196 : f32 to vector<8x128xf32>
    %1173 = arith.cmpf oeq, %1166, %1172 : vector<8x128xf32>
    %1174 = arith.cmpf ogt, %1163, %1158 : vector<8x128xf32>
    %1175 = arith.andi %1173, %1174 : vector<8x128xi1>
    %1176 = arith.ori %1171, %1175 : vector<8x128xi1>
    %cst_197 = arith.constant 0.000000e+00 : f32
    %1177 = vector.broadcast %cst_197 : f32 to vector<8x128xf32>
    %1178 = arith.cmpf ogt, %1163, %1177 : vector<8x128xf32>
    %1179 = arith.andi %1176, %1178 : vector<8x128xi1>
    %1180 = arith.select %1179, %37, %1154 : vector<8x128xi1>, vector<8x128xf32>
    %1181 = arith.select %1179, %49, %1155 : vector<8x128xi1>, vector<8x128xf32>
    %1182 = arith.cmpf oeq, %1180, %615 : vector<8x128xf32>
    %1183 = arith.cmpf oeq, %1181, %616 : vector<8x128xf32>
    %1184 = arith.andi %1182, %1183 : vector<8x128xi1>
    %1185 = arith.ori %995, %1184 : vector<8x128xi1>
    %1186 = arith.select %1185, %615, %1180 : vector<8x128xi1>, vector<8x128xf32>
    %1187 = arith.select %1185, %616, %1181 : vector<8x128xi1>, vector<8x128xf32>
    %1188 = arith.subf %4, %1186 : vector<8x128xf32>
    %1189 = arith.subf %16, %1187 : vector<8x128xf32>
    %1190 = arith.mulf %1188, %1188 : vector<8x128xf32>
    %1191 = arith.mulf %1189, %1189 : vector<8x128xf32>
    %1192 = arith.addf %1190, %1191 : vector<8x128xf32>
    %1193 = arith.subf %7, %1186 : vector<8x128xf32>
    %1194 = arith.subf %19, %1187 : vector<8x128xf32>
    %1195 = arith.mulf %1193, %1193 : vector<8x128xf32>
    %1196 = arith.mulf %1194, %1194 : vector<8x128xf32>
    %1197 = arith.addf %1195, %1196 : vector<8x128xf32>
    %1198 = arith.mulf %1188, %1194 : vector<8x128xf32>
    %1199 = arith.mulf %1189, %1193 : vector<8x128xf32>
    %1200 = arith.subf %1198, %1199 : vector<8x128xf32>
    %cst_198 = arith.constant 0.000000e+00 : f32
    %1201 = vector.broadcast %cst_198 : f32 to vector<8x128xf32>
    %1202 = arith.cmpf oeq, %1192, %1201 : vector<8x128xf32>
    %cst_199 = arith.constant 0.000000e+00 : f32
    %1203 = vector.broadcast %cst_199 : f32 to vector<8x128xf32>
    %1204 = arith.cmpf olt, %1200, %1203 : vector<8x128xf32>
    %1205 = arith.ori %1202, %1204 : vector<8x128xi1>
    %cst_200 = arith.constant 0.000000e+00 : f32
    %1206 = vector.broadcast %cst_200 : f32 to vector<8x128xf32>
    %1207 = arith.cmpf oeq, %1200, %1206 : vector<8x128xf32>
    %1208 = arith.cmpf ogt, %1197, %1192 : vector<8x128xf32>
    %1209 = arith.andi %1207, %1208 : vector<8x128xi1>
    %1210 = arith.ori %1205, %1209 : vector<8x128xi1>
    %cst_201 = arith.constant 0.000000e+00 : f32
    %1211 = vector.broadcast %cst_201 : f32 to vector<8x128xf32>
    %1212 = arith.cmpf ogt, %1197, %1211 : vector<8x128xf32>
    %1213 = arith.andi %1210, %1212 : vector<8x128xi1>
    %1214 = arith.select %1213, %7, %4 : vector<8x128xi1>, vector<8x128xf32>
    %1215 = arith.select %1213, %19, %16 : vector<8x128xi1>, vector<8x128xf32>
    %1216 = arith.select %1213, %1193, %1188 : vector<8x128xi1>, vector<8x128xf32>
    %1217 = arith.select %1213, %1194, %1189 : vector<8x128xi1>, vector<8x128xf32>
    %1218 = arith.select %1213, %1197, %1192 : vector<8x128xi1>, vector<8x128xf32>
    %1219 = arith.subf %10, %1186 : vector<8x128xf32>
    %1220 = arith.subf %22, %1187 : vector<8x128xf32>
    %1221 = arith.mulf %1219, %1219 : vector<8x128xf32>
    %1222 = arith.mulf %1220, %1220 : vector<8x128xf32>
    %1223 = arith.addf %1221, %1222 : vector<8x128xf32>
    %1224 = arith.mulf %1216, %1220 : vector<8x128xf32>
    %1225 = arith.mulf %1217, %1219 : vector<8x128xf32>
    %1226 = arith.subf %1224, %1225 : vector<8x128xf32>
    %cst_202 = arith.constant 0.000000e+00 : f32
    %1227 = vector.broadcast %cst_202 : f32 to vector<8x128xf32>
    %1228 = arith.cmpf oeq, %1218, %1227 : vector<8x128xf32>
    %cst_203 = arith.constant 0.000000e+00 : f32
    %1229 = vector.broadcast %cst_203 : f32 to vector<8x128xf32>
    %1230 = arith.cmpf olt, %1226, %1229 : vector<8x128xf32>
    %1231 = arith.ori %1228, %1230 : vector<8x128xi1>
    %cst_204 = arith.constant 0.000000e+00 : f32
    %1232 = vector.broadcast %cst_204 : f32 to vector<8x128xf32>
    %1233 = arith.cmpf oeq, %1226, %1232 : vector<8x128xf32>
    %1234 = arith.cmpf ogt, %1223, %1218 : vector<8x128xf32>
    %1235 = arith.andi %1233, %1234 : vector<8x128xi1>
    %1236 = arith.ori %1231, %1235 : vector<8x128xi1>
    %cst_205 = arith.constant 0.000000e+00 : f32
    %1237 = vector.broadcast %cst_205 : f32 to vector<8x128xf32>
    %1238 = arith.cmpf ogt, %1223, %1237 : vector<8x128xf32>
    %1239 = arith.andi %1236, %1238 : vector<8x128xi1>
    %1240 = arith.select %1239, %10, %1214 : vector<8x128xi1>, vector<8x128xf32>
    %1241 = arith.select %1239, %22, %1215 : vector<8x128xi1>, vector<8x128xf32>
    %1242 = arith.select %1239, %1219, %1216 : vector<8x128xi1>, vector<8x128xf32>
    %1243 = arith.select %1239, %1220, %1217 : vector<8x128xi1>, vector<8x128xf32>
    %1244 = arith.select %1239, %1223, %1218 : vector<8x128xi1>, vector<8x128xf32>
    %1245 = arith.subf %13, %1186 : vector<8x128xf32>
    %1246 = arith.subf %25, %1187 : vector<8x128xf32>
    %1247 = arith.mulf %1245, %1245 : vector<8x128xf32>
    %1248 = arith.mulf %1246, %1246 : vector<8x128xf32>
    %1249 = arith.addf %1247, %1248 : vector<8x128xf32>
    %1250 = arith.mulf %1242, %1246 : vector<8x128xf32>
    %1251 = arith.mulf %1243, %1245 : vector<8x128xf32>
    %1252 = arith.subf %1250, %1251 : vector<8x128xf32>
    %cst_206 = arith.constant 0.000000e+00 : f32
    %1253 = vector.broadcast %cst_206 : f32 to vector<8x128xf32>
    %1254 = arith.cmpf oeq, %1244, %1253 : vector<8x128xf32>
    %cst_207 = arith.constant 0.000000e+00 : f32
    %1255 = vector.broadcast %cst_207 : f32 to vector<8x128xf32>
    %1256 = arith.cmpf olt, %1252, %1255 : vector<8x128xf32>
    %1257 = arith.ori %1254, %1256 : vector<8x128xi1>
    %cst_208 = arith.constant 0.000000e+00 : f32
    %1258 = vector.broadcast %cst_208 : f32 to vector<8x128xf32>
    %1259 = arith.cmpf oeq, %1252, %1258 : vector<8x128xf32>
    %1260 = arith.cmpf ogt, %1249, %1244 : vector<8x128xf32>
    %1261 = arith.andi %1259, %1260 : vector<8x128xi1>
    %1262 = arith.ori %1257, %1261 : vector<8x128xi1>
    %cst_209 = arith.constant 0.000000e+00 : f32
    %1263 = vector.broadcast %cst_209 : f32 to vector<8x128xf32>
    %1264 = arith.cmpf ogt, %1249, %1263 : vector<8x128xf32>
    %1265 = arith.andi %1262, %1264 : vector<8x128xi1>
    %1266 = arith.select %1265, %13, %1240 : vector<8x128xi1>, vector<8x128xf32>
    %1267 = arith.select %1265, %25, %1241 : vector<8x128xi1>, vector<8x128xf32>
    %1268 = arith.select %1265, %1245, %1242 : vector<8x128xi1>, vector<8x128xf32>
    %1269 = arith.select %1265, %1246, %1243 : vector<8x128xi1>, vector<8x128xf32>
    %1270 = arith.select %1265, %1249, %1244 : vector<8x128xi1>, vector<8x128xf32>
    %1271 = arith.subf %28, %1186 : vector<8x128xf32>
    %1272 = arith.subf %40, %1187 : vector<8x128xf32>
    %1273 = arith.mulf %1271, %1271 : vector<8x128xf32>
    %1274 = arith.mulf %1272, %1272 : vector<8x128xf32>
    %1275 = arith.addf %1273, %1274 : vector<8x128xf32>
    %1276 = arith.mulf %1268, %1272 : vector<8x128xf32>
    %1277 = arith.mulf %1269, %1271 : vector<8x128xf32>
    %1278 = arith.subf %1276, %1277 : vector<8x128xf32>
    %cst_210 = arith.constant 0.000000e+00 : f32
    %1279 = vector.broadcast %cst_210 : f32 to vector<8x128xf32>
    %1280 = arith.cmpf oeq, %1270, %1279 : vector<8x128xf32>
    %cst_211 = arith.constant 0.000000e+00 : f32
    %1281 = vector.broadcast %cst_211 : f32 to vector<8x128xf32>
    %1282 = arith.cmpf olt, %1278, %1281 : vector<8x128xf32>
    %1283 = arith.ori %1280, %1282 : vector<8x128xi1>
    %cst_212 = arith.constant 0.000000e+00 : f32
    %1284 = vector.broadcast %cst_212 : f32 to vector<8x128xf32>
    %1285 = arith.cmpf oeq, %1278, %1284 : vector<8x128xf32>
    %1286 = arith.cmpf ogt, %1275, %1270 : vector<8x128xf32>
    %1287 = arith.andi %1285, %1286 : vector<8x128xi1>
    %1288 = arith.ori %1283, %1287 : vector<8x128xi1>
    %cst_213 = arith.constant 0.000000e+00 : f32
    %1289 = vector.broadcast %cst_213 : f32 to vector<8x128xf32>
    %1290 = arith.cmpf ogt, %1275, %1289 : vector<8x128xf32>
    %1291 = arith.andi %1288, %1290 : vector<8x128xi1>
    %1292 = arith.select %1291, %28, %1266 : vector<8x128xi1>, vector<8x128xf32>
    %1293 = arith.select %1291, %40, %1267 : vector<8x128xi1>, vector<8x128xf32>
    %1294 = arith.select %1291, %1271, %1268 : vector<8x128xi1>, vector<8x128xf32>
    %1295 = arith.select %1291, %1272, %1269 : vector<8x128xi1>, vector<8x128xf32>
    %1296 = arith.select %1291, %1275, %1270 : vector<8x128xi1>, vector<8x128xf32>
    %1297 = arith.subf %31, %1186 : vector<8x128xf32>
    %1298 = arith.subf %43, %1187 : vector<8x128xf32>
    %1299 = arith.mulf %1297, %1297 : vector<8x128xf32>
    %1300 = arith.mulf %1298, %1298 : vector<8x128xf32>
    %1301 = arith.addf %1299, %1300 : vector<8x128xf32>
    %1302 = arith.mulf %1294, %1298 : vector<8x128xf32>
    %1303 = arith.mulf %1295, %1297 : vector<8x128xf32>
    %1304 = arith.subf %1302, %1303 : vector<8x128xf32>
    %cst_214 = arith.constant 0.000000e+00 : f32
    %1305 = vector.broadcast %cst_214 : f32 to vector<8x128xf32>
    %1306 = arith.cmpf oeq, %1296, %1305 : vector<8x128xf32>
    %cst_215 = arith.constant 0.000000e+00 : f32
    %1307 = vector.broadcast %cst_215 : f32 to vector<8x128xf32>
    %1308 = arith.cmpf olt, %1304, %1307 : vector<8x128xf32>
    %1309 = arith.ori %1306, %1308 : vector<8x128xi1>
    %cst_216 = arith.constant 0.000000e+00 : f32
    %1310 = vector.broadcast %cst_216 : f32 to vector<8x128xf32>
    %1311 = arith.cmpf oeq, %1304, %1310 : vector<8x128xf32>
    %1312 = arith.cmpf ogt, %1301, %1296 : vector<8x128xf32>
    %1313 = arith.andi %1311, %1312 : vector<8x128xi1>
    %1314 = arith.ori %1309, %1313 : vector<8x128xi1>
    %cst_217 = arith.constant 0.000000e+00 : f32
    %1315 = vector.broadcast %cst_217 : f32 to vector<8x128xf32>
    %1316 = arith.cmpf ogt, %1301, %1315 : vector<8x128xf32>
    %1317 = arith.andi %1314, %1316 : vector<8x128xi1>
    %1318 = arith.select %1317, %31, %1292 : vector<8x128xi1>, vector<8x128xf32>
    %1319 = arith.select %1317, %43, %1293 : vector<8x128xi1>, vector<8x128xf32>
    %1320 = arith.select %1317, %1297, %1294 : vector<8x128xi1>, vector<8x128xf32>
    %1321 = arith.select %1317, %1298, %1295 : vector<8x128xi1>, vector<8x128xf32>
    %1322 = arith.select %1317, %1301, %1296 : vector<8x128xi1>, vector<8x128xf32>
    %1323 = arith.subf %34, %1186 : vector<8x128xf32>
    %1324 = arith.subf %46, %1187 : vector<8x128xf32>
    %1325 = arith.mulf %1323, %1323 : vector<8x128xf32>
    %1326 = arith.mulf %1324, %1324 : vector<8x128xf32>
    %1327 = arith.addf %1325, %1326 : vector<8x128xf32>
    %1328 = arith.mulf %1320, %1324 : vector<8x128xf32>
    %1329 = arith.mulf %1321, %1323 : vector<8x128xf32>
    %1330 = arith.subf %1328, %1329 : vector<8x128xf32>
    %cst_218 = arith.constant 0.000000e+00 : f32
    %1331 = vector.broadcast %cst_218 : f32 to vector<8x128xf32>
    %1332 = arith.cmpf oeq, %1322, %1331 : vector<8x128xf32>
    %cst_219 = arith.constant 0.000000e+00 : f32
    %1333 = vector.broadcast %cst_219 : f32 to vector<8x128xf32>
    %1334 = arith.cmpf olt, %1330, %1333 : vector<8x128xf32>
    %1335 = arith.ori %1332, %1334 : vector<8x128xi1>
    %cst_220 = arith.constant 0.000000e+00 : f32
    %1336 = vector.broadcast %cst_220 : f32 to vector<8x128xf32>
    %1337 = arith.cmpf oeq, %1330, %1336 : vector<8x128xf32>
    %1338 = arith.cmpf ogt, %1327, %1322 : vector<8x128xf32>
    %1339 = arith.andi %1337, %1338 : vector<8x128xi1>
    %1340 = arith.ori %1335, %1339 : vector<8x128xi1>
    %cst_221 = arith.constant 0.000000e+00 : f32
    %1341 = vector.broadcast %cst_221 : f32 to vector<8x128xf32>
    %1342 = arith.cmpf ogt, %1327, %1341 : vector<8x128xf32>
    %1343 = arith.andi %1340, %1342 : vector<8x128xi1>
    %1344 = arith.select %1343, %34, %1318 : vector<8x128xi1>, vector<8x128xf32>
    %1345 = arith.select %1343, %46, %1319 : vector<8x128xi1>, vector<8x128xf32>
    %1346 = arith.select %1343, %1323, %1320 : vector<8x128xi1>, vector<8x128xf32>
    %1347 = arith.select %1343, %1324, %1321 : vector<8x128xi1>, vector<8x128xf32>
    %1348 = arith.select %1343, %1327, %1322 : vector<8x128xi1>, vector<8x128xf32>
    %1349 = arith.subf %37, %1186 : vector<8x128xf32>
    %1350 = arith.subf %49, %1187 : vector<8x128xf32>
    %1351 = arith.mulf %1349, %1349 : vector<8x128xf32>
    %1352 = arith.mulf %1350, %1350 : vector<8x128xf32>
    %1353 = arith.addf %1351, %1352 : vector<8x128xf32>
    %1354 = arith.mulf %1346, %1350 : vector<8x128xf32>
    %1355 = arith.mulf %1347, %1349 : vector<8x128xf32>
    %1356 = arith.subf %1354, %1355 : vector<8x128xf32>
    %cst_222 = arith.constant 0.000000e+00 : f32
    %1357 = vector.broadcast %cst_222 : f32 to vector<8x128xf32>
    %1358 = arith.cmpf oeq, %1348, %1357 : vector<8x128xf32>
    %cst_223 = arith.constant 0.000000e+00 : f32
    %1359 = vector.broadcast %cst_223 : f32 to vector<8x128xf32>
    %1360 = arith.cmpf olt, %1356, %1359 : vector<8x128xf32>
    %1361 = arith.ori %1358, %1360 : vector<8x128xi1>
    %cst_224 = arith.constant 0.000000e+00 : f32
    %1362 = vector.broadcast %cst_224 : f32 to vector<8x128xf32>
    %1363 = arith.cmpf oeq, %1356, %1362 : vector<8x128xf32>
    %1364 = arith.cmpf ogt, %1353, %1348 : vector<8x128xf32>
    %1365 = arith.andi %1363, %1364 : vector<8x128xi1>
    %1366 = arith.ori %1361, %1365 : vector<8x128xi1>
    %cst_225 = arith.constant 0.000000e+00 : f32
    %1367 = vector.broadcast %cst_225 : f32 to vector<8x128xf32>
    %1368 = arith.cmpf ogt, %1353, %1367 : vector<8x128xf32>
    %1369 = arith.andi %1366, %1368 : vector<8x128xi1>
    %1370 = arith.select %1369, %37, %1344 : vector<8x128xi1>, vector<8x128xf32>
    %1371 = arith.select %1369, %49, %1345 : vector<8x128xi1>, vector<8x128xf32>
    %1372 = arith.cmpf oeq, %1370, %615 : vector<8x128xf32>
    %1373 = arith.cmpf oeq, %1371, %616 : vector<8x128xf32>
    %1374 = arith.andi %1372, %1373 : vector<8x128xi1>
    %1375 = arith.ori %1185, %1374 : vector<8x128xi1>
    %1376 = arith.select %1375, %615, %1370 : vector<8x128xi1>, vector<8x128xf32>
    %1377 = arith.select %1375, %616, %1371 : vector<8x128xi1>, vector<8x128xf32>
    %1378 = arith.subf %4, %1376 : vector<8x128xf32>
    %1379 = arith.subf %16, %1377 : vector<8x128xf32>
    %1380 = arith.mulf %1378, %1378 : vector<8x128xf32>
    %1381 = arith.mulf %1379, %1379 : vector<8x128xf32>
    %1382 = arith.addf %1380, %1381 : vector<8x128xf32>
    %1383 = arith.subf %7, %1376 : vector<8x128xf32>
    %1384 = arith.subf %19, %1377 : vector<8x128xf32>
    %1385 = arith.mulf %1383, %1383 : vector<8x128xf32>
    %1386 = arith.mulf %1384, %1384 : vector<8x128xf32>
    %1387 = arith.addf %1385, %1386 : vector<8x128xf32>
    %1388 = arith.mulf %1378, %1384 : vector<8x128xf32>
    %1389 = arith.mulf %1379, %1383 : vector<8x128xf32>
    %1390 = arith.subf %1388, %1389 : vector<8x128xf32>
    %cst_226 = arith.constant 0.000000e+00 : f32
    %1391 = vector.broadcast %cst_226 : f32 to vector<8x128xf32>
    %1392 = arith.cmpf oeq, %1382, %1391 : vector<8x128xf32>
    %cst_227 = arith.constant 0.000000e+00 : f32
    %1393 = vector.broadcast %cst_227 : f32 to vector<8x128xf32>
    %1394 = arith.cmpf olt, %1390, %1393 : vector<8x128xf32>
    %1395 = arith.ori %1392, %1394 : vector<8x128xi1>
    %cst_228 = arith.constant 0.000000e+00 : f32
    %1396 = vector.broadcast %cst_228 : f32 to vector<8x128xf32>
    %1397 = arith.cmpf oeq, %1390, %1396 : vector<8x128xf32>
    %1398 = arith.cmpf ogt, %1387, %1382 : vector<8x128xf32>
    %1399 = arith.andi %1397, %1398 : vector<8x128xi1>
    %1400 = arith.ori %1395, %1399 : vector<8x128xi1>
    %cst_229 = arith.constant 0.000000e+00 : f32
    %1401 = vector.broadcast %cst_229 : f32 to vector<8x128xf32>
    %1402 = arith.cmpf ogt, %1387, %1401 : vector<8x128xf32>
    %1403 = arith.andi %1400, %1402 : vector<8x128xi1>
    %1404 = arith.select %1403, %7, %4 : vector<8x128xi1>, vector<8x128xf32>
    %1405 = arith.select %1403, %19, %16 : vector<8x128xi1>, vector<8x128xf32>
    %1406 = arith.select %1403, %1383, %1378 : vector<8x128xi1>, vector<8x128xf32>
    %1407 = arith.select %1403, %1384, %1379 : vector<8x128xi1>, vector<8x128xf32>
    %1408 = arith.select %1403, %1387, %1382 : vector<8x128xi1>, vector<8x128xf32>
    %1409 = arith.subf %10, %1376 : vector<8x128xf32>
    %1410 = arith.subf %22, %1377 : vector<8x128xf32>
    %1411 = arith.mulf %1409, %1409 : vector<8x128xf32>
    %1412 = arith.mulf %1410, %1410 : vector<8x128xf32>
    %1413 = arith.addf %1411, %1412 : vector<8x128xf32>
    %1414 = arith.mulf %1406, %1410 : vector<8x128xf32>
    %1415 = arith.mulf %1407, %1409 : vector<8x128xf32>
    %1416 = arith.subf %1414, %1415 : vector<8x128xf32>
    %cst_230 = arith.constant 0.000000e+00 : f32
    %1417 = vector.broadcast %cst_230 : f32 to vector<8x128xf32>
    %1418 = arith.cmpf oeq, %1408, %1417 : vector<8x128xf32>
    %cst_231 = arith.constant 0.000000e+00 : f32
    %1419 = vector.broadcast %cst_231 : f32 to vector<8x128xf32>
    %1420 = arith.cmpf olt, %1416, %1419 : vector<8x128xf32>
    %1421 = arith.ori %1418, %1420 : vector<8x128xi1>
    %cst_232 = arith.constant 0.000000e+00 : f32
    %1422 = vector.broadcast %cst_232 : f32 to vector<8x128xf32>
    %1423 = arith.cmpf oeq, %1416, %1422 : vector<8x128xf32>
    %1424 = arith.cmpf ogt, %1413, %1408 : vector<8x128xf32>
    %1425 = arith.andi %1423, %1424 : vector<8x128xi1>
    %1426 = arith.ori %1421, %1425 : vector<8x128xi1>
    %cst_233 = arith.constant 0.000000e+00 : f32
    %1427 = vector.broadcast %cst_233 : f32 to vector<8x128xf32>
    %1428 = arith.cmpf ogt, %1413, %1427 : vector<8x128xf32>
    %1429 = arith.andi %1426, %1428 : vector<8x128xi1>
    %1430 = arith.select %1429, %10, %1404 : vector<8x128xi1>, vector<8x128xf32>
    %1431 = arith.select %1429, %22, %1405 : vector<8x128xi1>, vector<8x128xf32>
    %1432 = arith.select %1429, %1409, %1406 : vector<8x128xi1>, vector<8x128xf32>
    %1433 = arith.select %1429, %1410, %1407 : vector<8x128xi1>, vector<8x128xf32>
    %1434 = arith.select %1429, %1413, %1408 : vector<8x128xi1>, vector<8x128xf32>
    %1435 = arith.subf %13, %1376 : vector<8x128xf32>
    %1436 = arith.subf %25, %1377 : vector<8x128xf32>
    %1437 = arith.mulf %1435, %1435 : vector<8x128xf32>
    %1438 = arith.mulf %1436, %1436 : vector<8x128xf32>
    %1439 = arith.addf %1437, %1438 : vector<8x128xf32>
    %1440 = arith.mulf %1432, %1436 : vector<8x128xf32>
    %1441 = arith.mulf %1433, %1435 : vector<8x128xf32>
    %1442 = arith.subf %1440, %1441 : vector<8x128xf32>
    %cst_234 = arith.constant 0.000000e+00 : f32
    %1443 = vector.broadcast %cst_234 : f32 to vector<8x128xf32>
    %1444 = arith.cmpf oeq, %1434, %1443 : vector<8x128xf32>
    %cst_235 = arith.constant 0.000000e+00 : f32
    %1445 = vector.broadcast %cst_235 : f32 to vector<8x128xf32>
    %1446 = arith.cmpf olt, %1442, %1445 : vector<8x128xf32>
    %1447 = arith.ori %1444, %1446 : vector<8x128xi1>
    %cst_236 = arith.constant 0.000000e+00 : f32
    %1448 = vector.broadcast %cst_236 : f32 to vector<8x128xf32>
    %1449 = arith.cmpf oeq, %1442, %1448 : vector<8x128xf32>
    %1450 = arith.cmpf ogt, %1439, %1434 : vector<8x128xf32>
    %1451 = arith.andi %1449, %1450 : vector<8x128xi1>
    %1452 = arith.ori %1447, %1451 : vector<8x128xi1>
    %cst_237 = arith.constant 0.000000e+00 : f32
    %1453 = vector.broadcast %cst_237 : f32 to vector<8x128xf32>
    %1454 = arith.cmpf ogt, %1439, %1453 : vector<8x128xf32>
    %1455 = arith.andi %1452, %1454 : vector<8x128xi1>
    %1456 = arith.select %1455, %13, %1430 : vector<8x128xi1>, vector<8x128xf32>
    %1457 = arith.select %1455, %25, %1431 : vector<8x128xi1>, vector<8x128xf32>
    %1458 = arith.select %1455, %1435, %1432 : vector<8x128xi1>, vector<8x128xf32>
    %1459 = arith.select %1455, %1436, %1433 : vector<8x128xi1>, vector<8x128xf32>
    %1460 = arith.select %1455, %1439, %1434 : vector<8x128xi1>, vector<8x128xf32>
    %1461 = arith.subf %28, %1376 : vector<8x128xf32>
    %1462 = arith.subf %40, %1377 : vector<8x128xf32>
    %1463 = arith.mulf %1461, %1461 : vector<8x128xf32>
    %1464 = arith.mulf %1462, %1462 : vector<8x128xf32>
    %1465 = arith.addf %1463, %1464 : vector<8x128xf32>
    %1466 = arith.mulf %1458, %1462 : vector<8x128xf32>
    %1467 = arith.mulf %1459, %1461 : vector<8x128xf32>
    %1468 = arith.subf %1466, %1467 : vector<8x128xf32>
    %cst_238 = arith.constant 0.000000e+00 : f32
    %1469 = vector.broadcast %cst_238 : f32 to vector<8x128xf32>
    %1470 = arith.cmpf oeq, %1460, %1469 : vector<8x128xf32>
    %cst_239 = arith.constant 0.000000e+00 : f32
    %1471 = vector.broadcast %cst_239 : f32 to vector<8x128xf32>
    %1472 = arith.cmpf olt, %1468, %1471 : vector<8x128xf32>
    %1473 = arith.ori %1470, %1472 : vector<8x128xi1>
    %cst_240 = arith.constant 0.000000e+00 : f32
    %1474 = vector.broadcast %cst_240 : f32 to vector<8x128xf32>
    %1475 = arith.cmpf oeq, %1468, %1474 : vector<8x128xf32>
    %1476 = arith.cmpf ogt, %1465, %1460 : vector<8x128xf32>
    %1477 = arith.andi %1475, %1476 : vector<8x128xi1>
    %1478 = arith.ori %1473, %1477 : vector<8x128xi1>
    %cst_241 = arith.constant 0.000000e+00 : f32
    %1479 = vector.broadcast %cst_241 : f32 to vector<8x128xf32>
    %1480 = arith.cmpf ogt, %1465, %1479 : vector<8x128xf32>
    %1481 = arith.andi %1478, %1480 : vector<8x128xi1>
    %1482 = arith.select %1481, %28, %1456 : vector<8x128xi1>, vector<8x128xf32>
    %1483 = arith.select %1481, %40, %1457 : vector<8x128xi1>, vector<8x128xf32>
    %1484 = arith.select %1481, %1461, %1458 : vector<8x128xi1>, vector<8x128xf32>
    %1485 = arith.select %1481, %1462, %1459 : vector<8x128xi1>, vector<8x128xf32>
    %1486 = arith.select %1481, %1465, %1460 : vector<8x128xi1>, vector<8x128xf32>
    %1487 = arith.subf %31, %1376 : vector<8x128xf32>
    %1488 = arith.subf %43, %1377 : vector<8x128xf32>
    %1489 = arith.mulf %1487, %1487 : vector<8x128xf32>
    %1490 = arith.mulf %1488, %1488 : vector<8x128xf32>
    %1491 = arith.addf %1489, %1490 : vector<8x128xf32>
    %1492 = arith.mulf %1484, %1488 : vector<8x128xf32>
    %1493 = arith.mulf %1485, %1487 : vector<8x128xf32>
    %1494 = arith.subf %1492, %1493 : vector<8x128xf32>
    %cst_242 = arith.constant 0.000000e+00 : f32
    %1495 = vector.broadcast %cst_242 : f32 to vector<8x128xf32>
    %1496 = arith.cmpf oeq, %1486, %1495 : vector<8x128xf32>
    %cst_243 = arith.constant 0.000000e+00 : f32
    %1497 = vector.broadcast %cst_243 : f32 to vector<8x128xf32>
    %1498 = arith.cmpf olt, %1494, %1497 : vector<8x128xf32>
    %1499 = arith.ori %1496, %1498 : vector<8x128xi1>
    %cst_244 = arith.constant 0.000000e+00 : f32
    %1500 = vector.broadcast %cst_244 : f32 to vector<8x128xf32>
    %1501 = arith.cmpf oeq, %1494, %1500 : vector<8x128xf32>
    %1502 = arith.cmpf ogt, %1491, %1486 : vector<8x128xf32>
    %1503 = arith.andi %1501, %1502 : vector<8x128xi1>
    %1504 = arith.ori %1499, %1503 : vector<8x128xi1>
    %cst_245 = arith.constant 0.000000e+00 : f32
    %1505 = vector.broadcast %cst_245 : f32 to vector<8x128xf32>
    %1506 = arith.cmpf ogt, %1491, %1505 : vector<8x128xf32>
    %1507 = arith.andi %1504, %1506 : vector<8x128xi1>
    %1508 = arith.select %1507, %31, %1482 : vector<8x128xi1>, vector<8x128xf32>
    %1509 = arith.select %1507, %43, %1483 : vector<8x128xi1>, vector<8x128xf32>
    %1510 = arith.select %1507, %1487, %1484 : vector<8x128xi1>, vector<8x128xf32>
    %1511 = arith.select %1507, %1488, %1485 : vector<8x128xi1>, vector<8x128xf32>
    %1512 = arith.select %1507, %1491, %1486 : vector<8x128xi1>, vector<8x128xf32>
    %1513 = arith.subf %34, %1376 : vector<8x128xf32>
    %1514 = arith.subf %46, %1377 : vector<8x128xf32>
    %1515 = arith.mulf %1513, %1513 : vector<8x128xf32>
    %1516 = arith.mulf %1514, %1514 : vector<8x128xf32>
    %1517 = arith.addf %1515, %1516 : vector<8x128xf32>
    %1518 = arith.mulf %1510, %1514 : vector<8x128xf32>
    %1519 = arith.mulf %1511, %1513 : vector<8x128xf32>
    %1520 = arith.subf %1518, %1519 : vector<8x128xf32>
    %cst_246 = arith.constant 0.000000e+00 : f32
    %1521 = vector.broadcast %cst_246 : f32 to vector<8x128xf32>
    %1522 = arith.cmpf oeq, %1512, %1521 : vector<8x128xf32>
    %cst_247 = arith.constant 0.000000e+00 : f32
    %1523 = vector.broadcast %cst_247 : f32 to vector<8x128xf32>
    %1524 = arith.cmpf olt, %1520, %1523 : vector<8x128xf32>
    %1525 = arith.ori %1522, %1524 : vector<8x128xi1>
    %cst_248 = arith.constant 0.000000e+00 : f32
    %1526 = vector.broadcast %cst_248 : f32 to vector<8x128xf32>
    %1527 = arith.cmpf oeq, %1520, %1526 : vector<8x128xf32>
    %1528 = arith.cmpf ogt, %1517, %1512 : vector<8x128xf32>
    %1529 = arith.andi %1527, %1528 : vector<8x128xi1>
    %1530 = arith.ori %1525, %1529 : vector<8x128xi1>
    %cst_249 = arith.constant 0.000000e+00 : f32
    %1531 = vector.broadcast %cst_249 : f32 to vector<8x128xf32>
    %1532 = arith.cmpf ogt, %1517, %1531 : vector<8x128xf32>
    %1533 = arith.andi %1530, %1532 : vector<8x128xi1>
    %1534 = arith.select %1533, %34, %1508 : vector<8x128xi1>, vector<8x128xf32>
    %1535 = arith.select %1533, %46, %1509 : vector<8x128xi1>, vector<8x128xf32>
    %1536 = arith.select %1533, %1513, %1510 : vector<8x128xi1>, vector<8x128xf32>
    %1537 = arith.select %1533, %1514, %1511 : vector<8x128xi1>, vector<8x128xf32>
    %1538 = arith.select %1533, %1517, %1512 : vector<8x128xi1>, vector<8x128xf32>
    %1539 = arith.subf %37, %1376 : vector<8x128xf32>
    %1540 = arith.subf %49, %1377 : vector<8x128xf32>
    %1541 = arith.mulf %1539, %1539 : vector<8x128xf32>
    %1542 = arith.mulf %1540, %1540 : vector<8x128xf32>
    %1543 = arith.addf %1541, %1542 : vector<8x128xf32>
    %1544 = arith.mulf %1536, %1540 : vector<8x128xf32>
    %1545 = arith.mulf %1537, %1539 : vector<8x128xf32>
    %1546 = arith.subf %1544, %1545 : vector<8x128xf32>
    %cst_250 = arith.constant 0.000000e+00 : f32
    %1547 = vector.broadcast %cst_250 : f32 to vector<8x128xf32>
    %1548 = arith.cmpf oeq, %1538, %1547 : vector<8x128xf32>
    %cst_251 = arith.constant 0.000000e+00 : f32
    %1549 = vector.broadcast %cst_251 : f32 to vector<8x128xf32>
    %1550 = arith.cmpf olt, %1546, %1549 : vector<8x128xf32>
    %1551 = arith.ori %1548, %1550 : vector<8x128xi1>
    %cst_252 = arith.constant 0.000000e+00 : f32
    %1552 = vector.broadcast %cst_252 : f32 to vector<8x128xf32>
    %1553 = arith.cmpf oeq, %1546, %1552 : vector<8x128xf32>
    %1554 = arith.cmpf ogt, %1543, %1538 : vector<8x128xf32>
    %1555 = arith.andi %1553, %1554 : vector<8x128xi1>
    %1556 = arith.ori %1551, %1555 : vector<8x128xi1>
    %cst_253 = arith.constant 0.000000e+00 : f32
    %1557 = vector.broadcast %cst_253 : f32 to vector<8x128xf32>
    %1558 = arith.cmpf ogt, %1543, %1557 : vector<8x128xf32>
    %1559 = arith.andi %1556, %1558 : vector<8x128xi1>
    %1560 = arith.select %1559, %37, %1534 : vector<8x128xi1>, vector<8x128xf32>
    %1561 = arith.select %1559, %49, %1535 : vector<8x128xi1>, vector<8x128xf32>
    %1562 = arith.cmpf oeq, %1560, %615 : vector<8x128xf32>
    %1563 = arith.cmpf oeq, %1561, %616 : vector<8x128xf32>
    %1564 = arith.andi %1562, %1563 : vector<8x128xi1>
    %1565 = arith.ori %1375, %1564 : vector<8x128xi1>
    %1566 = arith.select %1565, %615, %1560 : vector<8x128xi1>, vector<8x128xf32>
    %1567 = arith.select %1565, %616, %1561 : vector<8x128xi1>, vector<8x128xf32>
    %1568 = arith.subf %4, %1566 : vector<8x128xf32>
    %1569 = arith.subf %16, %1567 : vector<8x128xf32>
    %1570 = arith.mulf %1568, %1568 : vector<8x128xf32>
    %1571 = arith.mulf %1569, %1569 : vector<8x128xf32>
    %1572 = arith.addf %1570, %1571 : vector<8x128xf32>
    %1573 = arith.subf %7, %1566 : vector<8x128xf32>
    %1574 = arith.subf %19, %1567 : vector<8x128xf32>
    %1575 = arith.mulf %1573, %1573 : vector<8x128xf32>
    %1576 = arith.mulf %1574, %1574 : vector<8x128xf32>
    %1577 = arith.addf %1575, %1576 : vector<8x128xf32>
    %1578 = arith.mulf %1568, %1574 : vector<8x128xf32>
    %1579 = arith.mulf %1569, %1573 : vector<8x128xf32>
    %1580 = arith.subf %1578, %1579 : vector<8x128xf32>
    %cst_254 = arith.constant 0.000000e+00 : f32
    %1581 = vector.broadcast %cst_254 : f32 to vector<8x128xf32>
    %1582 = arith.cmpf oeq, %1572, %1581 : vector<8x128xf32>
    %cst_255 = arith.constant 0.000000e+00 : f32
    %1583 = vector.broadcast %cst_255 : f32 to vector<8x128xf32>
    %1584 = arith.cmpf olt, %1580, %1583 : vector<8x128xf32>
    %1585 = arith.ori %1582, %1584 : vector<8x128xi1>
    %cst_256 = arith.constant 0.000000e+00 : f32
    %1586 = vector.broadcast %cst_256 : f32 to vector<8x128xf32>
    %1587 = arith.cmpf oeq, %1580, %1586 : vector<8x128xf32>
    %1588 = arith.cmpf ogt, %1577, %1572 : vector<8x128xf32>
    %1589 = arith.andi %1587, %1588 : vector<8x128xi1>
    %1590 = arith.ori %1585, %1589 : vector<8x128xi1>
    %cst_257 = arith.constant 0.000000e+00 : f32
    %1591 = vector.broadcast %cst_257 : f32 to vector<8x128xf32>
    %1592 = arith.cmpf ogt, %1577, %1591 : vector<8x128xf32>
    %1593 = arith.andi %1590, %1592 : vector<8x128xi1>
    %1594 = arith.select %1593, %7, %4 : vector<8x128xi1>, vector<8x128xf32>
    %1595 = arith.select %1593, %19, %16 : vector<8x128xi1>, vector<8x128xf32>
    %1596 = arith.select %1593, %1573, %1568 : vector<8x128xi1>, vector<8x128xf32>
    %1597 = arith.select %1593, %1574, %1569 : vector<8x128xi1>, vector<8x128xf32>
    %1598 = arith.select %1593, %1577, %1572 : vector<8x128xi1>, vector<8x128xf32>
    %1599 = arith.subf %10, %1566 : vector<8x128xf32>
    %1600 = arith.subf %22, %1567 : vector<8x128xf32>
    %1601 = arith.mulf %1599, %1599 : vector<8x128xf32>
    %1602 = arith.mulf %1600, %1600 : vector<8x128xf32>
    %1603 = arith.addf %1601, %1602 : vector<8x128xf32>
    %1604 = arith.mulf %1596, %1600 : vector<8x128xf32>
    %1605 = arith.mulf %1597, %1599 : vector<8x128xf32>
    %1606 = arith.subf %1604, %1605 : vector<8x128xf32>
    %cst_258 = arith.constant 0.000000e+00 : f32
    %1607 = vector.broadcast %cst_258 : f32 to vector<8x128xf32>
    %1608 = arith.cmpf oeq, %1598, %1607 : vector<8x128xf32>
    %cst_259 = arith.constant 0.000000e+00 : f32
    %1609 = vector.broadcast %cst_259 : f32 to vector<8x128xf32>
    %1610 = arith.cmpf olt, %1606, %1609 : vector<8x128xf32>
    %1611 = arith.ori %1608, %1610 : vector<8x128xi1>
    %cst_260 = arith.constant 0.000000e+00 : f32
    %1612 = vector.broadcast %cst_260 : f32 to vector<8x128xf32>
    %1613 = arith.cmpf oeq, %1606, %1612 : vector<8x128xf32>
    %1614 = arith.cmpf ogt, %1603, %1598 : vector<8x128xf32>
    %1615 = arith.andi %1613, %1614 : vector<8x128xi1>
    %1616 = arith.ori %1611, %1615 : vector<8x128xi1>
    %cst_261 = arith.constant 0.000000e+00 : f32
    %1617 = vector.broadcast %cst_261 : f32 to vector<8x128xf32>
    %1618 = arith.cmpf ogt, %1603, %1617 : vector<8x128xf32>
    %1619 = arith.andi %1616, %1618 : vector<8x128xi1>
    %1620 = arith.select %1619, %10, %1594 : vector<8x128xi1>, vector<8x128xf32>
    %1621 = arith.select %1619, %22, %1595 : vector<8x128xi1>, vector<8x128xf32>
    %1622 = arith.select %1619, %1599, %1596 : vector<8x128xi1>, vector<8x128xf32>
    %1623 = arith.select %1619, %1600, %1597 : vector<8x128xi1>, vector<8x128xf32>
    %1624 = arith.select %1619, %1603, %1598 : vector<8x128xi1>, vector<8x128xf32>
    %1625 = arith.subf %13, %1566 : vector<8x128xf32>
    %1626 = arith.subf %25, %1567 : vector<8x128xf32>
    %1627 = arith.mulf %1625, %1625 : vector<8x128xf32>
    %1628 = arith.mulf %1626, %1626 : vector<8x128xf32>
    %1629 = arith.addf %1627, %1628 : vector<8x128xf32>
    %1630 = arith.mulf %1622, %1626 : vector<8x128xf32>
    %1631 = arith.mulf %1623, %1625 : vector<8x128xf32>
    %1632 = arith.subf %1630, %1631 : vector<8x128xf32>
    %cst_262 = arith.constant 0.000000e+00 : f32
    %1633 = vector.broadcast %cst_262 : f32 to vector<8x128xf32>
    %1634 = arith.cmpf oeq, %1624, %1633 : vector<8x128xf32>
    %cst_263 = arith.constant 0.000000e+00 : f32
    %1635 = vector.broadcast %cst_263 : f32 to vector<8x128xf32>
    %1636 = arith.cmpf olt, %1632, %1635 : vector<8x128xf32>
    %1637 = arith.ori %1634, %1636 : vector<8x128xi1>
    %cst_264 = arith.constant 0.000000e+00 : f32
    %1638 = vector.broadcast %cst_264 : f32 to vector<8x128xf32>
    %1639 = arith.cmpf oeq, %1632, %1638 : vector<8x128xf32>
    %1640 = arith.cmpf ogt, %1629, %1624 : vector<8x128xf32>
    %1641 = arith.andi %1639, %1640 : vector<8x128xi1>
    %1642 = arith.ori %1637, %1641 : vector<8x128xi1>
    %cst_265 = arith.constant 0.000000e+00 : f32
    %1643 = vector.broadcast %cst_265 : f32 to vector<8x128xf32>
    %1644 = arith.cmpf ogt, %1629, %1643 : vector<8x128xf32>
    %1645 = arith.andi %1642, %1644 : vector<8x128xi1>
    %1646 = arith.select %1645, %13, %1620 : vector<8x128xi1>, vector<8x128xf32>
    %1647 = arith.select %1645, %25, %1621 : vector<8x128xi1>, vector<8x128xf32>
    %1648 = arith.select %1645, %1625, %1622 : vector<8x128xi1>, vector<8x128xf32>
    %1649 = arith.select %1645, %1626, %1623 : vector<8x128xi1>, vector<8x128xf32>
    %1650 = arith.select %1645, %1629, %1624 : vector<8x128xi1>, vector<8x128xf32>
    %1651 = arith.subf %28, %1566 : vector<8x128xf32>
    %1652 = arith.subf %40, %1567 : vector<8x128xf32>
    %1653 = arith.mulf %1651, %1651 : vector<8x128xf32>
    %1654 = arith.mulf %1652, %1652 : vector<8x128xf32>
    %1655 = arith.addf %1653, %1654 : vector<8x128xf32>
    %1656 = arith.mulf %1648, %1652 : vector<8x128xf32>
    %1657 = arith.mulf %1649, %1651 : vector<8x128xf32>
    %1658 = arith.subf %1656, %1657 : vector<8x128xf32>
    %cst_266 = arith.constant 0.000000e+00 : f32
    %1659 = vector.broadcast %cst_266 : f32 to vector<8x128xf32>
    %1660 = arith.cmpf oeq, %1650, %1659 : vector<8x128xf32>
    %cst_267 = arith.constant 0.000000e+00 : f32
    %1661 = vector.broadcast %cst_267 : f32 to vector<8x128xf32>
    %1662 = arith.cmpf olt, %1658, %1661 : vector<8x128xf32>
    %1663 = arith.ori %1660, %1662 : vector<8x128xi1>
    %cst_268 = arith.constant 0.000000e+00 : f32
    %1664 = vector.broadcast %cst_268 : f32 to vector<8x128xf32>
    %1665 = arith.cmpf oeq, %1658, %1664 : vector<8x128xf32>
    %1666 = arith.cmpf ogt, %1655, %1650 : vector<8x128xf32>
    %1667 = arith.andi %1665, %1666 : vector<8x128xi1>
    %1668 = arith.ori %1663, %1667 : vector<8x128xi1>
    %cst_269 = arith.constant 0.000000e+00 : f32
    %1669 = vector.broadcast %cst_269 : f32 to vector<8x128xf32>
    %1670 = arith.cmpf ogt, %1655, %1669 : vector<8x128xf32>
    %1671 = arith.andi %1668, %1670 : vector<8x128xi1>
    %1672 = arith.select %1671, %28, %1646 : vector<8x128xi1>, vector<8x128xf32>
    %1673 = arith.select %1671, %40, %1647 : vector<8x128xi1>, vector<8x128xf32>
    %1674 = arith.select %1671, %1651, %1648 : vector<8x128xi1>, vector<8x128xf32>
    %1675 = arith.select %1671, %1652, %1649 : vector<8x128xi1>, vector<8x128xf32>
    %1676 = arith.select %1671, %1655, %1650 : vector<8x128xi1>, vector<8x128xf32>
    %1677 = arith.subf %31, %1566 : vector<8x128xf32>
    %1678 = arith.subf %43, %1567 : vector<8x128xf32>
    %1679 = arith.mulf %1677, %1677 : vector<8x128xf32>
    %1680 = arith.mulf %1678, %1678 : vector<8x128xf32>
    %1681 = arith.addf %1679, %1680 : vector<8x128xf32>
    %1682 = arith.mulf %1674, %1678 : vector<8x128xf32>
    %1683 = arith.mulf %1675, %1677 : vector<8x128xf32>
    %1684 = arith.subf %1682, %1683 : vector<8x128xf32>
    %cst_270 = arith.constant 0.000000e+00 : f32
    %1685 = vector.broadcast %cst_270 : f32 to vector<8x128xf32>
    %1686 = arith.cmpf oeq, %1676, %1685 : vector<8x128xf32>
    %cst_271 = arith.constant 0.000000e+00 : f32
    %1687 = vector.broadcast %cst_271 : f32 to vector<8x128xf32>
    %1688 = arith.cmpf olt, %1684, %1687 : vector<8x128xf32>
    %1689 = arith.ori %1686, %1688 : vector<8x128xi1>
    %cst_272 = arith.constant 0.000000e+00 : f32
    %1690 = vector.broadcast %cst_272 : f32 to vector<8x128xf32>
    %1691 = arith.cmpf oeq, %1684, %1690 : vector<8x128xf32>
    %1692 = arith.cmpf ogt, %1681, %1676 : vector<8x128xf32>
    %1693 = arith.andi %1691, %1692 : vector<8x128xi1>
    %1694 = arith.ori %1689, %1693 : vector<8x128xi1>
    %cst_273 = arith.constant 0.000000e+00 : f32
    %1695 = vector.broadcast %cst_273 : f32 to vector<8x128xf32>
    %1696 = arith.cmpf ogt, %1681, %1695 : vector<8x128xf32>
    %1697 = arith.andi %1694, %1696 : vector<8x128xi1>
    %1698 = arith.select %1697, %31, %1672 : vector<8x128xi1>, vector<8x128xf32>
    %1699 = arith.select %1697, %43, %1673 : vector<8x128xi1>, vector<8x128xf32>
    %1700 = arith.select %1697, %1677, %1674 : vector<8x128xi1>, vector<8x128xf32>
    %1701 = arith.select %1697, %1678, %1675 : vector<8x128xi1>, vector<8x128xf32>
    %1702 = arith.select %1697, %1681, %1676 : vector<8x128xi1>, vector<8x128xf32>
    %1703 = arith.subf %34, %1566 : vector<8x128xf32>
    %1704 = arith.subf %46, %1567 : vector<8x128xf32>
    %1705 = arith.mulf %1703, %1703 : vector<8x128xf32>
    %1706 = arith.mulf %1704, %1704 : vector<8x128xf32>
    %1707 = arith.addf %1705, %1706 : vector<8x128xf32>
    %1708 = arith.mulf %1700, %1704 : vector<8x128xf32>
    %1709 = arith.mulf %1701, %1703 : vector<8x128xf32>
    %1710 = arith.subf %1708, %1709 : vector<8x128xf32>
    %cst_274 = arith.constant 0.000000e+00 : f32
    %1711 = vector.broadcast %cst_274 : f32 to vector<8x128xf32>
    %1712 = arith.cmpf oeq, %1702, %1711 : vector<8x128xf32>
    %cst_275 = arith.constant 0.000000e+00 : f32
    %1713 = vector.broadcast %cst_275 : f32 to vector<8x128xf32>
    %1714 = arith.cmpf olt, %1710, %1713 : vector<8x128xf32>
    %1715 = arith.ori %1712, %1714 : vector<8x128xi1>
    %cst_276 = arith.constant 0.000000e+00 : f32
    %1716 = vector.broadcast %cst_276 : f32 to vector<8x128xf32>
    %1717 = arith.cmpf oeq, %1710, %1716 : vector<8x128xf32>
    %1718 = arith.cmpf ogt, %1707, %1702 : vector<8x128xf32>
    %1719 = arith.andi %1717, %1718 : vector<8x128xi1>
    %1720 = arith.ori %1715, %1719 : vector<8x128xi1>
    %cst_277 = arith.constant 0.000000e+00 : f32
    %1721 = vector.broadcast %cst_277 : f32 to vector<8x128xf32>
    %1722 = arith.cmpf ogt, %1707, %1721 : vector<8x128xf32>
    %1723 = arith.andi %1720, %1722 : vector<8x128xi1>
    %1724 = arith.select %1723, %34, %1698 : vector<8x128xi1>, vector<8x128xf32>
    %1725 = arith.select %1723, %46, %1699 : vector<8x128xi1>, vector<8x128xf32>
    %1726 = arith.select %1723, %1703, %1700 : vector<8x128xi1>, vector<8x128xf32>
    %1727 = arith.select %1723, %1704, %1701 : vector<8x128xi1>, vector<8x128xf32>
    %1728 = arith.select %1723, %1707, %1702 : vector<8x128xi1>, vector<8x128xf32>
    %1729 = arith.subf %37, %1566 : vector<8x128xf32>
    %1730 = arith.subf %49, %1567 : vector<8x128xf32>
    %1731 = arith.mulf %1729, %1729 : vector<8x128xf32>
    %1732 = arith.mulf %1730, %1730 : vector<8x128xf32>
    %1733 = arith.addf %1731, %1732 : vector<8x128xf32>
    %1734 = arith.mulf %1726, %1730 : vector<8x128xf32>
    %1735 = arith.mulf %1727, %1729 : vector<8x128xf32>
    %1736 = arith.subf %1734, %1735 : vector<8x128xf32>
    %cst_278 = arith.constant 0.000000e+00 : f32
    %1737 = vector.broadcast %cst_278 : f32 to vector<8x128xf32>
    %1738 = arith.cmpf oeq, %1728, %1737 : vector<8x128xf32>
    %cst_279 = arith.constant 0.000000e+00 : f32
    %1739 = vector.broadcast %cst_279 : f32 to vector<8x128xf32>
    %1740 = arith.cmpf olt, %1736, %1739 : vector<8x128xf32>
    %1741 = arith.ori %1738, %1740 : vector<8x128xi1>
    %cst_280 = arith.constant 0.000000e+00 : f32
    %1742 = vector.broadcast %cst_280 : f32 to vector<8x128xf32>
    %1743 = arith.cmpf oeq, %1736, %1742 : vector<8x128xf32>
    %1744 = arith.cmpf ogt, %1733, %1728 : vector<8x128xf32>
    %1745 = arith.andi %1743, %1744 : vector<8x128xi1>
    %1746 = arith.ori %1741, %1745 : vector<8x128xi1>
    %cst_281 = arith.constant 0.000000e+00 : f32
    %1747 = vector.broadcast %cst_281 : f32 to vector<8x128xf32>
    %1748 = arith.cmpf ogt, %1733, %1747 : vector<8x128xf32>
    %1749 = arith.andi %1746, %1748 : vector<8x128xi1>
    %1750 = arith.select %1749, %37, %1724 : vector<8x128xi1>, vector<8x128xf32>
    %1751 = arith.select %1749, %49, %1725 : vector<8x128xi1>, vector<8x128xf32>
    %1752 = arith.cmpf oeq, %1750, %615 : vector<8x128xf32>
    %1753 = arith.cmpf oeq, %1751, %616 : vector<8x128xf32>
    %1754 = arith.andi %1752, %1753 : vector<8x128xi1>
    %1755 = arith.ori %1565, %1754 : vector<8x128xi1>
    %1756 = arith.select %1755, %615, %1750 : vector<8x128xi1>, vector<8x128xf32>
    %1757 = arith.select %1755, %616, %1751 : vector<8x128xi1>, vector<8x128xf32>
    %1758 = arith.subf %4, %1756 : vector<8x128xf32>
    %1759 = arith.subf %16, %1757 : vector<8x128xf32>
    %1760 = arith.mulf %1758, %1758 : vector<8x128xf32>
    %1761 = arith.mulf %1759, %1759 : vector<8x128xf32>
    %1762 = arith.addf %1760, %1761 : vector<8x128xf32>
    %1763 = arith.subf %7, %1756 : vector<8x128xf32>
    %1764 = arith.subf %19, %1757 : vector<8x128xf32>
    %1765 = arith.mulf %1763, %1763 : vector<8x128xf32>
    %1766 = arith.mulf %1764, %1764 : vector<8x128xf32>
    %1767 = arith.addf %1765, %1766 : vector<8x128xf32>
    %1768 = arith.mulf %1758, %1764 : vector<8x128xf32>
    %1769 = arith.mulf %1759, %1763 : vector<8x128xf32>
    %1770 = arith.subf %1768, %1769 : vector<8x128xf32>
    %cst_282 = arith.constant 0.000000e+00 : f32
    %1771 = vector.broadcast %cst_282 : f32 to vector<8x128xf32>
    %1772 = arith.cmpf oeq, %1762, %1771 : vector<8x128xf32>
    %cst_283 = arith.constant 0.000000e+00 : f32
    %1773 = vector.broadcast %cst_283 : f32 to vector<8x128xf32>
    %1774 = arith.cmpf olt, %1770, %1773 : vector<8x128xf32>
    %1775 = arith.ori %1772, %1774 : vector<8x128xi1>
    %cst_284 = arith.constant 0.000000e+00 : f32
    %1776 = vector.broadcast %cst_284 : f32 to vector<8x128xf32>
    %1777 = arith.cmpf oeq, %1770, %1776 : vector<8x128xf32>
    %1778 = arith.cmpf ogt, %1767, %1762 : vector<8x128xf32>
    %1779 = arith.andi %1777, %1778 : vector<8x128xi1>
    %1780 = arith.ori %1775, %1779 : vector<8x128xi1>
    %cst_285 = arith.constant 0.000000e+00 : f32
    %1781 = vector.broadcast %cst_285 : f32 to vector<8x128xf32>
    %1782 = arith.cmpf ogt, %1767, %1781 : vector<8x128xf32>
    %1783 = arith.andi %1780, %1782 : vector<8x128xi1>
    %1784 = arith.select %1783, %7, %4 : vector<8x128xi1>, vector<8x128xf32>
    %1785 = arith.select %1783, %19, %16 : vector<8x128xi1>, vector<8x128xf32>
    %1786 = arith.select %1783, %1763, %1758 : vector<8x128xi1>, vector<8x128xf32>
    %1787 = arith.select %1783, %1764, %1759 : vector<8x128xi1>, vector<8x128xf32>
    %1788 = arith.select %1783, %1767, %1762 : vector<8x128xi1>, vector<8x128xf32>
    %1789 = arith.subf %10, %1756 : vector<8x128xf32>
    %1790 = arith.subf %22, %1757 : vector<8x128xf32>
    %1791 = arith.mulf %1789, %1789 : vector<8x128xf32>
    %1792 = arith.mulf %1790, %1790 : vector<8x128xf32>
    %1793 = arith.addf %1791, %1792 : vector<8x128xf32>
    %1794 = arith.mulf %1786, %1790 : vector<8x128xf32>
    %1795 = arith.mulf %1787, %1789 : vector<8x128xf32>
    %1796 = arith.subf %1794, %1795 : vector<8x128xf32>
    %cst_286 = arith.constant 0.000000e+00 : f32
    %1797 = vector.broadcast %cst_286 : f32 to vector<8x128xf32>
    %1798 = arith.cmpf oeq, %1788, %1797 : vector<8x128xf32>
    %cst_287 = arith.constant 0.000000e+00 : f32
    %1799 = vector.broadcast %cst_287 : f32 to vector<8x128xf32>
    %1800 = arith.cmpf olt, %1796, %1799 : vector<8x128xf32>
    %1801 = arith.ori %1798, %1800 : vector<8x128xi1>
    %cst_288 = arith.constant 0.000000e+00 : f32
    %1802 = vector.broadcast %cst_288 : f32 to vector<8x128xf32>
    %1803 = arith.cmpf oeq, %1796, %1802 : vector<8x128xf32>
    %1804 = arith.cmpf ogt, %1793, %1788 : vector<8x128xf32>
    %1805 = arith.andi %1803, %1804 : vector<8x128xi1>
    %1806 = arith.ori %1801, %1805 : vector<8x128xi1>
    %cst_289 = arith.constant 0.000000e+00 : f32
    %1807 = vector.broadcast %cst_289 : f32 to vector<8x128xf32>
    %1808 = arith.cmpf ogt, %1793, %1807 : vector<8x128xf32>
    %1809 = arith.andi %1806, %1808 : vector<8x128xi1>
    %1810 = arith.select %1809, %10, %1784 : vector<8x128xi1>, vector<8x128xf32>
    %1811 = arith.select %1809, %22, %1785 : vector<8x128xi1>, vector<8x128xf32>
    %1812 = arith.select %1809, %1789, %1786 : vector<8x128xi1>, vector<8x128xf32>
    %1813 = arith.select %1809, %1790, %1787 : vector<8x128xi1>, vector<8x128xf32>
    %1814 = arith.select %1809, %1793, %1788 : vector<8x128xi1>, vector<8x128xf32>
    %1815 = arith.subf %13, %1756 : vector<8x128xf32>
    %1816 = arith.subf %25, %1757 : vector<8x128xf32>
    %1817 = arith.mulf %1815, %1815 : vector<8x128xf32>
    %1818 = arith.mulf %1816, %1816 : vector<8x128xf32>
    %1819 = arith.addf %1817, %1818 : vector<8x128xf32>
    %1820 = arith.mulf %1812, %1816 : vector<8x128xf32>
    %1821 = arith.mulf %1813, %1815 : vector<8x128xf32>
    %1822 = arith.subf %1820, %1821 : vector<8x128xf32>
    %cst_290 = arith.constant 0.000000e+00 : f32
    %1823 = vector.broadcast %cst_290 : f32 to vector<8x128xf32>
    %1824 = arith.cmpf oeq, %1814, %1823 : vector<8x128xf32>
    %cst_291 = arith.constant 0.000000e+00 : f32
    %1825 = vector.broadcast %cst_291 : f32 to vector<8x128xf32>
    %1826 = arith.cmpf olt, %1822, %1825 : vector<8x128xf32>
    %1827 = arith.ori %1824, %1826 : vector<8x128xi1>
    %cst_292 = arith.constant 0.000000e+00 : f32
    %1828 = vector.broadcast %cst_292 : f32 to vector<8x128xf32>
    %1829 = arith.cmpf oeq, %1822, %1828 : vector<8x128xf32>
    %1830 = arith.cmpf ogt, %1819, %1814 : vector<8x128xf32>
    %1831 = arith.andi %1829, %1830 : vector<8x128xi1>
    %1832 = arith.ori %1827, %1831 : vector<8x128xi1>
    %cst_293 = arith.constant 0.000000e+00 : f32
    %1833 = vector.broadcast %cst_293 : f32 to vector<8x128xf32>
    %1834 = arith.cmpf ogt, %1819, %1833 : vector<8x128xf32>
    %1835 = arith.andi %1832, %1834 : vector<8x128xi1>
    %1836 = arith.select %1835, %13, %1810 : vector<8x128xi1>, vector<8x128xf32>
    %1837 = arith.select %1835, %25, %1811 : vector<8x128xi1>, vector<8x128xf32>
    %1838 = arith.select %1835, %1815, %1812 : vector<8x128xi1>, vector<8x128xf32>
    %1839 = arith.select %1835, %1816, %1813 : vector<8x128xi1>, vector<8x128xf32>
    %1840 = arith.select %1835, %1819, %1814 : vector<8x128xi1>, vector<8x128xf32>
    %1841 = arith.subf %28, %1756 : vector<8x128xf32>
    %1842 = arith.subf %40, %1757 : vector<8x128xf32>
    %1843 = arith.mulf %1841, %1841 : vector<8x128xf32>
    %1844 = arith.mulf %1842, %1842 : vector<8x128xf32>
    %1845 = arith.addf %1843, %1844 : vector<8x128xf32>
    %1846 = arith.mulf %1838, %1842 : vector<8x128xf32>
    %1847 = arith.mulf %1839, %1841 : vector<8x128xf32>
    %1848 = arith.subf %1846, %1847 : vector<8x128xf32>
    %cst_294 = arith.constant 0.000000e+00 : f32
    %1849 = vector.broadcast %cst_294 : f32 to vector<8x128xf32>
    %1850 = arith.cmpf oeq, %1840, %1849 : vector<8x128xf32>
    %cst_295 = arith.constant 0.000000e+00 : f32
    %1851 = vector.broadcast %cst_295 : f32 to vector<8x128xf32>
    %1852 = arith.cmpf olt, %1848, %1851 : vector<8x128xf32>
    %1853 = arith.ori %1850, %1852 : vector<8x128xi1>
    %cst_296 = arith.constant 0.000000e+00 : f32
    %1854 = vector.broadcast %cst_296 : f32 to vector<8x128xf32>
    %1855 = arith.cmpf oeq, %1848, %1854 : vector<8x128xf32>
    %1856 = arith.cmpf ogt, %1845, %1840 : vector<8x128xf32>
    %1857 = arith.andi %1855, %1856 : vector<8x128xi1>
    %1858 = arith.ori %1853, %1857 : vector<8x128xi1>
    %cst_297 = arith.constant 0.000000e+00 : f32
    %1859 = vector.broadcast %cst_297 : f32 to vector<8x128xf32>
    %1860 = arith.cmpf ogt, %1845, %1859 : vector<8x128xf32>
    %1861 = arith.andi %1858, %1860 : vector<8x128xi1>
    %1862 = arith.select %1861, %28, %1836 : vector<8x128xi1>, vector<8x128xf32>
    %1863 = arith.select %1861, %40, %1837 : vector<8x128xi1>, vector<8x128xf32>
    %1864 = arith.select %1861, %1841, %1838 : vector<8x128xi1>, vector<8x128xf32>
    %1865 = arith.select %1861, %1842, %1839 : vector<8x128xi1>, vector<8x128xf32>
    %1866 = arith.select %1861, %1845, %1840 : vector<8x128xi1>, vector<8x128xf32>
    %1867 = arith.subf %31, %1756 : vector<8x128xf32>
    %1868 = arith.subf %43, %1757 : vector<8x128xf32>
    %1869 = arith.mulf %1867, %1867 : vector<8x128xf32>
    %1870 = arith.mulf %1868, %1868 : vector<8x128xf32>
    %1871 = arith.addf %1869, %1870 : vector<8x128xf32>
    %1872 = arith.mulf %1864, %1868 : vector<8x128xf32>
    %1873 = arith.mulf %1865, %1867 : vector<8x128xf32>
    %1874 = arith.subf %1872, %1873 : vector<8x128xf32>
    %cst_298 = arith.constant 0.000000e+00 : f32
    %1875 = vector.broadcast %cst_298 : f32 to vector<8x128xf32>
    %1876 = arith.cmpf oeq, %1866, %1875 : vector<8x128xf32>
    %cst_299 = arith.constant 0.000000e+00 : f32
    %1877 = vector.broadcast %cst_299 : f32 to vector<8x128xf32>
    %1878 = arith.cmpf olt, %1874, %1877 : vector<8x128xf32>
    %1879 = arith.ori %1876, %1878 : vector<8x128xi1>
    %cst_300 = arith.constant 0.000000e+00 : f32
    %1880 = vector.broadcast %cst_300 : f32 to vector<8x128xf32>
    %1881 = arith.cmpf oeq, %1874, %1880 : vector<8x128xf32>
    %1882 = arith.cmpf ogt, %1871, %1866 : vector<8x128xf32>
    %1883 = arith.andi %1881, %1882 : vector<8x128xi1>
    %1884 = arith.ori %1879, %1883 : vector<8x128xi1>
    %cst_301 = arith.constant 0.000000e+00 : f32
    %1885 = vector.broadcast %cst_301 : f32 to vector<8x128xf32>
    %1886 = arith.cmpf ogt, %1871, %1885 : vector<8x128xf32>
    %1887 = arith.andi %1884, %1886 : vector<8x128xi1>
    %1888 = arith.select %1887, %31, %1862 : vector<8x128xi1>, vector<8x128xf32>
    %1889 = arith.select %1887, %43, %1863 : vector<8x128xi1>, vector<8x128xf32>
    %1890 = arith.select %1887, %1867, %1864 : vector<8x128xi1>, vector<8x128xf32>
    %1891 = arith.select %1887, %1868, %1865 : vector<8x128xi1>, vector<8x128xf32>
    %1892 = arith.select %1887, %1871, %1866 : vector<8x128xi1>, vector<8x128xf32>
    %1893 = arith.subf %34, %1756 : vector<8x128xf32>
    %1894 = arith.subf %46, %1757 : vector<8x128xf32>
    %1895 = arith.mulf %1893, %1893 : vector<8x128xf32>
    %1896 = arith.mulf %1894, %1894 : vector<8x128xf32>
    %1897 = arith.addf %1895, %1896 : vector<8x128xf32>
    %1898 = arith.mulf %1890, %1894 : vector<8x128xf32>
    %1899 = arith.mulf %1891, %1893 : vector<8x128xf32>
    %1900 = arith.subf %1898, %1899 : vector<8x128xf32>
    %cst_302 = arith.constant 0.000000e+00 : f32
    %1901 = vector.broadcast %cst_302 : f32 to vector<8x128xf32>
    %1902 = arith.cmpf oeq, %1892, %1901 : vector<8x128xf32>
    %cst_303 = arith.constant 0.000000e+00 : f32
    %1903 = vector.broadcast %cst_303 : f32 to vector<8x128xf32>
    %1904 = arith.cmpf olt, %1900, %1903 : vector<8x128xf32>
    %1905 = arith.ori %1902, %1904 : vector<8x128xi1>
    %cst_304 = arith.constant 0.000000e+00 : f32
    %1906 = vector.broadcast %cst_304 : f32 to vector<8x128xf32>
    %1907 = arith.cmpf oeq, %1900, %1906 : vector<8x128xf32>
    %1908 = arith.cmpf ogt, %1897, %1892 : vector<8x128xf32>
    %1909 = arith.andi %1907, %1908 : vector<8x128xi1>
    %1910 = arith.ori %1905, %1909 : vector<8x128xi1>
    %cst_305 = arith.constant 0.000000e+00 : f32
    %1911 = vector.broadcast %cst_305 : f32 to vector<8x128xf32>
    %1912 = arith.cmpf ogt, %1897, %1911 : vector<8x128xf32>
    %1913 = arith.andi %1910, %1912 : vector<8x128xi1>
    %1914 = arith.select %1913, %34, %1888 : vector<8x128xi1>, vector<8x128xf32>
    %1915 = arith.select %1913, %46, %1889 : vector<8x128xi1>, vector<8x128xf32>
    %1916 = arith.select %1913, %1893, %1890 : vector<8x128xi1>, vector<8x128xf32>
    %1917 = arith.select %1913, %1894, %1891 : vector<8x128xi1>, vector<8x128xf32>
    %1918 = arith.select %1913, %1897, %1892 : vector<8x128xi1>, vector<8x128xf32>
    %1919 = arith.subf %37, %1756 : vector<8x128xf32>
    %1920 = arith.subf %49, %1757 : vector<8x128xf32>
    %1921 = arith.mulf %1919, %1919 : vector<8x128xf32>
    %1922 = arith.mulf %1920, %1920 : vector<8x128xf32>
    %1923 = arith.addf %1921, %1922 : vector<8x128xf32>
    %1924 = arith.mulf %1916, %1920 : vector<8x128xf32>
    %1925 = arith.mulf %1917, %1919 : vector<8x128xf32>
    %1926 = arith.subf %1924, %1925 : vector<8x128xf32>
    %cst_306 = arith.constant 0.000000e+00 : f32
    %1927 = vector.broadcast %cst_306 : f32 to vector<8x128xf32>
    %1928 = arith.cmpf oeq, %1918, %1927 : vector<8x128xf32>
    %cst_307 = arith.constant 0.000000e+00 : f32
    %1929 = vector.broadcast %cst_307 : f32 to vector<8x128xf32>
    %1930 = arith.cmpf olt, %1926, %1929 : vector<8x128xf32>
    %1931 = arith.ori %1928, %1930 : vector<8x128xi1>
    %cst_308 = arith.constant 0.000000e+00 : f32
    %1932 = vector.broadcast %cst_308 : f32 to vector<8x128xf32>
    %1933 = arith.cmpf oeq, %1926, %1932 : vector<8x128xf32>
    %1934 = arith.cmpf ogt, %1923, %1918 : vector<8x128xf32>
    %1935 = arith.andi %1933, %1934 : vector<8x128xi1>
    %1936 = arith.ori %1931, %1935 : vector<8x128xi1>
    %cst_309 = arith.constant 0.000000e+00 : f32
    %1937 = vector.broadcast %cst_309 : f32 to vector<8x128xf32>
    %1938 = arith.cmpf ogt, %1923, %1937 : vector<8x128xf32>
    %1939 = arith.andi %1936, %1938 : vector<8x128xi1>
    %1940 = arith.select %1939, %37, %1914 : vector<8x128xi1>, vector<8x128xf32>
    %1941 = arith.select %1939, %49, %1915 : vector<8x128xi1>, vector<8x128xf32>
    %1942 = arith.cmpf oeq, %1940, %615 : vector<8x128xf32>
    %1943 = arith.cmpf oeq, %1941, %616 : vector<8x128xf32>
    %1944 = arith.andi %1942, %1943 : vector<8x128xi1>
    %1945 = arith.ori %1755, %1944 : vector<8x128xi1>
    %1946 = arith.select %1945, %615, %1940 : vector<8x128xi1>, vector<8x128xf32>
    %1947 = arith.select %1945, %616, %1941 : vector<8x128xi1>, vector<8x128xf32>
    %cst_310 = arith.constant 0.000000e+00 : f32
    %1948 = vector.broadcast %cst_310 : f32 to vector<8x128xf32>
    %1949 = arith.mulf %615, %807 : vector<8x128xf32>
    %1950 = arith.addf %1948, %1949 : vector<8x128xf32>
    %1951 = arith.mulf %806, %616 : vector<8x128xf32>
    %1952 = arith.subf %1950, %1951 : vector<8x128xf32>
    %1953 = arith.mulf %806, %997 : vector<8x128xf32>
    %1954 = arith.addf %1952, %1953 : vector<8x128xf32>
    %1955 = arith.mulf %996, %807 : vector<8x128xf32>
    %1956 = arith.subf %1954, %1955 : vector<8x128xf32>
    %1957 = arith.mulf %996, %1187 : vector<8x128xf32>
    %1958 = arith.addf %1956, %1957 : vector<8x128xf32>
    %1959 = arith.mulf %1186, %997 : vector<8x128xf32>
    %1960 = arith.subf %1958, %1959 : vector<8x128xf32>
    %1961 = arith.mulf %1186, %1377 : vector<8x128xf32>
    %1962 = arith.addf %1960, %1961 : vector<8x128xf32>
    %1963 = arith.mulf %1376, %1187 : vector<8x128xf32>
    %1964 = arith.subf %1962, %1963 : vector<8x128xf32>
    %1965 = arith.mulf %1376, %1567 : vector<8x128xf32>
    %1966 = arith.addf %1964, %1965 : vector<8x128xf32>
    %1967 = arith.mulf %1566, %1377 : vector<8x128xf32>
    %1968 = arith.subf %1966, %1967 : vector<8x128xf32>
    %1969 = arith.mulf %1566, %1757 : vector<8x128xf32>
    %1970 = arith.addf %1968, %1969 : vector<8x128xf32>
    %1971 = arith.mulf %1756, %1567 : vector<8x128xf32>
    %1972 = arith.subf %1970, %1971 : vector<8x128xf32>
    %1973 = arith.mulf %1756, %1947 : vector<8x128xf32>
    %1974 = arith.addf %1972, %1973 : vector<8x128xf32>
    %1975 = arith.mulf %1946, %1757 : vector<8x128xf32>
    %1976 = arith.subf %1974, %1975 : vector<8x128xf32>
    %1977 = arith.mulf %1946, %616 : vector<8x128xf32>
    %1978 = arith.addf %1976, %1977 : vector<8x128xf32>
    %1979 = arith.mulf %615, %1947 : vector<8x128xf32>
    %1980 = arith.subf %1978, %1979 : vector<8x128xf32>
    %1981 = math.absf %1980 : vector<8x128xf32>
    %cst_311 = arith.constant 5.000000e-01 : f32
    %1982 = vector.broadcast %cst_311 : f32 to vector<8x128xf32>
    %1983 = arith.mulf %1982, %1981 : vector<8x128xf32>
    %1984 = arith.subf %156, %69 : vector<8x128xf32>
    %1985 = arith.subf %157, %70 : vector<8x128xf32>
    %cst_312 = arith.constant 0.000000e+00 : f32
    %1986 = vector.broadcast %cst_312 : f32 to vector<8x128xf32>
    %1987 = arith.subf %1986, %1985 : vector<8x128xf32>
    %1988 = arith.mulf %1987, %69 : vector<8x128xf32>
    %1989 = arith.mulf %1984, %70 : vector<8x128xf32>
    %1990 = arith.addf %1988, %1989 : vector<8x128xf32>
    %1991 = arith.subf %242, %156 : vector<8x128xf32>
    %1992 = arith.subf %243, %157 : vector<8x128xf32>
    %cst_313 = arith.constant 0.000000e+00 : f32
    %1993 = vector.broadcast %cst_313 : f32 to vector<8x128xf32>
    %1994 = arith.subf %1993, %1992 : vector<8x128xf32>
    %1995 = arith.mulf %1994, %156 : vector<8x128xf32>
    %1996 = arith.mulf %1991, %157 : vector<8x128xf32>
    %1997 = arith.addf %1995, %1996 : vector<8x128xf32>
    %1998 = arith.subf %328, %242 : vector<8x128xf32>
    %1999 = arith.subf %329, %243 : vector<8x128xf32>
    %cst_314 = arith.constant 0.000000e+00 : f32
    %2000 = vector.broadcast %cst_314 : f32 to vector<8x128xf32>
    %2001 = arith.subf %2000, %1999 : vector<8x128xf32>
    %2002 = arith.mulf %2001, %242 : vector<8x128xf32>
    %2003 = arith.mulf %1998, %243 : vector<8x128xf32>
    %2004 = arith.addf %2002, %2003 : vector<8x128xf32>
    %2005 = arith.subf %69, %328 : vector<8x128xf32>
    %2006 = arith.subf %70, %329 : vector<8x128xf32>
    %cst_315 = arith.constant 0.000000e+00 : f32
    %2007 = vector.broadcast %cst_315 : f32 to vector<8x128xf32>
    %2008 = arith.subf %2007, %2006 : vector<8x128xf32>
    %2009 = arith.mulf %2008, %328 : vector<8x128xf32>
    %2010 = arith.mulf %2005, %329 : vector<8x128xf32>
    %2011 = arith.addf %2009, %2010 : vector<8x128xf32>
    %2012 = arith.subf %436, %349 : vector<8x128xf32>
    %2013 = arith.subf %437, %350 : vector<8x128xf32>
    %cst_316 = arith.constant 0.000000e+00 : f32
    %2014 = vector.broadcast %cst_316 : f32 to vector<8x128xf32>
    %2015 = arith.subf %2014, %2013 : vector<8x128xf32>
    %2016 = arith.mulf %2015, %349 : vector<8x128xf32>
    %2017 = arith.mulf %2012, %350 : vector<8x128xf32>
    %2018 = arith.addf %2016, %2017 : vector<8x128xf32>
    %2019 = arith.subf %522, %436 : vector<8x128xf32>
    %2020 = arith.subf %523, %437 : vector<8x128xf32>
    %cst_317 = arith.constant 0.000000e+00 : f32
    %2021 = vector.broadcast %cst_317 : f32 to vector<8x128xf32>
    %2022 = arith.subf %2021, %2020 : vector<8x128xf32>
    %2023 = arith.mulf %2022, %436 : vector<8x128xf32>
    %2024 = arith.mulf %2019, %437 : vector<8x128xf32>
    %2025 = arith.addf %2023, %2024 : vector<8x128xf32>
    %2026 = arith.subf %608, %522 : vector<8x128xf32>
    %2027 = arith.subf %609, %523 : vector<8x128xf32>
    %cst_318 = arith.constant 0.000000e+00 : f32
    %2028 = vector.broadcast %cst_318 : f32 to vector<8x128xf32>
    %2029 = arith.subf %2028, %2027 : vector<8x128xf32>
    %2030 = arith.mulf %2029, %522 : vector<8x128xf32>
    %2031 = arith.mulf %2026, %523 : vector<8x128xf32>
    %2032 = arith.addf %2030, %2031 : vector<8x128xf32>
    %2033 = arith.subf %349, %608 : vector<8x128xf32>
    %2034 = arith.subf %350, %609 : vector<8x128xf32>
    %cst_319 = arith.constant 0.000000e+00 : f32
    %2035 = vector.broadcast %cst_319 : f32 to vector<8x128xf32>
    %2036 = arith.subf %2035, %2034 : vector<8x128xf32>
    %2037 = arith.mulf %2036, %608 : vector<8x128xf32>
    %2038 = arith.mulf %2033, %609 : vector<8x128xf32>
    %2039 = arith.addf %2037, %2038 : vector<8x128xf32>
    %cst_320 = arith.constant 0.000000e+00 : f32
    %2040 = vector.broadcast %cst_320 : f32 to vector<8x128xf32>
    %2041 = arith.subf %156, %69 : vector<8x128xf32>
    %2042 = arith.subf %157, %70 : vector<8x128xf32>
    %2043 = arith.mulf %2041, %2041 : vector<8x128xf32>
    %2044 = arith.mulf %2042, %2042 : vector<8x128xf32>
    %2045 = arith.addf %2043, %2044 : vector<8x128xf32>
    %cst_321 = arith.constant 0.000000e+00 : f32
    %2046 = vector.broadcast %cst_321 : f32 to vector<8x128xf32>
    %2047 = arith.cmpf ogt, %2045, %2046 : vector<8x128xf32>
    %cst_322 = arith.constant 0.000000e+00 : f32
    %2048 = vector.broadcast %cst_322 : f32 to vector<8x128xf32>
    %cst_323 = arith.constant 1.000000e+00 : f32
    %2049 = vector.broadcast %cst_323 : f32 to vector<8x128xf32>
    %2050 = arith.mulf %2015, %2041 : vector<8x128xf32>
    %2051 = arith.mulf %2012, %2042 : vector<8x128xf32>
    %2052 = arith.addf %2050, %2051 : vector<8x128xf32>
    %2053 = arith.mulf %2015, %69 : vector<8x128xf32>
    %2054 = arith.mulf %2012, %70 : vector<8x128xf32>
    %2055 = arith.addf %2053, %2054 : vector<8x128xf32>
    %2056 = arith.subf %2018, %2055 : vector<8x128xf32>
    %cst_324 = arith.constant 0.000000e+00 : f32
    %2057 = vector.broadcast %cst_324 : f32 to vector<8x128xf32>
    %2058 = arith.cmpf oeq, %2052, %2057 : vector<8x128xf32>
    %cst_325 = arith.constant 1.000000e+00 : f32
    %2059 = vector.broadcast %cst_325 : f32 to vector<8x128xf32>
    %2060 = arith.select %2058, %2059, %2052 : vector<8x128xi1>, vector<8x128xf32>
    %2061 = arith.divf %2056, %2060 : vector<8x128xf32>
    %cst_326 = arith.constant 0.000000e+00 : f32
    %2062 = vector.broadcast %cst_326 : f32 to vector<8x128xf32>
    %2063 = arith.cmpf ogt, %2052, %2062 : vector<8x128xf32>
    %2064 = arith.maximumf %2048, %2061 : vector<8x128xf32>
    %2065 = arith.select %2063, %2064, %2048 : vector<8x128xi1>, vector<8x128xf32>
    %cst_327 = arith.constant 0.000000e+00 : f32
    %2066 = vector.broadcast %cst_327 : f32 to vector<8x128xf32>
    %2067 = arith.cmpf olt, %2052, %2066 : vector<8x128xf32>
    %2068 = arith.minimumf %2049, %2061 : vector<8x128xf32>
    %2069 = arith.select %2067, %2068, %2049 : vector<8x128xi1>, vector<8x128xf32>
    %cst_328 = arith.constant 0.000000e+00 : f32
    %2070 = vector.broadcast %cst_328 : f32 to vector<8x128xf32>
    %2071 = arith.cmpf oeq, %2052, %2070 : vector<8x128xf32>
    %cst_329 = arith.constant 0.000000e+00 : f32
    %2072 = vector.broadcast %cst_329 : f32 to vector<8x128xf32>
    %2073 = arith.cmpf ogt, %2056, %2072 : vector<8x128xf32>
    %2074 = arith.andi %2071, %2073 : vector<8x128xi1>
    %cst_330 = arith.constant dense<true> : vector<8x128xi1>
    %2075 = arith.xori %2074, %cst_330 : vector<8x128xi1>
    %2076 = arith.andi %2047, %2075 : vector<8x128xi1>
    %2077 = arith.mulf %2022, %2041 : vector<8x128xf32>
    %2078 = arith.mulf %2019, %2042 : vector<8x128xf32>
    %2079 = arith.addf %2077, %2078 : vector<8x128xf32>
    %2080 = arith.mulf %2022, %69 : vector<8x128xf32>
    %2081 = arith.mulf %2019, %70 : vector<8x128xf32>
    %2082 = arith.addf %2080, %2081 : vector<8x128xf32>
    %2083 = arith.subf %2025, %2082 : vector<8x128xf32>
    %cst_331 = arith.constant 0.000000e+00 : f32
    %2084 = vector.broadcast %cst_331 : f32 to vector<8x128xf32>
    %2085 = arith.cmpf oeq, %2079, %2084 : vector<8x128xf32>
    %cst_332 = arith.constant 1.000000e+00 : f32
    %2086 = vector.broadcast %cst_332 : f32 to vector<8x128xf32>
    %2087 = arith.select %2085, %2086, %2079 : vector<8x128xi1>, vector<8x128xf32>
    %2088 = arith.divf %2083, %2087 : vector<8x128xf32>
    %cst_333 = arith.constant 0.000000e+00 : f32
    %2089 = vector.broadcast %cst_333 : f32 to vector<8x128xf32>
    %2090 = arith.cmpf ogt, %2079, %2089 : vector<8x128xf32>
    %2091 = arith.maximumf %2065, %2088 : vector<8x128xf32>
    %2092 = arith.select %2090, %2091, %2065 : vector<8x128xi1>, vector<8x128xf32>
    %cst_334 = arith.constant 0.000000e+00 : f32
    %2093 = vector.broadcast %cst_334 : f32 to vector<8x128xf32>
    %2094 = arith.cmpf olt, %2079, %2093 : vector<8x128xf32>
    %2095 = arith.minimumf %2069, %2088 : vector<8x128xf32>
    %2096 = arith.select %2094, %2095, %2069 : vector<8x128xi1>, vector<8x128xf32>
    %cst_335 = arith.constant 0.000000e+00 : f32
    %2097 = vector.broadcast %cst_335 : f32 to vector<8x128xf32>
    %2098 = arith.cmpf oeq, %2079, %2097 : vector<8x128xf32>
    %cst_336 = arith.constant 0.000000e+00 : f32
    %2099 = vector.broadcast %cst_336 : f32 to vector<8x128xf32>
    %2100 = arith.cmpf ogt, %2083, %2099 : vector<8x128xf32>
    %2101 = arith.andi %2098, %2100 : vector<8x128xi1>
    %cst_337 = arith.constant dense<true> : vector<8x128xi1>
    %2102 = arith.xori %2101, %cst_337 : vector<8x128xi1>
    %2103 = arith.andi %2076, %2102 : vector<8x128xi1>
    %2104 = arith.mulf %2029, %2041 : vector<8x128xf32>
    %2105 = arith.mulf %2026, %2042 : vector<8x128xf32>
    %2106 = arith.addf %2104, %2105 : vector<8x128xf32>
    %2107 = arith.mulf %2029, %69 : vector<8x128xf32>
    %2108 = arith.mulf %2026, %70 : vector<8x128xf32>
    %2109 = arith.addf %2107, %2108 : vector<8x128xf32>
    %2110 = arith.subf %2032, %2109 : vector<8x128xf32>
    %cst_338 = arith.constant 0.000000e+00 : f32
    %2111 = vector.broadcast %cst_338 : f32 to vector<8x128xf32>
    %2112 = arith.cmpf oeq, %2106, %2111 : vector<8x128xf32>
    %cst_339 = arith.constant 1.000000e+00 : f32
    %2113 = vector.broadcast %cst_339 : f32 to vector<8x128xf32>
    %2114 = arith.select %2112, %2113, %2106 : vector<8x128xi1>, vector<8x128xf32>
    %2115 = arith.divf %2110, %2114 : vector<8x128xf32>
    %cst_340 = arith.constant 0.000000e+00 : f32
    %2116 = vector.broadcast %cst_340 : f32 to vector<8x128xf32>
    %2117 = arith.cmpf ogt, %2106, %2116 : vector<8x128xf32>
    %2118 = arith.maximumf %2092, %2115 : vector<8x128xf32>
    %2119 = arith.select %2117, %2118, %2092 : vector<8x128xi1>, vector<8x128xf32>
    %cst_341 = arith.constant 0.000000e+00 : f32
    %2120 = vector.broadcast %cst_341 : f32 to vector<8x128xf32>
    %2121 = arith.cmpf olt, %2106, %2120 : vector<8x128xf32>
    %2122 = arith.minimumf %2096, %2115 : vector<8x128xf32>
    %2123 = arith.select %2121, %2122, %2096 : vector<8x128xi1>, vector<8x128xf32>
    %cst_342 = arith.constant 0.000000e+00 : f32
    %2124 = vector.broadcast %cst_342 : f32 to vector<8x128xf32>
    %2125 = arith.cmpf oeq, %2106, %2124 : vector<8x128xf32>
    %cst_343 = arith.constant 0.000000e+00 : f32
    %2126 = vector.broadcast %cst_343 : f32 to vector<8x128xf32>
    %2127 = arith.cmpf ogt, %2110, %2126 : vector<8x128xf32>
    %2128 = arith.andi %2125, %2127 : vector<8x128xi1>
    %cst_344 = arith.constant dense<true> : vector<8x128xi1>
    %2129 = arith.xori %2128, %cst_344 : vector<8x128xi1>
    %2130 = arith.andi %2103, %2129 : vector<8x128xi1>
    %2131 = arith.mulf %2036, %2041 : vector<8x128xf32>
    %2132 = arith.mulf %2033, %2042 : vector<8x128xf32>
    %2133 = arith.addf %2131, %2132 : vector<8x128xf32>
    %2134 = arith.mulf %2036, %69 : vector<8x128xf32>
    %2135 = arith.mulf %2033, %70 : vector<8x128xf32>
    %2136 = arith.addf %2134, %2135 : vector<8x128xf32>
    %2137 = arith.subf %2039, %2136 : vector<8x128xf32>
    %cst_345 = arith.constant 0.000000e+00 : f32
    %2138 = vector.broadcast %cst_345 : f32 to vector<8x128xf32>
    %2139 = arith.cmpf oeq, %2133, %2138 : vector<8x128xf32>
    %cst_346 = arith.constant 1.000000e+00 : f32
    %2140 = vector.broadcast %cst_346 : f32 to vector<8x128xf32>
    %2141 = arith.select %2139, %2140, %2133 : vector<8x128xi1>, vector<8x128xf32>
    %2142 = arith.divf %2137, %2141 : vector<8x128xf32>
    %cst_347 = arith.constant 0.000000e+00 : f32
    %2143 = vector.broadcast %cst_347 : f32 to vector<8x128xf32>
    %2144 = arith.cmpf ogt, %2133, %2143 : vector<8x128xf32>
    %2145 = arith.maximumf %2119, %2142 : vector<8x128xf32>
    %2146 = arith.select %2144, %2145, %2119 : vector<8x128xi1>, vector<8x128xf32>
    %cst_348 = arith.constant 0.000000e+00 : f32
    %2147 = vector.broadcast %cst_348 : f32 to vector<8x128xf32>
    %2148 = arith.cmpf olt, %2133, %2147 : vector<8x128xf32>
    %2149 = arith.minimumf %2123, %2142 : vector<8x128xf32>
    %2150 = arith.select %2148, %2149, %2123 : vector<8x128xi1>, vector<8x128xf32>
    %cst_349 = arith.constant 0.000000e+00 : f32
    %2151 = vector.broadcast %cst_349 : f32 to vector<8x128xf32>
    %2152 = arith.cmpf oeq, %2133, %2151 : vector<8x128xf32>
    %cst_350 = arith.constant 0.000000e+00 : f32
    %2153 = vector.broadcast %cst_350 : f32 to vector<8x128xf32>
    %2154 = arith.cmpf ogt, %2137, %2153 : vector<8x128xf32>
    %2155 = arith.andi %2152, %2154 : vector<8x128xi1>
    %cst_351 = arith.constant dense<true> : vector<8x128xi1>
    %2156 = arith.xori %2155, %cst_351 : vector<8x128xi1>
    %2157 = arith.andi %2130, %2156 : vector<8x128xi1>
    %2158 = arith.cmpf ole, %2146, %2150 : vector<8x128xf32>
    %2159 = arith.andi %2157, %2158 : vector<8x128xi1>
    %2160 = arith.mulf %2146, %2041 : vector<8x128xf32>
    %2161 = arith.addf %69, %2160 : vector<8x128xf32>
    %2162 = arith.mulf %2146, %2042 : vector<8x128xf32>
    %2163 = arith.addf %70, %2162 : vector<8x128xf32>
    %2164 = arith.mulf %2150, %2041 : vector<8x128xf32>
    %2165 = arith.addf %69, %2164 : vector<8x128xf32>
    %2166 = arith.mulf %2150, %2042 : vector<8x128xf32>
    %2167 = arith.addf %70, %2166 : vector<8x128xf32>
    %2168 = arith.mulf %2161, %2167 : vector<8x128xf32>
    %2169 = arith.mulf %2163, %2165 : vector<8x128xf32>
    %2170 = arith.subf %2168, %2169 : vector<8x128xf32>
    %cst_352 = arith.constant 5.000000e-01 : f32
    %2171 = vector.broadcast %cst_352 : f32 to vector<8x128xf32>
    %2172 = arith.mulf %2171, %2170 : vector<8x128xf32>
    %cst_353 = arith.constant 0.000000e+00 : f32
    %2173 = vector.broadcast %cst_353 : f32 to vector<8x128xf32>
    %2174 = arith.select %2159, %2172, %2173 : vector<8x128xi1>, vector<8x128xf32>
    %2175 = arith.addf %2040, %2174 : vector<8x128xf32>
    %2176 = arith.subf %436, %349 : vector<8x128xf32>
    %2177 = arith.subf %437, %350 : vector<8x128xf32>
    %2178 = arith.mulf %2176, %2176 : vector<8x128xf32>
    %2179 = arith.mulf %2177, %2177 : vector<8x128xf32>
    %2180 = arith.addf %2178, %2179 : vector<8x128xf32>
    %cst_354 = arith.constant 0.000000e+00 : f32
    %2181 = vector.broadcast %cst_354 : f32 to vector<8x128xf32>
    %2182 = arith.cmpf ogt, %2180, %2181 : vector<8x128xf32>
    %cst_355 = arith.constant 0.000000e+00 : f32
    %2183 = vector.broadcast %cst_355 : f32 to vector<8x128xf32>
    %cst_356 = arith.constant 1.000000e+00 : f32
    %2184 = vector.broadcast %cst_356 : f32 to vector<8x128xf32>
    %2185 = arith.mulf %1987, %2176 : vector<8x128xf32>
    %2186 = arith.mulf %1984, %2177 : vector<8x128xf32>
    %2187 = arith.addf %2185, %2186 : vector<8x128xf32>
    %2188 = arith.mulf %1987, %349 : vector<8x128xf32>
    %2189 = arith.mulf %1984, %350 : vector<8x128xf32>
    %2190 = arith.addf %2188, %2189 : vector<8x128xf32>
    %2191 = arith.subf %1990, %2190 : vector<8x128xf32>
    %cst_357 = arith.constant 0.000000e+00 : f32
    %2192 = vector.broadcast %cst_357 : f32 to vector<8x128xf32>
    %2193 = arith.cmpf oeq, %2187, %2192 : vector<8x128xf32>
    %cst_358 = arith.constant 1.000000e+00 : f32
    %2194 = vector.broadcast %cst_358 : f32 to vector<8x128xf32>
    %2195 = arith.select %2193, %2194, %2187 : vector<8x128xi1>, vector<8x128xf32>
    %2196 = arith.divf %2191, %2195 : vector<8x128xf32>
    %cst_359 = arith.constant 0.000000e+00 : f32
    %2197 = vector.broadcast %cst_359 : f32 to vector<8x128xf32>
    %2198 = arith.cmpf ogt, %2187, %2197 : vector<8x128xf32>
    %2199 = arith.maximumf %2183, %2196 : vector<8x128xf32>
    %2200 = arith.select %2198, %2199, %2183 : vector<8x128xi1>, vector<8x128xf32>
    %cst_360 = arith.constant 0.000000e+00 : f32
    %2201 = vector.broadcast %cst_360 : f32 to vector<8x128xf32>
    %2202 = arith.cmpf olt, %2187, %2201 : vector<8x128xf32>
    %2203 = arith.minimumf %2184, %2196 : vector<8x128xf32>
    %2204 = arith.select %2202, %2203, %2184 : vector<8x128xi1>, vector<8x128xf32>
    %cst_361 = arith.constant 0.000000e+00 : f32
    %2205 = vector.broadcast %cst_361 : f32 to vector<8x128xf32>
    %2206 = arith.cmpf oeq, %2187, %2205 : vector<8x128xf32>
    %cst_362 = arith.constant 0.000000e+00 : f32
    %2207 = vector.broadcast %cst_362 : f32 to vector<8x128xf32>
    %2208 = arith.cmpf ogt, %2191, %2207 : vector<8x128xf32>
    %2209 = arith.andi %2206, %2208 : vector<8x128xi1>
    %2210 = arith.mulf %1984, %2176 : vector<8x128xf32>
    %2211 = arith.mulf %1987, %2177 : vector<8x128xf32>
    %2212 = arith.subf %2210, %2211 : vector<8x128xf32>
    %cst_363 = arith.constant 0.000000e+00 : f32
    %2213 = vector.broadcast %cst_363 : f32 to vector<8x128xf32>
    %2214 = arith.cmpf ogt, %2212, %2213 : vector<8x128xf32>
    %cst_364 = arith.constant 0.000000e+00 : f32
    %2215 = vector.broadcast %cst_364 : f32 to vector<8x128xf32>
    %2216 = arith.cmpf oeq, %2187, %2215 : vector<8x128xf32>
    %cst_365 = arith.constant 0.000000e+00 : f32
    %2217 = vector.broadcast %cst_365 : f32 to vector<8x128xf32>
    %2218 = arith.cmpf oeq, %2191, %2217 : vector<8x128xf32>
    %2219 = arith.andi %2216, %2218 : vector<8x128xi1>
    %2220 = arith.andi %2219, %2214 : vector<8x128xi1>
    %2221 = arith.ori %2209, %2220 : vector<8x128xi1>
    %cst_366 = arith.constant dense<true> : vector<8x128xi1>
    %2222 = arith.xori %2221, %cst_366 : vector<8x128xi1>
    %2223 = arith.andi %2182, %2222 : vector<8x128xi1>
    %2224 = arith.mulf %1994, %2176 : vector<8x128xf32>
    %2225 = arith.mulf %1991, %2177 : vector<8x128xf32>
    %2226 = arith.addf %2224, %2225 : vector<8x128xf32>
    %2227 = arith.mulf %1994, %349 : vector<8x128xf32>
    %2228 = arith.mulf %1991, %350 : vector<8x128xf32>
    %2229 = arith.addf %2227, %2228 : vector<8x128xf32>
    %2230 = arith.subf %1997, %2229 : vector<8x128xf32>
    %cst_367 = arith.constant 0.000000e+00 : f32
    %2231 = vector.broadcast %cst_367 : f32 to vector<8x128xf32>
    %2232 = arith.cmpf oeq, %2226, %2231 : vector<8x128xf32>
    %cst_368 = arith.constant 1.000000e+00 : f32
    %2233 = vector.broadcast %cst_368 : f32 to vector<8x128xf32>
    %2234 = arith.select %2232, %2233, %2226 : vector<8x128xi1>, vector<8x128xf32>
    %2235 = arith.divf %2230, %2234 : vector<8x128xf32>
    %cst_369 = arith.constant 0.000000e+00 : f32
    %2236 = vector.broadcast %cst_369 : f32 to vector<8x128xf32>
    %2237 = arith.cmpf ogt, %2226, %2236 : vector<8x128xf32>
    %2238 = arith.maximumf %2200, %2235 : vector<8x128xf32>
    %2239 = arith.select %2237, %2238, %2200 : vector<8x128xi1>, vector<8x128xf32>
    %cst_370 = arith.constant 0.000000e+00 : f32
    %2240 = vector.broadcast %cst_370 : f32 to vector<8x128xf32>
    %2241 = arith.cmpf olt, %2226, %2240 : vector<8x128xf32>
    %2242 = arith.minimumf %2204, %2235 : vector<8x128xf32>
    %2243 = arith.select %2241, %2242, %2204 : vector<8x128xi1>, vector<8x128xf32>
    %cst_371 = arith.constant 0.000000e+00 : f32
    %2244 = vector.broadcast %cst_371 : f32 to vector<8x128xf32>
    %2245 = arith.cmpf oeq, %2226, %2244 : vector<8x128xf32>
    %cst_372 = arith.constant 0.000000e+00 : f32
    %2246 = vector.broadcast %cst_372 : f32 to vector<8x128xf32>
    %2247 = arith.cmpf ogt, %2230, %2246 : vector<8x128xf32>
    %2248 = arith.andi %2245, %2247 : vector<8x128xi1>
    %2249 = arith.mulf %1991, %2176 : vector<8x128xf32>
    %2250 = arith.mulf %1994, %2177 : vector<8x128xf32>
    %2251 = arith.subf %2249, %2250 : vector<8x128xf32>
    %cst_373 = arith.constant 0.000000e+00 : f32
    %2252 = vector.broadcast %cst_373 : f32 to vector<8x128xf32>
    %2253 = arith.cmpf ogt, %2251, %2252 : vector<8x128xf32>
    %cst_374 = arith.constant 0.000000e+00 : f32
    %2254 = vector.broadcast %cst_374 : f32 to vector<8x128xf32>
    %2255 = arith.cmpf oeq, %2226, %2254 : vector<8x128xf32>
    %cst_375 = arith.constant 0.000000e+00 : f32
    %2256 = vector.broadcast %cst_375 : f32 to vector<8x128xf32>
    %2257 = arith.cmpf oeq, %2230, %2256 : vector<8x128xf32>
    %2258 = arith.andi %2255, %2257 : vector<8x128xi1>
    %2259 = arith.andi %2258, %2253 : vector<8x128xi1>
    %2260 = arith.ori %2248, %2259 : vector<8x128xi1>
    %cst_376 = arith.constant dense<true> : vector<8x128xi1>
    %2261 = arith.xori %2260, %cst_376 : vector<8x128xi1>
    %2262 = arith.andi %2223, %2261 : vector<8x128xi1>
    %2263 = arith.mulf %2001, %2176 : vector<8x128xf32>
    %2264 = arith.mulf %1998, %2177 : vector<8x128xf32>
    %2265 = arith.addf %2263, %2264 : vector<8x128xf32>
    %2266 = arith.mulf %2001, %349 : vector<8x128xf32>
    %2267 = arith.mulf %1998, %350 : vector<8x128xf32>
    %2268 = arith.addf %2266, %2267 : vector<8x128xf32>
    %2269 = arith.subf %2004, %2268 : vector<8x128xf32>
    %cst_377 = arith.constant 0.000000e+00 : f32
    %2270 = vector.broadcast %cst_377 : f32 to vector<8x128xf32>
    %2271 = arith.cmpf oeq, %2265, %2270 : vector<8x128xf32>
    %cst_378 = arith.constant 1.000000e+00 : f32
    %2272 = vector.broadcast %cst_378 : f32 to vector<8x128xf32>
    %2273 = arith.select %2271, %2272, %2265 : vector<8x128xi1>, vector<8x128xf32>
    %2274 = arith.divf %2269, %2273 : vector<8x128xf32>
    %cst_379 = arith.constant 0.000000e+00 : f32
    %2275 = vector.broadcast %cst_379 : f32 to vector<8x128xf32>
    %2276 = arith.cmpf ogt, %2265, %2275 : vector<8x128xf32>
    %2277 = arith.maximumf %2239, %2274 : vector<8x128xf32>
    %2278 = arith.select %2276, %2277, %2239 : vector<8x128xi1>, vector<8x128xf32>
    %cst_380 = arith.constant 0.000000e+00 : f32
    %2279 = vector.broadcast %cst_380 : f32 to vector<8x128xf32>
    %2280 = arith.cmpf olt, %2265, %2279 : vector<8x128xf32>
    %2281 = arith.minimumf %2243, %2274 : vector<8x128xf32>
    %2282 = arith.select %2280, %2281, %2243 : vector<8x128xi1>, vector<8x128xf32>
    %cst_381 = arith.constant 0.000000e+00 : f32
    %2283 = vector.broadcast %cst_381 : f32 to vector<8x128xf32>
    %2284 = arith.cmpf oeq, %2265, %2283 : vector<8x128xf32>
    %cst_382 = arith.constant 0.000000e+00 : f32
    %2285 = vector.broadcast %cst_382 : f32 to vector<8x128xf32>
    %2286 = arith.cmpf ogt, %2269, %2285 : vector<8x128xf32>
    %2287 = arith.andi %2284, %2286 : vector<8x128xi1>
    %2288 = arith.mulf %1998, %2176 : vector<8x128xf32>
    %2289 = arith.mulf %2001, %2177 : vector<8x128xf32>
    %2290 = arith.subf %2288, %2289 : vector<8x128xf32>
    %cst_383 = arith.constant 0.000000e+00 : f32
    %2291 = vector.broadcast %cst_383 : f32 to vector<8x128xf32>
    %2292 = arith.cmpf ogt, %2290, %2291 : vector<8x128xf32>
    %cst_384 = arith.constant 0.000000e+00 : f32
    %2293 = vector.broadcast %cst_384 : f32 to vector<8x128xf32>
    %2294 = arith.cmpf oeq, %2265, %2293 : vector<8x128xf32>
    %cst_385 = arith.constant 0.000000e+00 : f32
    %2295 = vector.broadcast %cst_385 : f32 to vector<8x128xf32>
    %2296 = arith.cmpf oeq, %2269, %2295 : vector<8x128xf32>
    %2297 = arith.andi %2294, %2296 : vector<8x128xi1>
    %2298 = arith.andi %2297, %2292 : vector<8x128xi1>
    %2299 = arith.ori %2287, %2298 : vector<8x128xi1>
    %cst_386 = arith.constant dense<true> : vector<8x128xi1>
    %2300 = arith.xori %2299, %cst_386 : vector<8x128xi1>
    %2301 = arith.andi %2262, %2300 : vector<8x128xi1>
    %2302 = arith.mulf %2008, %2176 : vector<8x128xf32>
    %2303 = arith.mulf %2005, %2177 : vector<8x128xf32>
    %2304 = arith.addf %2302, %2303 : vector<8x128xf32>
    %2305 = arith.mulf %2008, %349 : vector<8x128xf32>
    %2306 = arith.mulf %2005, %350 : vector<8x128xf32>
    %2307 = arith.addf %2305, %2306 : vector<8x128xf32>
    %2308 = arith.subf %2011, %2307 : vector<8x128xf32>
    %cst_387 = arith.constant 0.000000e+00 : f32
    %2309 = vector.broadcast %cst_387 : f32 to vector<8x128xf32>
    %2310 = arith.cmpf oeq, %2304, %2309 : vector<8x128xf32>
    %cst_388 = arith.constant 1.000000e+00 : f32
    %2311 = vector.broadcast %cst_388 : f32 to vector<8x128xf32>
    %2312 = arith.select %2310, %2311, %2304 : vector<8x128xi1>, vector<8x128xf32>
    %2313 = arith.divf %2308, %2312 : vector<8x128xf32>
    %cst_389 = arith.constant 0.000000e+00 : f32
    %2314 = vector.broadcast %cst_389 : f32 to vector<8x128xf32>
    %2315 = arith.cmpf ogt, %2304, %2314 : vector<8x128xf32>
    %2316 = arith.maximumf %2278, %2313 : vector<8x128xf32>
    %2317 = arith.select %2315, %2316, %2278 : vector<8x128xi1>, vector<8x128xf32>
    %cst_390 = arith.constant 0.000000e+00 : f32
    %2318 = vector.broadcast %cst_390 : f32 to vector<8x128xf32>
    %2319 = arith.cmpf olt, %2304, %2318 : vector<8x128xf32>
    %2320 = arith.minimumf %2282, %2313 : vector<8x128xf32>
    %2321 = arith.select %2319, %2320, %2282 : vector<8x128xi1>, vector<8x128xf32>
    %cst_391 = arith.constant 0.000000e+00 : f32
    %2322 = vector.broadcast %cst_391 : f32 to vector<8x128xf32>
    %2323 = arith.cmpf oeq, %2304, %2322 : vector<8x128xf32>
    %cst_392 = arith.constant 0.000000e+00 : f32
    %2324 = vector.broadcast %cst_392 : f32 to vector<8x128xf32>
    %2325 = arith.cmpf ogt, %2308, %2324 : vector<8x128xf32>
    %2326 = arith.andi %2323, %2325 : vector<8x128xi1>
    %2327 = arith.mulf %2005, %2176 : vector<8x128xf32>
    %2328 = arith.mulf %2008, %2177 : vector<8x128xf32>
    %2329 = arith.subf %2327, %2328 : vector<8x128xf32>
    %cst_393 = arith.constant 0.000000e+00 : f32
    %2330 = vector.broadcast %cst_393 : f32 to vector<8x128xf32>
    %2331 = arith.cmpf ogt, %2329, %2330 : vector<8x128xf32>
    %cst_394 = arith.constant 0.000000e+00 : f32
    %2332 = vector.broadcast %cst_394 : f32 to vector<8x128xf32>
    %2333 = arith.cmpf oeq, %2304, %2332 : vector<8x128xf32>
    %cst_395 = arith.constant 0.000000e+00 : f32
    %2334 = vector.broadcast %cst_395 : f32 to vector<8x128xf32>
    %2335 = arith.cmpf oeq, %2308, %2334 : vector<8x128xf32>
    %2336 = arith.andi %2333, %2335 : vector<8x128xi1>
    %2337 = arith.andi %2336, %2331 : vector<8x128xi1>
    %2338 = arith.ori %2326, %2337 : vector<8x128xi1>
    %cst_396 = arith.constant dense<true> : vector<8x128xi1>
    %2339 = arith.xori %2338, %cst_396 : vector<8x128xi1>
    %2340 = arith.andi %2301, %2339 : vector<8x128xi1>
    %2341 = arith.cmpf ole, %2317, %2321 : vector<8x128xf32>
    %2342 = arith.andi %2340, %2341 : vector<8x128xi1>
    %2343 = arith.mulf %2317, %2176 : vector<8x128xf32>
    %2344 = arith.addf %349, %2343 : vector<8x128xf32>
    %2345 = arith.mulf %2317, %2177 : vector<8x128xf32>
    %2346 = arith.addf %350, %2345 : vector<8x128xf32>
    %2347 = arith.mulf %2321, %2176 : vector<8x128xf32>
    %2348 = arith.addf %349, %2347 : vector<8x128xf32>
    %2349 = arith.mulf %2321, %2177 : vector<8x128xf32>
    %2350 = arith.addf %350, %2349 : vector<8x128xf32>
    %2351 = arith.mulf %2344, %2350 : vector<8x128xf32>
    %2352 = arith.mulf %2346, %2348 : vector<8x128xf32>
    %2353 = arith.subf %2351, %2352 : vector<8x128xf32>
    %cst_397 = arith.constant 5.000000e-01 : f32
    %2354 = vector.broadcast %cst_397 : f32 to vector<8x128xf32>
    %2355 = arith.mulf %2354, %2353 : vector<8x128xf32>
    %cst_398 = arith.constant 0.000000e+00 : f32
    %2356 = vector.broadcast %cst_398 : f32 to vector<8x128xf32>
    %2357 = arith.select %2342, %2355, %2356 : vector<8x128xi1>, vector<8x128xf32>
    %2358 = arith.addf %2175, %2357 : vector<8x128xf32>
    %2359 = arith.subf %242, %156 : vector<8x128xf32>
    %2360 = arith.subf %243, %157 : vector<8x128xf32>
    %2361 = arith.mulf %2359, %2359 : vector<8x128xf32>
    %2362 = arith.mulf %2360, %2360 : vector<8x128xf32>
    %2363 = arith.addf %2361, %2362 : vector<8x128xf32>
    %cst_399 = arith.constant 0.000000e+00 : f32
    %2364 = vector.broadcast %cst_399 : f32 to vector<8x128xf32>
    %2365 = arith.cmpf ogt, %2363, %2364 : vector<8x128xf32>
    %cst_400 = arith.constant 0.000000e+00 : f32
    %2366 = vector.broadcast %cst_400 : f32 to vector<8x128xf32>
    %cst_401 = arith.constant 1.000000e+00 : f32
    %2367 = vector.broadcast %cst_401 : f32 to vector<8x128xf32>
    %2368 = arith.mulf %2015, %2359 : vector<8x128xf32>
    %2369 = arith.mulf %2012, %2360 : vector<8x128xf32>
    %2370 = arith.addf %2368, %2369 : vector<8x128xf32>
    %2371 = arith.mulf %2015, %156 : vector<8x128xf32>
    %2372 = arith.mulf %2012, %157 : vector<8x128xf32>
    %2373 = arith.addf %2371, %2372 : vector<8x128xf32>
    %2374 = arith.subf %2018, %2373 : vector<8x128xf32>
    %cst_402 = arith.constant 0.000000e+00 : f32
    %2375 = vector.broadcast %cst_402 : f32 to vector<8x128xf32>
    %2376 = arith.cmpf oeq, %2370, %2375 : vector<8x128xf32>
    %cst_403 = arith.constant 1.000000e+00 : f32
    %2377 = vector.broadcast %cst_403 : f32 to vector<8x128xf32>
    %2378 = arith.select %2376, %2377, %2370 : vector<8x128xi1>, vector<8x128xf32>
    %2379 = arith.divf %2374, %2378 : vector<8x128xf32>
    %cst_404 = arith.constant 0.000000e+00 : f32
    %2380 = vector.broadcast %cst_404 : f32 to vector<8x128xf32>
    %2381 = arith.cmpf ogt, %2370, %2380 : vector<8x128xf32>
    %2382 = arith.maximumf %2366, %2379 : vector<8x128xf32>
    %2383 = arith.select %2381, %2382, %2366 : vector<8x128xi1>, vector<8x128xf32>
    %cst_405 = arith.constant 0.000000e+00 : f32
    %2384 = vector.broadcast %cst_405 : f32 to vector<8x128xf32>
    %2385 = arith.cmpf olt, %2370, %2384 : vector<8x128xf32>
    %2386 = arith.minimumf %2367, %2379 : vector<8x128xf32>
    %2387 = arith.select %2385, %2386, %2367 : vector<8x128xi1>, vector<8x128xf32>
    %cst_406 = arith.constant 0.000000e+00 : f32
    %2388 = vector.broadcast %cst_406 : f32 to vector<8x128xf32>
    %2389 = arith.cmpf oeq, %2370, %2388 : vector<8x128xf32>
    %cst_407 = arith.constant 0.000000e+00 : f32
    %2390 = vector.broadcast %cst_407 : f32 to vector<8x128xf32>
    %2391 = arith.cmpf ogt, %2374, %2390 : vector<8x128xf32>
    %2392 = arith.andi %2389, %2391 : vector<8x128xi1>
    %cst_408 = arith.constant dense<true> : vector<8x128xi1>
    %2393 = arith.xori %2392, %cst_408 : vector<8x128xi1>
    %2394 = arith.andi %2365, %2393 : vector<8x128xi1>
    %2395 = arith.mulf %2022, %2359 : vector<8x128xf32>
    %2396 = arith.mulf %2019, %2360 : vector<8x128xf32>
    %2397 = arith.addf %2395, %2396 : vector<8x128xf32>
    %2398 = arith.mulf %2022, %156 : vector<8x128xf32>
    %2399 = arith.mulf %2019, %157 : vector<8x128xf32>
    %2400 = arith.addf %2398, %2399 : vector<8x128xf32>
    %2401 = arith.subf %2025, %2400 : vector<8x128xf32>
    %cst_409 = arith.constant 0.000000e+00 : f32
    %2402 = vector.broadcast %cst_409 : f32 to vector<8x128xf32>
    %2403 = arith.cmpf oeq, %2397, %2402 : vector<8x128xf32>
    %cst_410 = arith.constant 1.000000e+00 : f32
    %2404 = vector.broadcast %cst_410 : f32 to vector<8x128xf32>
    %2405 = arith.select %2403, %2404, %2397 : vector<8x128xi1>, vector<8x128xf32>
    %2406 = arith.divf %2401, %2405 : vector<8x128xf32>
    %cst_411 = arith.constant 0.000000e+00 : f32
    %2407 = vector.broadcast %cst_411 : f32 to vector<8x128xf32>
    %2408 = arith.cmpf ogt, %2397, %2407 : vector<8x128xf32>
    %2409 = arith.maximumf %2383, %2406 : vector<8x128xf32>
    %2410 = arith.select %2408, %2409, %2383 : vector<8x128xi1>, vector<8x128xf32>
    %cst_412 = arith.constant 0.000000e+00 : f32
    %2411 = vector.broadcast %cst_412 : f32 to vector<8x128xf32>
    %2412 = arith.cmpf olt, %2397, %2411 : vector<8x128xf32>
    %2413 = arith.minimumf %2387, %2406 : vector<8x128xf32>
    %2414 = arith.select %2412, %2413, %2387 : vector<8x128xi1>, vector<8x128xf32>
    %cst_413 = arith.constant 0.000000e+00 : f32
    %2415 = vector.broadcast %cst_413 : f32 to vector<8x128xf32>
    %2416 = arith.cmpf oeq, %2397, %2415 : vector<8x128xf32>
    %cst_414 = arith.constant 0.000000e+00 : f32
    %2417 = vector.broadcast %cst_414 : f32 to vector<8x128xf32>
    %2418 = arith.cmpf ogt, %2401, %2417 : vector<8x128xf32>
    %2419 = arith.andi %2416, %2418 : vector<8x128xi1>
    %cst_415 = arith.constant dense<true> : vector<8x128xi1>
    %2420 = arith.xori %2419, %cst_415 : vector<8x128xi1>
    %2421 = arith.andi %2394, %2420 : vector<8x128xi1>
    %2422 = arith.mulf %2029, %2359 : vector<8x128xf32>
    %2423 = arith.mulf %2026, %2360 : vector<8x128xf32>
    %2424 = arith.addf %2422, %2423 : vector<8x128xf32>
    %2425 = arith.mulf %2029, %156 : vector<8x128xf32>
    %2426 = arith.mulf %2026, %157 : vector<8x128xf32>
    %2427 = arith.addf %2425, %2426 : vector<8x128xf32>
    %2428 = arith.subf %2032, %2427 : vector<8x128xf32>
    %cst_416 = arith.constant 0.000000e+00 : f32
    %2429 = vector.broadcast %cst_416 : f32 to vector<8x128xf32>
    %2430 = arith.cmpf oeq, %2424, %2429 : vector<8x128xf32>
    %cst_417 = arith.constant 1.000000e+00 : f32
    %2431 = vector.broadcast %cst_417 : f32 to vector<8x128xf32>
    %2432 = arith.select %2430, %2431, %2424 : vector<8x128xi1>, vector<8x128xf32>
    %2433 = arith.divf %2428, %2432 : vector<8x128xf32>
    %cst_418 = arith.constant 0.000000e+00 : f32
    %2434 = vector.broadcast %cst_418 : f32 to vector<8x128xf32>
    %2435 = arith.cmpf ogt, %2424, %2434 : vector<8x128xf32>
    %2436 = arith.maximumf %2410, %2433 : vector<8x128xf32>
    %2437 = arith.select %2435, %2436, %2410 : vector<8x128xi1>, vector<8x128xf32>
    %cst_419 = arith.constant 0.000000e+00 : f32
    %2438 = vector.broadcast %cst_419 : f32 to vector<8x128xf32>
    %2439 = arith.cmpf olt, %2424, %2438 : vector<8x128xf32>
    %2440 = arith.minimumf %2414, %2433 : vector<8x128xf32>
    %2441 = arith.select %2439, %2440, %2414 : vector<8x128xi1>, vector<8x128xf32>
    %cst_420 = arith.constant 0.000000e+00 : f32
    %2442 = vector.broadcast %cst_420 : f32 to vector<8x128xf32>
    %2443 = arith.cmpf oeq, %2424, %2442 : vector<8x128xf32>
    %cst_421 = arith.constant 0.000000e+00 : f32
    %2444 = vector.broadcast %cst_421 : f32 to vector<8x128xf32>
    %2445 = arith.cmpf ogt, %2428, %2444 : vector<8x128xf32>
    %2446 = arith.andi %2443, %2445 : vector<8x128xi1>
    %cst_422 = arith.constant dense<true> : vector<8x128xi1>
    %2447 = arith.xori %2446, %cst_422 : vector<8x128xi1>
    %2448 = arith.andi %2421, %2447 : vector<8x128xi1>
    %2449 = arith.mulf %2036, %2359 : vector<8x128xf32>
    %2450 = arith.mulf %2033, %2360 : vector<8x128xf32>
    %2451 = arith.addf %2449, %2450 : vector<8x128xf32>
    %2452 = arith.mulf %2036, %156 : vector<8x128xf32>
    %2453 = arith.mulf %2033, %157 : vector<8x128xf32>
    %2454 = arith.addf %2452, %2453 : vector<8x128xf32>
    %2455 = arith.subf %2039, %2454 : vector<8x128xf32>
    %cst_423 = arith.constant 0.000000e+00 : f32
    %2456 = vector.broadcast %cst_423 : f32 to vector<8x128xf32>
    %2457 = arith.cmpf oeq, %2451, %2456 : vector<8x128xf32>
    %cst_424 = arith.constant 1.000000e+00 : f32
    %2458 = vector.broadcast %cst_424 : f32 to vector<8x128xf32>
    %2459 = arith.select %2457, %2458, %2451 : vector<8x128xi1>, vector<8x128xf32>
    %2460 = arith.divf %2455, %2459 : vector<8x128xf32>
    %cst_425 = arith.constant 0.000000e+00 : f32
    %2461 = vector.broadcast %cst_425 : f32 to vector<8x128xf32>
    %2462 = arith.cmpf ogt, %2451, %2461 : vector<8x128xf32>
    %2463 = arith.maximumf %2437, %2460 : vector<8x128xf32>
    %2464 = arith.select %2462, %2463, %2437 : vector<8x128xi1>, vector<8x128xf32>
    %cst_426 = arith.constant 0.000000e+00 : f32
    %2465 = vector.broadcast %cst_426 : f32 to vector<8x128xf32>
    %2466 = arith.cmpf olt, %2451, %2465 : vector<8x128xf32>
    %2467 = arith.minimumf %2441, %2460 : vector<8x128xf32>
    %2468 = arith.select %2466, %2467, %2441 : vector<8x128xi1>, vector<8x128xf32>
    %cst_427 = arith.constant 0.000000e+00 : f32
    %2469 = vector.broadcast %cst_427 : f32 to vector<8x128xf32>
    %2470 = arith.cmpf oeq, %2451, %2469 : vector<8x128xf32>
    %cst_428 = arith.constant 0.000000e+00 : f32
    %2471 = vector.broadcast %cst_428 : f32 to vector<8x128xf32>
    %2472 = arith.cmpf ogt, %2455, %2471 : vector<8x128xf32>
    %2473 = arith.andi %2470, %2472 : vector<8x128xi1>
    %cst_429 = arith.constant dense<true> : vector<8x128xi1>
    %2474 = arith.xori %2473, %cst_429 : vector<8x128xi1>
    %2475 = arith.andi %2448, %2474 : vector<8x128xi1>
    %2476 = arith.cmpf ole, %2464, %2468 : vector<8x128xf32>
    %2477 = arith.andi %2475, %2476 : vector<8x128xi1>
    %2478 = arith.mulf %2464, %2359 : vector<8x128xf32>
    %2479 = arith.addf %156, %2478 : vector<8x128xf32>
    %2480 = arith.mulf %2464, %2360 : vector<8x128xf32>
    %2481 = arith.addf %157, %2480 : vector<8x128xf32>
    %2482 = arith.mulf %2468, %2359 : vector<8x128xf32>
    %2483 = arith.addf %156, %2482 : vector<8x128xf32>
    %2484 = arith.mulf %2468, %2360 : vector<8x128xf32>
    %2485 = arith.addf %157, %2484 : vector<8x128xf32>
    %2486 = arith.mulf %2479, %2485 : vector<8x128xf32>
    %2487 = arith.mulf %2481, %2483 : vector<8x128xf32>
    %2488 = arith.subf %2486, %2487 : vector<8x128xf32>
    %cst_430 = arith.constant 5.000000e-01 : f32
    %2489 = vector.broadcast %cst_430 : f32 to vector<8x128xf32>
    %2490 = arith.mulf %2489, %2488 : vector<8x128xf32>
    %cst_431 = arith.constant 0.000000e+00 : f32
    %2491 = vector.broadcast %cst_431 : f32 to vector<8x128xf32>
    %2492 = arith.select %2477, %2490, %2491 : vector<8x128xi1>, vector<8x128xf32>
    %2493 = arith.addf %2358, %2492 : vector<8x128xf32>
    %2494 = arith.subf %522, %436 : vector<8x128xf32>
    %2495 = arith.subf %523, %437 : vector<8x128xf32>
    %2496 = arith.mulf %2494, %2494 : vector<8x128xf32>
    %2497 = arith.mulf %2495, %2495 : vector<8x128xf32>
    %2498 = arith.addf %2496, %2497 : vector<8x128xf32>
    %cst_432 = arith.constant 0.000000e+00 : f32
    %2499 = vector.broadcast %cst_432 : f32 to vector<8x128xf32>
    %2500 = arith.cmpf ogt, %2498, %2499 : vector<8x128xf32>
    %cst_433 = arith.constant 0.000000e+00 : f32
    %2501 = vector.broadcast %cst_433 : f32 to vector<8x128xf32>
    %cst_434 = arith.constant 1.000000e+00 : f32
    %2502 = vector.broadcast %cst_434 : f32 to vector<8x128xf32>
    %2503 = arith.mulf %1987, %2494 : vector<8x128xf32>
    %2504 = arith.mulf %1984, %2495 : vector<8x128xf32>
    %2505 = arith.addf %2503, %2504 : vector<8x128xf32>
    %2506 = arith.mulf %1987, %436 : vector<8x128xf32>
    %2507 = arith.mulf %1984, %437 : vector<8x128xf32>
    %2508 = arith.addf %2506, %2507 : vector<8x128xf32>
    %2509 = arith.subf %1990, %2508 : vector<8x128xf32>
    %cst_435 = arith.constant 0.000000e+00 : f32
    %2510 = vector.broadcast %cst_435 : f32 to vector<8x128xf32>
    %2511 = arith.cmpf oeq, %2505, %2510 : vector<8x128xf32>
    %cst_436 = arith.constant 1.000000e+00 : f32
    %2512 = vector.broadcast %cst_436 : f32 to vector<8x128xf32>
    %2513 = arith.select %2511, %2512, %2505 : vector<8x128xi1>, vector<8x128xf32>
    %2514 = arith.divf %2509, %2513 : vector<8x128xf32>
    %cst_437 = arith.constant 0.000000e+00 : f32
    %2515 = vector.broadcast %cst_437 : f32 to vector<8x128xf32>
    %2516 = arith.cmpf ogt, %2505, %2515 : vector<8x128xf32>
    %2517 = arith.maximumf %2501, %2514 : vector<8x128xf32>
    %2518 = arith.select %2516, %2517, %2501 : vector<8x128xi1>, vector<8x128xf32>
    %cst_438 = arith.constant 0.000000e+00 : f32
    %2519 = vector.broadcast %cst_438 : f32 to vector<8x128xf32>
    %2520 = arith.cmpf olt, %2505, %2519 : vector<8x128xf32>
    %2521 = arith.minimumf %2502, %2514 : vector<8x128xf32>
    %2522 = arith.select %2520, %2521, %2502 : vector<8x128xi1>, vector<8x128xf32>
    %cst_439 = arith.constant 0.000000e+00 : f32
    %2523 = vector.broadcast %cst_439 : f32 to vector<8x128xf32>
    %2524 = arith.cmpf oeq, %2505, %2523 : vector<8x128xf32>
    %cst_440 = arith.constant 0.000000e+00 : f32
    %2525 = vector.broadcast %cst_440 : f32 to vector<8x128xf32>
    %2526 = arith.cmpf ogt, %2509, %2525 : vector<8x128xf32>
    %2527 = arith.andi %2524, %2526 : vector<8x128xi1>
    %2528 = arith.mulf %1984, %2494 : vector<8x128xf32>
    %2529 = arith.mulf %1987, %2495 : vector<8x128xf32>
    %2530 = arith.subf %2528, %2529 : vector<8x128xf32>
    %cst_441 = arith.constant 0.000000e+00 : f32
    %2531 = vector.broadcast %cst_441 : f32 to vector<8x128xf32>
    %2532 = arith.cmpf ogt, %2530, %2531 : vector<8x128xf32>
    %cst_442 = arith.constant 0.000000e+00 : f32
    %2533 = vector.broadcast %cst_442 : f32 to vector<8x128xf32>
    %2534 = arith.cmpf oeq, %2505, %2533 : vector<8x128xf32>
    %cst_443 = arith.constant 0.000000e+00 : f32
    %2535 = vector.broadcast %cst_443 : f32 to vector<8x128xf32>
    %2536 = arith.cmpf oeq, %2509, %2535 : vector<8x128xf32>
    %2537 = arith.andi %2534, %2536 : vector<8x128xi1>
    %2538 = arith.andi %2537, %2532 : vector<8x128xi1>
    %2539 = arith.ori %2527, %2538 : vector<8x128xi1>
    %cst_444 = arith.constant dense<true> : vector<8x128xi1>
    %2540 = arith.xori %2539, %cst_444 : vector<8x128xi1>
    %2541 = arith.andi %2500, %2540 : vector<8x128xi1>
    %2542 = arith.mulf %1994, %2494 : vector<8x128xf32>
    %2543 = arith.mulf %1991, %2495 : vector<8x128xf32>
    %2544 = arith.addf %2542, %2543 : vector<8x128xf32>
    %2545 = arith.mulf %1994, %436 : vector<8x128xf32>
    %2546 = arith.mulf %1991, %437 : vector<8x128xf32>
    %2547 = arith.addf %2545, %2546 : vector<8x128xf32>
    %2548 = arith.subf %1997, %2547 : vector<8x128xf32>
    %cst_445 = arith.constant 0.000000e+00 : f32
    %2549 = vector.broadcast %cst_445 : f32 to vector<8x128xf32>
    %2550 = arith.cmpf oeq, %2544, %2549 : vector<8x128xf32>
    %cst_446 = arith.constant 1.000000e+00 : f32
    %2551 = vector.broadcast %cst_446 : f32 to vector<8x128xf32>
    %2552 = arith.select %2550, %2551, %2544 : vector<8x128xi1>, vector<8x128xf32>
    %2553 = arith.divf %2548, %2552 : vector<8x128xf32>
    %cst_447 = arith.constant 0.000000e+00 : f32
    %2554 = vector.broadcast %cst_447 : f32 to vector<8x128xf32>
    %2555 = arith.cmpf ogt, %2544, %2554 : vector<8x128xf32>
    %2556 = arith.maximumf %2518, %2553 : vector<8x128xf32>
    %2557 = arith.select %2555, %2556, %2518 : vector<8x128xi1>, vector<8x128xf32>
    %cst_448 = arith.constant 0.000000e+00 : f32
    %2558 = vector.broadcast %cst_448 : f32 to vector<8x128xf32>
    %2559 = arith.cmpf olt, %2544, %2558 : vector<8x128xf32>
    %2560 = arith.minimumf %2522, %2553 : vector<8x128xf32>
    %2561 = arith.select %2559, %2560, %2522 : vector<8x128xi1>, vector<8x128xf32>
    %cst_449 = arith.constant 0.000000e+00 : f32
    %2562 = vector.broadcast %cst_449 : f32 to vector<8x128xf32>
    %2563 = arith.cmpf oeq, %2544, %2562 : vector<8x128xf32>
    %cst_450 = arith.constant 0.000000e+00 : f32
    %2564 = vector.broadcast %cst_450 : f32 to vector<8x128xf32>
    %2565 = arith.cmpf ogt, %2548, %2564 : vector<8x128xf32>
    %2566 = arith.andi %2563, %2565 : vector<8x128xi1>
    %2567 = arith.mulf %1991, %2494 : vector<8x128xf32>
    %2568 = arith.mulf %1994, %2495 : vector<8x128xf32>
    %2569 = arith.subf %2567, %2568 : vector<8x128xf32>
    %cst_451 = arith.constant 0.000000e+00 : f32
    %2570 = vector.broadcast %cst_451 : f32 to vector<8x128xf32>
    %2571 = arith.cmpf ogt, %2569, %2570 : vector<8x128xf32>
    %cst_452 = arith.constant 0.000000e+00 : f32
    %2572 = vector.broadcast %cst_452 : f32 to vector<8x128xf32>
    %2573 = arith.cmpf oeq, %2544, %2572 : vector<8x128xf32>
    %cst_453 = arith.constant 0.000000e+00 : f32
    %2574 = vector.broadcast %cst_453 : f32 to vector<8x128xf32>
    %2575 = arith.cmpf oeq, %2548, %2574 : vector<8x128xf32>
    %2576 = arith.andi %2573, %2575 : vector<8x128xi1>
    %2577 = arith.andi %2576, %2571 : vector<8x128xi1>
    %2578 = arith.ori %2566, %2577 : vector<8x128xi1>
    %cst_454 = arith.constant dense<true> : vector<8x128xi1>
    %2579 = arith.xori %2578, %cst_454 : vector<8x128xi1>
    %2580 = arith.andi %2541, %2579 : vector<8x128xi1>
    %2581 = arith.mulf %2001, %2494 : vector<8x128xf32>
    %2582 = arith.mulf %1998, %2495 : vector<8x128xf32>
    %2583 = arith.addf %2581, %2582 : vector<8x128xf32>
    %2584 = arith.mulf %2001, %436 : vector<8x128xf32>
    %2585 = arith.mulf %1998, %437 : vector<8x128xf32>
    %2586 = arith.addf %2584, %2585 : vector<8x128xf32>
    %2587 = arith.subf %2004, %2586 : vector<8x128xf32>
    %cst_455 = arith.constant 0.000000e+00 : f32
    %2588 = vector.broadcast %cst_455 : f32 to vector<8x128xf32>
    %2589 = arith.cmpf oeq, %2583, %2588 : vector<8x128xf32>
    %cst_456 = arith.constant 1.000000e+00 : f32
    %2590 = vector.broadcast %cst_456 : f32 to vector<8x128xf32>
    %2591 = arith.select %2589, %2590, %2583 : vector<8x128xi1>, vector<8x128xf32>
    %2592 = arith.divf %2587, %2591 : vector<8x128xf32>
    %cst_457 = arith.constant 0.000000e+00 : f32
    %2593 = vector.broadcast %cst_457 : f32 to vector<8x128xf32>
    %2594 = arith.cmpf ogt, %2583, %2593 : vector<8x128xf32>
    %2595 = arith.maximumf %2557, %2592 : vector<8x128xf32>
    %2596 = arith.select %2594, %2595, %2557 : vector<8x128xi1>, vector<8x128xf32>
    %cst_458 = arith.constant 0.000000e+00 : f32
    %2597 = vector.broadcast %cst_458 : f32 to vector<8x128xf32>
    %2598 = arith.cmpf olt, %2583, %2597 : vector<8x128xf32>
    %2599 = arith.minimumf %2561, %2592 : vector<8x128xf32>
    %2600 = arith.select %2598, %2599, %2561 : vector<8x128xi1>, vector<8x128xf32>
    %cst_459 = arith.constant 0.000000e+00 : f32
    %2601 = vector.broadcast %cst_459 : f32 to vector<8x128xf32>
    %2602 = arith.cmpf oeq, %2583, %2601 : vector<8x128xf32>
    %cst_460 = arith.constant 0.000000e+00 : f32
    %2603 = vector.broadcast %cst_460 : f32 to vector<8x128xf32>
    %2604 = arith.cmpf ogt, %2587, %2603 : vector<8x128xf32>
    %2605 = arith.andi %2602, %2604 : vector<8x128xi1>
    %2606 = arith.mulf %1998, %2494 : vector<8x128xf32>
    %2607 = arith.mulf %2001, %2495 : vector<8x128xf32>
    %2608 = arith.subf %2606, %2607 : vector<8x128xf32>
    %cst_461 = arith.constant 0.000000e+00 : f32
    %2609 = vector.broadcast %cst_461 : f32 to vector<8x128xf32>
    %2610 = arith.cmpf ogt, %2608, %2609 : vector<8x128xf32>
    %cst_462 = arith.constant 0.000000e+00 : f32
    %2611 = vector.broadcast %cst_462 : f32 to vector<8x128xf32>
    %2612 = arith.cmpf oeq, %2583, %2611 : vector<8x128xf32>
    %cst_463 = arith.constant 0.000000e+00 : f32
    %2613 = vector.broadcast %cst_463 : f32 to vector<8x128xf32>
    %2614 = arith.cmpf oeq, %2587, %2613 : vector<8x128xf32>
    %2615 = arith.andi %2612, %2614 : vector<8x128xi1>
    %2616 = arith.andi %2615, %2610 : vector<8x128xi1>
    %2617 = arith.ori %2605, %2616 : vector<8x128xi1>
    %cst_464 = arith.constant dense<true> : vector<8x128xi1>
    %2618 = arith.xori %2617, %cst_464 : vector<8x128xi1>
    %2619 = arith.andi %2580, %2618 : vector<8x128xi1>
    %2620 = arith.mulf %2008, %2494 : vector<8x128xf32>
    %2621 = arith.mulf %2005, %2495 : vector<8x128xf32>
    %2622 = arith.addf %2620, %2621 : vector<8x128xf32>
    %2623 = arith.mulf %2008, %436 : vector<8x128xf32>
    %2624 = arith.mulf %2005, %437 : vector<8x128xf32>
    %2625 = arith.addf %2623, %2624 : vector<8x128xf32>
    %2626 = arith.subf %2011, %2625 : vector<8x128xf32>
    %cst_465 = arith.constant 0.000000e+00 : f32
    %2627 = vector.broadcast %cst_465 : f32 to vector<8x128xf32>
    %2628 = arith.cmpf oeq, %2622, %2627 : vector<8x128xf32>
    %cst_466 = arith.constant 1.000000e+00 : f32
    %2629 = vector.broadcast %cst_466 : f32 to vector<8x128xf32>
    %2630 = arith.select %2628, %2629, %2622 : vector<8x128xi1>, vector<8x128xf32>
    %2631 = arith.divf %2626, %2630 : vector<8x128xf32>
    %cst_467 = arith.constant 0.000000e+00 : f32
    %2632 = vector.broadcast %cst_467 : f32 to vector<8x128xf32>
    %2633 = arith.cmpf ogt, %2622, %2632 : vector<8x128xf32>
    %2634 = arith.maximumf %2596, %2631 : vector<8x128xf32>
    %2635 = arith.select %2633, %2634, %2596 : vector<8x128xi1>, vector<8x128xf32>
    %cst_468 = arith.constant 0.000000e+00 : f32
    %2636 = vector.broadcast %cst_468 : f32 to vector<8x128xf32>
    %2637 = arith.cmpf olt, %2622, %2636 : vector<8x128xf32>
    %2638 = arith.minimumf %2600, %2631 : vector<8x128xf32>
    %2639 = arith.select %2637, %2638, %2600 : vector<8x128xi1>, vector<8x128xf32>
    %cst_469 = arith.constant 0.000000e+00 : f32
    %2640 = vector.broadcast %cst_469 : f32 to vector<8x128xf32>
    %2641 = arith.cmpf oeq, %2622, %2640 : vector<8x128xf32>
    %cst_470 = arith.constant 0.000000e+00 : f32
    %2642 = vector.broadcast %cst_470 : f32 to vector<8x128xf32>
    %2643 = arith.cmpf ogt, %2626, %2642 : vector<8x128xf32>
    %2644 = arith.andi %2641, %2643 : vector<8x128xi1>
    %2645 = arith.mulf %2005, %2494 : vector<8x128xf32>
    %2646 = arith.mulf %2008, %2495 : vector<8x128xf32>
    %2647 = arith.subf %2645, %2646 : vector<8x128xf32>
    %cst_471 = arith.constant 0.000000e+00 : f32
    %2648 = vector.broadcast %cst_471 : f32 to vector<8x128xf32>
    %2649 = arith.cmpf ogt, %2647, %2648 : vector<8x128xf32>
    %cst_472 = arith.constant 0.000000e+00 : f32
    %2650 = vector.broadcast %cst_472 : f32 to vector<8x128xf32>
    %2651 = arith.cmpf oeq, %2622, %2650 : vector<8x128xf32>
    %cst_473 = arith.constant 0.000000e+00 : f32
    %2652 = vector.broadcast %cst_473 : f32 to vector<8x128xf32>
    %2653 = arith.cmpf oeq, %2626, %2652 : vector<8x128xf32>
    %2654 = arith.andi %2651, %2653 : vector<8x128xi1>
    %2655 = arith.andi %2654, %2649 : vector<8x128xi1>
    %2656 = arith.ori %2644, %2655 : vector<8x128xi1>
    %cst_474 = arith.constant dense<true> : vector<8x128xi1>
    %2657 = arith.xori %2656, %cst_474 : vector<8x128xi1>
    %2658 = arith.andi %2619, %2657 : vector<8x128xi1>
    %2659 = arith.cmpf ole, %2635, %2639 : vector<8x128xf32>
    %2660 = arith.andi %2658, %2659 : vector<8x128xi1>
    %2661 = arith.mulf %2635, %2494 : vector<8x128xf32>
    %2662 = arith.addf %436, %2661 : vector<8x128xf32>
    %2663 = arith.mulf %2635, %2495 : vector<8x128xf32>
    %2664 = arith.addf %437, %2663 : vector<8x128xf32>
    %2665 = arith.mulf %2639, %2494 : vector<8x128xf32>
    %2666 = arith.addf %436, %2665 : vector<8x128xf32>
    %2667 = arith.mulf %2639, %2495 : vector<8x128xf32>
    %2668 = arith.addf %437, %2667 : vector<8x128xf32>
    %2669 = arith.mulf %2662, %2668 : vector<8x128xf32>
    %2670 = arith.mulf %2664, %2666 : vector<8x128xf32>
    %2671 = arith.subf %2669, %2670 : vector<8x128xf32>
    %cst_475 = arith.constant 5.000000e-01 : f32
    %2672 = vector.broadcast %cst_475 : f32 to vector<8x128xf32>
    %2673 = arith.mulf %2672, %2671 : vector<8x128xf32>
    %cst_476 = arith.constant 0.000000e+00 : f32
    %2674 = vector.broadcast %cst_476 : f32 to vector<8x128xf32>
    %2675 = arith.select %2660, %2673, %2674 : vector<8x128xi1>, vector<8x128xf32>
    %2676 = arith.addf %2493, %2675 : vector<8x128xf32>
    %2677 = arith.subf %328, %242 : vector<8x128xf32>
    %2678 = arith.subf %329, %243 : vector<8x128xf32>
    %2679 = arith.mulf %2677, %2677 : vector<8x128xf32>
    %2680 = arith.mulf %2678, %2678 : vector<8x128xf32>
    %2681 = arith.addf %2679, %2680 : vector<8x128xf32>
    %cst_477 = arith.constant 0.000000e+00 : f32
    %2682 = vector.broadcast %cst_477 : f32 to vector<8x128xf32>
    %2683 = arith.cmpf ogt, %2681, %2682 : vector<8x128xf32>
    %cst_478 = arith.constant 0.000000e+00 : f32
    %2684 = vector.broadcast %cst_478 : f32 to vector<8x128xf32>
    %cst_479 = arith.constant 1.000000e+00 : f32
    %2685 = vector.broadcast %cst_479 : f32 to vector<8x128xf32>
    %2686 = arith.mulf %2015, %2677 : vector<8x128xf32>
    %2687 = arith.mulf %2012, %2678 : vector<8x128xf32>
    %2688 = arith.addf %2686, %2687 : vector<8x128xf32>
    %2689 = arith.mulf %2015, %242 : vector<8x128xf32>
    %2690 = arith.mulf %2012, %243 : vector<8x128xf32>
    %2691 = arith.addf %2689, %2690 : vector<8x128xf32>
    %2692 = arith.subf %2018, %2691 : vector<8x128xf32>
    %cst_480 = arith.constant 0.000000e+00 : f32
    %2693 = vector.broadcast %cst_480 : f32 to vector<8x128xf32>
    %2694 = arith.cmpf oeq, %2688, %2693 : vector<8x128xf32>
    %cst_481 = arith.constant 1.000000e+00 : f32
    %2695 = vector.broadcast %cst_481 : f32 to vector<8x128xf32>
    %2696 = arith.select %2694, %2695, %2688 : vector<8x128xi1>, vector<8x128xf32>
    %2697 = arith.divf %2692, %2696 : vector<8x128xf32>
    %cst_482 = arith.constant 0.000000e+00 : f32
    %2698 = vector.broadcast %cst_482 : f32 to vector<8x128xf32>
    %2699 = arith.cmpf ogt, %2688, %2698 : vector<8x128xf32>
    %2700 = arith.maximumf %2684, %2697 : vector<8x128xf32>
    %2701 = arith.select %2699, %2700, %2684 : vector<8x128xi1>, vector<8x128xf32>
    %cst_483 = arith.constant 0.000000e+00 : f32
    %2702 = vector.broadcast %cst_483 : f32 to vector<8x128xf32>
    %2703 = arith.cmpf olt, %2688, %2702 : vector<8x128xf32>
    %2704 = arith.minimumf %2685, %2697 : vector<8x128xf32>
    %2705 = arith.select %2703, %2704, %2685 : vector<8x128xi1>, vector<8x128xf32>
    %cst_484 = arith.constant 0.000000e+00 : f32
    %2706 = vector.broadcast %cst_484 : f32 to vector<8x128xf32>
    %2707 = arith.cmpf oeq, %2688, %2706 : vector<8x128xf32>
    %cst_485 = arith.constant 0.000000e+00 : f32
    %2708 = vector.broadcast %cst_485 : f32 to vector<8x128xf32>
    %2709 = arith.cmpf ogt, %2692, %2708 : vector<8x128xf32>
    %2710 = arith.andi %2707, %2709 : vector<8x128xi1>
    %cst_486 = arith.constant dense<true> : vector<8x128xi1>
    %2711 = arith.xori %2710, %cst_486 : vector<8x128xi1>
    %2712 = arith.andi %2683, %2711 : vector<8x128xi1>
    %2713 = arith.mulf %2022, %2677 : vector<8x128xf32>
    %2714 = arith.mulf %2019, %2678 : vector<8x128xf32>
    %2715 = arith.addf %2713, %2714 : vector<8x128xf32>
    %2716 = arith.mulf %2022, %242 : vector<8x128xf32>
    %2717 = arith.mulf %2019, %243 : vector<8x128xf32>
    %2718 = arith.addf %2716, %2717 : vector<8x128xf32>
    %2719 = arith.subf %2025, %2718 : vector<8x128xf32>
    %cst_487 = arith.constant 0.000000e+00 : f32
    %2720 = vector.broadcast %cst_487 : f32 to vector<8x128xf32>
    %2721 = arith.cmpf oeq, %2715, %2720 : vector<8x128xf32>
    %cst_488 = arith.constant 1.000000e+00 : f32
    %2722 = vector.broadcast %cst_488 : f32 to vector<8x128xf32>
    %2723 = arith.select %2721, %2722, %2715 : vector<8x128xi1>, vector<8x128xf32>
    %2724 = arith.divf %2719, %2723 : vector<8x128xf32>
    %cst_489 = arith.constant 0.000000e+00 : f32
    %2725 = vector.broadcast %cst_489 : f32 to vector<8x128xf32>
    %2726 = arith.cmpf ogt, %2715, %2725 : vector<8x128xf32>
    %2727 = arith.maximumf %2701, %2724 : vector<8x128xf32>
    %2728 = arith.select %2726, %2727, %2701 : vector<8x128xi1>, vector<8x128xf32>
    %cst_490 = arith.constant 0.000000e+00 : f32
    %2729 = vector.broadcast %cst_490 : f32 to vector<8x128xf32>
    %2730 = arith.cmpf olt, %2715, %2729 : vector<8x128xf32>
    %2731 = arith.minimumf %2705, %2724 : vector<8x128xf32>
    %2732 = arith.select %2730, %2731, %2705 : vector<8x128xi1>, vector<8x128xf32>
    %cst_491 = arith.constant 0.000000e+00 : f32
    %2733 = vector.broadcast %cst_491 : f32 to vector<8x128xf32>
    %2734 = arith.cmpf oeq, %2715, %2733 : vector<8x128xf32>
    %cst_492 = arith.constant 0.000000e+00 : f32
    %2735 = vector.broadcast %cst_492 : f32 to vector<8x128xf32>
    %2736 = arith.cmpf ogt, %2719, %2735 : vector<8x128xf32>
    %2737 = arith.andi %2734, %2736 : vector<8x128xi1>
    %cst_493 = arith.constant dense<true> : vector<8x128xi1>
    %2738 = arith.xori %2737, %cst_493 : vector<8x128xi1>
    %2739 = arith.andi %2712, %2738 : vector<8x128xi1>
    %2740 = arith.mulf %2029, %2677 : vector<8x128xf32>
    %2741 = arith.mulf %2026, %2678 : vector<8x128xf32>
    %2742 = arith.addf %2740, %2741 : vector<8x128xf32>
    %2743 = arith.mulf %2029, %242 : vector<8x128xf32>
    %2744 = arith.mulf %2026, %243 : vector<8x128xf32>
    %2745 = arith.addf %2743, %2744 : vector<8x128xf32>
    %2746 = arith.subf %2032, %2745 : vector<8x128xf32>
    %cst_494 = arith.constant 0.000000e+00 : f32
    %2747 = vector.broadcast %cst_494 : f32 to vector<8x128xf32>
    %2748 = arith.cmpf oeq, %2742, %2747 : vector<8x128xf32>
    %cst_495 = arith.constant 1.000000e+00 : f32
    %2749 = vector.broadcast %cst_495 : f32 to vector<8x128xf32>
    %2750 = arith.select %2748, %2749, %2742 : vector<8x128xi1>, vector<8x128xf32>
    %2751 = arith.divf %2746, %2750 : vector<8x128xf32>
    %cst_496 = arith.constant 0.000000e+00 : f32
    %2752 = vector.broadcast %cst_496 : f32 to vector<8x128xf32>
    %2753 = arith.cmpf ogt, %2742, %2752 : vector<8x128xf32>
    %2754 = arith.maximumf %2728, %2751 : vector<8x128xf32>
    %2755 = arith.select %2753, %2754, %2728 : vector<8x128xi1>, vector<8x128xf32>
    %cst_497 = arith.constant 0.000000e+00 : f32
    %2756 = vector.broadcast %cst_497 : f32 to vector<8x128xf32>
    %2757 = arith.cmpf olt, %2742, %2756 : vector<8x128xf32>
    %2758 = arith.minimumf %2732, %2751 : vector<8x128xf32>
    %2759 = arith.select %2757, %2758, %2732 : vector<8x128xi1>, vector<8x128xf32>
    %cst_498 = arith.constant 0.000000e+00 : f32
    %2760 = vector.broadcast %cst_498 : f32 to vector<8x128xf32>
    %2761 = arith.cmpf oeq, %2742, %2760 : vector<8x128xf32>
    %cst_499 = arith.constant 0.000000e+00 : f32
    %2762 = vector.broadcast %cst_499 : f32 to vector<8x128xf32>
    %2763 = arith.cmpf ogt, %2746, %2762 : vector<8x128xf32>
    %2764 = arith.andi %2761, %2763 : vector<8x128xi1>
    %cst_500 = arith.constant dense<true> : vector<8x128xi1>
    %2765 = arith.xori %2764, %cst_500 : vector<8x128xi1>
    %2766 = arith.andi %2739, %2765 : vector<8x128xi1>
    %2767 = arith.mulf %2036, %2677 : vector<8x128xf32>
    %2768 = arith.mulf %2033, %2678 : vector<8x128xf32>
    %2769 = arith.addf %2767, %2768 : vector<8x128xf32>
    %2770 = arith.mulf %2036, %242 : vector<8x128xf32>
    %2771 = arith.mulf %2033, %243 : vector<8x128xf32>
    %2772 = arith.addf %2770, %2771 : vector<8x128xf32>
    %2773 = arith.subf %2039, %2772 : vector<8x128xf32>
    %cst_501 = arith.constant 0.000000e+00 : f32
    %2774 = vector.broadcast %cst_501 : f32 to vector<8x128xf32>
    %2775 = arith.cmpf oeq, %2769, %2774 : vector<8x128xf32>
    %cst_502 = arith.constant 1.000000e+00 : f32
    %2776 = vector.broadcast %cst_502 : f32 to vector<8x128xf32>
    %2777 = arith.select %2775, %2776, %2769 : vector<8x128xi1>, vector<8x128xf32>
    %2778 = arith.divf %2773, %2777 : vector<8x128xf32>
    %cst_503 = arith.constant 0.000000e+00 : f32
    %2779 = vector.broadcast %cst_503 : f32 to vector<8x128xf32>
    %2780 = arith.cmpf ogt, %2769, %2779 : vector<8x128xf32>
    %2781 = arith.maximumf %2755, %2778 : vector<8x128xf32>
    %2782 = arith.select %2780, %2781, %2755 : vector<8x128xi1>, vector<8x128xf32>
    %cst_504 = arith.constant 0.000000e+00 : f32
    %2783 = vector.broadcast %cst_504 : f32 to vector<8x128xf32>
    %2784 = arith.cmpf olt, %2769, %2783 : vector<8x128xf32>
    %2785 = arith.minimumf %2759, %2778 : vector<8x128xf32>
    %2786 = arith.select %2784, %2785, %2759 : vector<8x128xi1>, vector<8x128xf32>
    %cst_505 = arith.constant 0.000000e+00 : f32
    %2787 = vector.broadcast %cst_505 : f32 to vector<8x128xf32>
    %2788 = arith.cmpf oeq, %2769, %2787 : vector<8x128xf32>
    %cst_506 = arith.constant 0.000000e+00 : f32
    %2789 = vector.broadcast %cst_506 : f32 to vector<8x128xf32>
    %2790 = arith.cmpf ogt, %2773, %2789 : vector<8x128xf32>
    %2791 = arith.andi %2788, %2790 : vector<8x128xi1>
    %cst_507 = arith.constant dense<true> : vector<8x128xi1>
    %2792 = arith.xori %2791, %cst_507 : vector<8x128xi1>
    %2793 = arith.andi %2766, %2792 : vector<8x128xi1>
    %2794 = arith.cmpf ole, %2782, %2786 : vector<8x128xf32>
    %2795 = arith.andi %2793, %2794 : vector<8x128xi1>
    %2796 = arith.mulf %2782, %2677 : vector<8x128xf32>
    %2797 = arith.addf %242, %2796 : vector<8x128xf32>
    %2798 = arith.mulf %2782, %2678 : vector<8x128xf32>
    %2799 = arith.addf %243, %2798 : vector<8x128xf32>
    %2800 = arith.mulf %2786, %2677 : vector<8x128xf32>
    %2801 = arith.addf %242, %2800 : vector<8x128xf32>
    %2802 = arith.mulf %2786, %2678 : vector<8x128xf32>
    %2803 = arith.addf %243, %2802 : vector<8x128xf32>
    %2804 = arith.mulf %2797, %2803 : vector<8x128xf32>
    %2805 = arith.mulf %2799, %2801 : vector<8x128xf32>
    %2806 = arith.subf %2804, %2805 : vector<8x128xf32>
    %cst_508 = arith.constant 5.000000e-01 : f32
    %2807 = vector.broadcast %cst_508 : f32 to vector<8x128xf32>
    %2808 = arith.mulf %2807, %2806 : vector<8x128xf32>
    %cst_509 = arith.constant 0.000000e+00 : f32
    %2809 = vector.broadcast %cst_509 : f32 to vector<8x128xf32>
    %2810 = arith.select %2795, %2808, %2809 : vector<8x128xi1>, vector<8x128xf32>
    %2811 = arith.addf %2676, %2810 : vector<8x128xf32>
    %2812 = arith.subf %608, %522 : vector<8x128xf32>
    %2813 = arith.subf %609, %523 : vector<8x128xf32>
    %2814 = arith.mulf %2812, %2812 : vector<8x128xf32>
    %2815 = arith.mulf %2813, %2813 : vector<8x128xf32>
    %2816 = arith.addf %2814, %2815 : vector<8x128xf32>
    %cst_510 = arith.constant 0.000000e+00 : f32
    %2817 = vector.broadcast %cst_510 : f32 to vector<8x128xf32>
    %2818 = arith.cmpf ogt, %2816, %2817 : vector<8x128xf32>
    %cst_511 = arith.constant 0.000000e+00 : f32
    %2819 = vector.broadcast %cst_511 : f32 to vector<8x128xf32>
    %cst_512 = arith.constant 1.000000e+00 : f32
    %2820 = vector.broadcast %cst_512 : f32 to vector<8x128xf32>
    %2821 = arith.mulf %1987, %2812 : vector<8x128xf32>
    %2822 = arith.mulf %1984, %2813 : vector<8x128xf32>
    %2823 = arith.addf %2821, %2822 : vector<8x128xf32>
    %2824 = arith.mulf %1987, %522 : vector<8x128xf32>
    %2825 = arith.mulf %1984, %523 : vector<8x128xf32>
    %2826 = arith.addf %2824, %2825 : vector<8x128xf32>
    %2827 = arith.subf %1990, %2826 : vector<8x128xf32>
    %cst_513 = arith.constant 0.000000e+00 : f32
    %2828 = vector.broadcast %cst_513 : f32 to vector<8x128xf32>
    %2829 = arith.cmpf oeq, %2823, %2828 : vector<8x128xf32>
    %cst_514 = arith.constant 1.000000e+00 : f32
    %2830 = vector.broadcast %cst_514 : f32 to vector<8x128xf32>
    %2831 = arith.select %2829, %2830, %2823 : vector<8x128xi1>, vector<8x128xf32>
    %2832 = arith.divf %2827, %2831 : vector<8x128xf32>
    %cst_515 = arith.constant 0.000000e+00 : f32
    %2833 = vector.broadcast %cst_515 : f32 to vector<8x128xf32>
    %2834 = arith.cmpf ogt, %2823, %2833 : vector<8x128xf32>
    %2835 = arith.maximumf %2819, %2832 : vector<8x128xf32>
    %2836 = arith.select %2834, %2835, %2819 : vector<8x128xi1>, vector<8x128xf32>
    %cst_516 = arith.constant 0.000000e+00 : f32
    %2837 = vector.broadcast %cst_516 : f32 to vector<8x128xf32>
    %2838 = arith.cmpf olt, %2823, %2837 : vector<8x128xf32>
    %2839 = arith.minimumf %2820, %2832 : vector<8x128xf32>
    %2840 = arith.select %2838, %2839, %2820 : vector<8x128xi1>, vector<8x128xf32>
    %cst_517 = arith.constant 0.000000e+00 : f32
    %2841 = vector.broadcast %cst_517 : f32 to vector<8x128xf32>
    %2842 = arith.cmpf oeq, %2823, %2841 : vector<8x128xf32>
    %cst_518 = arith.constant 0.000000e+00 : f32
    %2843 = vector.broadcast %cst_518 : f32 to vector<8x128xf32>
    %2844 = arith.cmpf ogt, %2827, %2843 : vector<8x128xf32>
    %2845 = arith.andi %2842, %2844 : vector<8x128xi1>
    %2846 = arith.mulf %1984, %2812 : vector<8x128xf32>
    %2847 = arith.mulf %1987, %2813 : vector<8x128xf32>
    %2848 = arith.subf %2846, %2847 : vector<8x128xf32>
    %cst_519 = arith.constant 0.000000e+00 : f32
    %2849 = vector.broadcast %cst_519 : f32 to vector<8x128xf32>
    %2850 = arith.cmpf ogt, %2848, %2849 : vector<8x128xf32>
    %cst_520 = arith.constant 0.000000e+00 : f32
    %2851 = vector.broadcast %cst_520 : f32 to vector<8x128xf32>
    %2852 = arith.cmpf oeq, %2823, %2851 : vector<8x128xf32>
    %cst_521 = arith.constant 0.000000e+00 : f32
    %2853 = vector.broadcast %cst_521 : f32 to vector<8x128xf32>
    %2854 = arith.cmpf oeq, %2827, %2853 : vector<8x128xf32>
    %2855 = arith.andi %2852, %2854 : vector<8x128xi1>
    %2856 = arith.andi %2855, %2850 : vector<8x128xi1>
    %2857 = arith.ori %2845, %2856 : vector<8x128xi1>
    %cst_522 = arith.constant dense<true> : vector<8x128xi1>
    %2858 = arith.xori %2857, %cst_522 : vector<8x128xi1>
    %2859 = arith.andi %2818, %2858 : vector<8x128xi1>
    %2860 = arith.mulf %1994, %2812 : vector<8x128xf32>
    %2861 = arith.mulf %1991, %2813 : vector<8x128xf32>
    %2862 = arith.addf %2860, %2861 : vector<8x128xf32>
    %2863 = arith.mulf %1994, %522 : vector<8x128xf32>
    %2864 = arith.mulf %1991, %523 : vector<8x128xf32>
    %2865 = arith.addf %2863, %2864 : vector<8x128xf32>
    %2866 = arith.subf %1997, %2865 : vector<8x128xf32>
    %cst_523 = arith.constant 0.000000e+00 : f32
    %2867 = vector.broadcast %cst_523 : f32 to vector<8x128xf32>
    %2868 = arith.cmpf oeq, %2862, %2867 : vector<8x128xf32>
    %cst_524 = arith.constant 1.000000e+00 : f32
    %2869 = vector.broadcast %cst_524 : f32 to vector<8x128xf32>
    %2870 = arith.select %2868, %2869, %2862 : vector<8x128xi1>, vector<8x128xf32>
    %2871 = arith.divf %2866, %2870 : vector<8x128xf32>
    %cst_525 = arith.constant 0.000000e+00 : f32
    %2872 = vector.broadcast %cst_525 : f32 to vector<8x128xf32>
    %2873 = arith.cmpf ogt, %2862, %2872 : vector<8x128xf32>
    %2874 = arith.maximumf %2836, %2871 : vector<8x128xf32>
    %2875 = arith.select %2873, %2874, %2836 : vector<8x128xi1>, vector<8x128xf32>
    %cst_526 = arith.constant 0.000000e+00 : f32
    %2876 = vector.broadcast %cst_526 : f32 to vector<8x128xf32>
    %2877 = arith.cmpf olt, %2862, %2876 : vector<8x128xf32>
    %2878 = arith.minimumf %2840, %2871 : vector<8x128xf32>
    %2879 = arith.select %2877, %2878, %2840 : vector<8x128xi1>, vector<8x128xf32>
    %cst_527 = arith.constant 0.000000e+00 : f32
    %2880 = vector.broadcast %cst_527 : f32 to vector<8x128xf32>
    %2881 = arith.cmpf oeq, %2862, %2880 : vector<8x128xf32>
    %cst_528 = arith.constant 0.000000e+00 : f32
    %2882 = vector.broadcast %cst_528 : f32 to vector<8x128xf32>
    %2883 = arith.cmpf ogt, %2866, %2882 : vector<8x128xf32>
    %2884 = arith.andi %2881, %2883 : vector<8x128xi1>
    %2885 = arith.mulf %1991, %2812 : vector<8x128xf32>
    %2886 = arith.mulf %1994, %2813 : vector<8x128xf32>
    %2887 = arith.subf %2885, %2886 : vector<8x128xf32>
    %cst_529 = arith.constant 0.000000e+00 : f32
    %2888 = vector.broadcast %cst_529 : f32 to vector<8x128xf32>
    %2889 = arith.cmpf ogt, %2887, %2888 : vector<8x128xf32>
    %cst_530 = arith.constant 0.000000e+00 : f32
    %2890 = vector.broadcast %cst_530 : f32 to vector<8x128xf32>
    %2891 = arith.cmpf oeq, %2862, %2890 : vector<8x128xf32>
    %cst_531 = arith.constant 0.000000e+00 : f32
    %2892 = vector.broadcast %cst_531 : f32 to vector<8x128xf32>
    %2893 = arith.cmpf oeq, %2866, %2892 : vector<8x128xf32>
    %2894 = arith.andi %2891, %2893 : vector<8x128xi1>
    %2895 = arith.andi %2894, %2889 : vector<8x128xi1>
    %2896 = arith.ori %2884, %2895 : vector<8x128xi1>
    %cst_532 = arith.constant dense<true> : vector<8x128xi1>
    %2897 = arith.xori %2896, %cst_532 : vector<8x128xi1>
    %2898 = arith.andi %2859, %2897 : vector<8x128xi1>
    %2899 = arith.mulf %2001, %2812 : vector<8x128xf32>
    %2900 = arith.mulf %1998, %2813 : vector<8x128xf32>
    %2901 = arith.addf %2899, %2900 : vector<8x128xf32>
    %2902 = arith.mulf %2001, %522 : vector<8x128xf32>
    %2903 = arith.mulf %1998, %523 : vector<8x128xf32>
    %2904 = arith.addf %2902, %2903 : vector<8x128xf32>
    %2905 = arith.subf %2004, %2904 : vector<8x128xf32>
    %cst_533 = arith.constant 0.000000e+00 : f32
    %2906 = vector.broadcast %cst_533 : f32 to vector<8x128xf32>
    %2907 = arith.cmpf oeq, %2901, %2906 : vector<8x128xf32>
    %cst_534 = arith.constant 1.000000e+00 : f32
    %2908 = vector.broadcast %cst_534 : f32 to vector<8x128xf32>
    %2909 = arith.select %2907, %2908, %2901 : vector<8x128xi1>, vector<8x128xf32>
    %2910 = arith.divf %2905, %2909 : vector<8x128xf32>
    %cst_535 = arith.constant 0.000000e+00 : f32
    %2911 = vector.broadcast %cst_535 : f32 to vector<8x128xf32>
    %2912 = arith.cmpf ogt, %2901, %2911 : vector<8x128xf32>
    %2913 = arith.maximumf %2875, %2910 : vector<8x128xf32>
    %2914 = arith.select %2912, %2913, %2875 : vector<8x128xi1>, vector<8x128xf32>
    %cst_536 = arith.constant 0.000000e+00 : f32
    %2915 = vector.broadcast %cst_536 : f32 to vector<8x128xf32>
    %2916 = arith.cmpf olt, %2901, %2915 : vector<8x128xf32>
    %2917 = arith.minimumf %2879, %2910 : vector<8x128xf32>
    %2918 = arith.select %2916, %2917, %2879 : vector<8x128xi1>, vector<8x128xf32>
    %cst_537 = arith.constant 0.000000e+00 : f32
    %2919 = vector.broadcast %cst_537 : f32 to vector<8x128xf32>
    %2920 = arith.cmpf oeq, %2901, %2919 : vector<8x128xf32>
    %cst_538 = arith.constant 0.000000e+00 : f32
    %2921 = vector.broadcast %cst_538 : f32 to vector<8x128xf32>
    %2922 = arith.cmpf ogt, %2905, %2921 : vector<8x128xf32>
    %2923 = arith.andi %2920, %2922 : vector<8x128xi1>
    %2924 = arith.mulf %1998, %2812 : vector<8x128xf32>
    %2925 = arith.mulf %2001, %2813 : vector<8x128xf32>
    %2926 = arith.subf %2924, %2925 : vector<8x128xf32>
    %cst_539 = arith.constant 0.000000e+00 : f32
    %2927 = vector.broadcast %cst_539 : f32 to vector<8x128xf32>
    %2928 = arith.cmpf ogt, %2926, %2927 : vector<8x128xf32>
    %cst_540 = arith.constant 0.000000e+00 : f32
    %2929 = vector.broadcast %cst_540 : f32 to vector<8x128xf32>
    %2930 = arith.cmpf oeq, %2901, %2929 : vector<8x128xf32>
    %cst_541 = arith.constant 0.000000e+00 : f32
    %2931 = vector.broadcast %cst_541 : f32 to vector<8x128xf32>
    %2932 = arith.cmpf oeq, %2905, %2931 : vector<8x128xf32>
    %2933 = arith.andi %2930, %2932 : vector<8x128xi1>
    %2934 = arith.andi %2933, %2928 : vector<8x128xi1>
    %2935 = arith.ori %2923, %2934 : vector<8x128xi1>
    %cst_542 = arith.constant dense<true> : vector<8x128xi1>
    %2936 = arith.xori %2935, %cst_542 : vector<8x128xi1>
    %2937 = arith.andi %2898, %2936 : vector<8x128xi1>
    %2938 = arith.mulf %2008, %2812 : vector<8x128xf32>
    %2939 = arith.mulf %2005, %2813 : vector<8x128xf32>
    %2940 = arith.addf %2938, %2939 : vector<8x128xf32>
    %2941 = arith.mulf %2008, %522 : vector<8x128xf32>
    %2942 = arith.mulf %2005, %523 : vector<8x128xf32>
    %2943 = arith.addf %2941, %2942 : vector<8x128xf32>
    %2944 = arith.subf %2011, %2943 : vector<8x128xf32>
    %cst_543 = arith.constant 0.000000e+00 : f32
    %2945 = vector.broadcast %cst_543 : f32 to vector<8x128xf32>
    %2946 = arith.cmpf oeq, %2940, %2945 : vector<8x128xf32>
    %cst_544 = arith.constant 1.000000e+00 : f32
    %2947 = vector.broadcast %cst_544 : f32 to vector<8x128xf32>
    %2948 = arith.select %2946, %2947, %2940 : vector<8x128xi1>, vector<8x128xf32>
    %2949 = arith.divf %2944, %2948 : vector<8x128xf32>
    %cst_545 = arith.constant 0.000000e+00 : f32
    %2950 = vector.broadcast %cst_545 : f32 to vector<8x128xf32>
    %2951 = arith.cmpf ogt, %2940, %2950 : vector<8x128xf32>
    %2952 = arith.maximumf %2914, %2949 : vector<8x128xf32>
    %2953 = arith.select %2951, %2952, %2914 : vector<8x128xi1>, vector<8x128xf32>
    %cst_546 = arith.constant 0.000000e+00 : f32
    %2954 = vector.broadcast %cst_546 : f32 to vector<8x128xf32>
    %2955 = arith.cmpf olt, %2940, %2954 : vector<8x128xf32>
    %2956 = arith.minimumf %2918, %2949 : vector<8x128xf32>
    %2957 = arith.select %2955, %2956, %2918 : vector<8x128xi1>, vector<8x128xf32>
    %cst_547 = arith.constant 0.000000e+00 : f32
    %2958 = vector.broadcast %cst_547 : f32 to vector<8x128xf32>
    %2959 = arith.cmpf oeq, %2940, %2958 : vector<8x128xf32>
    %cst_548 = arith.constant 0.000000e+00 : f32
    %2960 = vector.broadcast %cst_548 : f32 to vector<8x128xf32>
    %2961 = arith.cmpf ogt, %2944, %2960 : vector<8x128xf32>
    %2962 = arith.andi %2959, %2961 : vector<8x128xi1>
    %2963 = arith.mulf %2005, %2812 : vector<8x128xf32>
    %2964 = arith.mulf %2008, %2813 : vector<8x128xf32>
    %2965 = arith.subf %2963, %2964 : vector<8x128xf32>
    %cst_549 = arith.constant 0.000000e+00 : f32
    %2966 = vector.broadcast %cst_549 : f32 to vector<8x128xf32>
    %2967 = arith.cmpf ogt, %2965, %2966 : vector<8x128xf32>
    %cst_550 = arith.constant 0.000000e+00 : f32
    %2968 = vector.broadcast %cst_550 : f32 to vector<8x128xf32>
    %2969 = arith.cmpf oeq, %2940, %2968 : vector<8x128xf32>
    %cst_551 = arith.constant 0.000000e+00 : f32
    %2970 = vector.broadcast %cst_551 : f32 to vector<8x128xf32>
    %2971 = arith.cmpf oeq, %2944, %2970 : vector<8x128xf32>
    %2972 = arith.andi %2969, %2971 : vector<8x128xi1>
    %2973 = arith.andi %2972, %2967 : vector<8x128xi1>
    %2974 = arith.ori %2962, %2973 : vector<8x128xi1>
    %cst_552 = arith.constant dense<true> : vector<8x128xi1>
    %2975 = arith.xori %2974, %cst_552 : vector<8x128xi1>
    %2976 = arith.andi %2937, %2975 : vector<8x128xi1>
    %2977 = arith.cmpf ole, %2953, %2957 : vector<8x128xf32>
    %2978 = arith.andi %2976, %2977 : vector<8x128xi1>
    %2979 = arith.mulf %2953, %2812 : vector<8x128xf32>
    %2980 = arith.addf %522, %2979 : vector<8x128xf32>
    %2981 = arith.mulf %2953, %2813 : vector<8x128xf32>
    %2982 = arith.addf %523, %2981 : vector<8x128xf32>
    %2983 = arith.mulf %2957, %2812 : vector<8x128xf32>
    %2984 = arith.addf %522, %2983 : vector<8x128xf32>
    %2985 = arith.mulf %2957, %2813 : vector<8x128xf32>
    %2986 = arith.addf %523, %2985 : vector<8x128xf32>
    %2987 = arith.mulf %2980, %2986 : vector<8x128xf32>
    %2988 = arith.mulf %2982, %2984 : vector<8x128xf32>
    %2989 = arith.subf %2987, %2988 : vector<8x128xf32>
    %cst_553 = arith.constant 5.000000e-01 : f32
    %2990 = vector.broadcast %cst_553 : f32 to vector<8x128xf32>
    %2991 = arith.mulf %2990, %2989 : vector<8x128xf32>
    %cst_554 = arith.constant 0.000000e+00 : f32
    %2992 = vector.broadcast %cst_554 : f32 to vector<8x128xf32>
    %2993 = arith.select %2978, %2991, %2992 : vector<8x128xi1>, vector<8x128xf32>
    %2994 = arith.addf %2811, %2993 : vector<8x128xf32>
    %2995 = arith.subf %69, %328 : vector<8x128xf32>
    %2996 = arith.subf %70, %329 : vector<8x128xf32>
    %2997 = arith.mulf %2995, %2995 : vector<8x128xf32>
    %2998 = arith.mulf %2996, %2996 : vector<8x128xf32>
    %2999 = arith.addf %2997, %2998 : vector<8x128xf32>
    %cst_555 = arith.constant 0.000000e+00 : f32
    %3000 = vector.broadcast %cst_555 : f32 to vector<8x128xf32>
    %3001 = arith.cmpf ogt, %2999, %3000 : vector<8x128xf32>
    %cst_556 = arith.constant 0.000000e+00 : f32
    %3002 = vector.broadcast %cst_556 : f32 to vector<8x128xf32>
    %cst_557 = arith.constant 1.000000e+00 : f32
    %3003 = vector.broadcast %cst_557 : f32 to vector<8x128xf32>
    %3004 = arith.mulf %2015, %2995 : vector<8x128xf32>
    %3005 = arith.mulf %2012, %2996 : vector<8x128xf32>
    %3006 = arith.addf %3004, %3005 : vector<8x128xf32>
    %3007 = arith.mulf %2015, %328 : vector<8x128xf32>
    %3008 = arith.mulf %2012, %329 : vector<8x128xf32>
    %3009 = arith.addf %3007, %3008 : vector<8x128xf32>
    %3010 = arith.subf %2018, %3009 : vector<8x128xf32>
    %cst_558 = arith.constant 0.000000e+00 : f32
    %3011 = vector.broadcast %cst_558 : f32 to vector<8x128xf32>
    %3012 = arith.cmpf oeq, %3006, %3011 : vector<8x128xf32>
    %cst_559 = arith.constant 1.000000e+00 : f32
    %3013 = vector.broadcast %cst_559 : f32 to vector<8x128xf32>
    %3014 = arith.select %3012, %3013, %3006 : vector<8x128xi1>, vector<8x128xf32>
    %3015 = arith.divf %3010, %3014 : vector<8x128xf32>
    %cst_560 = arith.constant 0.000000e+00 : f32
    %3016 = vector.broadcast %cst_560 : f32 to vector<8x128xf32>
    %3017 = arith.cmpf ogt, %3006, %3016 : vector<8x128xf32>
    %3018 = arith.maximumf %3002, %3015 : vector<8x128xf32>
    %3019 = arith.select %3017, %3018, %3002 : vector<8x128xi1>, vector<8x128xf32>
    %cst_561 = arith.constant 0.000000e+00 : f32
    %3020 = vector.broadcast %cst_561 : f32 to vector<8x128xf32>
    %3021 = arith.cmpf olt, %3006, %3020 : vector<8x128xf32>
    %3022 = arith.minimumf %3003, %3015 : vector<8x128xf32>
    %3023 = arith.select %3021, %3022, %3003 : vector<8x128xi1>, vector<8x128xf32>
    %cst_562 = arith.constant 0.000000e+00 : f32
    %3024 = vector.broadcast %cst_562 : f32 to vector<8x128xf32>
    %3025 = arith.cmpf oeq, %3006, %3024 : vector<8x128xf32>
    %cst_563 = arith.constant 0.000000e+00 : f32
    %3026 = vector.broadcast %cst_563 : f32 to vector<8x128xf32>
    %3027 = arith.cmpf ogt, %3010, %3026 : vector<8x128xf32>
    %3028 = arith.andi %3025, %3027 : vector<8x128xi1>
    %cst_564 = arith.constant dense<true> : vector<8x128xi1>
    %3029 = arith.xori %3028, %cst_564 : vector<8x128xi1>
    %3030 = arith.andi %3001, %3029 : vector<8x128xi1>
    %3031 = arith.mulf %2022, %2995 : vector<8x128xf32>
    %3032 = arith.mulf %2019, %2996 : vector<8x128xf32>
    %3033 = arith.addf %3031, %3032 : vector<8x128xf32>
    %3034 = arith.mulf %2022, %328 : vector<8x128xf32>
    %3035 = arith.mulf %2019, %329 : vector<8x128xf32>
    %3036 = arith.addf %3034, %3035 : vector<8x128xf32>
    %3037 = arith.subf %2025, %3036 : vector<8x128xf32>
    %cst_565 = arith.constant 0.000000e+00 : f32
    %3038 = vector.broadcast %cst_565 : f32 to vector<8x128xf32>
    %3039 = arith.cmpf oeq, %3033, %3038 : vector<8x128xf32>
    %cst_566 = arith.constant 1.000000e+00 : f32
    %3040 = vector.broadcast %cst_566 : f32 to vector<8x128xf32>
    %3041 = arith.select %3039, %3040, %3033 : vector<8x128xi1>, vector<8x128xf32>
    %3042 = arith.divf %3037, %3041 : vector<8x128xf32>
    %cst_567 = arith.constant 0.000000e+00 : f32
    %3043 = vector.broadcast %cst_567 : f32 to vector<8x128xf32>
    %3044 = arith.cmpf ogt, %3033, %3043 : vector<8x128xf32>
    %3045 = arith.maximumf %3019, %3042 : vector<8x128xf32>
    %3046 = arith.select %3044, %3045, %3019 : vector<8x128xi1>, vector<8x128xf32>
    %cst_568 = arith.constant 0.000000e+00 : f32
    %3047 = vector.broadcast %cst_568 : f32 to vector<8x128xf32>
    %3048 = arith.cmpf olt, %3033, %3047 : vector<8x128xf32>
    %3049 = arith.minimumf %3023, %3042 : vector<8x128xf32>
    %3050 = arith.select %3048, %3049, %3023 : vector<8x128xi1>, vector<8x128xf32>
    %cst_569 = arith.constant 0.000000e+00 : f32
    %3051 = vector.broadcast %cst_569 : f32 to vector<8x128xf32>
    %3052 = arith.cmpf oeq, %3033, %3051 : vector<8x128xf32>
    %cst_570 = arith.constant 0.000000e+00 : f32
    %3053 = vector.broadcast %cst_570 : f32 to vector<8x128xf32>
    %3054 = arith.cmpf ogt, %3037, %3053 : vector<8x128xf32>
    %3055 = arith.andi %3052, %3054 : vector<8x128xi1>
    %cst_571 = arith.constant dense<true> : vector<8x128xi1>
    %3056 = arith.xori %3055, %cst_571 : vector<8x128xi1>
    %3057 = arith.andi %3030, %3056 : vector<8x128xi1>
    %3058 = arith.mulf %2029, %2995 : vector<8x128xf32>
    %3059 = arith.mulf %2026, %2996 : vector<8x128xf32>
    %3060 = arith.addf %3058, %3059 : vector<8x128xf32>
    %3061 = arith.mulf %2029, %328 : vector<8x128xf32>
    %3062 = arith.mulf %2026, %329 : vector<8x128xf32>
    %3063 = arith.addf %3061, %3062 : vector<8x128xf32>
    %3064 = arith.subf %2032, %3063 : vector<8x128xf32>
    %cst_572 = arith.constant 0.000000e+00 : f32
    %3065 = vector.broadcast %cst_572 : f32 to vector<8x128xf32>
    %3066 = arith.cmpf oeq, %3060, %3065 : vector<8x128xf32>
    %cst_573 = arith.constant 1.000000e+00 : f32
    %3067 = vector.broadcast %cst_573 : f32 to vector<8x128xf32>
    %3068 = arith.select %3066, %3067, %3060 : vector<8x128xi1>, vector<8x128xf32>
    %3069 = arith.divf %3064, %3068 : vector<8x128xf32>
    %cst_574 = arith.constant 0.000000e+00 : f32
    %3070 = vector.broadcast %cst_574 : f32 to vector<8x128xf32>
    %3071 = arith.cmpf ogt, %3060, %3070 : vector<8x128xf32>
    %3072 = arith.maximumf %3046, %3069 : vector<8x128xf32>
    %3073 = arith.select %3071, %3072, %3046 : vector<8x128xi1>, vector<8x128xf32>
    %cst_575 = arith.constant 0.000000e+00 : f32
    %3074 = vector.broadcast %cst_575 : f32 to vector<8x128xf32>
    %3075 = arith.cmpf olt, %3060, %3074 : vector<8x128xf32>
    %3076 = arith.minimumf %3050, %3069 : vector<8x128xf32>
    %3077 = arith.select %3075, %3076, %3050 : vector<8x128xi1>, vector<8x128xf32>
    %cst_576 = arith.constant 0.000000e+00 : f32
    %3078 = vector.broadcast %cst_576 : f32 to vector<8x128xf32>
    %3079 = arith.cmpf oeq, %3060, %3078 : vector<8x128xf32>
    %cst_577 = arith.constant 0.000000e+00 : f32
    %3080 = vector.broadcast %cst_577 : f32 to vector<8x128xf32>
    %3081 = arith.cmpf ogt, %3064, %3080 : vector<8x128xf32>
    %3082 = arith.andi %3079, %3081 : vector<8x128xi1>
    %cst_578 = arith.constant dense<true> : vector<8x128xi1>
    %3083 = arith.xori %3082, %cst_578 : vector<8x128xi1>
    %3084 = arith.andi %3057, %3083 : vector<8x128xi1>
    %3085 = arith.mulf %2036, %2995 : vector<8x128xf32>
    %3086 = arith.mulf %2033, %2996 : vector<8x128xf32>
    %3087 = arith.addf %3085, %3086 : vector<8x128xf32>
    %3088 = arith.mulf %2036, %328 : vector<8x128xf32>
    %3089 = arith.mulf %2033, %329 : vector<8x128xf32>
    %3090 = arith.addf %3088, %3089 : vector<8x128xf32>
    %3091 = arith.subf %2039, %3090 : vector<8x128xf32>
    %cst_579 = arith.constant 0.000000e+00 : f32
    %3092 = vector.broadcast %cst_579 : f32 to vector<8x128xf32>
    %3093 = arith.cmpf oeq, %3087, %3092 : vector<8x128xf32>
    %cst_580 = arith.constant 1.000000e+00 : f32
    %3094 = vector.broadcast %cst_580 : f32 to vector<8x128xf32>
    %3095 = arith.select %3093, %3094, %3087 : vector<8x128xi1>, vector<8x128xf32>
    %3096 = arith.divf %3091, %3095 : vector<8x128xf32>
    %cst_581 = arith.constant 0.000000e+00 : f32
    %3097 = vector.broadcast %cst_581 : f32 to vector<8x128xf32>
    %3098 = arith.cmpf ogt, %3087, %3097 : vector<8x128xf32>
    %3099 = arith.maximumf %3073, %3096 : vector<8x128xf32>
    %3100 = arith.select %3098, %3099, %3073 : vector<8x128xi1>, vector<8x128xf32>
    %cst_582 = arith.constant 0.000000e+00 : f32
    %3101 = vector.broadcast %cst_582 : f32 to vector<8x128xf32>
    %3102 = arith.cmpf olt, %3087, %3101 : vector<8x128xf32>
    %3103 = arith.minimumf %3077, %3096 : vector<8x128xf32>
    %3104 = arith.select %3102, %3103, %3077 : vector<8x128xi1>, vector<8x128xf32>
    %cst_583 = arith.constant 0.000000e+00 : f32
    %3105 = vector.broadcast %cst_583 : f32 to vector<8x128xf32>
    %3106 = arith.cmpf oeq, %3087, %3105 : vector<8x128xf32>
    %cst_584 = arith.constant 0.000000e+00 : f32
    %3107 = vector.broadcast %cst_584 : f32 to vector<8x128xf32>
    %3108 = arith.cmpf ogt, %3091, %3107 : vector<8x128xf32>
    %3109 = arith.andi %3106, %3108 : vector<8x128xi1>
    %cst_585 = arith.constant dense<true> : vector<8x128xi1>
    %3110 = arith.xori %3109, %cst_585 : vector<8x128xi1>
    %3111 = arith.andi %3084, %3110 : vector<8x128xi1>
    %3112 = arith.cmpf ole, %3100, %3104 : vector<8x128xf32>
    %3113 = arith.andi %3111, %3112 : vector<8x128xi1>
    %3114 = arith.mulf %3100, %2995 : vector<8x128xf32>
    %3115 = arith.addf %328, %3114 : vector<8x128xf32>
    %3116 = arith.mulf %3100, %2996 : vector<8x128xf32>
    %3117 = arith.addf %329, %3116 : vector<8x128xf32>
    %3118 = arith.mulf %3104, %2995 : vector<8x128xf32>
    %3119 = arith.addf %328, %3118 : vector<8x128xf32>
    %3120 = arith.mulf %3104, %2996 : vector<8x128xf32>
    %3121 = arith.addf %329, %3120 : vector<8x128xf32>
    %3122 = arith.mulf %3115, %3121 : vector<8x128xf32>
    %3123 = arith.mulf %3117, %3119 : vector<8x128xf32>
    %3124 = arith.subf %3122, %3123 : vector<8x128xf32>
    %cst_586 = arith.constant 5.000000e-01 : f32
    %3125 = vector.broadcast %cst_586 : f32 to vector<8x128xf32>
    %3126 = arith.mulf %3125, %3124 : vector<8x128xf32>
    %cst_587 = arith.constant 0.000000e+00 : f32
    %3127 = vector.broadcast %cst_587 : f32 to vector<8x128xf32>
    %3128 = arith.select %3113, %3126, %3127 : vector<8x128xi1>, vector<8x128xf32>
    %3129 = arith.addf %2994, %3128 : vector<8x128xf32>
    %3130 = arith.subf %349, %608 : vector<8x128xf32>
    %3131 = arith.subf %350, %609 : vector<8x128xf32>
    %3132 = arith.mulf %3130, %3130 : vector<8x128xf32>
    %3133 = arith.mulf %3131, %3131 : vector<8x128xf32>
    %3134 = arith.addf %3132, %3133 : vector<8x128xf32>
    %cst_588 = arith.constant 0.000000e+00 : f32
    %3135 = vector.broadcast %cst_588 : f32 to vector<8x128xf32>
    %3136 = arith.cmpf ogt, %3134, %3135 : vector<8x128xf32>
    %cst_589 = arith.constant 0.000000e+00 : f32
    %3137 = vector.broadcast %cst_589 : f32 to vector<8x128xf32>
    %cst_590 = arith.constant 1.000000e+00 : f32
    %3138 = vector.broadcast %cst_590 : f32 to vector<8x128xf32>
    %3139 = arith.mulf %1987, %3130 : vector<8x128xf32>
    %3140 = arith.mulf %1984, %3131 : vector<8x128xf32>
    %3141 = arith.addf %3139, %3140 : vector<8x128xf32>
    %3142 = arith.mulf %1987, %608 : vector<8x128xf32>
    %3143 = arith.mulf %1984, %609 : vector<8x128xf32>
    %3144 = arith.addf %3142, %3143 : vector<8x128xf32>
    %3145 = arith.subf %1990, %3144 : vector<8x128xf32>
    %cst_591 = arith.constant 0.000000e+00 : f32
    %3146 = vector.broadcast %cst_591 : f32 to vector<8x128xf32>
    %3147 = arith.cmpf oeq, %3141, %3146 : vector<8x128xf32>
    %cst_592 = arith.constant 1.000000e+00 : f32
    %3148 = vector.broadcast %cst_592 : f32 to vector<8x128xf32>
    %3149 = arith.select %3147, %3148, %3141 : vector<8x128xi1>, vector<8x128xf32>
    %3150 = arith.divf %3145, %3149 : vector<8x128xf32>
    %cst_593 = arith.constant 0.000000e+00 : f32
    %3151 = vector.broadcast %cst_593 : f32 to vector<8x128xf32>
    %3152 = arith.cmpf ogt, %3141, %3151 : vector<8x128xf32>
    %3153 = arith.maximumf %3137, %3150 : vector<8x128xf32>
    %3154 = arith.select %3152, %3153, %3137 : vector<8x128xi1>, vector<8x128xf32>
    %cst_594 = arith.constant 0.000000e+00 : f32
    %3155 = vector.broadcast %cst_594 : f32 to vector<8x128xf32>
    %3156 = arith.cmpf olt, %3141, %3155 : vector<8x128xf32>
    %3157 = arith.minimumf %3138, %3150 : vector<8x128xf32>
    %3158 = arith.select %3156, %3157, %3138 : vector<8x128xi1>, vector<8x128xf32>
    %cst_595 = arith.constant 0.000000e+00 : f32
    %3159 = vector.broadcast %cst_595 : f32 to vector<8x128xf32>
    %3160 = arith.cmpf oeq, %3141, %3159 : vector<8x128xf32>
    %cst_596 = arith.constant 0.000000e+00 : f32
    %3161 = vector.broadcast %cst_596 : f32 to vector<8x128xf32>
    %3162 = arith.cmpf ogt, %3145, %3161 : vector<8x128xf32>
    %3163 = arith.andi %3160, %3162 : vector<8x128xi1>
    %3164 = arith.mulf %1984, %3130 : vector<8x128xf32>
    %3165 = arith.mulf %1987, %3131 : vector<8x128xf32>
    %3166 = arith.subf %3164, %3165 : vector<8x128xf32>
    %cst_597 = arith.constant 0.000000e+00 : f32
    %3167 = vector.broadcast %cst_597 : f32 to vector<8x128xf32>
    %3168 = arith.cmpf ogt, %3166, %3167 : vector<8x128xf32>
    %cst_598 = arith.constant 0.000000e+00 : f32
    %3169 = vector.broadcast %cst_598 : f32 to vector<8x128xf32>
    %3170 = arith.cmpf oeq, %3141, %3169 : vector<8x128xf32>
    %cst_599 = arith.constant 0.000000e+00 : f32
    %3171 = vector.broadcast %cst_599 : f32 to vector<8x128xf32>
    %3172 = arith.cmpf oeq, %3145, %3171 : vector<8x128xf32>
    %3173 = arith.andi %3170, %3172 : vector<8x128xi1>
    %3174 = arith.andi %3173, %3168 : vector<8x128xi1>
    %3175 = arith.ori %3163, %3174 : vector<8x128xi1>
    %cst_600 = arith.constant dense<true> : vector<8x128xi1>
    %3176 = arith.xori %3175, %cst_600 : vector<8x128xi1>
    %3177 = arith.andi %3136, %3176 : vector<8x128xi1>
    %3178 = arith.mulf %1994, %3130 : vector<8x128xf32>
    %3179 = arith.mulf %1991, %3131 : vector<8x128xf32>
    %3180 = arith.addf %3178, %3179 : vector<8x128xf32>
    %3181 = arith.mulf %1994, %608 : vector<8x128xf32>
    %3182 = arith.mulf %1991, %609 : vector<8x128xf32>
    %3183 = arith.addf %3181, %3182 : vector<8x128xf32>
    %3184 = arith.subf %1997, %3183 : vector<8x128xf32>
    %cst_601 = arith.constant 0.000000e+00 : f32
    %3185 = vector.broadcast %cst_601 : f32 to vector<8x128xf32>
    %3186 = arith.cmpf oeq, %3180, %3185 : vector<8x128xf32>
    %cst_602 = arith.constant 1.000000e+00 : f32
    %3187 = vector.broadcast %cst_602 : f32 to vector<8x128xf32>
    %3188 = arith.select %3186, %3187, %3180 : vector<8x128xi1>, vector<8x128xf32>
    %3189 = arith.divf %3184, %3188 : vector<8x128xf32>
    %cst_603 = arith.constant 0.000000e+00 : f32
    %3190 = vector.broadcast %cst_603 : f32 to vector<8x128xf32>
    %3191 = arith.cmpf ogt, %3180, %3190 : vector<8x128xf32>
    %3192 = arith.maximumf %3154, %3189 : vector<8x128xf32>
    %3193 = arith.select %3191, %3192, %3154 : vector<8x128xi1>, vector<8x128xf32>
    %cst_604 = arith.constant 0.000000e+00 : f32
    %3194 = vector.broadcast %cst_604 : f32 to vector<8x128xf32>
    %3195 = arith.cmpf olt, %3180, %3194 : vector<8x128xf32>
    %3196 = arith.minimumf %3158, %3189 : vector<8x128xf32>
    %3197 = arith.select %3195, %3196, %3158 : vector<8x128xi1>, vector<8x128xf32>
    %cst_605 = arith.constant 0.000000e+00 : f32
    %3198 = vector.broadcast %cst_605 : f32 to vector<8x128xf32>
    %3199 = arith.cmpf oeq, %3180, %3198 : vector<8x128xf32>
    %cst_606 = arith.constant 0.000000e+00 : f32
    %3200 = vector.broadcast %cst_606 : f32 to vector<8x128xf32>
    %3201 = arith.cmpf ogt, %3184, %3200 : vector<8x128xf32>
    %3202 = arith.andi %3199, %3201 : vector<8x128xi1>
    %3203 = arith.mulf %1991, %3130 : vector<8x128xf32>
    %3204 = arith.mulf %1994, %3131 : vector<8x128xf32>
    %3205 = arith.subf %3203, %3204 : vector<8x128xf32>
    %cst_607 = arith.constant 0.000000e+00 : f32
    %3206 = vector.broadcast %cst_607 : f32 to vector<8x128xf32>
    %3207 = arith.cmpf ogt, %3205, %3206 : vector<8x128xf32>
    %cst_608 = arith.constant 0.000000e+00 : f32
    %3208 = vector.broadcast %cst_608 : f32 to vector<8x128xf32>
    %3209 = arith.cmpf oeq, %3180, %3208 : vector<8x128xf32>
    %cst_609 = arith.constant 0.000000e+00 : f32
    %3210 = vector.broadcast %cst_609 : f32 to vector<8x128xf32>
    %3211 = arith.cmpf oeq, %3184, %3210 : vector<8x128xf32>
    %3212 = arith.andi %3209, %3211 : vector<8x128xi1>
    %3213 = arith.andi %3212, %3207 : vector<8x128xi1>
    %3214 = arith.ori %3202, %3213 : vector<8x128xi1>
    %cst_610 = arith.constant dense<true> : vector<8x128xi1>
    %3215 = arith.xori %3214, %cst_610 : vector<8x128xi1>
    %3216 = arith.andi %3177, %3215 : vector<8x128xi1>
    %3217 = arith.mulf %2001, %3130 : vector<8x128xf32>
    %3218 = arith.mulf %1998, %3131 : vector<8x128xf32>
    %3219 = arith.addf %3217, %3218 : vector<8x128xf32>
    %3220 = arith.mulf %2001, %608 : vector<8x128xf32>
    %3221 = arith.mulf %1998, %609 : vector<8x128xf32>
    %3222 = arith.addf %3220, %3221 : vector<8x128xf32>
    %3223 = arith.subf %2004, %3222 : vector<8x128xf32>
    %cst_611 = arith.constant 0.000000e+00 : f32
    %3224 = vector.broadcast %cst_611 : f32 to vector<8x128xf32>
    %3225 = arith.cmpf oeq, %3219, %3224 : vector<8x128xf32>
    %cst_612 = arith.constant 1.000000e+00 : f32
    %3226 = vector.broadcast %cst_612 : f32 to vector<8x128xf32>
    %3227 = arith.select %3225, %3226, %3219 : vector<8x128xi1>, vector<8x128xf32>
    %3228 = arith.divf %3223, %3227 : vector<8x128xf32>
    %cst_613 = arith.constant 0.000000e+00 : f32
    %3229 = vector.broadcast %cst_613 : f32 to vector<8x128xf32>
    %3230 = arith.cmpf ogt, %3219, %3229 : vector<8x128xf32>
    %3231 = arith.maximumf %3193, %3228 : vector<8x128xf32>
    %3232 = arith.select %3230, %3231, %3193 : vector<8x128xi1>, vector<8x128xf32>
    %cst_614 = arith.constant 0.000000e+00 : f32
    %3233 = vector.broadcast %cst_614 : f32 to vector<8x128xf32>
    %3234 = arith.cmpf olt, %3219, %3233 : vector<8x128xf32>
    %3235 = arith.minimumf %3197, %3228 : vector<8x128xf32>
    %3236 = arith.select %3234, %3235, %3197 : vector<8x128xi1>, vector<8x128xf32>
    %cst_615 = arith.constant 0.000000e+00 : f32
    %3237 = vector.broadcast %cst_615 : f32 to vector<8x128xf32>
    %3238 = arith.cmpf oeq, %3219, %3237 : vector<8x128xf32>
    %cst_616 = arith.constant 0.000000e+00 : f32
    %3239 = vector.broadcast %cst_616 : f32 to vector<8x128xf32>
    %3240 = arith.cmpf ogt, %3223, %3239 : vector<8x128xf32>
    %3241 = arith.andi %3238, %3240 : vector<8x128xi1>
    %3242 = arith.mulf %1998, %3130 : vector<8x128xf32>
    %3243 = arith.mulf %2001, %3131 : vector<8x128xf32>
    %3244 = arith.subf %3242, %3243 : vector<8x128xf32>
    %cst_617 = arith.constant 0.000000e+00 : f32
    %3245 = vector.broadcast %cst_617 : f32 to vector<8x128xf32>
    %3246 = arith.cmpf ogt, %3244, %3245 : vector<8x128xf32>
    %cst_618 = arith.constant 0.000000e+00 : f32
    %3247 = vector.broadcast %cst_618 : f32 to vector<8x128xf32>
    %3248 = arith.cmpf oeq, %3219, %3247 : vector<8x128xf32>
    %cst_619 = arith.constant 0.000000e+00 : f32
    %3249 = vector.broadcast %cst_619 : f32 to vector<8x128xf32>
    %3250 = arith.cmpf oeq, %3223, %3249 : vector<8x128xf32>
    %3251 = arith.andi %3248, %3250 : vector<8x128xi1>
    %3252 = arith.andi %3251, %3246 : vector<8x128xi1>
    %3253 = arith.ori %3241, %3252 : vector<8x128xi1>
    %cst_620 = arith.constant dense<true> : vector<8x128xi1>
    %3254 = arith.xori %3253, %cst_620 : vector<8x128xi1>
    %3255 = arith.andi %3216, %3254 : vector<8x128xi1>
    %3256 = arith.mulf %2008, %3130 : vector<8x128xf32>
    %3257 = arith.mulf %2005, %3131 : vector<8x128xf32>
    %3258 = arith.addf %3256, %3257 : vector<8x128xf32>
    %3259 = arith.mulf %2008, %608 : vector<8x128xf32>
    %3260 = arith.mulf %2005, %609 : vector<8x128xf32>
    %3261 = arith.addf %3259, %3260 : vector<8x128xf32>
    %3262 = arith.subf %2011, %3261 : vector<8x128xf32>
    %cst_621 = arith.constant 0.000000e+00 : f32
    %3263 = vector.broadcast %cst_621 : f32 to vector<8x128xf32>
    %3264 = arith.cmpf oeq, %3258, %3263 : vector<8x128xf32>
    %cst_622 = arith.constant 1.000000e+00 : f32
    %3265 = vector.broadcast %cst_622 : f32 to vector<8x128xf32>
    %3266 = arith.select %3264, %3265, %3258 : vector<8x128xi1>, vector<8x128xf32>
    %3267 = arith.divf %3262, %3266 : vector<8x128xf32>
    %cst_623 = arith.constant 0.000000e+00 : f32
    %3268 = vector.broadcast %cst_623 : f32 to vector<8x128xf32>
    %3269 = arith.cmpf ogt, %3258, %3268 : vector<8x128xf32>
    %3270 = arith.maximumf %3232, %3267 : vector<8x128xf32>
    %3271 = arith.select %3269, %3270, %3232 : vector<8x128xi1>, vector<8x128xf32>
    %cst_624 = arith.constant 0.000000e+00 : f32
    %3272 = vector.broadcast %cst_624 : f32 to vector<8x128xf32>
    %3273 = arith.cmpf olt, %3258, %3272 : vector<8x128xf32>
    %3274 = arith.minimumf %3236, %3267 : vector<8x128xf32>
    %3275 = arith.select %3273, %3274, %3236 : vector<8x128xi1>, vector<8x128xf32>
    %cst_625 = arith.constant 0.000000e+00 : f32
    %3276 = vector.broadcast %cst_625 : f32 to vector<8x128xf32>
    %3277 = arith.cmpf oeq, %3258, %3276 : vector<8x128xf32>
    %cst_626 = arith.constant 0.000000e+00 : f32
    %3278 = vector.broadcast %cst_626 : f32 to vector<8x128xf32>
    %3279 = arith.cmpf ogt, %3262, %3278 : vector<8x128xf32>
    %3280 = arith.andi %3277, %3279 : vector<8x128xi1>
    %3281 = arith.mulf %2005, %3130 : vector<8x128xf32>
    %3282 = arith.mulf %2008, %3131 : vector<8x128xf32>
    %3283 = arith.subf %3281, %3282 : vector<8x128xf32>
    %cst_627 = arith.constant 0.000000e+00 : f32
    %3284 = vector.broadcast %cst_627 : f32 to vector<8x128xf32>
    %3285 = arith.cmpf ogt, %3283, %3284 : vector<8x128xf32>
    %cst_628 = arith.constant 0.000000e+00 : f32
    %3286 = vector.broadcast %cst_628 : f32 to vector<8x128xf32>
    %3287 = arith.cmpf oeq, %3258, %3286 : vector<8x128xf32>
    %cst_629 = arith.constant 0.000000e+00 : f32
    %3288 = vector.broadcast %cst_629 : f32 to vector<8x128xf32>
    %3289 = arith.cmpf oeq, %3262, %3288 : vector<8x128xf32>
    %3290 = arith.andi %3287, %3289 : vector<8x128xi1>
    %3291 = arith.andi %3290, %3285 : vector<8x128xi1>
    %3292 = arith.ori %3280, %3291 : vector<8x128xi1>
    %cst_630 = arith.constant dense<true> : vector<8x128xi1>
    %3293 = arith.xori %3292, %cst_630 : vector<8x128xi1>
    %3294 = arith.andi %3255, %3293 : vector<8x128xi1>
    %3295 = arith.cmpf ole, %3271, %3275 : vector<8x128xf32>
    %3296 = arith.andi %3294, %3295 : vector<8x128xi1>
    %3297 = arith.mulf %3271, %3130 : vector<8x128xf32>
    %3298 = arith.addf %608, %3297 : vector<8x128xf32>
    %3299 = arith.mulf %3271, %3131 : vector<8x128xf32>
    %3300 = arith.addf %609, %3299 : vector<8x128xf32>
    %3301 = arith.mulf %3275, %3130 : vector<8x128xf32>
    %3302 = arith.addf %608, %3301 : vector<8x128xf32>
    %3303 = arith.mulf %3275, %3131 : vector<8x128xf32>
    %3304 = arith.addf %609, %3303 : vector<8x128xf32>
    %3305 = arith.mulf %3298, %3304 : vector<8x128xf32>
    %3306 = arith.mulf %3300, %3302 : vector<8x128xf32>
    %3307 = arith.subf %3305, %3306 : vector<8x128xf32>
    %cst_631 = arith.constant 5.000000e-01 : f32
    %3308 = vector.broadcast %cst_631 : f32 to vector<8x128xf32>
    %3309 = arith.mulf %3308, %3307 : vector<8x128xf32>
    %cst_632 = arith.constant 0.000000e+00 : f32
    %3310 = vector.broadcast %cst_632 : f32 to vector<8x128xf32>
    %3311 = arith.select %3296, %3309, %3310 : vector<8x128xi1>, vector<8x128xf32>
    %3312 = arith.addf %3129, %3311 : vector<8x128xf32>
    %cst_633 = arith.constant 0.000000e+00 : f32
    %3313 = vector.broadcast %cst_633 : f32 to vector<8x128xf32>
    %3314 = arith.maximumf %3312, %3313 : vector<8x128xf32>
    %cst_634 = arith.constant 0.000000e+00 : f32
    %3315 = vector.broadcast %cst_634 : f32 to vector<8x128xf32>
    %3316 = arith.cmpf ogt, %1983, %3315 : vector<8x128xf32>
    %cst_635 = arith.constant 1.000000e+00 : f32
    %3317 = vector.broadcast %cst_635 : f32 to vector<8x128xf32>
    %3318 = arith.select %3316, %1983, %3317 : vector<8x128xi1>, vector<8x128xf32>
    %3319 = tpu.reciprocal %3318 {approx = true} : vector<8x128xf32> -> vector<8x128xf32>
    %3320 = arith.mulf %3318, %3319 : vector<8x128xf32>
    %cst_636 = arith.constant 2.000000e+00 : f32
    %3321 = vector.broadcast %cst_636 : f32 to vector<8x128xf32>
    %3322 = arith.subf %3321, %3320 : vector<8x128xf32>
    %3323 = arith.mulf %3319, %3322 : vector<8x128xf32>
    %3324 = arith.mulf %3314, %3323 : vector<8x128xf32>
    %cst_637 = arith.constant 0.000000e+00 : f32
    %3325 = vector.broadcast %cst_637 : f32 to vector<8x128xf32>
    %3326 = arith.select %3316, %3324, %3325 : vector<8x128xi1>, vector<8x128xf32>
    %cst_638 = arith.constant 1.000000e+00 : f32
    %3327 = vector.broadcast %cst_638 : f32 to vector<8x128xf32>
    %3328 = arith.subf %3327, %3326 : vector<8x128xf32>
    %3329 = arith.index_cast %1 : i32 to index
    %c0_639 = arith.constant 0 : index
    %c0_640 = arith.constant 0 : index
    %3330 = vector.load %arg3[%3329, %c0_639, %c0_640] : memref<1x8x128xf32, #tpu.memory_space<vmem>>, vector<1x8x128xf32>
    %3331 = vector.shape_cast %3330 : vector<1x8x128xf32> to vector<8x128xf32>
    %3332 = vector.shape_cast %3328 : vector<8x128xf32> to vector<1x8x128xf32>
    tpu.vector_store %arg3[%3329, %c0_639, %c0_640], %3332 {strides = array<i32>} : memref<1x8x128xf32, #tpu.memory_space<vmem>>, vector<1x8x128xf32>,
    %c1_i32_641 = arith.constant 1 : i32
    return
  }
  func.func @transform_0(%arg0: i32) -> (i32, i32, i32, i32) {
    %c0_i32 = arith.constant 0 : i32
    %c0_i32_0 = arith.constant 0 : i32
    %c0_i32_1 = arith.constant 0 : i32
    %c0_i32_2 = arith.constant 0 : i32
    return %c0_i32, %arg0, %c0_i32_0, %c0_i32_1 : i32, i32, i32, i32
  }
  func.func @transform_1(%arg0: i32) -> (i32, i32, i32, i32) {
    %c0_i32 = arith.constant 0 : i32
    %c0_i32_0 = arith.constant 0 : i32
    %c0_i32_1 = arith.constant 0 : i32
    %c0_i32_2 = arith.constant 0 : i32
    return %c0_i32, %arg0, %c0_i32_0, %c0_i32_1 : i32, i32, i32, i32
  }
  func.func @transform_2(%arg0: i32) -> (i32, i32, i32) {
    %c0_i32 = arith.constant 0 : i32
    %c0_i32_0 = arith.constant 0 : i32
    %c0_i32_1 = arith.constant 0 : i32
    return %arg0, %c0_i32, %c0_i32_0 : i32, i32, i32
  }
}

</mosaic_0001>

<llo_original>
// kernel: tpu_custom_call.1
$region0: #{tpu_custom_call.1}
  #allocation0 [shape = 'u32[]', space=smem, size = 0x4, offset = 0x4, fixed_abs, tag = 'smem constant byte address 0x4 - core index']
  #allocation1 [shape = 'u32[72,128]{1,0:T(1,128)}', space=vmem, size = 0x9000, scoped, tag = 'internal scratch']
  %s0 = inlined_call_operand.hbm [shape: f32[8,1,8,128], index: 0, kind: input, shape index: {}]
  %s1 = inlined_call_operand.hbm [shape: f32[8,1,8,128], index: 1, kind: input, shape index: {}]
  %s2 = inlined_call_operand.hbm [shape: f32[1,8,128], index: 2, kind: output, shape index: {}]
  %s3 = sld [smem:[#allocation0]]
  $region26: #{tpu_custom_call.1} parent=0
    _
  %s5 = ssub.s32 1, %s3
  %s6 = scalar_select 0, %s5, %s3
  $region1: #{tpu_custom_call.1} parent=0
    #allocation2 [shape = 'u8[32768]{0}', space=vmem, size = 0x8000, scoped, tag = 'input window, operand 0, single buffered']
    #allocation3 [shape = 's32[1]{0}', space=sflag, size = 0x4, scoped, tag = 'scoped memory for tpu_custom_call.1']
    #allocation4 [shape = 's32[1]{0}', space=sflag, size = 0x4, scoped, tag = 'scoped memory for tpu_custom_call.1']
    #allocation5 [shape = 'u8[32768]{0}', space=vmem, size = 0x8000, scoped, tag = 'input window, operand 1, single buffered']
    #allocation6 [shape = 's32[1]{0}', space=sflag, size = 0x4, scoped, tag = 'scoped memory for tpu_custom_call.1']
    #allocation7 [shape = 'u8[4096]{0}', space=vmem, size = 0x1000, scoped, tag = 'output window, operand 0, single buffered']
    %7 = vsyncpa [#allocation3], 0
    %8 = vsyncpa [#allocation6], 0
    %9 = vsyncpa [#allocation4], 0
    // Predicated region
    $region2: #{tpu_custom_call.1} parent=1 // pred_check
      _
    $region3: #{tpu_custom_call.1} parent=1 // pred_check_branch
      %11 = sbr.rel (0) target = $region5
    $region4: #{tpu_custom_call.1} parent=1 // pred_region
      %13 = vsyncadd [#allocation3], 0
      %s14 = sshll.u32 %s0, 4
      %s15 = int_to_ptr.hbm [resolvable:$true] %s14
      %s16 = sshll.u32 [#allocation2], 4
      %s17 = int_to_ptr.vmem [resolvable:$true] %s16
      %22 = dma.hbm_to_vmem [thread:$0]  %s15, 1024, %s17, [#allocation3], 128, 128, 8
    $region5: #{tpu_custom_call.1} parent=1 // pred_fallthru
      _
    // Predicated region
    $region6: #{tpu_custom_call.1} parent=1 // pred_check
      _
    $region7: #{tpu_custom_call.1} parent=1 // pred_check_branch
      %24 = sbr.rel (0) target = $region9
    $region8: #{tpu_custom_call.1} parent=1 // pred_region
      %26 = vsyncadd [#allocation6], 0
      %s27 = sshll.u32 %s1, 4
      %s28 = int_to_ptr.hbm [resolvable:$true] %s27
      %s29 = sshll.u32 [#allocation5], 4
      %s30 = int_to_ptr.vmem [resolvable:$true] %s29
      %35 = dma.hbm_to_vmem [thread:$0]  %s28, 1024, %s30, [#allocation6], 128, 128, 8
    $region9: #{tpu_custom_call.1} parent=1 // pred_fallthru
      _
    // Predicated region
    $region10: #{tpu_custom_call.1} parent=1 // pred_check
      _
    $region11: #{tpu_custom_call.1} parent=1 // pred_check_branch
      %37 = sbr.rel (0) target = $region13
    $region12: #{tpu_custom_call.1} parent=1 // pred_region
      %39 = dma.done [#allocation3], 1024
    $region13: #{tpu_custom_call.1} parent=1 // pred_fallthru
      _
    // Predicated region
    $region14: #{tpu_custom_call.1} parent=1 // pred_check
      _
    $region15: #{tpu_custom_call.1} parent=1 // pred_check_branch
      %41 = sbr.rel (0) target = $region17
    $region16: #{tpu_custom_call.1} parent=1 // pred_region
      %43 = dma.done [#allocation6], 1024
    $region17: #{tpu_custom_call.1} parent=1 // pred_fallthru
      _
    %v44 = vld [vmem:[#allocation2] sm:$0xff]
    %s45 = scalar_lea.vmem [#allocation2], 16
    %v46 = vld [vmem:[%s45] sm:$0xff]
    %s47 = scalar_lea.vmem [#allocation2], 32
    %v48 = vld [vmem:[%s47] sm:$0xff]
    %s49 = scalar_lea.vmem [#allocation2], 48
    %v50 = vld [vmem:[%s49] sm:$0xff]
    %s51 = scalar_lea.vmem [#allocation2], 8
    %v52 = vld [vmem:[%s51] sm:$0xff]
    %s53 = scalar_lea.vmem [#allocation2], 24
    %v54 = vld [vmem:[%s53] sm:$0xff]
    %s55 = scalar_lea.vmem [#allocation2], 40
    %v56 = vld [vmem:[%s55] sm:$0xff]
    %s57 = scalar_lea.vmem [#allocation2], 56
    %v58 = vld [vmem:[%s57] sm:$0xff]
    %v59 = vld [vmem:[#allocation5] sm:$0xff]
    %s60 = scalar_lea.vmem [#allocation5], 16
    %v61 = vld [vmem:[%s60] sm:$0xff]
    %s62 = scalar_lea.vmem [#allocation5], 32
    %v63 = vld [vmem:[%s62] sm:$0xff]
    %s64 = scalar_lea.vmem [#allocation5], 48
    %v65 = vld [vmem:[%s64] sm:$0xff]
    %s66 = scalar_lea.vmem [#allocation5], 8
    %v67 = vld [vmem:[%s66] sm:$0xff]
    %s68 = scalar_lea.vmem [#allocation5], 24
    %v69 = vld [vmem:[%s68] sm:$0xff]
    %s70 = scalar_lea.vmem [#allocation5], 40
    %v71 = vld [vmem:[%s70] sm:$0xff]
    %s72 = scalar_lea.vmem [#allocation5], 56
    %v73 = vld [vmem:[%s72] sm:$0xff]
    %vm74 = vcmp.lt.f32.partialorder %v54, %v52
    %vm75 = vcmp.eq.f32.partialorder %v54, %v52
    %vm76 = vcmp.lt.f32.partialorder %v46, %v44
    %vm77 = vmand %vm75, %vm76
    %vm78 = vmor %vm74, %vm77
    %v79 = vsel %vm78, %v46, %v44
    %v80 = vsel %vm78, %v54, %v52
    %vm81 = vcmp.lt.f32.partialorder %v56, %v80
    %vm82 = vcmp.eq.f32.partialorder %v56, %v80
    %vm83 = vcmp.lt.f32.partialorder %v48, %v79
    %vm84 = vmand %vm82, %vm83
    %vm85 = vmor %vm81, %vm84
    %v86 = vsel %vm85, %v48, %v79
    %v87 = vsel %vm85, %v56, %v80
    %vm88 = vcmp.lt.f32.partialorder %v58, %v87
    %vm89 = vcmp.eq.f32.partialorder %v58, %v87
    %vm90 = vcmp.lt.f32.partialorder %v50, %v86
    %vm91 = vmand %vm89, %vm90
    %vm92 = vmor %vm88, %vm91
    %v93 = vsel %vm92, %v50, %v86
    %v94 = vsel %vm92, %v58, %v87
    %v95 = vsub.f32 %v44, %v93
    %v96 = vsub.f32 %v52, %v94
    %v97 = vmul.f32 %v95, %v95
    %v98 = vmul.f32 %v96, %v96
    %v99 = vadd.f32 %v97, %v98
    %v100 = vsub.f32 %v46, %v93
    %v101 = vsub.f32 %v54, %v94
    %v102 = vmul.f32 %v100, %v100
    %v103 = vmul.f32 %v101, %v101
    %v104 = vadd.f32 %v102, %v103
    %v105 = vmul.f32 %v95, %v101
    %v106 = vmul.f32 %v96, %v100
    %v107 = vsub.f32 %v105, %v106
    %vm108 = vcmp.eq.f32.partialorder %v99, 0.0
    %vm109 = vcmp.lt.f32.partialorder %v107, 0.0
    %vm110 = vmor %vm108, %vm109
    %vm111 = vcmp.eq.f32.partialorder %v107, 0.0
    %vm112 = vcmp.gt.f32.partialorder %v104, %v99
    %vm113 = vmand %vm111, %vm112
    %vm114 = vmor %vm110, %vm113
    %vm115 = vcmp.gt.f32.partialorder %v104, 0.0
    %vm116 = vmand %vm114, %vm115
    %v117 = vsel %vm116, %v46, %v44
    %v118 = vsel %vm116, %v54, %v52
    %v119 = vsel %vm116, %v100, %v95
    %v120 = vsel %vm116, %v101, %v96
    %v121 = vsel %vm116, %v104, %v99
    %v122 = vsub.f32 %v48, %v93
    %v123 = vsub.f32 %v56, %v94
    %v124 = vmul.f32 %v122, %v122
    %v125 = vmul.f32 %v123, %v123
    %v126 = vadd.f32 %v124, %v125
    %v127 = vmul.f32 %v119, %v123
    %v128 = vmul.f32 %v120, %v122
    %v129 = vsub.f32 %v127, %v128
    %vm130 = vcmp.eq.f32.partialorder %v121, 0.0
    %vm131 = vcmp.lt.f32.partialorder %v129, 0.0
    %vm132 = vmor %vm130, %vm131
    %vm133 = vcmp.eq.f32.partialorder %v129, 0.0
    %vm134 = vcmp.gt.f32.partialorder %v126, %v121
    %vm135 = vmand %vm133, %vm134
    %vm136 = vmor %vm132, %vm135
    %vm137 = vcmp.gt.f32.partialorder %v126, 0.0
    %vm138 = vmand %vm136, %vm137
    %v139 = vsel %vm138, %v48, %v117
    %v140 = vsel %vm138, %v56, %v118
    %v141 = vsel %vm138, %v122, %v119
    %v142 = vsel %vm138, %v123, %v120
    %v143 = vsel %vm138, %v126, %v121
    %v144 = vsub.f32 %v50, %v93
    %v145 = vsub.f32 %v58, %v94
    %v146 = vmul.f32 %v144, %v144
    %v147 = vmul.f32 %v145, %v145
    %v148 = vadd.f32 %v146, %v147
    %v149 = vmul.f32 %v141, %v145
    %v150 = vmul.f32 %v142, %v144
    %v151 = vsub.f32 %v149, %v150
    %vm152 = vcmp.eq.f32.partialorder %v143, 0.0
    %vm153 = vcmp.lt.f32.partialorder %v151, 0.0
    %vm154 = vmor %vm152, %vm153
    %vm155 = vcmp.eq.f32.partialorder %v151, 0.0
    %vm156 = vcmp.gt.f32.partialorder %v148, %v143
    %vm157 = vmand %vm155, %vm156
    %vm158 = vmor %vm154, %vm157
    %vm159 = vcmp.gt.f32.partialorder %v148, 0.0
    %vm160 = vmand %vm158, %vm159
    %v161 = vsel %vm160, %v50, %v139
    %v162 = vsel %vm160, %v58, %v140
    %vm163 = vcmp.eq.f32.partialorder %v161, %v93
    %vm164 = vcmp.eq.f32.partialorder %v162, %v94
    %vm165 = vmand %vm163, %vm164
    %v166 = vsel %vm165, %v93, %v161
    %v167 = vsel %vm165, %v94, %v162
    %v168 = vsub.f32 %v44, %v166
    %v169 = vsub.f32 %v52, %v167
    %v170 = vmul.f32 %v168, %v168
    %v171 = vmul.f32 %v169, %v169
    %v172 = vadd.f32 %v170, %v171
    %v173 = vsub.f32 %v46, %v166
    %v174 = vsub.f32 %v54, %v167
    %v175 = vmul.f32 %v173, %v173
    %v176 = vmul.f32 %v174, %v174
    %v177 = vadd.f32 %v175, %v176
    %v178 = vmul.f32 %v168, %v174
    %v179 = vmul.f32 %v169, %v173
    %v180 = vsub.f32 %v178, %v179
    %vm181 = vcmp.eq.f32.partialorder %v172, 0.0
    %vm182 = vcmp.lt.f32.partialorder %v180, 0.0
    %vm183 = vmor %vm181, %vm182
    %vm184 = vcmp.eq.f32.partialorder %v180, 0.0
    %vm185 = vcmp.gt.f32.partialorder %v177, %v172
    %vm186 = vmand %vm184, %vm185
    %vm187 = vmor %vm183, %vm186
    %vm188 = vcmp.gt.f32.partialorder %v177, 0.0
    %vm189 = vmand %vm187, %vm188
    %v190 = vsel %vm189, %v46, %v44
    %v191 = vsel %vm189, %v54, %v52
    %v192 = vsel %vm189, %v173, %v168
    %v193 = vsel %vm189, %v174, %v169
    %v194 = vsel %vm189, %v177, %v172
    %v195 = vsub.f32 %v48, %v166
    %v196 = vsub.f32 %v56, %v167
    %v197 = vmul.f32 %v195, %v195
    %v198 = vmul.f32 %v196, %v196
    %v199 = vadd.f32 %v197, %v198
    %v200 = vmul.f32 %v192, %v196
    %v201 = vmul.f32 %v193, %v195
    %v202 = vsub.f32 %v200, %v201
    %vm203 = vcmp.eq.f32.partialorder %v194, 0.0
    %vm204 = vcmp.lt.f32.partialorder %v202, 0.0
    %vm205 = vmor %vm203, %vm204
    %vm206 = vcmp.eq.f32.partialorder %v202, 0.0
    %vm207 = vcmp.gt.f32.partialorder %v199, %v194
    %vm208 = vmand %vm206, %vm207
    %vm209 = vmor %vm205, %vm208
    %vm210 = vcmp.gt.f32.partialorder %v199, 0.0
    %vm211 = vmand %vm209, %vm210
    %v212 = vsel %vm211, %v48, %v190
    %v213 = vsel %vm211, %v56, %v191
    %v214 = vsel %vm211, %v195, %v192
    %v215 = vsel %vm211, %v196, %v193
    %v216 = vsel %vm211, %v199, %v194
    %v217 = vsub.f32 %v50, %v166
    %v218 = vsub.f32 %v58, %v167
    %v219 = vmul.f32 %v217, %v217
    %v220 = vmul.f32 %v218, %v218
    %v221 = vadd.f32 %v219, %v220
    %v222 = vmul.f32 %v214, %v218
    %v223 = vmul.f32 %v215, %v217
    %v224 = vsub.f32 %v222, %v223
    %vm225 = vcmp.eq.f32.partialorder %v216, 0.0
    %vm226 = vcmp.lt.f32.partialorder %v224, 0.0
    %vm227 = vmor %vm225, %vm226
    %vm228 = vcmp.eq.f32.partialorder %v224, 0.0
    %vm229 = vcmp.gt.f32.partialorder %v221, %v216
    %vm230 = vmand %vm228, %vm229
    %vm231 = vmor %vm227, %vm230
    %vm232 = vcmp.gt.f32.partialorder %v221, 0.0
    %vm233 = vmand %vm231, %vm232
    %v234 = vsel %vm233, %v50, %v212
    %v235 = vsel %vm233, %v58, %v213
    %vm236 = vcmp.eq.f32.partialorder %v234, %v93
    %vm237 = vcmp.eq.f32.partialorder %v235, %v94
    %vm238 = vmand %vm236, %vm237
    %vm239 = vmor %vm165, %vm238
    %v240 = vsel %vm239, %v93, %v234
    %v241 = vsel %vm239, %v94, %v235
    %v242 = vsub.f32 %v44, %v240
    %v243 = vsub.f32 %v52, %v241
    %v244 = vmul.f32 %v242, %v242
    %v245 = vmul.f32 %v243, %v243
    %v246 = vadd.f32 %v244, %v245
    %v247 = vsub.f32 %v46, %v240
    %v248 = vsub.f32 %v54, %v241
    %v249 = vmul.f32 %v247, %v247
    %v250 = vmul.f32 %v248, %v248
    %v251 = vadd.f32 %v249, %v250
    %v252 = vmul.f32 %v242, %v248
    %v253 = vmul.f32 %v243, %v247
    %v254 = vsub.f32 %v252, %v253
    %vm255 = vcmp.eq.f32.partialorder %v246, 0.0
    %vm256 = vcmp.lt.f32.partialorder %v254, 0.0
    %vm257 = vmor %vm255, %vm256
    %vm258 = vcmp.eq.f32.partialorder %v254, 0.0
    %vm259 = vcmp.gt.f32.partialorder %v251, %v246
    %vm260 = vmand %vm258, %vm259
    %vm261 = vmor %vm257, %vm260
    %vm262 = vcmp.gt.f32.partialorder %v251, 0.0
    %vm263 = vmand %vm261, %vm262
    %v264 = vsel %vm263, %v46, %v44
    %v265 = vsel %vm263, %v54, %v52
    %v266 = vsel %vm263, %v247, %v242
    %v267 = vsel %vm263, %v248, %v243
    %v268 = vsel %vm263, %v251, %v246
    %v269 = vsub.f32 %v48, %v240
    %v270 = vsub.f32 %v56, %v241
    %v271 = vmul.f32 %v269, %v269
    %v272 = vmul.f32 %v270, %v270
    %v273 = vadd.f32 %v271, %v272
    %v274 = vmul.f32 %v266, %v270
    %v275 = vmul.f32 %v267, %v269
    %v276 = vsub.f32 %v274, %v275
    %vm277 = vcmp.eq.f32.partialorder %v268, 0.0
    %vm278 = vcmp.lt.f32.partialorder %v276, 0.0
    %vm279 = vmor %vm277, %vm278
    %vm280 = vcmp.eq.f32.partialorder %v276, 0.0
    %vm281 = vcmp.gt.f32.partialorder %v273, %v268
    %vm282 = vmand %vm280, %vm281
    %vm283 = vmor %vm279, %vm282
    %vm284 = vcmp.gt.f32.partialorder %v273, 0.0
    %vm285 = vmand %vm283, %vm284
    %v286 = vsel %vm285, %v48, %v264
    %v287 = vsel %vm285, %v56, %v265
    %v288 = vsel %vm285, %v269, %v266
    %v289 = vsel %vm285, %v270, %v267
    %v290 = vsel %vm285, %v273, %v268
    %v291 = vsub.f32 %v50, %v240
    %v292 = vsub.f32 %v58, %v241
    %v293 = vmul.f32 %v291, %v291
    %v294 = vmul.f32 %v292, %v292
    %v295 = vadd.f32 %v293, %v294
    %v296 = vmul.f32 %v288, %v292
    %v297 = vmul.f32 %v289, %v291
    %v298 = vsub.f32 %v296, %v297
    %vm299 = vcmp.eq.f32.partialorder %v290, 0.0
    %vm300 = vcmp.lt.f32.partialorder %v298, 0.0
    %vm301 = vmor %vm299, %vm300
    %vm302 = vcmp.eq.f32.partialorder %v298, 0.0
    %vm303 = vcmp.gt.f32.partialorder %v295, %v290
    %vm304 = vmand %vm302, %vm303
    %vm305 = vmor %vm301, %vm304
    %vm306 = vcmp.gt.f32.partialorder %v295, 0.0
    %vm307 = vmand %vm305, %vm306
    %v308 = vsel %vm307, %v50, %v286
    %v309 = vsel %vm307, %v58, %v287
    %vm310 = vcmp.eq.f32.partialorder %v308, %v93
    %vm311 = vcmp.eq.f32.partialorder %v309, %v94
    %vm312 = vmand %vm310, %vm311
    %vm313 = vmor %vm239, %vm312
    %v314 = vsel %vm313, %v93, %v308
    %v315 = vsel %vm313, %v94, %v309
    %vm316 = vcmp.lt.f32.partialorder %v69, %v67
    %vm317 = vcmp.eq.f32.partialorder %v69, %v67
    %vm318 = vcmp.lt.f32.partialorder %v61, %v59
    %vm319 = vmand %vm317, %vm318
    %vm320 = vmor %vm316, %vm319
    %v321 = vsel %vm320, %v61, %v59
    %v322 = vsel %vm320, %v69, %v67
    %vm323 = vcmp.lt.f32.partialorder %v71, %v322
    %vm324 = vcmp.eq.f32.partialorder %v71, %v322
    %vm325 = vcmp.lt.f32.partialorder %v63, %v321
    %vm326 = vmand %vm324, %vm325
    %vm327 = vmor %vm323, %vm326
    %v328 = vsel %vm327, %v63, %v321
    %v329 = vsel %vm327, %v71, %v322
    %vm330 = vcmp.lt.f32.partialorder %v73, %v329
    %vm331 = vcmp.eq.f32.partialorder %v73, %v329
    %vm332 = vcmp.lt.f32.partialorder %v65, %v328
    %vm333 = vmand %vm331, %vm332
    %vm334 = vmor %vm330, %vm333
    %v335 = vsel %vm334, %v65, %v328
    %v336 = vsel %vm334, %v73, %v329
    %v337 = vsub.f32 %v59, %v335
    %v338 = vsub.f32 %v67, %v336
    %v339 = vmul.f32 %v337, %v337
    %v340 = vmul.f32 %v338, %v338
    %v341 = vadd.f32 %v339, %v340
    %v342 = vsub.f32 %v61, %v335
    %v343 = vsub.f32 %v69, %v336
    %v344 = vmul.f32 %v342, %v342
    %v345 = vmul.f32 %v343, %v343
    %v346 = vadd.f32 %v344, %v345
    %v347 = vmul.f32 %v337, %v343
    %v348 = vmul.f32 %v338, %v342
    %v349 = vsub.f32 %v347, %v348
    %vm350 = vcmp.eq.f32.partialorder %v341, 0.0
    %vm351 = vcmp.lt.f32.partialorder %v349, 0.0
    %vm352 = vmor %vm350, %vm351
    %vm353 = vcmp.eq.f32.partialorder %v349, 0.0
    %vm354 = vcmp.gt.f32.partialorder %v346, %v341
    %vm355 = vmand %vm353, %vm354
    %vm356 = vmor %vm352, %vm355
    %vm357 = vcmp.gt.f32.partialorder %v346, 0.0
    %vm358 = vmand %vm356, %vm357
    %v359 = vsel %vm358, %v61, %v59
    %v360 = vsel %vm358, %v69, %v67
    %v361 = vsel %vm358, %v342, %v337
    %v362 = vsel %vm358, %v343, %v338
    %v363 = vsel %vm358, %v346, %v341
    %v364 = vsub.f32 %v63, %v335
    %v365 = vsub.f32 %v71, %v336
    %v366 = vmul.f32 %v364, %v364
    %v367 = vmul.f32 %v365, %v365
    %v368 = vadd.f32 %v366, %v367
    %v369 = vmul.f32 %v361, %v365
    %v370 = vmul.f32 %v362, %v364
    %v371 = vsub.f32 %v369, %v370
    %vm372 = vcmp.eq.f32.partialorder %v363, 0.0
    %vm373 = vcmp.lt.f32.partialorder %v371, 0.0
    %vm374 = vmor %vm372, %vm373
    %vm375 = vcmp.eq.f32.partialorder %v371, 0.0
    %vm376 = vcmp.gt.f32.partialorder %v368, %v363
    %vm377 = vmand %vm375, %vm376
    %vm378 = vmor %vm374, %vm377
    %vm379 = vcmp.gt.f32.partialorder %v368, 0.0
    %vm380 = vmand %vm378, %vm379
    %v381 = vsel %vm380, %v63, %v359
    %v382 = vsel %vm380, %v71, %v360
    %v383 = vsel %vm380, %v364, %v361
    %v384 = vsel %vm380, %v365, %v362
    %v385 = vsel %vm380, %v368, %v363
    %v386 = vsub.f32 %v65, %v335
    %v387 = vsub.f32 %v73, %v336
    %v388 = vmul.f32 %v386, %v386
    %v389 = vmul.f32 %v387, %v387
    %v390 = vadd.f32 %v388, %v389
    %v391 = vmul.f32 %v383, %v387
    %v392 = vmul.f32 %v384, %v386
    %v393 = vsub.f32 %v391, %v392
    %vm394 = vcmp.eq.f32.partialorder %v385, 0.0
    %vm395 = vcmp.lt.f32.partialorder %v393, 0.0
    %vm396 = vmor %vm394, %vm395
    %vm397 = vcmp.eq.f32.partialorder %v393, 0.0
    %vm398 = vcmp.gt.f32.partialorder %v390, %v385
    %vm399 = vmand %vm397, %vm398
    %vm400 = vmor %vm396, %vm399
    %vm401 = vcmp.gt.f32.partialorder %v390, 0.0
    %vm402 = vmand %vm400, %vm401
    %v403 = vsel %vm402, %v65, %v381
    %v404 = vsel %vm402, %v73, %v382
    %vm405 = vcmp.eq.f32.partialorder %v403, %v335
    %vm406 = vcmp.eq.f32.partialorder %v404, %v336
    %vm407 = vmand %vm405, %vm406
    %v408 = vsel %vm407, %v335, %v403
    %v409 = vsel %vm407, %v336, %v404
    %v410 = vsub.f32 %v59, %v408
    %v411 = vsub.f32 %v67, %v409
    %v412 = vmul.f32 %v410, %v410
    %v413 = vmul.f32 %v411, %v411
    %v414 = vadd.f32 %v412, %v413
    %v415 = vsub.f32 %v61, %v408
    %v416 = vsub.f32 %v69, %v409
    %v417 = vmul.f32 %v415, %v415
    %v418 = vmul.f32 %v416, %v416
    %v419 = vadd.f32 %v417, %v418
    %v420 = vmul.f32 %v410, %v416
    %v421 = vmul.f32 %v411, %v415
    %v422 = vsub.f32 %v420, %v421
    %vm423 = vcmp.eq.f32.partialorder %v414, 0.0
    %vm424 = vcmp.lt.f32.partialorder %v422, 0.0
    %vm425 = vmor %vm423, %vm424
    %vm426 = vcmp.eq.f32.partialorder %v422, 0.0
    %vm427 = vcmp.gt.f32.partialorder %v419, %v414
    %vm428 = vmand %vm426, %vm427
    %vm429 = vmor %vm425, %vm428
    %vm430 = vcmp.gt.f32.partialorder %v419, 0.0
    %vm431 = vmand %vm429, %vm430
    %v432 = vsel %vm431, %v61, %v59
    %v433 = vsel %vm431, %v69, %v67
    %v434 = vsel %vm431, %v415, %v410
    %v435 = vsel %vm431, %v416, %v411
    %v436 = vsel %vm431, %v419, %v414
    %v437 = vsub.f32 %v63, %v408
    %v438 = vsub.f32 %v71, %v409
    %v439 = vmul.f32 %v437, %v437
    %v440 = vmul.f32 %v438, %v438
    %v441 = vadd.f32 %v439, %v440
    %v442 = vmul.f32 %v434, %v438
    %v443 = vmul.f32 %v435, %v437
    %v444 = vsub.f32 %v442, %v443
    %vm445 = vcmp.eq.f32.partialorder %v436, 0.0
    %vm446 = vcmp.lt.f32.partialorder %v444, 0.0
    %vm447 = vmor %vm445, %vm446
    %vm448 = vcmp.eq.f32.partialorder %v444, 0.0
    %vm449 = vcmp.gt.f32.partialorder %v441, %v436
    %vm450 = vmand %vm448, %vm449
    %vm451 = vmor %vm447, %vm450
    %vm452 = vcmp.gt.f32.partialorder %v441, 0.0
    %vm453 = vmand %vm451, %vm452
    %v454 = vsel %vm453, %v63, %v432
    %v455 = vsel %vm453, %v71, %v433
    %v456 = vsel %vm453, %v437, %v434
    %v457 = vsel %vm453, %v438, %v435
    %v458 = vsel %vm453, %v441, %v436
    %v459 = vsub.f32 %v65, %v408
    %v460 = vsub.f32 %v73, %v409
    %v461 = vmul.f32 %v459, %v459
    %v462 = vmul.f32 %v460, %v460
    %v463 = vadd.f32 %v461, %v462
    %v464 = vmul.f32 %v456, %v460
    %v465 = vmul.f32 %v457, %v459
    %v466 = vsub.f32 %v464, %v465
    %vm467 = vcmp.eq.f32.partialorder %v458, 0.0
    %vm468 = vcmp.lt.f32.partialorder %v466, 0.0
    %vm469 = vmor %vm467, %vm468
    %vm470 = vcmp.eq.f32.partialorder %v466, 0.0
    %vm471 = vcmp.gt.f32.partialorder %v463, %v458
    %vm472 = vmand %vm470, %vm471
    %vm473 = vmor %vm469, %vm472
    %vm474 = vcmp.gt.f32.partialorder %v463, 0.0
    %vm475 = vmand %vm473, %vm474
    %v476 = vsel %vm475, %v65, %v454
    %v477 = vsel %vm475, %v73, %v455
    %vm478 = vcmp.eq.f32.partialorder %v476, %v335
    %vm479 = vcmp.eq.f32.partialorder %v477, %v336
    %vm480 = vmand %vm478, %vm479
    %vm481 = vmor %vm407, %vm480
    %v482 = vsel %vm481, %v335, %v476
    %v483 = vsel %vm481, %v336, %v477
    %v484 = vsub.f32 %v59, %v482
    %v485 = vsub.f32 %v67, %v483
    %v486 = vmul.f32 %v484, %v484
    %v487 = vmul.f32 %v485, %v485
    %v488 = vadd.f32 %v486, %v487
    %v489 = vsub.f32 %v61, %v482
    %v490 = vsub.f32 %v69, %v483
    %v491 = vmul.f32 %v489, %v489
    %v492 = vmul.f32 %v490, %v490
    %v493 = vadd.f32 %v491, %v492
    %v494 = vmul.f32 %v484, %v490
    %v495 = vmul.f32 %v485, %v489
    %v496 = vsub.f32 %v494, %v495
    %vm497 = vcmp.eq.f32.partialorder %v488, 0.0
    %vm498 = vcmp.lt.f32.partialorder %v496, 0.0
    %vm499 = vmor %vm497, %vm498
    %vm500 = vcmp.eq.f32.partialorder %v496, 0.0
    %vm501 = vcmp.gt.f32.partialorder %v493, %v488
    %vm502 = vmand %vm500, %vm501
    %vm503 = vmor %vm499, %vm502
    %vm504 = vcmp.gt.f32.partialorder %v493, 0.0
    %vm505 = vmand %vm503, %vm504
    %v506 = vsel %vm505, %v61, %v59
    %v507 = vsel %vm505, %v69, %v67
    %v508 = vsel %vm505, %v489, %v484
    %v509 = vsel %vm505, %v490, %v485
    %v510 = vsel %vm505, %v493, %v488
    %v511 = vsub.f32 %v63, %v482
    %v512 = vsub.f32 %v71, %v483
    %v513 = vmul.f32 %v511, %v511
    %v514 = vmul.f32 %v512, %v512
    %v515 = vadd.f32 %v513, %v514
    %v516 = vmul.f32 %v508, %v512
    %v517 = vmul.f32 %v509, %v511
    %v518 = vsub.f32 %v516, %v517
    %vm519 = vcmp.eq.f32.partialorder %v510, 0.0
    %vm520 = vcmp.lt.f32.partialorder %v518, 0.0
    %vm521 = vmor %vm519, %vm520
    %vm522 = vcmp.eq.f32.partialorder %v518, 0.0
    %vm523 = vcmp.gt.f32.partialorder %v515, %v510
    %vm524 = vmand %vm522, %vm523
    %vm525 = vmor %vm521, %vm524
    %vm526 = vcmp.gt.f32.partialorder %v515, 0.0
    %vm527 = vmand %vm525, %vm526
    %v528 = vsel %vm527, %v63, %v506
    %v529 = vsel %vm527, %v71, %v507
    %v530 = vsel %vm527, %v511, %v508
    %v531 = vsel %vm527, %v512, %v509
    %v532 = vsel %vm527, %v515, %v510
    %v533 = vsub.f32 %v65, %v482
    %v534 = vsub.f32 %v73, %v483
    %v535 = vmul.f32 %v533, %v533
    %v536 = vmul.f32 %v534, %v534
    %v537 = vadd.f32 %v535, %v536
    %v538 = vmul.f32 %v530, %v534
    %v539 = vmul.f32 %v531, %v533
    %v540 = vsub.f32 %v538, %v539
    %vm541 = vcmp.eq.f32.partialorder %v532, 0.0
    %vm542 = vcmp.lt.f32.partialorder %v540, 0.0
    %vm543 = vmor %vm541, %vm542
    %vm544 = vcmp.eq.f32.partialorder %v540, 0.0
    %vm545 = vcmp.gt.f32.partialorder %v537, %v532
    %vm546 = vmand %vm544, %vm545
    %vm547 = vmor %vm543, %vm546
    %vm548 = vcmp.gt.f32.partialorder %v537, 0.0
    %vm549 = vmand %vm547, %vm548
    %v550 = vsel %vm549, %v65, %v528
    %v551 = vsel %vm549, %v73, %v529
    %vm552 = vcmp.eq.f32.partialorder %v550, %v335
    %vm553 = vcmp.eq.f32.partialorder %v551, %v336
    %vm554 = vmand %vm552, %vm553
    %vm555 = vmor %vm481, %vm554
    %v556 = vsel %vm555, %v335, %v550
    %v557 = vsel %vm555, %v336, %v551
    %vm558 = vcmp.lt.f32.partialorder %v336, %v94
    %vm559 = vcmp.eq.f32.partialorder %v336, %v94
    %vm560 = vcmp.lt.f32.partialorder %v335, %v93
    %vm561 = vmand %vm559, %vm560
    %vm562 = vmor %vm558, %vm561
    %v563 = vsel %vm562, %v335, %v93
    %v564 = vsel %vm562, %v336, %v94
    %v565 = vsub.f32 %v44, %v563
    %v566 = vsub.f32 %v52, %v564
    %v567 = vmul.f32 %v565, %v565
    %v568 = vmul.f32 %v566, %v566
    %v569 = vadd.f32 %v567, %v568
    %v570 = vsub.f32 %v46, %v563
    %v571 = vsub.f32 %v54, %v564
    %v572 = vmul.f32 %v570, %v570
    %v573 = vmul.f32 %v571, %v571
    %v574 = vadd.f32 %v572, %v573
    %v575 = vmul.f32 %v565, %v571
    %v576 = vmul.f32 %v566, %v570
    %v577 = vsub.f32 %v575, %v576
    %vm578 = vcmp.eq.f32.partialorder %v569, 0.0
    %vm579 = vcmp.lt.f32.partialorder %v577, 0.0
    %vm580 = vmor %vm578, %vm579
    %vm581 = vcmp.eq.f32.partialorder %v577, 0.0
    %vm582 = vcmp.gt.f32.partialorder %v574, %v569
    %vm583 = vmand %vm581, %vm582
    %vm584 = vmor %vm580, %vm583
    %vm585 = vcmp.gt.f32.partialorder %v574, 0.0
    %vm586 = vmand %vm584, %vm585
    %v587 = vsel %vm586, %v46, %v44
    %v588 = vsel %vm586, %v54, %v52
    %v589 = vsel %vm586, %v570, %v565
    %v590 = vsel %vm586, %v571, %v566
    %v591 = vsel %vm586, %v574, %v569
    %v592 = vsub.f32 %v48, %v563
    %v593 = vsub.f32 %v56, %v564
    %v594 = vmul.f32 %v592, %v592
    %v595 = vmul.f32 %v593, %v593
    %v596 = vadd.f32 %v594, %v595
    %v597 = vmul.f32 %v589, %v593
    %v598 = vmul.f32 %v590, %v592
    %v599 = vsub.f32 %v597, %v598
    %vm600 = vcmp.eq.f32.partialorder %v591, 0.0
    %vm601 = vcmp.lt.f32.partialorder %v599, 0.0
    %vm602 = vmor %vm600, %vm601
    %vm603 = vcmp.eq.f32.partialorder %v599, 0.0
    %vm604 = vcmp.gt.f32.partialorder %v596, %v591
    %vm605 = vmand %vm603, %vm604
    %vm606 = vmor %vm602, %vm605
    %vm607 = vcmp.gt.f32.partialorder %v596, 0.0
    %vm608 = vmand %vm606, %vm607
    %v609 = vsel %vm608, %v48, %v587
    %v610 = vsel %vm608, %v56, %v588
    %v611 = vsel %vm608, %v592, %v589
    %v612 = vsel %vm608, %v593, %v590
    %v613 = vsel %vm608, %v596, %v591
    %v614 = vsub.f32 %v50, %v563
    %v615 = vsub.f32 %v58, %v564
    %v616 = vmul.f32 %v614, %v614
    %v617 = vmul.f32 %v615, %v615
    %v618 = vadd.f32 %v616, %v617
    %v619 = vmul.f32 %v611, %v615
    %v620 = vmul.f32 %v612, %v614
    %v621 = vsub.f32 %v619, %v620
    %vm622 = vcmp.eq.f32.partialorder %v613, 0.0
    %vm623 = vcmp.lt.f32.partialorder %v621, 0.0
    %vm624 = vmor %vm622, %vm623
    %vm625 = vcmp.eq.f32.partialorder %v621, 0.0
    %vm626 = vcmp.gt.f32.partialorder %v618, %v613
    %vm627 = vmand %vm625, %vm626
    %vm628 = vmor %vm624, %vm627
    %vm629 = vcmp.gt.f32.partialorder %v618, 0.0
    %vm630 = vmand %vm628, %vm629
    %v631 = vsel %vm630, %v50, %v609
    %v632 = vsel %vm630, %v58, %v610
    %v633 = vsel %vm630, %v614, %v611
    %v634 = vsel %vm630, %v615, %v612
    %v635 = vsel %vm630, %v618, %v613
    %v636 = vsub.f32 %v59, %v563
    %v637 = vsub.f32 %v67, %v564
    %v638 = vmul.f32 %v636, %v636
    %v639 = vmul.f32 %v637, %v637
    %v640 = vadd.f32 %v638, %v639
    %v641 = vmul.f32 %v633, %v637
    %v642 = vmul.f32 %v634, %v636
    %v643 = vsub.f32 %v641, %v642
    %vm644 = vcmp.eq.f32.partialorder %v635, 0.0
    %vm645 = vcmp.lt.f32.partialorder %v643, 0.0
    %vm646 = vmor %vm644, %vm645
    %vm647 = vcmp.eq.f32.partialorder %v643, 0.0
    %vm648 = vcmp.gt.f32.partialorder %v640, %v635
    %vm649 = vmand %vm647, %vm648
    %vm650 = vmor %vm646, %vm649
    %vm651 = vcmp.gt.f32.partialorder %v640, 0.0
    %vm652 = vmand %vm650, %vm651
    %v653 = vsel %vm652, %v59, %v631
    %v654 = vsel %vm652, %v67, %v632
    %v655 = vsel %vm652, %v636, %v633
    %v656 = vsel %vm652, %v637, %v634
    %v657 = vsel %vm652, %v640, %v635
    %v658 = vsub.f32 %v61, %v563
    %v659 = vsub.f32 %v69, %v564
    %v660 = vmul.f32 %v658, %v658
    %v661 = vmul.f32 %v659, %v659
    %v662 = vadd.f32 %v660, %v661
    %v663 = vmul.f32 %v655, %v659
    %v664 = vmul.f32 %v656, %v658
    %v665 = vsub.f32 %v663, %v664
    %vm666 = vcmp.eq.f32.partialorder %v657, 0.0
    %vm667 = vcmp.lt.f32.partialorder %v665, 0.0
    %vm668 = vmor %vm666, %vm667
    %vm669 = vcmp.eq.f32.partialorder %v665, 0.0
    %vm670 = vcmp.gt.f32.partialorder %v662, %v657
    %vm671 = vmand %vm669, %vm670
    %vm672 = vmor %vm668, %vm671
    %vm673 = vcmp.gt.f32.partialorder %v662, 0.0
    %vm674 = vmand %vm672, %vm673
    %v675 = vsel %vm674, %v61, %v653
    %v676 = vsel %vm674, %v69, %v654
    %v677 = vsel %vm674, %v658, %v655
    %v678 = vsel %vm674, %v659, %v656
    %v679 = vsel %vm674, %v662, %v657
    %v680 = vsub.f32 %v63, %v563
    %v681 = vsub.f32 %v71, %v564
    %v682 = vmul.f32 %v680, %v680
    %v683 = vmul.f32 %v681, %v681
    %v684 = vadd.f32 %v682, %v683
    %v685 = vmul.f32 %v677, %v681
    %v686 = vmul.f32 %v678, %v680
    %v687 = vsub.f32 %v685, %v686
    %vm688 = vcmp.eq.f32.partialorder %v679, 0.0
    %vm689 = vcmp.lt.f32.partialorder %v687, 0.0
    %vm690 = vmor %vm688, %vm689
    %vm691 = vcmp.eq.f32.partialorder %v687, 0.0
    %vm692 = vcmp.gt.f32.partialorder %v684, %v679
    %vm693 = vmand %vm691, %vm692
    %vm694 = vmor %vm690, %vm693
    %vm695 = vcmp.gt.f32.partialorder %v684, 0.0
    %vm696 = vmand %vm694, %vm695
    %v697 = vsel %vm696, %v63, %v675
    %v698 = vsel %vm696, %v71, %v676
    %v699 = vsel %vm696, %v680, %v677
    %v700 = vsel %vm696, %v681, %v678
    %v701 = vsel %vm696, %v684, %v679
    %v702 = vsub.f32 %v65, %v563
    %v703 = vsub.f32 %v73, %v564
    %v704 = vmul.f32 %v702, %v702
    %v705 = vmul.f32 %v703, %v703
    %v706 = vadd.f32 %v704, %v705
    %v707 = vmul.f32 %v699, %v703
    %v708 = vmul.f32 %v700, %v702
    %v709 = vsub.f32 %v707, %v708
    %vm710 = vcmp.eq.f32.partialorder %v701, 0.0
    %vm711 = vcmp.lt.f32.partialorder %v709, 0.0
    %vm712 = vmor %vm710, %vm711
    %vm713 = vcmp.eq.f32.partialorder %v709, 0.0
    %vm714 = vcmp.gt.f32.partialorder %v706, %v701
    %vm715 = vmand %vm713, %vm714
    %vm716 = vmor %vm712, %vm715
    %vm717 = vcmp.gt.f32.partialorder %v706, 0.0
    %vm718 = vmand %vm716, %vm717
    %v719 = vsel %vm718, %v65, %v697
    %v720 = vsel %vm718, %v73, %v698
    %vm721 = vcmp.eq.f32.partialorder %v719, %v563
    %vm722 = vcmp.eq.f32.partialorder %v720, %v564
    %vm723 = vmand %vm721, %vm722
    %v724 = vsel %vm723, %v563, %v719
    %v725 = vsel %vm723, %v564, %v720
    %v726 = vsub.f32 %v44, %v724
    %v727 = vsub.f32 %v52, %v725
    %v728 = vmul.f32 %v726, %v726
    %v729 = vmul.f32 %v727, %v727
    %v730 = vadd.f32 %v728, %v729
    %v731 = vsub.f32 %v46, %v724
    %v732 = vsub.f32 %v54, %v725
    %v733 = vmul.f32 %v731, %v731
    %v734 = vmul.f32 %v732, %v732
    %v735 = vadd.f32 %v733, %v734
    %v736 = vmul.f32 %v726, %v732
    %v737 = vmul.f32 %v727, %v731
    %v738 = vsub.f32 %v736, %v737
    %vm739 = vcmp.eq.f32.partialorder %v730, 0.0
    %vm740 = vcmp.lt.f32.partialorder %v738, 0.0
    %vm741 = vmor %vm739, %vm740
    %vm742 = vcmp.eq.f32.partialorder %v738, 0.0
    %vm743 = vcmp.gt.f32.partialorder %v735, %v730
    %vm744 = vmand %vm742, %vm743
    %vm745 = vmor %vm741, %vm744
    %vm746 = vcmp.gt.f32.partialorder %v735, 0.0
    %vm747 = vmand %vm745, %vm746
    %v748 = vsel %vm747, %v46, %v44
    %v749 = vsel %vm747, %v54, %v52
    %v750 = vsel %vm747, %v731, %v726
    %v751 = vsel %vm747, %v732, %v727
    %v752 = vsel %vm747, %v735, %v730
    %v753 = vsub.f32 %v48, %v724
    %v754 = vsub.f32 %v56, %v725
    %v755 = vmul.f32 %v753, %v753
    %v756 = vmul.f32 %v754, %v754
    %v757 = vadd.f32 %v755, %v756
    %v758 = vmul.f32 %v750, %v754
    %v759 = vmul.f32 %v751, %v753
    %v760 = vsub.f32 %v758, %v759
    %vm761 = vcmp.eq.f32.partialorder %v752, 0.0
    %vm762 = vcmp.lt.f32.partialorder %v760, 0.0
    %vm763 = vmor %vm761, %vm762
    %vm764 = vcmp.eq.f32.partialorder %v760, 0.0
    %vm765 = vcmp.gt.f32.partialorder %v757, %v752
    %vm766 = vmand %vm764, %vm765
    %vm767 = vmor %vm763, %vm766
    %vm768 = vcmp.gt.f32.partialorder %v757, 0.0
    %vm769 = vmand %vm767, %vm768
    %v770 = vsel %vm769, %v48, %v748
    %v771 = vsel %vm769, %v56, %v749
    %v772 = vsel %vm769, %v753, %v750
    %v773 = vsel %vm769, %v754, %v751
    %v774 = vsel %vm769, %v757, %v752
    %v775 = vsub.f32 %v50, %v724
    %v776 = vsub.f32 %v58, %v725
    %v777 = vmul.f32 %v775, %v775
    %v778 = vmul.f32 %v776, %v776
    %v779 = vadd.f32 %v777, %v778
    %v780 = vmul.f32 %v772, %v776
    %v781 = vmul.f32 %v773, %v775
    %v782 = vsub.f32 %v780, %v781
    %vm783 = vcmp.eq.f32.partialorder %v774, 0.0
    %vm784 = vcmp.lt.f32.partialorder %v782, 0.0
    %vm785 = vmor %vm783, %vm784
    %vm786 = vcmp.eq.f32.partialorder %v782, 0.0
    %vm787 = vcmp.gt.f32.partialorder %v779, %v774
    %vm788 = vmand %vm786, %vm787
    %vm789 = vmor %vm785, %vm788
    %vm790 = vcmp.gt.f32.partialorder %v779, 0.0
    %vm791 = vmand %vm789, %vm790
    %v792 = vsel %vm791, %v50, %v770
    %v793 = vsel %vm791, %v58, %v771
    %v794 = vsel %vm791, %v775, %v772
    %v795 = vsel %vm791, %v776, %v773
    %v796 = vsel %vm791, %v779, %v774
    %v797 = vsub.f32 %v59, %v724
    %v798 = vsub.f32 %v67, %v725
    %v799 = vmul.f32 %v797, %v797
    %v800 = vmul.f32 %v798, %v798
    %v801 = vadd.f32 %v799, %v800
    %v802 = vmul.f32 %v794, %v798
    %v803 = vmul.f32 %v795, %v797
    %v804 = vsub.f32 %v802, %v803
    %vm805 = vcmp.eq.f32.partialorder %v796, 0.0
    %vm806 = vcmp.lt.f32.partialorder %v804, 0.0
    %vm807 = vmor %vm805, %vm806
    %vm808 = vcmp.eq.f32.partialorder %v804, 0.0
    %vm809 = vcmp.gt.f32.partialorder %v801, %v796
    %vm810 = vmand %vm808, %vm809
    %vm811 = vmor %vm807, %vm810
    %vm812 = vcmp.gt.f32.partialorder %v801, 0.0
    %vm813 = vmand %vm811, %vm812
    %v814 = vsel %vm813, %v59, %v792
    %v815 = vsel %vm813, %v67, %v793
    %v816 = vsel %vm813, %v797, %v794
    %v817 = vsel %vm813, %v798, %v795
    %v818 = vsel %vm813, %v801, %v796
    %v819 = vsub.f32 %v61, %v724
    %v820 = vsub.f32 %v69, %v725
    %v821 = vmul.f32 %v819, %v819
    %v822 = vmul.f32 %v820, %v820
    %v823 = vadd.f32 %v821, %v822
    %v824 = vmul.f32 %v816, %v820
    %v825 = vmul.f32 %v817, %v819
    %v826 = vsub.f32 %v824, %v825
    %vm827 = vcmp.eq.f32.partialorder %v818, 0.0
    %vm828 = vcmp.lt.f32.partialorder %v826, 0.0
    %vm829 = vmor %vm827, %vm828
    %vm830 = vcmp.eq.f32.partialorder %v826, 0.0
    %vm831 = vcmp.gt.f32.partialorder %v823, %v818
    %vm832 = vmand %vm830, %vm831
    %vm833 = vmor %vm829, %vm832
    %vm834 = vcmp.gt.f32.partialorder %v823, 0.0
    %vm835 = vmand %vm833, %vm834
    %v836 = vsel %vm835, %v61, %v814
    %v837 = vsel %vm835, %v69, %v815
    %v838 = vsel %vm835, %v819, %v816
    %v839 = vsel %vm835, %v820, %v817
    %v840 = vsel %vm835, %v823, %v818
    %v841 = vsub.f32 %v63, %v724
    %v842 = vsub.f32 %v71, %v725
    %v843 = vmul.f32 %v841, %v841
    %v844 = vmul.f32 %v842, %v842
    %v845 = vadd.f32 %v843, %v844
    %v846 = vmul.f32 %v838, %v842
    %v847 = vmul.f32 %v839, %v841
    %v848 = vsub.f32 %v846, %v847
    %vm849 = vcmp.eq.f32.partialorder %v840, 0.0
    %vm850 = vcmp.lt.f32.partialorder %v848, 0.0
    %vm851 = vmor %vm849, %vm850
    %vm852 = vcmp.eq.f32.partialorder %v848, 0.0
    %vm853 = vcmp.gt.f32.partialorder %v845, %v840
    %vm854 = vmand %vm852, %vm853
    %vm855 = vmor %vm851, %vm854
    %vm856 = vcmp.gt.f32.partialorder %v845, 0.0
    %vm857 = vmand %vm855, %vm856
    %v858 = vsel %vm857, %v63, %v836
    %v859 = vsel %vm857, %v71, %v837
    %v860 = vsel %vm857, %v841, %v838
    %v861 = vsel %vm857, %v842, %v839
    %v862 = vsel %vm857, %v845, %v840
    %v863 = vsub.f32 %v65, %v724
    %v864 = vsub.f32 %v73, %v725
    %v865 = vmul.f32 %v863, %v863
    %v866 = vmul.f32 %v864, %v864
    %v867 = vadd.f32 %v865, %v866
    %v868 = vmul.f32 %v860, %v864
    %v869 = vmul.f32 %v861, %v863
    %v870 = vsub.f32 %v868, %v869
    %vm871 = vcmp.eq.f32.partialorder %v862, 0.0
    %vm872 = vcmp.lt.f32.partialorder %v870, 0.0
    %vm873 = vmor %vm871, %vm872
    %vm874 = vcmp.eq.f32.partialorder %v870, 0.0
    %vm875 = vcmp.gt.f32.partialorder %v867, %v862
    %vm876 = vmand %vm874, %vm875
    %vm877 = vmor %vm873, %vm876
    %vm878 = vcmp.gt.f32.partialorder %v867, 0.0
    %vm879 = vmand %vm877, %vm878
    %v880 = vsel %vm879, %v65, %v858
    %v881 = vsel %vm879, %v73, %v859
    %vm882 = vcmp.eq.f32.partialorder %v880, %v563
    %vm883 = vcmp.eq.f32.partialorder %v881, %v564
    %vm884 = vmand %vm882, %vm883
    %vm885 = vmor %vm723, %vm884
    %v886 = vsel %vm885, %v563, %v880
    %v887 = vsel %vm885, %v564, %v881
    %v888 = vsub.f32 %v44, %v886
    %v889 = vsub.f32 %v52, %v887
    %v890 = vmul.f32 %v888, %v888
    %v891 = vmul.f32 %v889, %v889
    %v892 = vadd.f32 %v890, %v891
    %v893 = vsub.f32 %v46, %v886
    %v894 = vsub.f32 %v54, %v887
    %v895 = vmul.f32 %v893, %v893
    %v896 = vmul.f32 %v894, %v894
    %v897 = vadd.f32 %v895, %v896
    %v898 = vmul.f32 %v888, %v894
    %v899 = vmul.f32 %v889, %v893
    %v900 = vsub.f32 %v898, %v899
    %vm901 = vcmp.eq.f32.partialorder %v892, 0.0
    %vm902 = vcmp.lt.f32.partialorder %v900, 0.0
    %vm903 = vmor %vm901, %vm902
    %vm904 = vcmp.eq.f32.partialorder %v900, 0.0
    %vm905 = vcmp.gt.f32.partialorder %v897, %v892
    %vm906 = vmand %vm904, %vm905
    %vm907 = vmor %vm903, %vm906
    %vm908 = vcmp.gt.f32.partialorder %v897, 0.0
    %vm909 = vmand %vm907, %vm908
    %v910 = vsel %vm909, %v46, %v44
    %v911 = vsel %vm909, %v54, %v52
    %v912 = vsel %vm909, %v893, %v888
    %v913 = vsel %vm909, %v894, %v889
    %v914 = vsel %vm909, %v897, %v892
    %v915 = vsub.f32 %v48, %v886
    %v916 = vsub.f32 %v56, %v887
    %v917 = vmul.f32 %v915, %v915
    %v918 = vmul.f32 %v916, %v916
    %v919 = vadd.f32 %v917, %v918
    %v920 = vmul.f32 %v912, %v916
    %v921 = vmul.f32 %v913, %v915
    %v922 = vsub.f32 %v920, %v921
    %vm923 = vcmp.eq.f32.partialorder %v914, 0.0
    %vm924 = vcmp.lt.f32.partialorder %v922, 0.0
    %vm925 = vmor %vm923, %vm924
    %vm926 = vcmp.eq.f32.partialorder %v922, 0.0
    %vm927 = vcmp.gt.f32.partialorder %v919, %v914
    %vm928 = vmand %vm926, %vm927
    %vm929 = vmor %vm925, %vm928
    %vm930 = vcmp.gt.f32.partialorder %v919, 0.0
    %vm931 = vmand %vm929, %vm930
    %v932 = vsel %vm931, %v48, %v910
    %v933 = vsel %vm931, %v56, %v911
    %v934 = vsel %vm931, %v915, %v912
    %v935 = vsel %vm931, %v916, %v913
    %v936 = vsel %vm931, %v919, %v914
    %v937 = vsub.f32 %v50, %v886
    %v938 = vsub.f32 %v58, %v887
    %v939 = vmul.f32 %v937, %v937
    %v940 = vmul.f32 %v938, %v938
    %v941 = vadd.f32 %v939, %v940
    %v942 = vmul.f32 %v934, %v938
    %v943 = vmul.f32 %v935, %v937
    %v944 = vsub.f32 %v942, %v943
    %vm945 = vcmp.eq.f32.partialorder %v936, 0.0
    %vm946 = vcmp.lt.f32.partialorder %v944, 0.0
    %vm947 = vmor %vm945, %vm946
    %vm948 = vcmp.eq.f32.partialorder %v944, 0.0
    %vm949 = vcmp.gt.f32.partialorder %v941, %v936
    %vm950 = vmand %vm948, %vm949
    %vm951 = vmor %vm947, %vm950
    %vm952 = vcmp.gt.f32.partialorder %v941, 0.0
    %vm953 = vmand %vm951, %vm952
    %v954 = vsel %vm953, %v50, %v932
    %v955 = vsel %vm953, %v58, %v933
    %v956 = vsel %vm953, %v937, %v934
    %v957 = vsel %vm953, %v938, %v935
    %v958 = vsel %vm953, %v941, %v936
    %v959 = vsub.f32 %v59, %v886
    %v960 = vsub.f32 %v67, %v887
    %v961 = vmul.f32 %v959, %v959
    %v962 = vmul.f32 %v960, %v960
    %v963 = vadd.f32 %v961, %v962
    %v964 = vmul.f32 %v956, %v960
    %v965 = vmul.f32 %v957, %v959
    %v966 = vsub.f32 %v964, %v965
    %vm967 = vcmp.eq.f32.partialorder %v958, 0.0
    %vm968 = vcmp.lt.f32.partialorder %v966, 0.0
    %vm969 = vmor %vm967, %vm968
    %vm970 = vcmp.eq.f32.partialorder %v966, 0.0
    %vm971 = vcmp.gt.f32.partialorder %v963, %v958
    %vm972 = vmand %vm970, %vm971
    %vm973 = vmor %vm969, %vm972
    %vm974 = vcmp.gt.f32.partialorder %v963, 0.0
    %vm975 = vmand %vm973, %vm974
    %v976 = vsel %vm975, %v59, %v954
    %v977 = vsel %vm975, %v67, %v955
    %v978 = vsel %vm975, %v959, %v956
    %v979 = vsel %vm975, %v960, %v957
    %v980 = vsel %vm975, %v963, %v958
    %v981 = vsub.f32 %v61, %v886
    %v982 = vsub.f32 %v69, %v887
    %v983 = vmul.f32 %v981, %v981
    %v984 = vmul.f32 %v982, %v982
    %v985 = vadd.f32 %v983, %v984
    %v986 = vmul.f32 %v978, %v982
    %v987 = vmul.f32 %v979, %v981
    %v988 = vsub.f32 %v986, %v987
    %vm989 = vcmp.eq.f32.partialorder %v980, 0.0
    %vm990 = vcmp.lt.f32.partialorder %v988, 0.0
    %vm991 = vmor %vm989, %vm990
    %vm992 = vcmp.eq.f32.partialorder %v988, 0.0
    %vm993 = vcmp.gt.f32.partialorder %v985, %v980
    %vm994 = vmand %vm992, %vm993
    %vm995 = vmor %vm991, %vm994
    %vm996 = vcmp.gt.f32.partialorder %v985, 0.0
    %vm997 = vmand %vm995, %vm996
    %v998 = vsel %vm997, %v61, %v976
    %v999 = vsel %vm997, %v69, %v977
    %v1000 = vsel %vm997, %v981, %v978
    %v1001 = vsel %vm997, %v982, %v979
    %v1002 = vsel %vm997, %v985, %v980
    %v1003 = vsub.f32 %v63, %v886
    %v1004 = vsub.f32 %v71, %v887
    %v1005 = vmul.f32 %v1003, %v1003
    %v1006 = vmul.f32 %v1004, %v1004
    %v1007 = vadd.f32 %v1005, %v1006
    %v1008 = vmul.f32 %v1000, %v1004
    %v1009 = vmul.f32 %v1001, %v1003
    %v1010 = vsub.f32 %v1008, %v1009
    %vm1011 = vcmp.eq.f32.partialorder %v1002, 0.0
    %vm1012 = vcmp.lt.f32.partialorder %v1010, 0.0
    %vm1013 = vmor %vm1011, %vm1012
    %vm1014 = vcmp.eq.f32.partialorder %v1010, 0.0
    %vm1015 = vcmp.gt.f32.partialorder %v1007, %v1002
    %vm1016 = vmand %vm1014, %vm1015
    %vm1017 = vmor %vm1013, %vm1016
    %vm1018 = vcmp.gt.f32.partialorder %v1007, 0.0
    %vm1019 = vmand %vm1017, %vm1018
    %v1020 = vsel %vm1019, %v63, %v998
    %v1021 = vsel %vm1019, %v71, %v999
    %v1022 = vsel %vm1019, %v1003, %v1000
    %v1023 = vsel %vm1019, %v1004, %v1001
    %v1024 = vsel %vm1019, %v1007, %v1002
    %v1025 = vsub.f32 %v65, %v886
    %v1026 = vsub.f32 %v73, %v887
    %v1027 = vmul.f32 %v1025, %v1025
    %v1028 = vmul.f32 %v1026, %v1026
    %v1029 = vadd.f32 %v1027, %v1028
    %v1030 = vmul.f32 %v1022, %v1026
    %v1031 = vmul.f32 %v1023, %v1025
    %v1032 = vsub.f32 %v1030, %v1031
    %vm1033 = vcmp.eq.f32.partialorder %v1024, 0.0
    %vm1034 = vcmp.lt.f32.partialorder %v1032, 0.0
    %vm1035 = vmor %vm1033, %vm1034
    %vm1036 = vcmp.eq.f32.partialorder %v1032, 0.0
    %vm1037 = vcmp.gt.f32.partialorder %v1029, %v1024
    %vm1038 = vmand %vm1036, %vm1037
    %vm1039 = vmor %vm1035, %vm1038
    %vm1040 = vcmp.gt.f32.partialorder %v1029, 0.0
    %vm1041 = vmand %vm1039, %vm1040
    %v1042 = vsel %vm1041, %v65, %v1020
    %v1043 = vsel %vm1041, %v73, %v1021
    %vm1044 = vcmp.eq.f32.partialorder %v1042, %v563
    %vm1045 = vcmp.eq.f32.partialorder %v1043, %v564
    %vm1046 = vmand %vm1044, %vm1045
    %vm1047 = vmor %vm885, %vm1046
    %v1048 = vsel %vm1047, %v563, %v1042
    %v1049 = vsel %vm1047, %v564, %v1043
    %v1050 = vsub.f32 %v44, %v1048
    %v1051 = vsub.f32 %v52, %v1049
    %v1052 = vmul.f32 %v1050, %v1050
    %v1053 = vmul.f32 %v1051, %v1051
    %v1054 = vadd.f32 %v1052, %v1053
    %v1055 = vsub.f32 %v46, %v1048
    %v1056 = vsub.f32 %v54, %v1049
    %v1057 = vmul.f32 %v1055, %v1055
    %v1058 = vmul.f32 %v1056, %v1056
    %v1059 = vadd.f32 %v1057, %v1058
    %v1060 = vmul.f32 %v1050, %v1056
    %v1061 = vmul.f32 %v1051, %v1055
    %v1062 = vsub.f32 %v1060, %v1061
    %vm1063 = vcmp.eq.f32.partialorder %v1054, 0.0
    %vm1064 = vcmp.lt.f32.partialorder %v1062, 0.0
    %vm1065 = vmor %vm1063, %vm1064
    %vm1066 = vcmp.eq.f32.partialorder %v1062, 0.0
    %vm1067 = vcmp.gt.f32.partialorder %v1059, %v1054
    %vm1068 = vmand %vm1066, %vm1067
    %vm1069 = vmor %vm1065, %vm1068
    %vm1070 = vcmp.gt.f32.partialorder %v1059, 0.0
    %vm1071 = vmand %vm1069, %vm1070
    %v1072 = vsel %vm1071, %v46, %v44
    %v1073 = vsel %vm1071, %v54, %v52
    %v1074 = vsel %vm1071, %v1055, %v1050
    %v1075 = vsel %vm1071, %v1056, %v1051
    %v1076 = vsel %vm1071, %v1059, %v1054
    %v1077 = vsub.f32 %v48, %v1048
    %v1078 = vsub.f32 %v56, %v1049
    %v1079 = vmul.f32 %v1077, %v1077
    %v1080 = vmul.f32 %v1078, %v1078
    %v1081 = vadd.f32 %v1079, %v1080
    %v1082 = vmul.f32 %v1074, %v1078
    %v1083 = vmul.f32 %v1075, %v1077
    %v1084 = vsub.f32 %v1082, %v1083
    %vm1085 = vcmp.eq.f32.partialorder %v1076, 0.0
    %vm1086 = vcmp.lt.f32.partialorder %v1084, 0.0
    %vm1087 = vmor %vm1085, %vm1086
    %vm1088 = vcmp.eq.f32.partialorder %v1084, 0.0
    %vm1089 = vcmp.gt.f32.partialorder %v1081, %v1076
    %vm1090 = vmand %vm1088, %vm1089
    %vm1091 = vmor %vm1087, %vm1090
    %vm1092 = vcmp.gt.f32.partialorder %v1081, 0.0
    %vm1093 = vmand %vm1091, %vm1092
    %v1094 = vsel %vm1093, %v48, %v1072
    %v1095 = vsel %vm1093, %v56, %v1073
    %v1096 = vsel %vm1093, %v1077, %v1074
    %v1097 = vsel %vm1093, %v1078, %v1075
    %v1098 = vsel %vm1093, %v1081, %v1076
    %v1099 = vsub.f32 %v50, %v1048
    %v1100 = vsub.f32 %v58, %v1049
    %v1101 = vmul.f32 %v1099, %v1099
    %v1102 = vmul.f32 %v1100, %v1100
    %v1103 = vadd.f32 %v1101, %v1102
    %v1104 = vmul.f32 %v1096, %v1100
    %v1105 = vmul.f32 %v1097, %v1099
    %v1106 = vsub.f32 %v1104, %v1105
    %vm1107 = vcmp.eq.f32.partialorder %v1098, 0.0
    %vm1108 = vcmp.lt.f32.partialorder %v1106, 0.0
    %vm1109 = vmor %vm1107, %vm1108
    %vm1110 = vcmp.eq.f32.partialorder %v1106, 0.0
    %vm1111 = vcmp.gt.f32.partialorder %v1103, %v1098
    %vm1112 = vmand %vm1110, %vm1111
    %vm1113 = vmor %vm1109, %vm1112
    %vm1114 = vcmp.gt.f32.partialorder %v1103, 0.0
    %vm1115 = vmand %vm1113, %vm1114
    %v1116 = vsel %vm1115, %v50, %v1094
    %v1117 = vsel %vm1115, %v58, %v1095
    %v1118 = vsel %vm1115, %v1099, %v1096
    %v1119 = vsel %vm1115, %v1100, %v1097
    %v1120 = vsel %vm1115, %v1103, %v1098
    %v1121 = vsub.f32 %v59, %v1048
    %v1122 = vsub.f32 %v67, %v1049
    %v1123 = vmul.f32 %v1121, %v1121
    %v1124 = vmul.f32 %v1122, %v1122
    %v1125 = vadd.f32 %v1123, %v1124
    %v1126 = vmul.f32 %v1118, %v1122
    %v1127 = vmul.f32 %v1119, %v1121
    %v1128 = vsub.f32 %v1126, %v1127
    %vm1129 = vcmp.eq.f32.partialorder %v1120, 0.0
    %vm1130 = vcmp.lt.f32.partialorder %v1128, 0.0
    %vm1131 = vmor %vm1129, %vm1130
    %vm1132 = vcmp.eq.f32.partialorder %v1128, 0.0
    %vm1133 = vcmp.gt.f32.partialorder %v1125, %v1120
    %vm1134 = vmand %vm1132, %vm1133
    %vm1135 = vmor %vm1131, %vm1134
    %vm1136 = vcmp.gt.f32.partialorder %v1125, 0.0
    %vm1137 = vmand %vm1135, %vm1136
    %v1138 = vsel %vm1137, %v59, %v1116
    %v1139 = vsel %vm1137, %v67, %v1117
    %v1140 = vsel %vm1137, %v1121, %v1118
    %v1141 = vsel %vm1137, %v1122, %v1119
    %v1142 = vsel %vm1137, %v1125, %v1120
    %v1143 = vsub.f32 %v61, %v1048
    %v1144 = vsub.f32 %v69, %v1049
    %v1145 = vmul.f32 %v1143, %v1143
    %v1146 = vmul.f32 %v1144, %v1144
    %v1147 = vadd.f32 %v1145, %v1146
    %v1148 = vmul.f32 %v1140, %v1144
    %v1149 = vmul.f32 %v1141, %v1143
    %v1150 = vsub.f32 %v1148, %v1149
    %vm1151 = vcmp.eq.f32.partialorder %v1142, 0.0
    %vm1152 = vcmp.lt.f32.partialorder %v1150, 0.0
    %vm1153 = vmor %vm1151, %vm1152
    %vm1154 = vcmp.eq.f32.partialorder %v1150, 0.0
    %vm1155 = vcmp.gt.f32.partialorder %v1147, %v1142
    %vm1156 = vmand %vm1154, %vm1155
    %vm1157 = vmor %vm1153, %vm1156
    %vm1158 = vcmp.gt.f32.partialorder %v1147, 0.0
    %vm1159 = vmand %vm1157, %vm1158
    %v1160 = vsel %vm1159, %v61, %v1138
    %v1161 = vsel %vm1159, %v69, %v1139
    %v1162 = vsel %vm1159, %v1143, %v1140
    %v1163 = vsel %vm1159, %v1144, %v1141
    %v1164 = vsel %vm1159, %v1147, %v1142
    %v1165 = vsub.f32 %v63, %v1048
    %v1166 = vsub.f32 %v71, %v1049
    %v1167 = vmul.f32 %v1165, %v1165
    %v1168 = vmul.f32 %v1166, %v1166
    %v1169 = vadd.f32 %v1167, %v1168
    %v1170 = vmul.f32 %v1162, %v1166
    %v1171 = vmul.f32 %v1163, %v1165
    %v1172 = vsub.f32 %v1170, %v1171
    %vm1173 = vcmp.eq.f32.partialorder %v1164, 0.0
    %vm1174 = vcmp.lt.f32.partialorder %v1172, 0.0
    %vm1175 = vmor %vm1173, %vm1174
    %vm1176 = vcmp.eq.f32.partialorder %v1172, 0.0
    %vm1177 = vcmp.gt.f32.partialorder %v1169, %v1164
    %vm1178 = vmand %vm1176, %vm1177
    %vm1179 = vmor %vm1175, %vm1178
    %vm1180 = vcmp.gt.f32.partialorder %v1169, 0.0
    %vm1181 = vmand %vm1179, %vm1180
    %v1182 = vsel %vm1181, %v63, %v1160
    %v1183 = vsel %vm1181, %v71, %v1161
    %v1184 = vsel %vm1181, %v1165, %v1162
    %v1185 = vsel %vm1181, %v1166, %v1163
    %v1186 = vsel %vm1181, %v1169, %v1164
    %v1187 = vsub.f32 %v65, %v1048
    %v1188 = vsub.f32 %v73, %v1049
    %v1189 = vmul.f32 %v1187, %v1187
    %v1190 = vmul.f32 %v1188, %v1188
    %v1191 = vadd.f32 %v1189, %v1190
    %v1192 = vmul.f32 %v1184, %v1188
    %v1193 = vmul.f32 %v1185, %v1187
    %v1194 = vsub.f32 %v1192, %v1193
    %vm1195 = vcmp.eq.f32.partialorder %v1186, 0.0
    %vm1196 = vcmp.lt.f32.partialorder %v1194, 0.0
    %vm1197 = vmor %vm1195, %vm1196
    %vm1198 = vcmp.eq.f32.partialorder %v1194, 0.0
    %vm1199 = vcmp.gt.f32.partialorder %v1191, %v1186
    %vm1200 = vmand %vm1198, %vm1199
    %vm1201 = vmor %vm1197, %vm1200
    %vm1202 = vcmp.gt.f32.partialorder %v1191, 0.0
    %vm1203 = vmand %vm1201, %vm1202
    %v1204 = vsel %vm1203, %v65, %v1182
    %v1205 = vsel %vm1203, %v73, %v1183
    %vm1206 = vcmp.eq.f32.partialorder %v1204, %v563
    %vm1207 = vcmp.eq.f32.partialorder %v1205, %v564
    %vm1208 = vmand %vm1206, %vm1207
    %vm1209 = vmor %vm1047, %vm1208
    %v1210 = vsel %vm1209, %v563, %v1204
    %v1211 = vsel %vm1209, %v564, %v1205
    %v1212 = vsub.f32 %v44, %v1210
    %v1213 = vsub.f32 %v52, %v1211
    %v1214 = vmul.f32 %v1212, %v1212
    %v1215 = vmul.f32 %v1213, %v1213
    %v1216 = vadd.f32 %v1214, %v1215
    %v1217 = vsub.f32 %v46, %v1210
    %v1218 = vsub.f32 %v54, %v1211
    %v1219 = vmul.f32 %v1217, %v1217
    %v1220 = vmul.f32 %v1218, %v1218
    %v1221 = vadd.f32 %v1219, %v1220
    %v1222 = vmul.f32 %v1212, %v1218
    %v1223 = vmul.f32 %v1213, %v1217
    %v1224 = vsub.f32 %v1222, %v1223
    %vm1225 = vcmp.eq.f32.partialorder %v1216, 0.0
    %vm1226 = vcmp.lt.f32.partialorder %v1224, 0.0
    %vm1227 = vmor %vm1225, %vm1226
    %vm1228 = vcmp.eq.f32.partialorder %v1224, 0.0
    %vm1229 = vcmp.gt.f32.partialorder %v1221, %v1216
    %vm1230 = vmand %vm1228, %vm1229
    %vm1231 = vmor %vm1227, %vm1230
    %vm1232 = vcmp.gt.f32.partialorder %v1221, 0.0
    %vm1233 = vmand %vm1231, %vm1232
    %v1234 = vsel %vm1233, %v46, %v44
    %v1235 = vsel %vm1233, %v54, %v52
    %v1236 = vsel %vm1233, %v1217, %v1212
    %v1237 = vsel %vm1233, %v1218, %v1213
    %v1238 = vsel %vm1233, %v1221, %v1216
    %v1239 = vsub.f32 %v48, %v1210
    %v1240 = vsub.f32 %v56, %v1211
    %v1241 = vmul.f32 %v1239, %v1239
    %v1242 = vmul.f32 %v1240, %v1240
    %v1243 = vadd.f32 %v1241, %v1242
    %v1244 = vmul.f32 %v1236, %v1240
    %v1245 = vmul.f32 %v1237, %v1239
    %v1246 = vsub.f32 %v1244, %v1245
    %vm1247 = vcmp.eq.f32.partialorder %v1238, 0.0
    %vm1248 = vcmp.lt.f32.partialorder %v1246, 0.0
    %vm1249 = vmor %vm1247, %vm1248
    %vm1250 = vcmp.eq.f32.partialorder %v1246, 0.0
    %vm1251 = vcmp.gt.f32.partialorder %v1243, %v1238
    %vm1252 = vmand %vm1250, %vm1251
    %vm1253 = vmor %vm1249, %vm1252
    %vm1254 = vcmp.gt.f32.partialorder %v1243, 0.0
    %vm1255 = vmand %vm1253, %vm1254
    %v1256 = vsel %vm1255, %v48, %v1234
    %v1257 = vsel %vm1255, %v56, %v1235
    %v1258 = vsel %vm1255, %v1239, %v1236
    %v1259 = vsel %vm1255, %v1240, %v1237
    %v1260 = vsel %vm1255, %v1243, %v1238
    %v1261 = vsub.f32 %v50, %v1210
    %v1262 = vsub.f32 %v58, %v1211
    %v1263 = vmul.f32 %v1261, %v1261
    %v1264 = vmul.f32 %v1262, %v1262
    %v1265 = vadd.f32 %v1263, %v1264
    %v1266 = vmul.f32 %v1258, %v1262
    %v1267 = vmul.f32 %v1259, %v1261
    %v1268 = vsub.f32 %v1266, %v1267
    %vm1269 = vcmp.eq.f32.partialorder %v1260, 0.0
    %vm1270 = vcmp.lt.f32.partialorder %v1268, 0.0
    %vm1271 = vmor %vm1269, %vm1270
    %vm1272 = vcmp.eq.f32.partialorder %v1268, 0.0
    %vm1273 = vcmp.gt.f32.partialorder %v1265, %v1260
    %vm1274 = vmand %vm1272, %vm1273
    %vm1275 = vmor %vm1271, %vm1274
    %vm1276 = vcmp.gt.f32.partialorder %v1265, 0.0
    %vm1277 = vmand %vm1275, %vm1276
    %v1278 = vsel %vm1277, %v50, %v1256
    %v1279 = vsel %vm1277, %v58, %v1257
    %v1280 = vsel %vm1277, %v1261, %v1258
    %v1281 = vsel %vm1277, %v1262, %v1259
    %v1282 = vsel %vm1277, %v1265, %v1260
    %v1283 = vsub.f32 %v59, %v1210
    %v1284 = vsub.f32 %v67, %v1211
    %v1285 = vmul.f32 %v1283, %v1283
    %v1286 = vmul.f32 %v1284, %v1284
    %v1287 = vadd.f32 %v1285, %v1286
    %v1288 = vmul.f32 %v1280, %v1284
    %v1289 = vmul.f32 %v1281, %v1283
    %v1290 = vsub.f32 %v1288, %v1289
    %vm1291 = vcmp.eq.f32.partialorder %v1282, 0.0
    %vm1292 = vcmp.lt.f32.partialorder %v1290, 0.0
    %vm1293 = vmor %vm1291, %vm1292
    %vm1294 = vcmp.eq.f32.partialorder %v1290, 0.0
    %vm1295 = vcmp.gt.f32.partialorder %v1287, %v1282
    %vm1296 = vmand %vm1294, %vm1295
    %vm1297 = vmor %vm1293, %vm1296
    %vm1298 = vcmp.gt.f32.partialorder %v1287, 0.0
    %vm1299 = vmand %vm1297, %vm1298
    %v1300 = vsel %vm1299, %v59, %v1278
    %v1301 = vsel %vm1299, %v67, %v1279
    %v1302 = vsel %vm1299, %v1283, %v1280
    %v1303 = vsel %vm1299, %v1284, %v1281
    %v1304 = vsel %vm1299, %v1287, %v1282
    %v1305 = vsub.f32 %v61, %v1210
    %v1306 = vsub.f32 %v69, %v1211
    %v1307 = vmul.f32 %v1305, %v1305
    %v1308 = vmul.f32 %v1306, %v1306
    %v1309 = vadd.f32 %v1307, %v1308
    %v1310 = vmul.f32 %v1302, %v1306
    %v1311 = vmul.f32 %v1303, %v1305
    %v1312 = vsub.f32 %v1310, %v1311
    %vm1313 = vcmp.eq.f32.partialorder %v1304, 0.0
    %vm1314 = vcmp.lt.f32.partialorder %v1312, 0.0
    %vm1315 = vmor %vm1313, %vm1314
    %vm1316 = vcmp.eq.f32.partialorder %v1312, 0.0
    %vm1317 = vcmp.gt.f32.partialorder %v1309, %v1304
    %vm1318 = vmand %vm1316, %vm1317
    %vm1319 = vmor %vm1315, %vm1318
    %vm1320 = vcmp.gt.f32.partialorder %v1309, 0.0
    %vm1321 = vmand %vm1319, %vm1320
    %v1322 = vsel %vm1321, %v61, %v1300
    %v1323 = vsel %vm1321, %v69, %v1301
    %v1324 = vsel %vm1321, %v1305, %v1302
    %v1325 = vsel %vm1321, %v1306, %v1303
    %v1326 = vsel %vm1321, %v1309, %v1304
    %v1327 = vsub.f32 %v63, %v1210
    %v1328 = vsub.f32 %v71, %v1211
    %v1329 = vmul.f32 %v1327, %v1327
    %v1330 = vmul.f32 %v1328, %v1328
    %v1331 = vadd.f32 %v1329, %v1330
    %v1332 = vmul.f32 %v1324, %v1328
    %v1333 = vmul.f32 %v1325, %v1327
    %v1334 = vsub.f32 %v1332, %v1333
    %vm1335 = vcmp.eq.f32.partialorder %v1326, 0.0
    %vm1336 = vcmp.lt.f32.partialorder %v1334, 0.0
    %vm1337 = vmor %vm1335, %vm1336
    %vm1338 = vcmp.eq.f32.partialorder %v1334, 0.0
    %vm1339 = vcmp.gt.f32.partialorder %v1331, %v1326
    %vm1340 = vmand %vm1338, %vm1339
    %vm1341 = vmor %vm1337, %vm1340
    %vm1342 = vcmp.gt.f32.partialorder %v1331, 0.0
    %vm1343 = vmand %vm1341, %vm1342
    %v1344 = vsel %vm1343, %v63, %v1322
    %v1345 = vsel %vm1343, %v71, %v1323
    %v1346 = vsel %vm1343, %v1327, %v1324
    %v1347 = vsel %vm1343, %v1328, %v1325
    %v1348 = vsel %vm1343, %v1331, %v1326
    %v1349 = vsub.f32 %v65, %v1210
    %v1350 = vsub.f32 %v73, %v1211
    %v1351 = vmul.f32 %v1349, %v1349
    %v1352 = vmul.f32 %v1350, %v1350
    %v1353 = vadd.f32 %v1351, %v1352
    %v1354 = vmul.f32 %v1346, %v1350
    %v1355 = vmul.f32 %v1347, %v1349
    %v1356 = vsub.f32 %v1354, %v1355
    %vm1357 = vcmp.eq.f32.partialorder %v1348, 0.0
    %vm1358 = vcmp.lt.f32.partialorder %v1356, 0.0
    %vm1359 = vmor %vm1357, %vm1358
    %vm1360 = vcmp.eq.f32.partialorder %v1356, 0.0
    %vm1361 = vcmp.gt.f32.partialorder %v1353, %v1348
    %vm1362 = vmand %vm1360, %vm1361
    %vm1363 = vmor %vm1359, %vm1362
    %vm1364 = vcmp.gt.f32.partialorder %v1353, 0.0
    %vm1365 = vmand %vm1363, %vm1364
    %v1366 = vsel %vm1365, %v65, %v1344
    %v1367 = vsel %vm1365, %v73, %v1345
    %vm1368 = vcmp.eq.f32.partialorder %v1366, %v563
    %vm1369 = vcmp.eq.f32.partialorder %v1367, %v564
    %vm1370 = vmand %vm1368, %vm1369
    %vm1371 = vmor %vm1209, %vm1370
    %v1372 = vsel %vm1371, %v563, %v1366
    %v1373 = vsel %vm1371, %v564, %v1367
    %v1374 = vsub.f32 %v44, %v1372
    %v1375 = vsub.f32 %v52, %v1373
    %v1376 = vmul.f32 %v1374, %v1374
    %v1377 = vmul.f32 %v1375, %v1375
    %v1378 = vadd.f32 %v1376, %v1377
    %v1379 = vsub.f32 %v46, %v1372
    %v1380 = vsub.f32 %v54, %v1373
    %v1381 = vmul.f32 %v1379, %v1379
    %v1382 = vmul.f32 %v1380, %v1380
    %v1383 = vadd.f32 %v1381, %v1382
    %v1384 = vmul.f32 %v1374, %v1380
    %v1385 = vmul.f32 %v1375, %v1379
    %v1386 = vsub.f32 %v1384, %v1385
    %vm1387 = vcmp.eq.f32.partialorder %v1378, 0.0
    %vm1388 = vcmp.lt.f32.partialorder %v1386, 0.0
    %vm1389 = vmor %vm1387, %vm1388
    %vm1390 = vcmp.eq.f32.partialorder %v1386, 0.0
    %vm1391 = vcmp.gt.f32.partialorder %v1383, %v1378
    %vm1392 = vmand %vm1390, %vm1391
    %vm1393 = vmor %vm1389, %vm1392
    %vm1394 = vcmp.gt.f32.partialorder %v1383, 0.0
    %vm1395 = vmand %vm1393, %vm1394
    %v1396 = vsel %vm1395, %v46, %v44
    %v1397 = vsel %vm1395, %v54, %v52
    %v1398 = vsel %vm1395, %v1379, %v1374
    %v1399 = vsel %vm1395, %v1380, %v1375
    %v1400 = vsel %vm1395, %v1383, %v1378
    %v1401 = vsub.f32 %v48, %v1372
    %v1402 = vsub.f32 %v56, %v1373
    %v1403 = vmul.f32 %v1401, %v1401
    %v1404 = vmul.f32 %v1402, %v1402
    %v1405 = vadd.f32 %v1403, %v1404
    %v1406 = vmul.f32 %v1398, %v1402
    %v1407 = vmul.f32 %v1399, %v1401
    %v1408 = vsub.f32 %v1406, %v1407
    %vm1409 = vcmp.eq.f32.partialorder %v1400, 0.0
    %vm1410 = vcmp.lt.f32.partialorder %v1408, 0.0
    %vm1411 = vmor %vm1409, %vm1410
    %vm1412 = vcmp.eq.f32.partialorder %v1408, 0.0
    %vm1413 = vcmp.gt.f32.partialorder %v1405, %v1400
    %vm1414 = vmand %vm1412, %vm1413
    %vm1415 = vmor %vm1411, %vm1414
    %vm1416 = vcmp.gt.f32.partialorder %v1405, 0.0
    %vm1417 = vmand %vm1415, %vm1416
    %v1418 = vsel %vm1417, %v48, %v1396
    %v1419 = vsel %vm1417, %v56, %v1397
    %v1420 = vsel %vm1417, %v1401, %v1398
    %v1421 = vsel %vm1417, %v1402, %v1399
    %v1422 = vsel %vm1417, %v1405, %v1400
    %v1423 = vsub.f32 %v50, %v1372
    %v1424 = vsub.f32 %v58, %v1373
    %v1425 = vmul.f32 %v1423, %v1423
    %v1426 = vmul.f32 %v1424, %v1424
    %v1427 = vadd.f32 %v1425, %v1426
    %v1428 = vmul.f32 %v1420, %v1424
    %v1429 = vmul.f32 %v1421, %v1423
    %v1430 = vsub.f32 %v1428, %v1429
    %vm1431 = vcmp.eq.f32.partialorder %v1422, 0.0
    %vm1432 = vcmp.lt.f32.partialorder %v1430, 0.0
    %vm1433 = vmor %vm1431, %vm1432
    %vm1434 = vcmp.eq.f32.partialorder %v1430, 0.0
    %vm1435 = vcmp.gt.f32.partialorder %v1427, %v1422
    %vm1436 = vmand %vm1434, %vm1435
    %vm1437 = vmor %vm1433, %vm1436
    %vm1438 = vcmp.gt.f32.partialorder %v1427, 0.0
    %vm1439 = vmand %vm1437, %vm1438
    %v1440 = vsel %vm1439, %v50, %v1418
    %v1441 = vsel %vm1439, %v58, %v1419
    %v1442 = vsel %vm1439, %v1423, %v1420
    %v1443 = vsel %vm1439, %v1424, %v1421
    %v1444 = vsel %vm1439, %v1427, %v1422
    %v1445 = vsub.f32 %v59, %v1372
    %v1446 = vsub.f32 %v67, %v1373
    %v1447 = vmul.f32 %v1445, %v1445
    %v1448 = vmul.f32 %v1446, %v1446
    %v1449 = vadd.f32 %v1447, %v1448
    %v1450 = vmul.f32 %v1442, %v1446
    %v1451 = vmul.f32 %v1443, %v1445
    %v1452 = vsub.f32 %v1450, %v1451
    %vm1453 = vcmp.eq.f32.partialorder %v1444, 0.0
    %vm1454 = vcmp.lt.f32.partialorder %v1452, 0.0
    %vm1455 = vmor %vm1453, %vm1454
    %vm1456 = vcmp.eq.f32.partialorder %v1452, 0.0
    %vm1457 = vcmp.gt.f32.partialorder %v1449, %v1444
    %vm1458 = vmand %vm1456, %vm1457
    %vm1459 = vmor %vm1455, %vm1458
    %vm1460 = vcmp.gt.f32.partialorder %v1449, 0.0
    %vm1461 = vmand %vm1459, %vm1460
    %v1462 = vsel %vm1461, %v59, %v1440
    %v1463 = vsel %vm1461, %v67, %v1441
    %v1464 = vsel %vm1461, %v1445, %v1442
    %v1465 = vsel %vm1461, %v1446, %v1443
    %v1466 = vsel %vm1461, %v1449, %v1444
    %v1467 = vsub.f32 %v61, %v1372
    %v1468 = vsub.f32 %v69, %v1373
    %v1469 = vmul.f32 %v1467, %v1467
    %v1470 = vmul.f32 %v1468, %v1468
    %v1471 = vadd.f32 %v1469, %v1470
    %v1472 = vmul.f32 %v1464, %v1468
    %v1473 = vmul.f32 %v1465, %v1467
    %v1474 = vsub.f32 %v1472, %v1473
    %vm1475 = vcmp.eq.f32.partialorder %v1466, 0.0
    %vm1476 = vcmp.lt.f32.partialorder %v1474, 0.0
    %vm1477 = vmor %vm1475, %vm1476
    %vm1478 = vcmp.eq.f32.partialorder %v1474, 0.0
    %vm1479 = vcmp.gt.f32.partialorder %v1471, %v1466
    %vm1480 = vmand %vm1478, %vm1479
    %vm1481 = vmor %vm1477, %vm1480
    %vm1482 = vcmp.gt.f32.partialorder %v1471, 0.0
    %vm1483 = vmand %vm1481, %vm1482
    %v1484 = vsel %vm1483, %v61, %v1462
    %v1485 = vsel %vm1483, %v69, %v1463
    %v1486 = vsel %vm1483, %v1467, %v1464
    %v1487 = vsel %vm1483, %v1468, %v1465
    %v1488 = vsel %vm1483, %v1471, %v1466
    %v1489 = vsub.f32 %v63, %v1372
    %v1490 = vsub.f32 %v71, %v1373
    %v1491 = vmul.f32 %v1489, %v1489
    %v1492 = vmul.f32 %v1490, %v1490
    %v1493 = vadd.f32 %v1491, %v1492
    %v1494 = vmul.f32 %v1486, %v1490
    %v1495 = vmul.f32 %v1487, %v1489
    %v1496 = vsub.f32 %v1494, %v1495
    %vm1497 = vcmp.eq.f32.partialorder %v1488, 0.0
    %vm1498 = vcmp.lt.f32.partialorder %v1496, 0.0
    %vm1499 = vmor %vm1497, %vm1498
    %vm1500 = vcmp.eq.f32.partialorder %v1496, 0.0
    %vm1501 = vcmp.gt.f32.partialorder %v1493, %v1488
    %vm1502 = vmand %vm1500, %vm1501
    %vm1503 = vmor %vm1499, %vm1502
    %vm1504 = vcmp.gt.f32.partialorder %v1493, 0.0
    %vm1505 = vmand %vm1503, %vm1504
    %v1506 = vsel %vm1505, %v63, %v1484
    %v1507 = vsel %vm1505, %v71, %v1485
    %v1508 = vsel %vm1505, %v1489, %v1486
    %v1509 = vsel %vm1505, %v1490, %v1487
    %v1510 = vsel %vm1505, %v1493, %v1488
    %v1511 = vsub.f32 %v65, %v1372
    %v1512 = vsub.f32 %v73, %v1373
    %v1513 = vmul.f32 %v1511, %v1511
    %v1514 = vmul.f32 %v1512, %v1512
    %v1515 = vadd.f32 %v1513, %v1514
    %v1516 = vmul.f32 %v1508, %v1512
    %v1517 = vmul.f32 %v1509, %v1511
    %v1518 = vsub.f32 %v1516, %v1517
    %vm1519 = vcmp.eq.f32.partialorder %v1510, 0.0
    %vm1520 = vcmp.lt.f32.partialorder %v1518, 0.0
    %vm1521 = vmor %vm1519, %vm1520
    %vm1522 = vcmp.eq.f32.partialorder %v1518, 0.0
    %vm1523 = vcmp.gt.f32.partialorder %v1515, %v1510
    %vm1524 = vmand %vm1522, %vm1523
    %vm1525 = vmor %vm1521, %vm1524
    %vm1526 = vcmp.gt.f32.partialorder %v1515, 0.0
    %vm1527 = vmand %vm1525, %vm1526
    %v1528 = vsel %vm1527, %v65, %v1506
    %v1529 = vsel %vm1527, %v73, %v1507
    %vm1530 = vcmp.eq.f32.partialorder %v1528, %v563
    %vm1531 = vcmp.eq.f32.partialorder %v1529, %v564
    %vm1532 = vmand %vm1530, %vm1531
    %vm1533 = vmor %vm1371, %vm1532
    %v1534 = vsel %vm1533, %v563, %v1528
    %v1535 = vsel %vm1533, %v564, %v1529
    %v1536 = vsub.f32 %v44, %v1534
    %v1537 = vsub.f32 %v52, %v1535
    %v1538 = vmul.f32 %v1536, %v1536
    %v1539 = vmul.f32 %v1537, %v1537
    %v1540 = vadd.f32 %v1538, %v1539
    %v1541 = vsub.f32 %v46, %v1534
    %v1542 = vsub.f32 %v54, %v1535
    %v1543 = vmul.f32 %v1541, %v1541
    %v1544 = vmul.f32 %v1542, %v1542
    %v1545 = vadd.f32 %v1543, %v1544
    %v1546 = vmul.f32 %v1536, %v1542
    %v1547 = vmul.f32 %v1537, %v1541
    %v1548 = vsub.f32 %v1546, %v1547
    %vm1549 = vcmp.eq.f32.partialorder %v1540, 0.0
    %vm1550 = vcmp.lt.f32.partialorder %v1548, 0.0
    %vm1551 = vmor %vm1549, %vm1550
    %vm1552 = vcmp.eq.f32.partialorder %v1548, 0.0
    %vm1553 = vcmp.gt.f32.partialorder %v1545, %v1540
    %vm1554 = vmand %vm1552, %vm1553
    %vm1555 = vmor %vm1551, %vm1554
    %vm1556 = vcmp.gt.f32.partialorder %v1545, 0.0
    %vm1557 = vmand %vm1555, %vm1556
    %v1558 = vsel %vm1557, %v46, %v44
    %v1559 = vsel %vm1557, %v54, %v52
    %v1560 = vsel %vm1557, %v1541, %v1536
    %v1561 = vsel %vm1557, %v1542, %v1537
    %v1562 = vsel %vm1557, %v1545, %v1540
    %v1563 = vsub.f32 %v48, %v1534
    %v1564 = vsub.f32 %v56, %v1535
    %v1565 = vmul.f32 %v1563, %v1563
    %v1566 = vmul.f32 %v1564, %v1564
    %v1567 = vadd.f32 %v1565, %v1566
    %v1568 = vmul.f32 %v1560, %v1564
    %v1569 = vmul.f32 %v1561, %v1563
    %v1570 = vsub.f32 %v1568, %v1569
    %vm1571 = vcmp.eq.f32.partialorder %v1562, 0.0
    %vm1572 = vcmp.lt.f32.partialorder %v1570, 0.0
    %vm1573 = vmor %vm1571, %vm1572
    %vm1574 = vcmp.eq.f32.partialorder %v1570, 0.0
    %vm1575 = vcmp.gt.f32.partialorder %v1567, %v1562
    %vm1576 = vmand %vm1574, %vm1575
    %vm1577 = vmor %vm1573, %vm1576
    %vm1578 = vcmp.gt.f32.partialorder %v1567, 0.0
    %vm1579 = vmand %vm1577, %vm1578
    %v1580 = vsel %vm1579, %v48, %v1558
    %v1581 = vsel %vm1579, %v56, %v1559
    %v1582 = vsel %vm1579, %v1563, %v1560
    %v1583 = vsel %vm1579, %v1564, %v1561
    %v1584 = vsel %vm1579, %v1567, %v1562
    %v1585 = vsub.f32 %v50, %v1534
    %v1586 = vsub.f32 %v58, %v1535
    %v1587 = vmul.f32 %v1585, %v1585
    %v1588 = vmul.f32 %v1586, %v1586
    %v1589 = vadd.f32 %v1587, %v1588
    %v1590 = vmul.f32 %v1582, %v1586
    %v1591 = vmul.f32 %v1583, %v1585
    %v1592 = vsub.f32 %v1590, %v1591
    %vm1593 = vcmp.eq.f32.partialorder %v1584, 0.0
    %vm1594 = vcmp.lt.f32.partialorder %v1592, 0.0
    %vm1595 = vmor %vm1593, %vm1594
    %vm1596 = vcmp.eq.f32.partialorder %v1592, 0.0
    %vm1597 = vcmp.gt.f32.partialorder %v1589, %v1584
    %vm1598 = vmand %vm1596, %vm1597
    %vm1599 = vmor %vm1595, %vm1598
    %vm1600 = vcmp.gt.f32.partialorder %v1589, 0.0
    %vm1601 = vmand %vm1599, %vm1600
    %v1602 = vsel %vm1601, %v50, %v1580
    %v1603 = vsel %vm1601, %v58, %v1581
    %v1604 = vsel %vm1601, %v1585, %v1582
    %v1605 = vsel %vm1601, %v1586, %v1583
    %v1606 = vsel %vm1601, %v1589, %v1584
    %v1607 = vsub.f32 %v59, %v1534
    %v1608 = vsub.f32 %v67, %v1535
    %v1609 = vmul.f32 %v1607, %v1607
    %v1610 = vmul.f32 %v1608, %v1608
    %v1611 = vadd.f32 %v1609, %v1610
    %v1612 = vmul.f32 %v1604, %v1608
    %v1613 = vmul.f32 %v1605, %v1607
    %v1614 = vsub.f32 %v1612, %v1613
    %vm1615 = vcmp.eq.f32.partialorder %v1606, 0.0
    %vm1616 = vcmp.lt.f32.partialorder %v1614, 0.0
    %vm1617 = vmor %vm1615, %vm1616
    %vm1618 = vcmp.eq.f32.partialorder %v1614, 0.0
    %vm1619 = vcmp.gt.f32.partialorder %v1611, %v1606
    %vm1620 = vmand %vm1618, %vm1619
    %vm1621 = vmor %vm1617, %vm1620
    %vm1622 = vcmp.gt.f32.partialorder %v1611, 0.0
    %vm1623 = vmand %vm1621, %vm1622
    %v1624 = vsel %vm1623, %v59, %v1602
    %v1625 = vsel %vm1623, %v67, %v1603
    %v1626 = vsel %vm1623, %v1607, %v1604
    %v1627 = vsel %vm1623, %v1608, %v1605
    %v1628 = vsel %vm1623, %v1611, %v1606
    %v1629 = vsub.f32 %v61, %v1534
    %v1630 = vsub.f32 %v69, %v1535
    %v1631 = vmul.f32 %v1629, %v1629
    %v1632 = vmul.f32 %v1630, %v1630
    %v1633 = vadd.f32 %v1631, %v1632
    %v1634 = vmul.f32 %v1626, %v1630
    %v1635 = vmul.f32 %v1627, %v1629
    %v1636 = vsub.f32 %v1634, %v1635
    %vm1637 = vcmp.eq.f32.partialorder %v1628, 0.0
    %vm1638 = vcmp.lt.f32.partialorder %v1636, 0.0
    %vm1639 = vmor %vm1637, %vm1638
    %vm1640 = vcmp.eq.f32.partialorder %v1636, 0.0
    %vm1641 = vcmp.gt.f32.partialorder %v1633, %v1628
    %vm1642 = vmand %vm1640, %vm1641
    %vm1643 = vmor %vm1639, %vm1642
    %vm1644 = vcmp.gt.f32.partialorder %v1633, 0.0
    %vm1645 = vmand %vm1643, %vm1644
    %v1646 = vsel %vm1645, %v61, %v1624
    %v1647 = vsel %vm1645, %v69, %v1625
    %v1648 = vsel %vm1645, %v1629, %v1626
    %v1649 = vsel %vm1645, %v1630, %v1627
    %v1650 = vsel %vm1645, %v1633, %v1628
    %v1651 = vsub.f32 %v63, %v1534
    %v1652 = vsub.f32 %v71, %v1535
    %v1653 = vmul.f32 %v1651, %v1651
    %v1654 = vmul.f32 %v1652, %v1652
    %v1655 = vadd.f32 %v1653, %v1654
    %v1656 = vmul.f32 %v1648, %v1652
    %v1657 = vmul.f32 %v1649, %v1651
    %v1658 = vsub.f32 %v1656, %v1657
    %vm1659 = vcmp.eq.f32.partialorder %v1650, 0.0
    %vm1660 = vcmp.lt.f32.partialorder %v1658, 0.0
    %vm1661 = vmor %vm1659, %vm1660
    %vm1662 = vcmp.eq.f32.partialorder %v1658, 0.0
    %vm1663 = vcmp.gt.f32.partialorder %v1655, %v1650
    %vm1664 = vmand %vm1662, %vm1663
    %vm1665 = vmor %vm1661, %vm1664
    %vm1666 = vcmp.gt.f32.partialorder %v1655, 0.0
    %vm1667 = vmand %vm1665, %vm1666
    %v1668 = vsel %vm1667, %v63, %v1646
    %v1669 = vsel %vm1667, %v71, %v1647
    %v1670 = vsel %vm1667, %v1651, %v1648
    %v1671 = vsel %vm1667, %v1652, %v1649
    %v1672 = vsel %vm1667, %v1655, %v1650
    %v1673 = vsub.f32 %v65, %v1534
    %v1674 = vsub.f32 %v73, %v1535
    %v1675 = vmul.f32 %v1673, %v1673
    %v1676 = vmul.f32 %v1674, %v1674
    %v1677 = vadd.f32 %v1675, %v1676
    %v1678 = vmul.f32 %v1670, %v1674
    %v1679 = vmul.f32 %v1671, %v1673
    %v1680 = vsub.f32 %v1678, %v1679
    %vm1681 = vcmp.eq.f32.partialorder %v1672, 0.0
    %vm1682 = vcmp.lt.f32.partialorder %v1680, 0.0
    %vm1683 = vmor %vm1681, %vm1682
    %vm1684 = vcmp.eq.f32.partialorder %v1680, 0.0
    %vm1685 = vcmp.gt.f32.partialorder %v1677, %v1672
    %vm1686 = vmand %vm1684, %vm1685
    %vm1687 = vmor %vm1683, %vm1686
    %vm1688 = vcmp.gt.f32.partialorder %v1677, 0.0
    %vm1689 = vmand %vm1687, %vm1688
    %v1690 = vsel %vm1689, %v65, %v1668
    %v1691 = vsel %vm1689, %v73, %v1669
    %vm1692 = vcmp.eq.f32.partialorder %v1690, %v563
    %vm1693 = vcmp.eq.f32.partialorder %v1691, %v564
    %vm1694 = vmand %vm1692, %vm1693
    %vm1695 = vmor %vm1533, %vm1694
    %v1696 = vsel %vm1695, %v563, %v1690
    %v1697 = vsel %vm1695, %v564, %v1691
    %v1698 = vmul.f32 %v563, %v725
    %v1699 = vadd.f32 %v1698, 0.0
    %v1700 = vmul.f32 %v724, %v564
    %v1701 = vsub.f32 %v1699, %v1700
    %v1702 = vmul.f32 %v724, %v887
    %v1703 = vadd.f32 %v1701, %v1702
    %v1704 = vmul.f32 %v886, %v725
    %v1705 = vsub.f32 %v1703, %v1704
    %v1706 = vmul.f32 %v886, %v1049
    %v1707 = vadd.f32 %v1705, %v1706
    %v1708 = vmul.f32 %v1048, %v887
    %v1709 = vsub.f32 %v1707, %v1708
    %v1710 = vmul.f32 %v1048, %v1211
    %v1711 = vadd.f32 %v1709, %v1710
    %v1712 = vmul.f32 %v1210, %v1049
    %v1713 = vsub.f32 %v1711, %v1712
    %v1714 = vmul.f32 %v1210, %v1373
    %v1715 = vadd.f32 %v1713, %v1714
    %v1716 = vmul.f32 %v1372, %v1211
    %v1717 = vsub.f32 %v1715, %v1716
    %v1718 = vmul.f32 %v1372, %v1535
    %v1719 = vadd.f32 %v1717, %v1718
    %v1720 = vmul.f32 %v1534, %v1373
    %v1721 = vsub.f32 %v1719, %v1720
    %v1722 = vmul.f32 %v1534, %v1697
    %v1723 = vadd.f32 %v1721, %v1722
    %v1724 = vmul.f32 %v1696, %v1535
    %v1725 = vsub.f32 %v1723, %v1724
    %v1726 = vmul.f32 %v1696, %v564
    %v1727 = vadd.f32 %v1725, %v1726
    %v1728 = vmul.f32 %v563, %v1697
    %v1729 = vsub.f32 %v1727, %v1728
    %v1730 = vand.u32 2147483647, %v1729
    %v1731 = vmul.f32 %v1730, 0.5
    %v1732 = vsub.f32 %v166, %v93
    %v1733 = vsub.f32 %v167, %v94
    %v1734 = vsub.f32 0.0, %v1733
    %v1735 = vmul.f32 %v1734, %v93
    %v1736 = vmul.f32 %v1732, %v94
    %v1737 = vadd.f32 %v1735, %v1736
    %v1738 = vsub.f32 %v240, %v166
    %v1739 = vsub.f32 %v241, %v167
    %v1740 = vsub.f32 0.0, %v1739
    %v1741 = vmul.f32 %v1740, %v166
    %v1742 = vmul.f32 %v1738, %v167
    %v1743 = vadd.f32 %v1741, %v1742
    %v1744 = vsub.f32 %v314, %v240
    %v1745 = vsub.f32 %v315, %v241
    %v1746 = vsub.f32 0.0, %v1745
    %v1747 = vmul.f32 %v1746, %v240
    %v1748 = vmul.f32 %v1744, %v241
    %v1749 = vadd.f32 %v1747, %v1748
    %v1750 = vsub.f32 %v93, %v314
    %v1751 = vsub.f32 %v94, %v315
    %v1752 = vsub.f32 0.0, %v1751
    %v1753 = vmul.f32 %v1752, %v314
    %v1754 = vmul.f32 %v1750, %v315
    %v1755 = vadd.f32 %v1753, %v1754
    %v1756 = vsub.f32 %v408, %v335
    %v1757 = vsub.f32 %v409, %v336
    %v1758 = vsub.f32 0.0, %v1757
    %v1759 = vmul.f32 %v1758, %v335
    %v1760 = vmul.f32 %v1756, %v336
    %v1761 = vadd.f32 %v1759, %v1760
    %v1762 = vsub.f32 %v482, %v408
    %v1763 = vsub.f32 %v483, %v409
    %v1764 = vsub.f32 0.0, %v1763
    %v1765 = vmul.f32 %v1764, %v408
    %v1766 = vmul.f32 %v1762, %v409
    %v1767 = vadd.f32 %v1765, %v1766
    %v1768 = vsub.f32 %v556, %v482
    %v1769 = vsub.f32 %v557, %v483
    %v1770 = vsub.f32 0.0, %v1769
    %v1771 = vmul.f32 %v1770, %v482
    %v1772 = vmul.f32 %v1768, %v483
    %v1773 = vadd.f32 %v1771, %v1772
    %v1774 = vsub.f32 %v335, %v556
    %v1775 = vsub.f32 %v336, %v557
    %v1776 = vsub.f32 0.0, %v1775
    %v1777 = vmul.f32 %v1776, %v556
    %v1778 = vmul.f32 %v1774, %v557
    %v1779 = vadd.f32 %v1777, %v1778
    %v1780 = vmul.f32 %v1732, %v1732
    %v1781 = vmul.f32 %v1733, %v1733
    %v1782 = vadd.f32 %v1780, %v1781
    %vm1783 = vcmp.gt.f32.partialorder %v1782, 0.0
    %v1784 = vmul.f32 %v1758, %v1732
    %v1785 = vmul.f32 %v1756, %v1733
    %v1786 = vadd.f32 %v1784, %v1785
    %v1787 = vmul.f32 %v1758, %v93
    %v1788 = vmul.f32 %v1756, %v94
    %v1789 = vadd.f32 %v1787, %v1788
    %v1790 = vsub.f32 %v1761, %v1789
    %vm1791 = vcmp.eq.f32.partialorder %v1786, 0.0
    %v1792 = vsel %vm1791, 1.0, %v1786
    %v1793 = vrcp.pop %v1792
    %v1794 = vmul.f32 %v1792, %v1793
    %v1795 = vsub.f32 1.0, %v1794
    %v1796 = vmul.f32 %v1793, %v1795
    %v1797 = vadd.f32 %v1793, %v1796
    %vm1798 = vweird.f32 %v1792
    %vm1799 = vweird.f32 %v1793
    %vm1800 = vmor %vm1798, %vm1799
    %v1801 = vsel %vm1800, %v1793, %v1797
    %v1802 = vand.u32 2147483647, %v1792
    %vm1803 = vcmp.eq.f32.partialorder %v1802, 8.507059e+37
    %v1804 = vand.u32 %v1792, 2147483648
    %v1805 = vor.u32 1.1754944e-38, %v1804
    %v1806 = vsel %vm1803, %v1805, %v1801
    %v1807 = vmul.f32 %v1790, %v1806
    %vm1808 = vcmp.gt.f32.partialorder %v1786, 0.0
    %v1809 = vmax.f32 %v1807, 0.0
    %v1810 = vsel %vm1808, %v1809, 0.0
    %vm1811 = vcmp.lt.f32.partialorder %v1786, 0.0
    %v1812 = vmin.f32 %v1807, 1.0
    %v1813 = vsel %vm1811, %v1812, 1.0
    %vm1814 = vcmp.gt.f32.partialorder %v1790, 0.0
    %vm1815 = vmand %vm1791, %vm1814
    %vm1816 = vmxor %vm1815, 1
    %vm1817 = vmand %vm1783, %vm1816
    %v1818 = vmul.f32 %v1764, %v1732
    %v1819 = vmul.f32 %v1762, %v1733
    %v1820 = vadd.f32 %v1818, %v1819
    %v1821 = vmul.f32 %v1764, %v93
    %v1822 = vmul.f32 %v1762, %v94
    %v1823 = vadd.f32 %v1821, %v1822
    %v1824 = vsub.f32 %v1767, %v1823
    %vm1825 = vcmp.eq.f32.partialorder %v1820, 0.0
    %v1826 = vsel %vm1825, 1.0, %v1820
    %v1827 = vrcp.pop %v1826
    %v1828 = vmul.f32 %v1826, %v1827
    %v1829 = vsub.f32 1.0, %v1828
    %v1830 = vmul.f32 %v1827, %v1829
    %v1831 = vadd.f32 %v1827, %v1830
    %vm1832 = vweird.f32 %v1826
    %vm1833 = vweird.f32 %v1827
    %vm1834 = vmor %vm1832, %vm1833
    %v1835 = vsel %vm1834, %v1827, %v1831
    %v1836 = vand.u32 2147483647, %v1826
    %vm1837 = vcmp.eq.f32.partialorder %v1836, 8.507059e+37
    %v1838 = vand.u32 %v1826, 2147483648
    %v1839 = vor.u32 1.1754944e-38, %v1838
    %v1840 = vsel %vm1837, %v1839, %v1835
    %v1841 = vmul.f32 %v1824, %v1840
    %vm1842 = vcmp.gt.f32.partialorder %v1820, 0.0
    %v1843 = vmax.f32 %v1810, %v1841
    %v1844 = vsel %vm1842, %v1843, %v1810
    %vm1845 = vcmp.lt.f32.partialorder %v1820, 0.0
    %v1846 = vmin.f32 %v1813, %v1841
    %v1847 = vsel %vm1845, %v1846, %v1813
    %vm1848 = vcmp.gt.f32.partialorder %v1824, 0.0
    %vm1849 = vmand %vm1825, %vm1848
    %vm1850 = vmxor %vm1849, 1
    %vm1851 = vmand %vm1817, %vm1850
    %v1852 = vmul.f32 %v1770, %v1732
    %v1853 = vmul.f32 %v1768, %v1733
    %v1854 = vadd.f32 %v1852, %v1853
    %v1855 = vmul.f32 %v1770, %v93
    %v1856 = vmul.f32 %v1768, %v94
    %v1857 = vadd.f32 %v1855, %v1856
    %v1858 = vsub.f32 %v1773, %v1857
    %vm1859 = vcmp.eq.f32.partialorder %v1854, 0.0
    %v1860 = vsel %vm1859, 1.0, %v1854
    %v1861 = vrcp.pop %v1860
    %v1862 = vmul.f32 %v1860, %v1861
    %v1863 = vsub.f32 1.0, %v1862
    %v1864 = vmul.f32 %v1861, %v1863
    %v1865 = vadd.f32 %v1861, %v1864
    %vm1866 = vweird.f32 %v1860
    %vm1867 = vweird.f32 %v1861
    %vm1868 = vmor %vm1866, %vm1867
    %v1869 = vsel %vm1868, %v1861, %v1865
    %v1870 = vand.u32 2147483647, %v1860
    %vm1871 = vcmp.eq.f32.partialorder %v1870, 8.507059e+37
    %v1872 = vand.u32 %v1860, 2147483648
    %v1873 = vor.u32 1.1754944e-38, %v1872
    %v1874 = vsel %vm1871, %v1873, %v1869
    %v1875 = vmul.f32 %v1858, %v1874
    %vm1876 = vcmp.gt.f32.partialorder %v1854, 0.0
    %v1877 = vmax.f32 %v1844, %v1875
    %v1878 = vsel %vm1876, %v1877, %v1844
    %vm1879 = vcmp.lt.f32.partialorder %v1854, 0.0
    %v1880 = vmin.f32 %v1847, %v1875
    %v1881 = vsel %vm1879, %v1880, %v1847
    %vm1882 = vcmp.gt.f32.partialorder %v1858, 0.0
    %vm1883 = vmand %vm1859, %vm1882
    %vm1884 = vmxor %vm1883, 1
    %vm1885 = vmand %vm1851, %vm1884
    %v1886 = vmul.f32 %v1776, %v1732
    %v1887 = vmul.f32 %v1774, %v1733
    %v1888 = vadd.f32 %v1886, %v1887
    %v1889 = vmul.f32 %v1776, %v93
    %v1890 = vmul.f32 %v1774, %v94
    %v1891 = vadd.f32 %v1889, %v1890
    %v1892 = vsub.f32 %v1779, %v1891
    %vm1893 = vcmp.eq.f32.partialorder %v1888, 0.0
    %v1894 = vsel %vm1893, 1.0, %v1888
    %v1895 = vrcp.pop %v1894
    %v1896 = vmul.f32 %v1894, %v1895
    %v1897 = vsub.f32 1.0, %v1896
    %v1898 = vmul.f32 %v1895, %v1897
    %v1899 = vadd.f32 %v1895, %v1898
    %vm1900 = vweird.f32 %v1894
    %vm1901 = vweird.f32 %v1895
    %vm1902 = vmor %vm1900, %vm1901
    %v1903 = vsel %vm1902, %v1895, %v1899
    %v1904 = vand.u32 2147483647, %v1894
    %vm1905 = vcmp.eq.f32.partialorder %v1904, 8.507059e+37
    %v1906 = vand.u32 %v1894, 2147483648
    %v1907 = vor.u32 1.1754944e-38, %v1906
    %v1908 = vsel %vm1905, %v1907, %v1903
    %v1909 = vmul.f32 %v1892, %v1908
    %vm1910 = vcmp.gt.f32.partialorder %v1888, 0.0
    %v1911 = vmax.f32 %v1878, %v1909
    %v1912 = vsel %vm1910, %v1911, %v1878
    %vm1913 = vcmp.lt.f32.partialorder %v1888, 0.0
    %v1914 = vmin.f32 %v1881, %v1909
    %v1915 = vsel %vm1913, %v1914, %v1881
    %vm1916 = vcmp.gt.f32.partialorder %v1892, 0.0
    %vm1917 = vmand %vm1893, %vm1916
    %vm1918 = vmxor %vm1917, 1
    %vm1919 = vmand %vm1885, %vm1918
    %vm1920 = vcmp.le.f32.partialorder %v1912, %v1915
    %vm1921 = vmand %vm1919, %vm1920
    %v1922 = vmul.f32 %v1912, %v1732
    %v1923 = vadd.f32 %v93, %v1922
    %v1924 = vmul.f32 %v1912, %v1733
    %v1925 = vadd.f32 %v94, %v1924
    %v1926 = vmul.f32 %v1915, %v1732
    %v1927 = vadd.f32 %v93, %v1926
    %v1928 = vmul.f32 %v1915, %v1733
    %v1929 = vadd.f32 %v94, %v1928
    %v1930 = vmul.f32 %v1923, %v1929
    %v1931 = vmul.f32 %v1925, %v1927
    %v1932 = vsub.f32 %v1930, %v1931
    %v1933 = vmul.f32 %v1932, 0.5
    %v1934 = vsel %vm1921, %v1933, 0.0
    %v1935 = vadd.f32 %v1934, 0.0
    %v1936 = vmul.f32 %v1756, %v1756
    %v1937 = vmul.f32 %v1757, %v1757
    %v1938 = vadd.f32 %v1936, %v1937
    %vm1939 = vcmp.gt.f32.partialorder %v1938, 0.0
    %v1940 = vmul.f32 %v1734, %v1756
    %v1941 = vmul.f32 %v1732, %v1757
    %v1942 = vadd.f32 %v1940, %v1941
    %v1943 = vmul.f32 %v1734, %v335
    %v1944 = vmul.f32 %v1732, %v336
    %v1945 = vadd.f32 %v1943, %v1944
    %v1946 = vsub.f32 %v1737, %v1945
    %vm1947 = vcmp.eq.f32.partialorder %v1942, 0.0
    %v1948 = vsel %vm1947, 1.0, %v1942
    %v1949 = vrcp.pop %v1948
    %v1950 = vmul.f32 %v1948, %v1949
    %v1951 = vsub.f32 1.0, %v1950
    %v1952 = vmul.f32 %v1949, %v1951
    %v1953 = vadd.f32 %v1949, %v1952
    %vm1954 = vweird.f32 %v1948
    %vm1955 = vweird.f32 %v1949
    %vm1956 = vmor %vm1954, %vm1955
    %v1957 = vsel %vm1956, %v1949, %v1953
    %v1958 = vand.u32 2147483647, %v1948
    %vm1959 = vcmp.eq.f32.partialorder %v1958, 8.507059e+37
    %v1960 = vand.u32 %v1948, 2147483648
    %v1961 = vor.u32 1.1754944e-38, %v1960
    %v1962 = vsel %vm1959, %v1961, %v1957
    %v1963 = vmul.f32 %v1946, %v1962
    %vm1964 = vcmp.gt.f32.partialorder %v1942, 0.0
    %v1965 = vmax.f32 %v1963, 0.0
    %v1966 = vsel %vm1964, %v1965, 0.0
    %vm1967 = vcmp.lt.f32.partialorder %v1942, 0.0
    %v1968 = vmin.f32 %v1963, 1.0
    %v1969 = vsel %vm1967, %v1968, 1.0
    %vm1970 = vcmp.gt.f32.partialorder %v1946, 0.0
    %vm1971 = vmand %vm1947, %vm1970
    %v1972 = vmul.f32 %v1732, %v1756
    %v1973 = vmul.f32 %v1734, %v1757
    %v1974 = vsub.f32 %v1972, %v1973
    %vm1975 = vcmp.gt.f32.partialorder %v1974, 0.0
    %vm1976 = vcmp.eq.f32.partialorder %v1946, 0.0
    %vm1977 = vmand %vm1947, %vm1976
    %vm1978 = vmand %vm1977, %vm1975
    %vm1979 = vmor %vm1971, %vm1978
    %vm1980 = vmxor %vm1979, 1
    %vm1981 = vmand %vm1939, %vm1980
    %v1982 = vmul.f32 %v1740, %v1756
    %v1983 = vmul.f32 %v1738, %v1757
    %v1984 = vadd.f32 %v1982, %v1983
    %v1985 = vmul.f32 %v1740, %v335
    %v1986 = vmul.f32 %v1738, %v336
    %v1987 = vadd.f32 %v1985, %v1986
    %v1988 = vsub.f32 %v1743, %v1987
    %vm1989 = vcmp.eq.f32.partialorder %v1984, 0.0
    %v1990 = vsel %vm1989, 1.0, %v1984
    %v1991 = vrcp.pop %v1990
    %v1992 = vmul.f32 %v1990, %v1991
    %v1993 = vsub.f32 1.0, %v1992
    %v1994 = vmul.f32 %v1991, %v1993
    %v1995 = vadd.f32 %v1991, %v1994
    %vm1996 = vweird.f32 %v1990
    %vm1997 = vweird.f32 %v1991
    %vm1998 = vmor %vm1996, %vm1997
    %v1999 = vsel %vm1998, %v1991, %v1995
    %v2000 = vand.u32 2147483647, %v1990
    %vm2001 = vcmp.eq.f32.partialorder %v2000, 8.507059e+37
    %v2002 = vand.u32 %v1990, 2147483648
    %v2003 = vor.u32 1.1754944e-38, %v2002
    %v2004 = vsel %vm2001, %v2003, %v1999
    %v2005 = vmul.f32 %v1988, %v2004
    %vm2006 = vcmp.gt.f32.partialorder %v1984, 0.0
    %v2007 = vmax.f32 %v1966, %v2005
    %v2008 = vsel %vm2006, %v2007, %v1966
    %vm2009 = vcmp.lt.f32.partialorder %v1984, 0.0
    %v2010 = vmin.f32 %v1969, %v2005
    %v2011 = vsel %vm2009, %v2010, %v1969
    %vm2012 = vcmp.gt.f32.partialorder %v1988, 0.0
    %vm2013 = vmand %vm1989, %vm2012
    %v2014 = vmul.f32 %v1738, %v1756
    %v2015 = vmul.f32 %v1740, %v1757
    %v2016 = vsub.f32 %v2014, %v2015
    %vm2017 = vcmp.gt.f32.partialorder %v2016, 0.0
    %vm2018 = vcmp.eq.f32.partialorder %v1988, 0.0
    %vm2019 = vmand %vm1989, %vm2018
    %vm2020 = vmand %vm2019, %vm2017
    %vm2021 = vmor %vm2013, %vm2020
    %vm2022 = vmxor %vm2021, 1
    %vm2023 = vmand %vm1981, %vm2022
    %v2024 = vmul.f32 %v1746, %v1756
    %v2025 = vmul.f32 %v1744, %v1757
    %v2026 = vadd.f32 %v2024, %v2025
    %v2027 = vmul.f32 %v1746, %v335
    %v2028 = vmul.f32 %v1744, %v336
    %v2029 = vadd.f32 %v2027, %v2028
    %v2030 = vsub.f32 %v1749, %v2029
    %vm2031 = vcmp.eq.f32.partialorder %v2026, 0.0
    %v2032 = vsel %vm2031, 1.0, %v2026
    %v2033 = vrcp.pop %v2032
    %v2034 = vmul.f32 %v2032, %v2033
    %v2035 = vsub.f32 1.0, %v2034
    %v2036 = vmul.f32 %v2033, %v2035
    %v2037 = vadd.f32 %v2033, %v2036
    %vm2038 = vweird.f32 %v2032
    %vm2039 = vweird.f32 %v2033
    %vm2040 = vmor %vm2038, %vm2039
    %v2041 = vsel %vm2040, %v2033, %v2037
    %v2042 = vand.u32 2147483647, %v2032
    %vm2043 = vcmp.eq.f32.partialorder %v2042, 8.507059e+37
    %v2044 = vand.u32 %v2032, 2147483648
    %v2045 = vor.u32 1.1754944e-38, %v2044
    %v2046 = vsel %vm2043, %v2045, %v2041
    %v2047 = vmul.f32 %v2030, %v2046
    %vm2048 = vcmp.gt.f32.partialorder %v2026, 0.0
    %v2049 = vmax.f32 %v2008, %v2047
    %v2050 = vsel %vm2048, %v2049, %v2008
    %vm2051 = vcmp.lt.f32.partialorder %v2026, 0.0
    %v2052 = vmin.f32 %v2011, %v2047
    %v2053 = vsel %vm2051, %v2052, %v2011
    %vm2054 = vcmp.gt.f32.partialorder %v2030, 0.0
    %vm2055 = vmand %vm2031, %vm2054
    %v2056 = vmul.f32 %v1744, %v1756
    %v2057 = vmul.f32 %v1746, %v1757
    %v2058 = vsub.f32 %v2056, %v2057
    %vm2059 = vcmp.gt.f32.partialorder %v2058, 0.0
    %vm2060 = vcmp.eq.f32.partialorder %v2030, 0.0
    %vm2061 = vmand %vm2031, %vm2060
    %vm2062 = vmand %vm2061, %vm2059
    %vm2063 = vmor %vm2055, %vm2062
    %vm2064 = vmxor %vm2063, 1
    %vm2065 = vmand %vm2023, %vm2064
    %v2066 = vmul.f32 %v1752, %v1756
    %v2067 = vmul.f32 %v1750, %v1757
    %v2068 = vadd.f32 %v2066, %v2067
    %v2069 = vmul.f32 %v1752, %v335
    %v2070 = vmul.f32 %v1750, %v336
    %v2071 = vadd.f32 %v2069, %v2070
    %v2072 = vsub.f32 %v1755, %v2071
    %vm2073 = vcmp.eq.f32.partialorder %v2068, 0.0
    %v2074 = vsel %vm2073, 1.0, %v2068
    %v2075 = vrcp.pop %v2074
    %v2076 = vmul.f32 %v2074, %v2075
    %v2077 = vsub.f32 1.0, %v2076
    %v2078 = vmul.f32 %v2075, %v2077
    %v2079 = vadd.f32 %v2075, %v2078
    %vm2080 = vweird.f32 %v2074
    %vm2081 = vweird.f32 %v2075
    %vm2082 = vmor %vm2080, %vm2081
    %v2083 = vsel %vm2082, %v2075, %v2079
    %v2084 = vand.u32 2147483647, %v2074
    %vm2085 = vcmp.eq.f32.partialorder %v2084, 8.507059e+37
    %v2086 = vand.u32 %v2074, 2147483648
    %v2087 = vor.u32 1.1754944e-38, %v2086
    %v2088 = vsel %vm2085, %v2087, %v2083
    %v2089 = vmul.f32 %v2072, %v2088
    %vm2090 = vcmp.gt.f32.partialorder %v2068, 0.0
    %v2091 = vmax.f32 %v2050, %v2089
    %v2092 = vsel %vm2090, %v2091, %v2050
    %vm2093 = vcmp.lt.f32.partialorder %v2068, 0.0
    %v2094 = vmin.f32 %v2053, %v2089
    %v2095 = vsel %vm2093, %v2094, %v2053
    %vm2096 = vcmp.gt.f32.partialorder %v2072, 0.0
    %vm2097 = vmand %vm2073, %vm2096
    %v2098 = vmul.f32 %v1750, %v1756
    %v2099 = vmul.f32 %v1752, %v1757
    %v2100 = vsub.f32 %v2098, %v2099
    %vm2101 = vcmp.gt.f32.partialorder %v2100, 0.0
    %vm2102 = vcmp.eq.f32.partialorder %v2072, 0.0
    %vm2103 = vmand %vm2073, %vm2102
    %vm2104 = vmand %vm2103, %vm2101
    %vm2105 = vmor %vm2097, %vm2104
    %vm2106 = vmxor %vm2105, 1
    %vm2107 = vmand %vm2065, %vm2106
    %vm2108 = vcmp.le.f32.partialorder %v2092, %v2095
    %vm2109 = vmand %vm2107, %vm2108
    %v2110 = vmul.f32 %v2092, %v1756
    %v2111 = vadd.f32 %v335, %v2110
    %v2112 = vmul.f32 %v2092, %v1757
    %v2113 = vadd.f32 %v336, %v2112
    %v2114 = vmul.f32 %v2095, %v1756
    %v2115 = vadd.f32 %v335, %v2114
    %v2116 = vmul.f32 %v2095, %v1757
    %v2117 = vadd.f32 %v336, %v2116
    %v2118 = vmul.f32 %v2111, %v2117
    %v2119 = vmul.f32 %v2113, %v2115
    %v2120 = vsub.f32 %v2118, %v2119
    %v2121 = vmul.f32 %v2120, 0.5
    %v2122 = vsel %vm2109, %v2121, 0.0
    %v2123 = vadd.f32 %v1935, %v2122
    %v2124 = vmul.f32 %v1738, %v1738
    %v2125 = vmul.f32 %v1739, %v1739
    %v2126 = vadd.f32 %v2124, %v2125
    %vm2127 = vcmp.gt.f32.partialorder %v2126, 0.0
    %v2128 = vmul.f32 %v1758, %v1738
    %v2129 = vmul.f32 %v1756, %v1739
    %v2130 = vadd.f32 %v2128, %v2129
    %v2131 = vmul.f32 %v1758, %v166
    %v2132 = vmul.f32 %v1756, %v167
    %v2133 = vadd.f32 %v2131, %v2132
    %v2134 = vsub.f32 %v1761, %v2133
    %vm2135 = vcmp.eq.f32.partialorder %v2130, 0.0
    %v2136 = vsel %vm2135, 1.0, %v2130
    %v2137 = vrcp.pop %v2136
    %v2138 = vmul.f32 %v2136, %v2137
    %v2139 = vsub.f32 1.0, %v2138
    %v2140 = vmul.f32 %v2137, %v2139
    %v2141 = vadd.f32 %v2137, %v2140
    %vm2142 = vweird.f32 %v2136
    %vm2143 = vweird.f32 %v2137
    %vm2144 = vmor %vm2142, %vm2143
    %v2145 = vsel %vm2144, %v2137, %v2141
    %v2146 = vand.u32 2147483647, %v2136
    %vm2147 = vcmp.eq.f32.partialorder %v2146, 8.507059e+37
    %v2148 = vand.u32 %v2136, 2147483648
    %v2149 = vor.u32 1.1754944e-38, %v2148
    %v2150 = vsel %vm2147, %v2149, %v2145
    %v2151 = vmul.f32 %v2134, %v2150
    %vm2152 = vcmp.gt.f32.partialorder %v2130, 0.0
    %v2153 = vmax.f32 %v2151, 0.0
    %v2154 = vsel %vm2152, %v2153, 0.0
    %vm2155 = vcmp.lt.f32.partialorder %v2130, 0.0
    %v2156 = vmin.f32 %v2151, 1.0
    %v2157 = vsel %vm2155, %v2156, 1.0
    %vm2158 = vcmp.gt.f32.partialorder %v2134, 0.0
    %vm2159 = vmand %vm2135, %vm2158
    %vm2160 = vmxor %vm2159, 1
    %vm2161 = vmand %vm2127, %vm2160
    %v2162 = vmul.f32 %v1764, %v1738
    %v2163 = vmul.f32 %v1762, %v1739
    %v2164 = vadd.f32 %v2162, %v2163
    %v2165 = vmul.f32 %v1764, %v166
    %v2166 = vmul.f32 %v1762, %v167
    %v2167 = vadd.f32 %v2165, %v2166
    %v2168 = vsub.f32 %v1767, %v2167
    %vm2169 = vcmp.eq.f32.partialorder %v2164, 0.0
    %v2170 = vsel %vm2169, 1.0, %v2164
    %v2171 = vrcp.pop %v2170
    %v2172 = vmul.f32 %v2170, %v2171
    %v2173 = vsub.f32 1.0, %v2172
    %v2174 = vmul.f32 %v2171, %v2173
    %v2175 = vadd.f32 %v2171, %v2174
    %vm2176 = vweird.f32 %v2170
    %vm2177 = vweird.f32 %v2171
    %vm2178 = vmor %vm2176, %vm2177
    %v2179 = vsel %vm2178, %v2171, %v2175
    %v2180 = vand.u32 2147483647, %v2170
    %vm2181 = vcmp.eq.f32.partialorder %v2180, 8.507059e+37
    %v2182 = vand.u32 %v2170, 2147483648
    %v2183 = vor.u32 1.1754944e-38, %v2182
    %v2184 = vsel %vm2181, %v2183, %v2179
    %v2185 = vmul.f32 %v2168, %v2184
    %vm2186 = vcmp.gt.f32.partialorder %v2164, 0.0
    %v2187 = vmax.f32 %v2154, %v2185
    %v2188 = vsel %vm2186, %v2187, %v2154
    %vm2189 = vcmp.lt.f32.partialorder %v2164, 0.0
    %v2190 = vmin.f32 %v2157, %v2185
    %v2191 = vsel %vm2189, %v2190, %v2157
    %vm2192 = vcmp.gt.f32.partialorder %v2168, 0.0
    %vm2193 = vmand %vm2169, %vm2192
    %vm2194 = vmxor %vm2193, 1
    %vm2195 = vmand %vm2161, %vm2194
    %v2196 = vmul.f32 %v1770, %v1738
    %v2197 = vmul.f32 %v1768, %v1739
    %v2198 = vadd.f32 %v2196, %v2197
    %v2199 = vmul.f32 %v1770, %v166
    %v2200 = vmul.f32 %v1768, %v167
    %v2201 = vadd.f32 %v2199, %v2200
    %v2202 = vsub.f32 %v1773, %v2201
    %vm2203 = vcmp.eq.f32.partialorder %v2198, 0.0
    %v2204 = vsel %vm2203, 1.0, %v2198
    %v2205 = vrcp.pop %v2204
    %v2206 = vmul.f32 %v2204, %v2205
    %v2207 = vsub.f32 1.0, %v2206
    %v2208 = vmul.f32 %v2205, %v2207
    %v2209 = vadd.f32 %v2205, %v2208
    %vm2210 = vweird.f32 %v2204
    %vm2211 = vweird.f32 %v2205
    %vm2212 = vmor %vm2210, %vm2211
    %v2213 = vsel %vm2212, %v2205, %v2209
    %v2214 = vand.u32 2147483647, %v2204
    %vm2215 = vcmp.eq.f32.partialorder %v2214, 8.507059e+37
    %v2216 = vand.u32 %v2204, 2147483648
    %v2217 = vor.u32 1.1754944e-38, %v2216
    %v2218 = vsel %vm2215, %v2217, %v2213
    %v2219 = vmul.f32 %v2202, %v2218
    %vm2220 = vcmp.gt.f32.partialorder %v2198, 0.0
    %v2221 = vmax.f32 %v2188, %v2219
    %v2222 = vsel %vm2220, %v2221, %v2188
    %vm2223 = vcmp.lt.f32.partialorder %v2198, 0.0
    %v2224 = vmin.f32 %v2191, %v2219
    %v2225 = vsel %vm2223, %v2224, %v2191
    %vm2226 = vcmp.gt.f32.partialorder %v2202, 0.0
    %vm2227 = vmand %vm2203, %vm2226
    %vm2228 = vmxor %vm2227, 1
    %vm2229 = vmand %vm2195, %vm2228
    %v2230 = vmul.f32 %v1776, %v1738
    %v2231 = vmul.f32 %v1774, %v1739
    %v2232 = vadd.f32 %v2230, %v2231
    %v2233 = vmul.f32 %v1776, %v166
    %v2234 = vmul.f32 %v1774, %v167
    %v2235 = vadd.f32 %v2233, %v2234
    %v2236 = vsub.f32 %v1779, %v2235
    %vm2237 = vcmp.eq.f32.partialorder %v2232, 0.0
    %v2238 = vsel %vm2237, 1.0, %v2232
    %v2239 = vrcp.pop %v2238
    %v2240 = vmul.f32 %v2238, %v2239
    %v2241 = vsub.f32 1.0, %v2240
    %v2242 = vmul.f32 %v2239, %v2241
    %v2243 = vadd.f32 %v2239, %v2242
    %vm2244 = vweird.f32 %v2238
    %vm2245 = vweird.f32 %v2239
    %vm2246 = vmor %vm2244, %vm2245
    %v2247 = vsel %vm2246, %v2239, %v2243
    %v2248 = vand.u32 2147483647, %v2238
    %vm2249 = vcmp.eq.f32.partialorder %v2248, 8.507059e+37
    %v2250 = vand.u32 %v2238, 2147483648
    %v2251 = vor.u32 1.1754944e-38, %v2250
    %v2252 = vsel %vm2249, %v2251, %v2247
    %v2253 = vmul.f32 %v2236, %v2252
    %vm2254 = vcmp.gt.f32.partialorder %v2232, 0.0
    %v2255 = vmax.f32 %v2222, %v2253
    %v2256 = vsel %vm2254, %v2255, %v2222
    %vm2257 = vcmp.lt.f32.partialorder %v2232, 0.0
    %v2258 = vmin.f32 %v2225, %v2253
    %v2259 = vsel %vm2257, %v2258, %v2225
    %vm2260 = vcmp.gt.f32.partialorder %v2236, 0.0
    %vm2261 = vmand %vm2237, %vm2260
    %vm2262 = vmxor %vm2261, 1
    %vm2263 = vmand %vm2229, %vm2262
    %vm2264 = vcmp.le.f32.partialorder %v2256, %v2259
    %vm2265 = vmand %vm2263, %vm2264
    %v2266 = vmul.f32 %v2256, %v1738
    %v2267 = vadd.f32 %v166, %v2266
    %v2268 = vmul.f32 %v2256, %v1739
    %v2269 = vadd.f32 %v167, %v2268
    %v2270 = vmul.f32 %v2259, %v1738
    %v2271 = vadd.f32 %v166, %v2270
    %v2272 = vmul.f32 %v2259, %v1739
    %v2273 = vadd.f32 %v167, %v2272
    %v2274 = vmul.f32 %v2267, %v2273
    %v2275 = vmul.f32 %v2269, %v2271
    %v2276 = vsub.f32 %v2274, %v2275
    %v2277 = vmul.f32 %v2276, 0.5
    %v2278 = vsel %vm2265, %v2277, 0.0
    %v2279 = vadd.f32 %v2123, %v2278
    %v2280 = vmul.f32 %v1762, %v1762
    %v2281 = vmul.f32 %v1763, %v1763
    %v2282 = vadd.f32 %v2280, %v2281
    %vm2283 = vcmp.gt.f32.partialorder %v2282, 0.0
    %v2284 = vmul.f32 %v1734, %v1762
    %v2285 = vmul.f32 %v1732, %v1763
    %v2286 = vadd.f32 %v2284, %v2285
    %v2287 = vmul.f32 %v1734, %v408
    %v2288 = vmul.f32 %v1732, %v409
    %v2289 = vadd.f32 %v2287, %v2288
    %v2290 = vsub.f32 %v1737, %v2289
    %vm2291 = vcmp.eq.f32.partialorder %v2286, 0.0
    %v2292 = vsel %vm2291, 1.0, %v2286
    %v2293 = vrcp.pop %v2292
    %v2294 = vmul.f32 %v2292, %v2293
    %v2295 = vsub.f32 1.0, %v2294
    %v2296 = vmul.f32 %v2293, %v2295
    %v2297 = vadd.f32 %v2293, %v2296
    %vm2298 = vweird.f32 %v2292
    %vm2299 = vweird.f32 %v2293
    %vm2300 = vmor %vm2298, %vm2299
    %v2301 = vsel %vm2300, %v2293, %v2297
    %v2302 = vand.u32 2147483647, %v2292
    %vm2303 = vcmp.eq.f32.partialorder %v2302, 8.507059e+37
    %v2304 = vand.u32 %v2292, 2147483648
    %v2305 = vor.u32 1.1754944e-38, %v2304
    %v2306 = vsel %vm2303, %v2305, %v2301
    %v2307 = vmul.f32 %v2290, %v2306
    %vm2308 = vcmp.gt.f32.partialorder %v2286, 0.0
    %v2309 = vmax.f32 %v2307, 0.0
    %v2310 = vsel %vm2308, %v2309, 0.0
    %vm2311 = vcmp.lt.f32.partialorder %v2286, 0.0
    %v2312 = vmin.f32 %v2307, 1.0
    %v2313 = vsel %vm2311, %v2312, 1.0
    %vm2314 = vcmp.gt.f32.partialorder %v2290, 0.0
    %vm2315 = vmand %vm2291, %vm2314
    %v2316 = vmul.f32 %v1732, %v1762
    %v2317 = vmul.f32 %v1734, %v1763
    %v2318 = vsub.f32 %v2316, %v2317
    %vm2319 = vcmp.gt.f32.partialorder %v2318, 0.0
    %vm2320 = vcmp.eq.f32.partialorder %v2290, 0.0
    %vm2321 = vmand %vm2291, %vm2320
    %vm2322 = vmand %vm2321, %vm2319
    %vm2323 = vmor %vm2315, %vm2322
    %vm2324 = vmxor %vm2323, 1
    %vm2325 = vmand %vm2283, %vm2324
    %v2326 = vmul.f32 %v1740, %v1762
    %v2327 = vmul.f32 %v1738, %v1763
    %v2328 = vadd.f32 %v2326, %v2327
    %v2329 = vmul.f32 %v1740, %v408
    %v2330 = vmul.f32 %v1738, %v409
    %v2331 = vadd.f32 %v2329, %v2330
    %v2332 = vsub.f32 %v1743, %v2331
    %vm2333 = vcmp.eq.f32.partialorder %v2328, 0.0
    %v2334 = vsel %vm2333, 1.0, %v2328
    %v2335 = vrcp.pop %v2334
    %v2336 = vmul.f32 %v2334, %v2335
    %v2337 = vsub.f32 1.0, %v2336
    %v2338 = vmul.f32 %v2335, %v2337
    %v2339 = vadd.f32 %v2335, %v2338
    %vm2340 = vweird.f32 %v2334
    %vm2341 = vweird.f32 %v2335
    %vm2342 = vmor %vm2340, %vm2341
    %v2343 = vsel %vm2342, %v2335, %v2339
    %v2344 = vand.u32 2147483647, %v2334
    %vm2345 = vcmp.eq.f32.partialorder %v2344, 8.507059e+37
    %v2346 = vand.u32 %v2334, 2147483648
    %v2347 = vor.u32 1.1754944e-38, %v2346
    %v2348 = vsel %vm2345, %v2347, %v2343
    %v2349 = vmul.f32 %v2332, %v2348
    %vm2350 = vcmp.gt.f32.partialorder %v2328, 0.0
    %v2351 = vmax.f32 %v2310, %v2349
    %v2352 = vsel %vm2350, %v2351, %v2310
    %vm2353 = vcmp.lt.f32.partialorder %v2328, 0.0
    %v2354 = vmin.f32 %v2313, %v2349
    %v2355 = vsel %vm2353, %v2354, %v2313
    %vm2356 = vcmp.gt.f32.partialorder %v2332, 0.0
    %vm2357 = vmand %vm2333, %vm2356
    %v2358 = vmul.f32 %v1738, %v1762
    %v2359 = vmul.f32 %v1740, %v1763
    %v2360 = vsub.f32 %v2358, %v2359
    %vm2361 = vcmp.gt.f32.partialorder %v2360, 0.0
    %vm2362 = vcmp.eq.f32.partialorder %v2332, 0.0
    %vm2363 = vmand %vm2333, %vm2362
    %vm2364 = vmand %vm2363, %vm2361
    %vm2365 = vmor %vm2357, %vm2364
    %vm2366 = vmxor %vm2365, 1
    %vm2367 = vmand %vm2325, %vm2366
    %v2368 = vmul.f32 %v1746, %v1762
    %v2369 = vmul.f32 %v1744, %v1763
    %v2370 = vadd.f32 %v2368, %v2369
    %v2371 = vmul.f32 %v1746, %v408
    %v2372 = vmul.f32 %v1744, %v409
    %v2373 = vadd.f32 %v2371, %v2372
    %v2374 = vsub.f32 %v1749, %v2373
    %vm2375 = vcmp.eq.f32.partialorder %v2370, 0.0
    %v2376 = vsel %vm2375, 1.0, %v2370
    %v2377 = vrcp.pop %v2376
    %v2378 = vmul.f32 %v2376, %v2377
    %v2379 = vsub.f32 1.0, %v2378
    %v2380 = vmul.f32 %v2377, %v2379
    %v2381 = vadd.f32 %v2377, %v2380
    %vm2382 = vweird.f32 %v2376
    %vm2383 = vweird.f32 %v2377
    %vm2384 = vmor %vm2382, %vm2383
    %v2385 = vsel %vm2384, %v2377, %v2381
    %v2386 = vand.u32 2147483647, %v2376
    %vm2387 = vcmp.eq.f32.partialorder %v2386, 8.507059e+37
    %v2388 = vand.u32 %v2376, 2147483648
    %v2389 = vor.u32 1.1754944e-38, %v2388
    %v2390 = vsel %vm2387, %v2389, %v2385
    %v2391 = vmul.f32 %v2374, %v2390
    %vm2392 = vcmp.gt.f32.partialorder %v2370, 0.0
    %v2393 = vmax.f32 %v2352, %v2391
    %v2394 = vsel %vm2392, %v2393, %v2352
    %vm2395 = vcmp.lt.f32.partialorder %v2370, 0.0
    %v2396 = vmin.f32 %v2355, %v2391
    %v2397 = vsel %vm2395, %v2396, %v2355
    %vm2398 = vcmp.gt.f32.partialorder %v2374, 0.0
    %vm2399 = vmand %vm2375, %vm2398
    %v2400 = vmul.f32 %v1744, %v1762
    %v2401 = vmul.f32 %v1746, %v1763
    %v2402 = vsub.f32 %v2400, %v2401
    %vm2403 = vcmp.gt.f32.partialorder %v2402, 0.0
    %vm2404 = vcmp.eq.f32.partialorder %v2374, 0.0
    %vm2405 = vmand %vm2375, %vm2404
    %vm2406 = vmand %vm2405, %vm2403
    %vm2407 = vmor %vm2399, %vm2406
    %vm2408 = vmxor %vm2407, 1
    %vm2409 = vmand %vm2367, %vm2408
    %v2410 = vmul.f32 %v1752, %v1762
    %v2411 = vmul.f32 %v1750, %v1763
    %v2412 = vadd.f32 %v2410, %v2411
    %v2413 = vmul.f32 %v1752, %v408
    %v2414 = vmul.f32 %v1750, %v409
    %v2415 = vadd.f32 %v2413, %v2414
    %v2416 = vsub.f32 %v1755, %v2415
    %vm2417 = vcmp.eq.f32.partialorder %v2412, 0.0
    %v2418 = vsel %vm2417, 1.0, %v2412
    %v2419 = vrcp.pop %v2418
    %v2420 = vmul.f32 %v2418, %v2419
    %v2421 = vsub.f32 1.0, %v2420
    %v2422 = vmul.f32 %v2419, %v2421
    %v2423 = vadd.f32 %v2419, %v2422
    %vm2424 = vweird.f32 %v2418
    %vm2425 = vweird.f32 %v2419
    %vm2426 = vmor %vm2424, %vm2425
    %v2427 = vsel %vm2426, %v2419, %v2423
    %v2428 = vand.u32 2147483647, %v2418
    %vm2429 = vcmp.eq.f32.partialorder %v2428, 8.507059e+37
    %v2430 = vand.u32 %v2418, 2147483648
    %v2431 = vor.u32 1.1754944e-38, %v2430
    %v2432 = vsel %vm2429, %v2431, %v2427
    %v2433 = vmul.f32 %v2416, %v2432
    %vm2434 = vcmp.gt.f32.partialorder %v2412, 0.0
    %v2435 = vmax.f32 %v2394, %v2433
    %v2436 = vsel %vm2434, %v2435, %v2394
    %vm2437 = vcmp.lt.f32.partialorder %v2412, 0.0
    %v2438 = vmin.f32 %v2397, %v2433
    %v2439 = vsel %vm2437, %v2438, %v2397
    %vm2440 = vcmp.gt.f32.partialorder %v2416, 0.0
    %vm2441 = vmand %vm2417, %vm2440
    %v2442 = vmul.f32 %v1750, %v1762
    %v2443 = vmul.f32 %v1752, %v1763
    %v2444 = vsub.f32 %v2442, %v2443
    %vm2445 = vcmp.gt.f32.partialorder %v2444, 0.0
    %vm2446 = vcmp.eq.f32.partialorder %v2416, 0.0
    %vm2447 = vmand %vm2417, %vm2446
    %vm2448 = vmand %vm2447, %vm2445
    %vm2449 = vmor %vm2441, %vm2448
    %vm2450 = vmxor %vm2449, 1
    %vm2451 = vmand %vm2409, %vm2450
    %vm2452 = vcmp.le.f32.partialorder %v2436, %v2439
    %vm2453 = vmand %vm2451, %vm2452
    %v2454 = vmul.f32 %v2436, %v1762
    %v2455 = vadd.f32 %v408, %v2454
    %v2456 = vmul.f32 %v2436, %v1763
    %v2457 = vadd.f32 %v409, %v2456
    %v2458 = vmul.f32 %v2439, %v1762
    %v2459 = vadd.f32 %v408, %v2458
    %v2460 = vmul.f32 %v2439, %v1763
    %v2461 = vadd.f32 %v409, %v2460
    %v2462 = vmul.f32 %v2455, %v2461
    %v2463 = vmul.f32 %v2457, %v2459
    %v2464 = vsub.f32 %v2462, %v2463
    %v2465 = vmul.f32 %v2464, 0.5
    %v2466 = vsel %vm2453, %v2465, 0.0
    %v2467 = vadd.f32 %v2279, %v2466
    %v2468 = vmul.f32 %v1744, %v1744
    %v2469 = vmul.f32 %v1745, %v1745
    %v2470 = vadd.f32 %v2468, %v2469
    %vm2471 = vcmp.gt.f32.partialorder %v2470, 0.0
    %v2472 = vmul.f32 %v1758, %v1744
    %v2473 = vmul.f32 %v1756, %v1745
    %v2474 = vadd.f32 %v2472, %v2473
    %v2475 = vmul.f32 %v1758, %v240
    %v2476 = vmul.f32 %v1756, %v241
    %v2477 = vadd.f32 %v2475, %v2476
    %v2478 = vsub.f32 %v1761, %v2477
    %vm2479 = vcmp.eq.f32.partialorder %v2474, 0.0
    %v2480 = vsel %vm2479, 1.0, %v2474
    %v2481 = vrcp.pop %v2480
    %v2482 = vmul.f32 %v2480, %v2481
    %v2483 = vsub.f32 1.0, %v2482
    %v2484 = vmul.f32 %v2481, %v2483
    %v2485 = vadd.f32 %v2481, %v2484
    %vm2486 = vweird.f32 %v2480
    %vm2487 = vweird.f32 %v2481
    %vm2488 = vmor %vm2486, %vm2487
    %v2489 = vsel %vm2488, %v2481, %v2485
    %v2490 = vand.u32 2147483647, %v2480
    %vm2491 = vcmp.eq.f32.partialorder %v2490, 8.507059e+37
    %v2492 = vand.u32 %v2480, 2147483648
    %v2493 = vor.u32 1.1754944e-38, %v2492
    %v2494 = vsel %vm2491, %v2493, %v2489
    %v2495 = vmul.f32 %v2478, %v2494
    %vm2496 = vcmp.gt.f32.partialorder %v2474, 0.0
    %v2497 = vmax.f32 %v2495, 0.0
    %v2498 = vsel %vm2496, %v2497, 0.0
    %vm2499 = vcmp.lt.f32.partialorder %v2474, 0.0
    %v2500 = vmin.f32 %v2495, 1.0
    %v2501 = vsel %vm2499, %v2500, 1.0
    %vm2502 = vcmp.gt.f32.partialorder %v2478, 0.0
    %vm2503 = vmand %vm2479, %vm2502
    %vm2504 = vmxor %vm2503, 1
    %vm2505 = vmand %vm2471, %vm2504
    %v2506 = vmul.f32 %v1764, %v1744
    %v2507 = vmul.f32 %v1762, %v1745
    %v2508 = vadd.f32 %v2506, %v2507
    %v2509 = vmul.f32 %v1764, %v240
    %v2510 = vmul.f32 %v1762, %v241
    %v2511 = vadd.f32 %v2509, %v2510
    %v2512 = vsub.f32 %v1767, %v2511
    %vm2513 = vcmp.eq.f32.partialorder %v2508, 0.0
    %v2514 = vsel %vm2513, 1.0, %v2508
    %v2515 = vrcp.pop %v2514
    %v2516 = vmul.f32 %v2514, %v2515
    %v2517 = vsub.f32 1.0, %v2516
    %v2518 = vmul.f32 %v2515, %v2517
    %v2519 = vadd.f32 %v2515, %v2518
    %vm2520 = vweird.f32 %v2514
    %vm2521 = vweird.f32 %v2515
    %vm2522 = vmor %vm2520, %vm2521
    %v2523 = vsel %vm2522, %v2515, %v2519
    %v2524 = vand.u32 2147483647, %v2514
    %vm2525 = vcmp.eq.f32.partialorder %v2524, 8.507059e+37
    %v2526 = vand.u32 %v2514, 2147483648
    %v2527 = vor.u32 1.1754944e-38, %v2526
    %v2528 = vsel %vm2525, %v2527, %v2523
    %v2529 = vmul.f32 %v2512, %v2528
    %vm2530 = vcmp.gt.f32.partialorder %v2508, 0.0
    %v2531 = vmax.f32 %v2498, %v2529
    %v2532 = vsel %vm2530, %v2531, %v2498
    %vm2533 = vcmp.lt.f32.partialorder %v2508, 0.0
    %v2534 = vmin.f32 %v2501, %v2529
    %v2535 = vsel %vm2533, %v2534, %v2501
    %vm2536 = vcmp.gt.f32.partialorder %v2512, 0.0
    %vm2537 = vmand %vm2513, %vm2536
    %vm2538 = vmxor %vm2537, 1
    %vm2539 = vmand %vm2505, %vm2538
    %v2540 = vmul.f32 %v1770, %v1744
    %v2541 = vmul.f32 %v1768, %v1745
    %v2542 = vadd.f32 %v2540, %v2541
    %v2543 = vmul.f32 %v1770, %v240
    %v2544 = vmul.f32 %v1768, %v241
    %v2545 = vadd.f32 %v2543, %v2544
    %v2546 = vsub.f32 %v1773, %v2545
    %vm2547 = vcmp.eq.f32.partialorder %v2542, 0.0
    %v2548 = vsel %vm2547, 1.0, %v2542
    %v2549 = vrcp.pop %v2548
    %v2550 = vmul.f32 %v2548, %v2549
    %v2551 = vsub.f32 1.0, %v2550
    %v2552 = vmul.f32 %v2549, %v2551
    %v2553 = vadd.f32 %v2549, %v2552
    %vm2554 = vweird.f32 %v2548
    %vm2555 = vweird.f32 %v2549
    %vm2556 = vmor %vm2554, %vm2555
    %v2557 = vsel %vm2556, %v2549, %v2553
    %v2558 = vand.u32 2147483647, %v2548
    %vm2559 = vcmp.eq.f32.partialorder %v2558, 8.507059e+37
    %v2560 = vand.u32 %v2548, 2147483648
    %v2561 = vor.u32 1.1754944e-38, %v2560
    %v2562 = vsel %vm2559, %v2561, %v2557
    %v2563 = vmul.f32 %v2546, %v2562
    %vm2564 = vcmp.gt.f32.partialorder %v2542, 0.0
    %v2565 = vmax.f32 %v2532, %v2563
    %v2566 = vsel %vm2564, %v2565, %v2532
    %vm2567 = vcmp.lt.f32.partialorder %v2542, 0.0
    %v2568 = vmin.f32 %v2535, %v2563
    %v2569 = vsel %vm2567, %v2568, %v2535
    %vm2570 = vcmp.gt.f32.partialorder %v2546, 0.0
    %vm2571 = vmand %vm2547, %vm2570
    %vm2572 = vmxor %vm2571, 1
    %vm2573 = vmand %vm2539, %vm2572
    %v2574 = vmul.f32 %v1776, %v1744
    %v2575 = vmul.f32 %v1774, %v1745
    %v2576 = vadd.f32 %v2574, %v2575
    %v2577 = vmul.f32 %v1776, %v240
    %v2578 = vmul.f32 %v1774, %v241
    %v2579 = vadd.f32 %v2577, %v2578
    %v2580 = vsub.f32 %v1779, %v2579
    %vm2581 = vcmp.eq.f32.partialorder %v2576, 0.0
    %v2582 = vsel %vm2581, 1.0, %v2576
    %v2583 = vrcp.pop %v2582
    %v2584 = vmul.f32 %v2582, %v2583
    %v2585 = vsub.f32 1.0, %v2584
    %v2586 = vmul.f32 %v2583, %v2585
    %v2587 = vadd.f32 %v2583, %v2586
    %vm2588 = vweird.f32 %v2582
    %vm2589 = vweird.f32 %v2583
    %vm2590 = vmor %vm2588, %vm2589
    %v2591 = vsel %vm2590, %v2583, %v2587
    %v2592 = vand.u32 2147483647, %v2582
    %vm2593 = vcmp.eq.f32.partialorder %v2592, 8.507059e+37
    %v2594 = vand.u32 %v2582, 2147483648
    %v2595 = vor.u32 1.1754944e-38, %v2594
    %v2596 = vsel %vm2593, %v2595, %v2591
    %v2597 = vmul.f32 %v2580, %v2596
    %vm2598 = vcmp.gt.f32.partialorder %v2576, 0.0
    %v2599 = vmax.f32 %v2566, %v2597
    %v2600 = vsel %vm2598, %v2599, %v2566
    %vm2601 = vcmp.lt.f32.partialorder %v2576, 0.0
    %v2602 = vmin.f32 %v2569, %v2597
    %v2603 = vsel %vm2601, %v2602, %v2569
    %vm2604 = vcmp.gt.f32.partialorder %v2580, 0.0
    %vm2605 = vmand %vm2581, %vm2604
    %vm2606 = vmxor %vm2605, 1
    %vm2607 = vmand %vm2573, %vm2606
    %vm2608 = vcmp.le.f32.partialorder %v2600, %v2603
    %vm2609 = vmand %vm2607, %vm2608
    %v2610 = vmul.f32 %v2600, %v1744
    %v2611 = vadd.f32 %v240, %v2610
    %v2612 = vmul.f32 %v2600, %v1745
    %v2613 = vadd.f32 %v241, %v2612
    %v2614 = vmul.f32 %v2603, %v1744
    %v2615 = vadd.f32 %v240, %v2614
    %v2616 = vmul.f32 %v2603, %v1745
    %v2617 = vadd.f32 %v241, %v2616
    %v2618 = vmul.f32 %v2611, %v2617
    %v2619 = vmul.f32 %v2613, %v2615
    %v2620 = vsub.f32 %v2618, %v2619
    %v2621 = vmul.f32 %v2620, 0.5
    %v2622 = vsel %vm2609, %v2621, 0.0
    %v2623 = vadd.f32 %v2467, %v2622
    %v2624 = vmul.f32 %v1768, %v1768
    %v2625 = vmul.f32 %v1769, %v1769
    %v2626 = vadd.f32 %v2624, %v2625
    %vm2627 = vcmp.gt.f32.partialorder %v2626, 0.0
    %v2628 = vmul.f32 %v1734, %v1768
    %v2629 = vmul.f32 %v1732, %v1769
    %v2630 = vadd.f32 %v2628, %v2629
    %v2631 = vmul.f32 %v1734, %v482
    %v2632 = vmul.f32 %v1732, %v483
    %v2633 = vadd.f32 %v2631, %v2632
    %v2634 = vsub.f32 %v1737, %v2633
    %vm2635 = vcmp.eq.f32.partialorder %v2630, 0.0
    %v2636 = vsel %vm2635, 1.0, %v2630
    %v2637 = vrcp.pop %v2636
    %v2638 = vmul.f32 %v2636, %v2637
    %v2639 = vsub.f32 1.0, %v2638
    %v2640 = vmul.f32 %v2637, %v2639
    %v2641 = vadd.f32 %v2637, %v2640
    %vm2642 = vweird.f32 %v2636
    %vm2643 = vweird.f32 %v2637
    %vm2644 = vmor %vm2642, %vm2643
    %v2645 = vsel %vm2644, %v2637, %v2641
    %v2646 = vand.u32 2147483647, %v2636
    %vm2647 = vcmp.eq.f32.partialorder %v2646, 8.507059e+37
    %v2648 = vand.u32 %v2636, 2147483648
    %v2649 = vor.u32 1.1754944e-38, %v2648
    %v2650 = vsel %vm2647, %v2649, %v2645
    %v2651 = vmul.f32 %v2634, %v2650
    %vm2652 = vcmp.gt.f32.partialorder %v2630, 0.0
    %v2653 = vmax.f32 %v2651, 0.0
    %v2654 = vsel %vm2652, %v2653, 0.0
    %vm2655 = vcmp.lt.f32.partialorder %v2630, 0.0
    %v2656 = vmin.f32 %v2651, 1.0
    %v2657 = vsel %vm2655, %v2656, 1.0
    %vm2658 = vcmp.gt.f32.partialorder %v2634, 0.0
    %vm2659 = vmand %vm2635, %vm2658
    %v2660 = vmul.f32 %v1732, %v1768
    %v2661 = vmul.f32 %v1734, %v1769
    %v2662 = vsub.f32 %v2660, %v2661
    %vm2663 = vcmp.gt.f32.partialorder %v2662, 0.0
    %vm2664 = vcmp.eq.f32.partialorder %v2634, 0.0
    %vm2665 = vmand %vm2635, %vm2664
    %vm2666 = vmand %vm2665, %vm2663
    %vm2667 = vmor %vm2659, %vm2666
    %vm2668 = vmxor %vm2667, 1
    %vm2669 = vmand %vm2627, %vm2668
    %v2670 = vmul.f32 %v1740, %v1768
    %v2671 = vmul.f32 %v1738, %v1769
    %v2672 = vadd.f32 %v2670, %v2671
    %v2673 = vmul.f32 %v1740, %v482
    %v2674 = vmul.f32 %v1738, %v483
    %v2675 = vadd.f32 %v2673, %v2674
    %v2676 = vsub.f32 %v1743, %v2675
    %vm2677 = vcmp.eq.f32.partialorder %v2672, 0.0
    %v2678 = vsel %vm2677, 1.0, %v2672
    %v2679 = vrcp.pop %v2678
    %v2680 = vmul.f32 %v2678, %v2679
    %v2681 = vsub.f32 1.0, %v2680
    %v2682 = vmul.f32 %v2679, %v2681
    %v2683 = vadd.f32 %v2679, %v2682
    %vm2684 = vweird.f32 %v2678
    %vm2685 = vweird.f32 %v2679
    %vm2686 = vmor %vm2684, %vm2685
    %v2687 = vsel %vm2686, %v2679, %v2683
    %v2688 = vand.u32 2147483647, %v2678
    %vm2689 = vcmp.eq.f32.partialorder %v2688, 8.507059e+37
    %v2690 = vand.u32 %v2678, 2147483648
    %v2691 = vor.u32 1.1754944e-38, %v2690
    %v2692 = vsel %vm2689, %v2691, %v2687
    %v2693 = vmul.f32 %v2676, %v2692
    %vm2694 = vcmp.gt.f32.partialorder %v2672, 0.0
    %v2695 = vmax.f32 %v2654, %v2693
    %v2696 = vsel %vm2694, %v2695, %v2654
    %vm2697 = vcmp.lt.f32.partialorder %v2672, 0.0
    %v2698 = vmin.f32 %v2657, %v2693
    %v2699 = vsel %vm2697, %v2698, %v2657
    %vm2700 = vcmp.gt.f32.partialorder %v2676, 0.0
    %vm2701 = vmand %vm2677, %vm2700
    %v2702 = vmul.f32 %v1738, %v1768
    %v2703 = vmul.f32 %v1740, %v1769
    %v2704 = vsub.f32 %v2702, %v2703
    %vm2705 = vcmp.gt.f32.partialorder %v2704, 0.0
    %vm2706 = vcmp.eq.f32.partialorder %v2676, 0.0
    %vm2707 = vmand %vm2677, %vm2706
    %vm2708 = vmand %vm2707, %vm2705
    %vm2709 = vmor %vm2701, %vm2708
    %vm2710 = vmxor %vm2709, 1
    %vm2711 = vmand %vm2669, %vm2710
    %v2712 = vmul.f32 %v1746, %v1768
    %v2713 = vmul.f32 %v1744, %v1769
    %v2714 = vadd.f32 %v2712, %v2713
    %v2715 = vmul.f32 %v1746, %v482
    %v2716 = vmul.f32 %v1744, %v483
    %v2717 = vadd.f32 %v2715, %v2716
    %v2718 = vsub.f32 %v1749, %v2717
    %vm2719 = vcmp.eq.f32.partialorder %v2714, 0.0
    %v2720 = vsel %vm2719, 1.0, %v2714
    %v2721 = vrcp.pop %v2720
    %v2722 = vmul.f32 %v2720, %v2721
    %v2723 = vsub.f32 1.0, %v2722
    %v2724 = vmul.f32 %v2721, %v2723
    %v2725 = vadd.f32 %v2721, %v2724
    %vm2726 = vweird.f32 %v2720
    %vm2727 = vweird.f32 %v2721
    %vm2728 = vmor %vm2726, %vm2727
    %v2729 = vsel %vm2728, %v2721, %v2725
    %v2730 = vand.u32 2147483647, %v2720
    %vm2731 = vcmp.eq.f32.partialorder %v2730, 8.507059e+37
    %v2732 = vand.u32 %v2720, 2147483648
    %v2733 = vor.u32 1.1754944e-38, %v2732
    %v2734 = vsel %vm2731, %v2733, %v2729
    %v2735 = vmul.f32 %v2718, %v2734
    %vm2736 = vcmp.gt.f32.partialorder %v2714, 0.0
    %v2737 = vmax.f32 %v2696, %v2735
    %v2738 = vsel %vm2736, %v2737, %v2696
    %vm2739 = vcmp.lt.f32.partialorder %v2714, 0.0
    %v2740 = vmin.f32 %v2699, %v2735
    %v2741 = vsel %vm2739, %v2740, %v2699
    %vm2742 = vcmp.gt.f32.partialorder %v2718, 0.0
    %vm2743 = vmand %vm2719, %vm2742
    %v2744 = vmul.f32 %v1744, %v1768
    %v2745 = vmul.f32 %v1746, %v1769
    %v2746 = vsub.f32 %v2744, %v2745
    %vm2747 = vcmp.gt.f32.partialorder %v2746, 0.0
    %vm2748 = vcmp.eq.f32.partialorder %v2718, 0.0
    %vm2749 = vmand %vm2719, %vm2748
    %vm2750 = vmand %vm2749, %vm2747
    %vm2751 = vmor %vm2743, %vm2750
    %vm2752 = vmxor %vm2751, 1
    %vm2753 = vmand %vm2711, %vm2752
    %v2754 = vmul.f32 %v1752, %v1768
    %v2755 = vmul.f32 %v1750, %v1769
    %v2756 = vadd.f32 %v2754, %v2755
    %v2757 = vmul.f32 %v1752, %v482
    %v2758 = vmul.f32 %v1750, %v483
    %v2759 = vadd.f32 %v2757, %v2758
    %v2760 = vsub.f32 %v1755, %v2759
    %vm2761 = vcmp.eq.f32.partialorder %v2756, 0.0
    %v2762 = vsel %vm2761, 1.0, %v2756
    %v2763 = vrcp.pop %v2762
    %v2764 = vmul.f32 %v2762, %v2763
    %v2765 = vsub.f32 1.0, %v2764
    %v2766 = vmul.f32 %v2763, %v2765
    %v2767 = vadd.f32 %v2763, %v2766
    %vm2768 = vweird.f32 %v2762
    %vm2769 = vweird.f32 %v2763
    %vm2770 = vmor %vm2768, %vm2769
    %v2771 = vsel %vm2770, %v2763, %v2767
    %v2772 = vand.u32 2147483647, %v2762
    %vm2773 = vcmp.eq.f32.partialorder %v2772, 8.507059e+37
    %v2774 = vand.u32 %v2762, 2147483648
    %v2775 = vor.u32 1.1754944e-38, %v2774
    %v2776 = vsel %vm2773, %v2775, %v2771
    %v2777 = vmul.f32 %v2760, %v2776
    %vm2778 = vcmp.gt.f32.partialorder %v2756, 0.0
    %v2779 = vmax.f32 %v2738, %v2777
    %v2780 = vsel %vm2778, %v2779, %v2738
    %vm2781 = vcmp.lt.f32.partialorder %v2756, 0.0
    %v2782 = vmin.f32 %v2741, %v2777
    %v2783 = vsel %vm2781, %v2782, %v2741
    %vm2784 = vcmp.gt.f32.partialorder %v2760, 0.0
    %vm2785 = vmand %vm2761, %vm2784
    %v2786 = vmul.f32 %v1750, %v1768
    %v2787 = vmul.f32 %v1752, %v1769
    %v2788 = vsub.f32 %v2786, %v2787
    %vm2789 = vcmp.gt.f32.partialorder %v2788, 0.0
    %vm2790 = vcmp.eq.f32.partialorder %v2760, 0.0
    %vm2791 = vmand %vm2761, %vm2790
    %vm2792 = vmand %vm2791, %vm2789
    %vm2793 = vmor %vm2785, %vm2792
    %vm2794 = vmxor %vm2793, 1
    %vm2795 = vmand %vm2753, %vm2794
    %vm2796 = vcmp.le.f32.partialorder %v2780, %v2783
    %vm2797 = vmand %vm2795, %vm2796
    %v2798 = vmul.f32 %v2780, %v1768
    %v2799 = vadd.f32 %v482, %v2798
    %v2800 = vmul.f32 %v2780, %v1769
    %v2801 = vadd.f32 %v483, %v2800
    %v2802 = vmul.f32 %v2783, %v1768
    %v2803 = vadd.f32 %v482, %v2802
    %v2804 = vmul.f32 %v2783, %v1769
    %v2805 = vadd.f32 %v483, %v2804
    %v2806 = vmul.f32 %v2799, %v2805
    %v2807 = vmul.f32 %v2801, %v2803
    %v2808 = vsub.f32 %v2806, %v2807
    %v2809 = vmul.f32 %v2808, 0.5
    %v2810 = vsel %vm2797, %v2809, 0.0
    %v2811 = vadd.f32 %v2623, %v2810
    %v2812 = vmul.f32 %v1750, %v1750
    %v2813 = vmul.f32 %v1751, %v1751
    %v2814 = vadd.f32 %v2812, %v2813
    %vm2815 = vcmp.gt.f32.partialorder %v2814, 0.0
    %v2816 = vmul.f32 %v1758, %v1750
    %v2817 = vmul.f32 %v1756, %v1751
    %v2818 = vadd.f32 %v2816, %v2817
    %v2819 = vmul.f32 %v1758, %v314
    %v2820 = vmul.f32 %v1756, %v315
    %v2821 = vadd.f32 %v2819, %v2820
    %v2822 = vsub.f32 %v1761, %v2821
    %vm2823 = vcmp.eq.f32.partialorder %v2818, 0.0
    %v2824 = vsel %vm2823, 1.0, %v2818
    %v2825 = vrcp.pop %v2824
    %v2826 = vmul.f32 %v2824, %v2825
    %v2827 = vsub.f32 1.0, %v2826
    %v2828 = vmul.f32 %v2825, %v2827
    %v2829 = vadd.f32 %v2825, %v2828
    %vm2830 = vweird.f32 %v2824
    %vm2831 = vweird.f32 %v2825
    %vm2832 = vmor %vm2830, %vm2831
    %v2833 = vsel %vm2832, %v2825, %v2829
    %v2834 = vand.u32 2147483647, %v2824
    %vm2835 = vcmp.eq.f32.partialorder %v2834, 8.507059e+37
    %v2836 = vand.u32 %v2824, 2147483648
    %v2837 = vor.u32 1.1754944e-38, %v2836
    %v2838 = vsel %vm2835, %v2837, %v2833
    %v2839 = vmul.f32 %v2822, %v2838
    %vm2840 = vcmp.gt.f32.partialorder %v2818, 0.0
    %v2841 = vmax.f32 %v2839, 0.0
    %v2842 = vsel %vm2840, %v2841, 0.0
    %vm2843 = vcmp.lt.f32.partialorder %v2818, 0.0
    %v2844 = vmin.f32 %v2839, 1.0
    %v2845 = vsel %vm2843, %v2844, 1.0
    %vm2846 = vcmp.gt.f32.partialorder %v2822, 0.0
    %vm2847 = vmand %vm2823, %vm2846
    %vm2848 = vmxor %vm2847, 1
    %vm2849 = vmand %vm2815, %vm2848
    %v2850 = vmul.f32 %v1764, %v1750
    %v2851 = vmul.f32 %v1762, %v1751
    %v2852 = vadd.f32 %v2850, %v2851
    %v2853 = vmul.f32 %v1764, %v314
    %v2854 = vmul.f32 %v1762, %v315
    %v2855 = vadd.f32 %v2853, %v2854
    %v2856 = vsub.f32 %v1767, %v2855
    %vm2857 = vcmp.eq.f32.partialorder %v2852, 0.0
    %v2858 = vsel %vm2857, 1.0, %v2852
    %v2859 = vrcp.pop %v2858
    %v2860 = vmul.f32 %v2858, %v2859
    %v2861 = vsub.f32 1.0, %v2860
    %v2862 = vmul.f32 %v2859, %v2861
    %v2863 = vadd.f32 %v2859, %v2862
    %vm2864 = vweird.f32 %v2858
    %vm2865 = vweird.f32 %v2859
    %vm2866 = vmor %vm2864, %vm2865
    %v2867 = vsel %vm2866, %v2859, %v2863
    %v2868 = vand.u32 2147483647, %v2858
    %vm2869 = vcmp.eq.f32.partialorder %v2868, 8.507059e+37
    %v2870 = vand.u32 %v2858, 2147483648
    %v2871 = vor.u32 1.1754944e-38, %v2870
    %v2872 = vsel %vm2869, %v2871, %v2867
    %v2873 = vmul.f32 %v2856, %v2872
    %vm2874 = vcmp.gt.f32.partialorder %v2852, 0.0
    %v2875 = vmax.f32 %v2842, %v2873
    %v2876 = vsel %vm2874, %v2875, %v2842
    %vm2877 = vcmp.lt.f32.partialorder %v2852, 0.0
    %v2878 = vmin.f32 %v2845, %v2873
    %v2879 = vsel %vm2877, %v2878, %v2845
    %vm2880 = vcmp.gt.f32.partialorder %v2856, 0.0
    %vm2881 = vmand %vm2857, %vm2880
    %vm2882 = vmxor %vm2881, 1
    %vm2883 = vmand %vm2849, %vm2882
    %v2884 = vmul.f32 %v1770, %v1750
    %v2885 = vmul.f32 %v1768, %v1751
    %v2886 = vadd.f32 %v2884, %v2885
    %v2887 = vmul.f32 %v1770, %v314
    %v2888 = vmul.f32 %v1768, %v315
    %v2889 = vadd.f32 %v2887, %v2888
    %v2890 = vsub.f32 %v1773, %v2889
    %vm2891 = vcmp.eq.f32.partialorder %v2886, 0.0
    %v2892 = vsel %vm2891, 1.0, %v2886
    %v2893 = vrcp.pop %v2892
    %v2894 = vmul.f32 %v2892, %v2893
    %v2895 = vsub.f32 1.0, %v2894
    %v2896 = vmul.f32 %v2893, %v2895
    %v2897 = vadd.f32 %v2893, %v2896
    %vm2898 = vweird.f32 %v2892
    %vm2899 = vweird.f32 %v2893
    %vm2900 = vmor %vm2898, %vm2899
    %v2901 = vsel %vm2900, %v2893, %v2897
    %v2902 = vand.u32 2147483647, %v2892
    %vm2903 = vcmp.eq.f32.partialorder %v2902, 8.507059e+37
    %v2904 = vand.u32 %v2892, 2147483648
    %v2905 = vor.u32 1.1754944e-38, %v2904
    %v2906 = vsel %vm2903, %v2905, %v2901
    %v2907 = vmul.f32 %v2890, %v2906
    %vm2908 = vcmp.gt.f32.partialorder %v2886, 0.0
    %v2909 = vmax.f32 %v2876, %v2907
    %v2910 = vsel %vm2908, %v2909, %v2876
    %vm2911 = vcmp.lt.f32.partialorder %v2886, 0.0
    %v2912 = vmin.f32 %v2879, %v2907
    %v2913 = vsel %vm2911, %v2912, %v2879
    %vm2914 = vcmp.gt.f32.partialorder %v2890, 0.0
    %vm2915 = vmand %vm2891, %vm2914
    %vm2916 = vmxor %vm2915, 1
    %vm2917 = vmand %vm2883, %vm2916
    %v2918 = vmul.f32 %v1776, %v1750
    %v2919 = vmul.f32 %v1774, %v1751
    %v2920 = vadd.f32 %v2918, %v2919
    %v2921 = vmul.f32 %v1776, %v314
    %v2922 = vmul.f32 %v1774, %v315
    %v2923 = vadd.f32 %v2921, %v2922
    %v2924 = vsub.f32 %v1779, %v2923
    %vm2925 = vcmp.eq.f32.partialorder %v2920, 0.0
    %v2926 = vsel %vm2925, 1.0, %v2920
    %v2927 = vrcp.pop %v2926
    %v2928 = vmul.f32 %v2926, %v2927
    %v2929 = vsub.f32 1.0, %v2928
    %v2930 = vmul.f32 %v2927, %v2929
    %v2931 = vadd.f32 %v2927, %v2930
    %vm2932 = vweird.f32 %v2926
    %vm2933 = vweird.f32 %v2927
    %vm2934 = vmor %vm2932, %vm2933
    %v2935 = vsel %vm2934, %v2927, %v2931
    %v2936 = vand.u32 2147483647, %v2926
    %vm2937 = vcmp.eq.f32.partialorder %v2936, 8.507059e+37
    %v2938 = vand.u32 %v2926, 2147483648
    %v2939 = vor.u32 1.1754944e-38, %v2938
    %v2940 = vsel %vm2937, %v2939, %v2935
    %v2941 = vmul.f32 %v2924, %v2940
    %vm2942 = vcmp.gt.f32.partialorder %v2920, 0.0
    %v2943 = vmax.f32 %v2910, %v2941
    %v2944 = vsel %vm2942, %v2943, %v2910
    %vm2945 = vcmp.lt.f32.partialorder %v2920, 0.0
    %v2946 = vmin.f32 %v2913, %v2941
    %v2947 = vsel %vm2945, %v2946, %v2913
    %vm2948 = vcmp.gt.f32.partialorder %v2924, 0.0
    %vm2949 = vmand %vm2925, %vm2948
    %vm2950 = vmxor %vm2949, 1
    %vm2951 = vmand %vm2917, %vm2950
    %vm2952 = vcmp.le.f32.partialorder %v2944, %v2947
    %vm2953 = vmand %vm2951, %vm2952
    %v2954 = vmul.f32 %v2944, %v1750
    %v2955 = vadd.f32 %v314, %v2954
    %v2956 = vmul.f32 %v2944, %v1751
    %v2957 = vadd.f32 %v315, %v2956
    %v2958 = vmul.f32 %v2947, %v1750
    %v2959 = vadd.f32 %v314, %v2958
    %v2960 = vmul.f32 %v2947, %v1751
    %v2961 = vadd.f32 %v315, %v2960
    %v2962 = vmul.f32 %v2955, %v2961
    %v2963 = vmul.f32 %v2957, %v2959
    %v2964 = vsub.f32 %v2962, %v2963
    %v2965 = vmul.f32 %v2964, 0.5
    %v2966 = vsel %vm2953, %v2965, 0.0
    %v2967 = vadd.f32 %v2811, %v2966
    %v2968 = vmul.f32 %v1774, %v1774
    %v2969 = vmul.f32 %v1775, %v1775
    %v2970 = vadd.f32 %v2968, %v2969
    %vm2971 = vcmp.gt.f32.partialorder %v2970, 0.0
    %v2972 = vmul.f32 %v1734, %v1774
    %v2973 = vmul.f32 %v1732, %v1775
    %v2974 = vadd.f32 %v2972, %v2973
    %v2975 = vmul.f32 %v1734, %v556
    %v2976 = vmul.f32 %v1732, %v557
    %v2977 = vadd.f32 %v2975, %v2976
    %v2978 = vsub.f32 %v1737, %v2977
    %vm2979 = vcmp.eq.f32.partialorder %v2974, 0.0
    %v2980 = vsel %vm2979, 1.0, %v2974
    %v2981 = vrcp.pop %v2980
    %v2982 = vmul.f32 %v2980, %v2981
    %v2983 = vsub.f32 1.0, %v2982
    %v2984 = vmul.f32 %v2981, %v2983
    %v2985 = vadd.f32 %v2981, %v2984
    %vm2986 = vweird.f32 %v2980
    %vm2987 = vweird.f32 %v2981
    %vm2988 = vmor %vm2986, %vm2987
    %v2989 = vsel %vm2988, %v2981, %v2985
    %v2990 = vand.u32 2147483647, %v2980
    %vm2991 = vcmp.eq.f32.partialorder %v2990, 8.507059e+37
    %v2992 = vand.u32 %v2980, 2147483648
    %v2993 = vor.u32 1.1754944e-38, %v2992
    %v2994 = vsel %vm2991, %v2993, %v2989
    %v2995 = vmul.f32 %v2978, %v2994
    %vm2996 = vcmp.gt.f32.partialorder %v2974, 0.0
    %v2997 = vmax.f32 %v2995, 0.0
    %v2998 = vsel %vm2996, %v2997, 0.0
    %vm2999 = vcmp.lt.f32.partialorder %v2974, 0.0
    %v3000 = vmin.f32 %v2995, 1.0
    %v3001 = vsel %vm2999, %v3000, 1.0
    %vm3002 = vcmp.gt.f32.partialorder %v2978, 0.0
    %vm3003 = vmand %vm2979, %vm3002
    %v3004 = vmul.f32 %v1732, %v1774
    %v3005 = vmul.f32 %v1734, %v1775
    %v3006 = vsub.f32 %v3004, %v3005
    %vm3007 = vcmp.gt.f32.partialorder %v3006, 0.0
    %vm3008 = vcmp.eq.f32.partialorder %v2978, 0.0
    %vm3009 = vmand %vm2979, %vm3008
    %vm3010 = vmand %vm3009, %vm3007
    %vm3011 = vmor %vm3003, %vm3010
    %vm3012 = vmxor %vm3011, 1
    %vm3013 = vmand %vm2971, %vm3012
    %v3014 = vmul.f32 %v1740, %v1774
    %v3015 = vmul.f32 %v1738, %v1775
    %v3016 = vadd.f32 %v3014, %v3015
    %v3017 = vmul.f32 %v1740, %v556
    %v3018 = vmul.f32 %v1738, %v557
    %v3019 = vadd.f32 %v3017, %v3018
    %v3020 = vsub.f32 %v1743, %v3019
    %vm3021 = vcmp.eq.f32.partialorder %v3016, 0.0
    %v3022 = vsel %vm3021, 1.0, %v3016
    %v3023 = vrcp.pop %v3022
    %v3024 = vmul.f32 %v3022, %v3023
    %v3025 = vsub.f32 1.0, %v3024
    %v3026 = vmul.f32 %v3023, %v3025
    %v3027 = vadd.f32 %v3023, %v3026
    %vm3028 = vweird.f32 %v3022
    %vm3029 = vweird.f32 %v3023
    %vm3030 = vmor %vm3028, %vm3029
    %v3031 = vsel %vm3030, %v3023, %v3027
    %v3032 = vand.u32 2147483647, %v3022
    %vm3033 = vcmp.eq.f32.partialorder %v3032, 8.507059e+37
    %v3034 = vand.u32 %v3022, 2147483648
    %v3035 = vor.u32 1.1754944e-38, %v3034
    %v3036 = vsel %vm3033, %v3035, %v3031
    %v3037 = vmul.f32 %v3020, %v3036
    %vm3038 = vcmp.gt.f32.partialorder %v3016, 0.0
    %v3039 = vmax.f32 %v2998, %v3037
    %v3040 = vsel %vm3038, %v3039, %v2998
    %vm3041 = vcmp.lt.f32.partialorder %v3016, 0.0
    %v3042 = vmin.f32 %v3001, %v3037
    %v3043 = vsel %vm3041, %v3042, %v3001
    %vm3044 = vcmp.gt.f32.partialorder %v3020, 0.0
    %vm3045 = vmand %vm3021, %vm3044
    %v3046 = vmul.f32 %v1738, %v1774
    %v3047 = vmul.f32 %v1740, %v1775
    %v3048 = vsub.f32 %v3046, %v3047
    %vm3049 = vcmp.gt.f32.partialorder %v3048, 0.0
    %vm3050 = vcmp.eq.f32.partialorder %v3020, 0.0
    %vm3051 = vmand %vm3021, %vm3050
    %vm3052 = vmand %vm3051, %vm3049
    %vm3053 = vmor %vm3045, %vm3052
    %vm3054 = vmxor %vm3053, 1
    %vm3055 = vmand %vm3013, %vm3054
    %v3056 = vmul.f32 %v1746, %v1774
    %v3057 = vmul.f32 %v1744, %v1775
    %v3058 = vadd.f32 %v3056, %v3057
    %v3059 = vmul.f32 %v1746, %v556
    %v3060 = vmul.f32 %v1744, %v557
    %v3061 = vadd.f32 %v3059, %v3060
    %v3062 = vsub.f32 %v1749, %v3061
    %vm3063 = vcmp.eq.f32.partialorder %v3058, 0.0
    %v3064 = vsel %vm3063, 1.0, %v3058
    %v3065 = vrcp.pop %v3064
    %v3066 = vmul.f32 %v3064, %v3065
    %v3067 = vsub.f32 1.0, %v3066
    %v3068 = vmul.f32 %v3065, %v3067
    %v3069 = vadd.f32 %v3065, %v3068
    %vm3070 = vweird.f32 %v3064
    %vm3071 = vweird.f32 %v3065
    %vm3072 = vmor %vm3070, %vm3071
    %v3073 = vsel %vm3072, %v3065, %v3069
    %v3074 = vand.u32 2147483647, %v3064
    %vm3075 = vcmp.eq.f32.partialorder %v3074, 8.507059e+37
    %v3076 = vand.u32 %v3064, 2147483648
    %v3077 = vor.u32 1.1754944e-38, %v3076
    %v3078 = vsel %vm3075, %v3077, %v3073
    %v3079 = vmul.f32 %v3062, %v3078
    %vm3080 = vcmp.gt.f32.partialorder %v3058, 0.0
    %v3081 = vmax.f32 %v3040, %v3079
    %v3082 = vsel %vm3080, %v3081, %v3040
    %vm3083 = vcmp.lt.f32.partialorder %v3058, 0.0
    %v3084 = vmin.f32 %v3043, %v3079
    %v3085 = vsel %vm3083, %v3084, %v3043
    %vm3086 = vcmp.gt.f32.partialorder %v3062, 0.0
    %vm3087 = vmand %vm3063, %vm3086
    %v3088 = vmul.f32 %v1744, %v1774
    %v3089 = vmul.f32 %v1746, %v1775
    %v3090 = vsub.f32 %v3088, %v3089
    %vm3091 = vcmp.gt.f32.partialorder %v3090, 0.0
    %vm3092 = vcmp.eq.f32.partialorder %v3062, 0.0
    %vm3093 = vmand %vm3063, %vm3092
    %vm3094 = vmand %vm3093, %vm3091
    %vm3095 = vmor %vm3087, %vm3094
    %vm3096 = vmxor %vm3095, 1
    %vm3097 = vmand %vm3055, %vm3096
    %v3098 = vmul.f32 %v1752, %v1774
    %v3099 = vmul.f32 %v1750, %v1775
    %v3100 = vadd.f32 %v3098, %v3099
    %v3101 = vmul.f32 %v1752, %v556
    %v3102 = vmul.f32 %v1750, %v557
    %v3103 = vadd.f32 %v3101, %v3102
    %v3104 = vsub.f32 %v1755, %v3103
    %vm3105 = vcmp.eq.f32.partialorder %v3100, 0.0
    %v3106 = vsel %vm3105, 1.0, %v3100
    %v3107 = vrcp.pop %v3106
    %v3108 = vmul.f32 %v3106, %v3107
    %v3109 = vsub.f32 1.0, %v3108
    %v3110 = vmul.f32 %v3107, %v3109
    %v3111 = vadd.f32 %v3107, %v3110
    %vm3112 = vweird.f32 %v3106
    %vm3113 = vweird.f32 %v3107
    %vm3114 = vmor %vm3112, %vm3113
    %v3115 = vsel %vm3114, %v3107, %v3111
    %v3116 = vand.u32 2147483647, %v3106
    %vm3117 = vcmp.eq.f32.partialorder %v3116, 8.507059e+37
    %v3118 = vand.u32 %v3106, 2147483648
    %v3119 = vor.u32 1.1754944e-38, %v3118
    %v3120 = vsel %vm3117, %v3119, %v3115
    %v3121 = vmul.f32 %v3104, %v3120
    %vm3122 = vcmp.gt.f32.partialorder %v3100, 0.0
    %v3123 = vmax.f32 %v3082, %v3121
    %v3124 = vsel %vm3122, %v3123, %v3082
    %vm3125 = vcmp.lt.f32.partialorder %v3100, 0.0
    %v3126 = vmin.f32 %v3085, %v3121
    %v3127 = vsel %vm3125, %v3126, %v3085
    %vm3128 = vcmp.gt.f32.partialorder %v3104, 0.0
    %vm3129 = vmand %vm3105, %vm3128
    %v3130 = vmul.f32 %v1750, %v1774
    %v3131 = vmul.f32 %v1752, %v1775
    %v3132 = vsub.f32 %v3130, %v3131
    %vm3133 = vcmp.gt.f32.partialorder %v3132, 0.0
    %vm3134 = vcmp.eq.f32.partialorder %v3104, 0.0
    %vm3135 = vmand %vm3105, %vm3134
    %vm3136 = vmand %vm3135, %vm3133
    %vm3137 = vmor %vm3129, %vm3136
    %vm3138 = vmxor %vm3137, 1
    %vm3139 = vmand %vm3097, %vm3138
    %vm3140 = vcmp.le.f32.partialorder %v3124, %v3127
    %vm3141 = vmand %vm3139, %vm3140
    %v3142 = vmul.f32 %v3124, %v1774
    %v3143 = vadd.f32 %v556, %v3142
    %v3144 = vmul.f32 %v3124, %v1775
    %v3145 = vadd.f32 %v557, %v3144
    %v3146 = vmul.f32 %v3127, %v1774
    %v3147 = vadd.f32 %v556, %v3146
    %v3148 = vmul.f32 %v3127, %v1775
    %v3149 = vadd.f32 %v557, %v3148
    %v3150 = vmul.f32 %v3143, %v3149
    %v3151 = vmul.f32 %v3145, %v3147
    %v3152 = vsub.f32 %v3150, %v3151
    %v3153 = vmul.f32 %v3152, 0.5
    %v3154 = vsel %vm3141, %v3153, 0.0
    %v3155 = vadd.f32 %v2967, %v3154
    %v3156 = vmax.f32 %v3155, 0.0
    %vm3157 = vcmp.gt.f32.partialorder %v1731, 0.0
    %v3158 = vsel %vm3157, %v1731, 1.0
    %v3159 = vrcp.pop %v3158
    %v3160 = vmul.f32 %v3158, %v3159
    %v3161 = vsub.f32 2.0, %v3160
    %v3162 = vmul.f32 %v3159, %v3161
    %v3163 = vmul.f32 %v3156, %v3162
    %v3164 = vsel %vm3157, %v3163, 0.0
    %v3165 = vsub.f32 1.0, %v3164
    %3166 = vst [vmem:[#allocation7] sm:$0xff] %v3165
    // Predicated region
    $region18: #{tpu_custom_call.1} parent=1 // pred_check
      _
    $region19: #{tpu_custom_call.1} parent=1 // pred_check_branch
      %3168 = sbr.rel (0) target = $region21
    $region20: #{tpu_custom_call.1} parent=1 // pred_region
      %3170 = vsyncadd [#allocation4], 0
      %s3172 = sshll.u32 [#allocation7], 4
      %s3173 = int_to_ptr.vmem [resolvable:$true] %s3172
      %s3174 = sshll.u32 %s2, 4
      %s3175 = int_to_ptr.hbm [resolvable:$true] %s3174
      %3177 = dma.vmem_to_hbm [thread:$0]  %s3173, 128, %s3175, [#allocation4]
    $region21: #{tpu_custom_call.1} parent=1 // pred_fallthru
      _
    // Predicated region
    $region22: #{tpu_custom_call.1} parent=1 // pred_check
      _
    $region23: #{tpu_custom_call.1} parent=1 // pred_check_branch
      %3179 = sbr.rel (0) target = $region25
    $region24: #{tpu_custom_call.1} parent=1 // pred_region
      %3181 = dma.done [#allocation4], 128
    $region25: #{tpu_custom_call.1} parent=1 // pred_fallthru
      _
    %3182 = vsyncpa [#allocation3], 1
    %3183 = vsyncpa [#allocation6], 1
    %3184 = vsyncpa [#allocation4], 1

</llo_original>
